<compile_context>
chip_gen: v5e
topology: v5e:2x2
jax: 0.10.0
libtpu: 0.0.40
codegen_flags: <defaults>
</compile_context>

<pallas_src>
import functools

import jax
import jax.numpy as jnp
from jax.experimental import pallas as pl
from jax.experimental.pallas import tpu as pltpu

LANE = 128
_VMEM_LIMIT_BYTES = 64 * 1024 * 1024   # fits v5e/v6e (128 MiB) and v7x (64 MiB)


def _round_up(x, m):
    return (x + m - 1) // m * m


# ---------------------------------------------------------------------------
# Kernel 1: streaming 3x3x3 "same" conv (rotating im2col cache, 3 deep matmuls)
#           + fused BN statistics, with an optional fused BN+ReLU input prologue.
# ---------------------------------------------------------------------------
def _conv_kernel(x_ref, w_ref, scale_ref, shift_ref,
                 y_ref, sum_ref, sq_ref,
                 pad_ref, col_ref, *, apply_prologue):
    """One (batch n, streaming step z) tile.  Step z ingests input depth slice z and
    emits output depth d = z - 1 (the z grid axis has extent D + 1).

    x_ref:        (1, 1, H, W, Cin)     input slice min(z, D-1), true (unpadded) Cin
    w_ref:        (3, 9*Cin_p, Cout_p)  per-kd im2col weight slabs (constant index)
    scale/shift:  (1, Cin)              BN+ReLU prologue of the input (conv2 only)
    y_ref:        (1, 1, H, W, Cout_p)  conv output for depth max(z-1, 0)
    sum_ref/sq_ref: (1, 1, Cout_p)      per-batch channel sum / sum of squares
    pad_ref:      (H+2, W+2, Cin_p)     zero-halo staging slab for the incoming slice
    col_ref:      (3, H*W, 9*Cin_p)     rotating im2col cache, slab index = slice mod 3
    """
    z = pl.program_id(1)
    D = pl.num_programs(1) - 1
    H, W, Cout_p = y_ref.shape[2], y_ref.shape[3], y_ref.shape[4]
    Cin = x_ref.shape[-1]
    Cin_p = pad_ref.shape[-1]
    HW = H * W
    cdt = pad_ref.dtype
    zmod = z % 3

    # Once per image: zero the halo border, the padded input lanes and all three cache
    # slabs.  The zero slabs supply the depth 'same' padding and also guarantee no
    # stale data leaks across the batch boundary.
    @pl.when(z == 0)
    def _():
        pad_ref[...] = jnp.zeros_like(pad_ref)
        col_ref[...] = jnp.zeros_like(col_ref)

    # Ingest input slice z exactly once: optional fused BN+ReLU prologue, then
    # assemble its 3x3 spatial im2col into cache slab z mod 3 (9 window copies).
    # TODO(synk): the kw = 0/1/2 windows are sublane-misaligned; a pltpu.roll-based
    # shift from one aligned slab would move that work onto the XLU.
    @pl.when(z < D)
    def _():
        v = x_ref[0, 0].astype(jnp.float32)                              # (H, W, Cin)
        if apply_prologue:
            v = jnp.maximum(v * scale_ref[...].reshape(1, 1, Cin)
                            + shift_ref[...].reshape(1, 1, Cin), 0.0)
        pad_ref[1:H + 1, 1:W + 1, :Cin] = v.astype(cdt)
        for kh in range(3):
            for kw in range(3):
                j = (kh * 3 + kw) * Cin_p
                col_ref[zmod, :, j:j + Cin_p] = (
                    pad_ref[kh:kh + H, kw:kw + W, :].reshape(HW, Cin_p))

    # The conceptual slice at depth D is all zeros (implicit depth padding).
    @pl.when(z == D)
    def _():
        col_ref[zmod, :, :] = jnp.zeros((HW, 9 * Cin_p), cdt)

    @pl.when(z == 1)
    def _():
        sum_ref[...] = jnp.zeros_like(sum_ref)
        sq_ref[...] = jnp.zeros_like(sq_ref)

    # Emit output depth d = z - 1: three deep-K MXU matmuls against cached slabs.
    # (slabs for out-of-range depths are zero, so no per-step masking is needed)
    @pl.when(z >= 1)
    def _():
        acc = jnp.dot(col_ref[(z + 2) % 3], w_ref[1],
                      preferred_element_type=jnp.float32)                # slice z-1, kd=1
        acc = acc + jnp.dot(col_ref[(z + 1) % 3], w_ref[0],
                            preferred_element_type=jnp.float32)          # slice z-2, kd=0
        acc = acc + jnp.dot(col_ref[zmod], w_ref[2],
                            preferred_element_type=jnp.float32)          # slice z,   kd=2
        y_ref[0, 0] = acc.reshape(H, W, Cout_p).astype(y_ref.dtype)

        # fused BatchNorm statistics (per-batch partials, combined in the wrapper).
        # TODO(synk): E[x^2] - mean^2 in f32 can cancel at very large volumes; a
        # shifted / Welford-style accumulation would be safer there.
        sum_ref[...] += jnp.sum(acc, axis=0, keepdims=True).reshape(1, 1, Cout_p)
        sq_ref[...] += jnp.sum(acc * acc, axis=0, keepdims=True).reshape(1, 1, Cout_p)


def conv3d_bn_stats(x, w_packed, in_scale, in_shift, *, apply_prologue, compute_dtype):
    """3x3x3 'same' conv (no bias) + fused per-channel sum / sum-of-squares.

    x:        (N, D, H, W, Cin)  channels-last; Cin may be < 128 (not lane-padded)
    w_packed: (3, 9*Cin_p, Cout_p)
    returns   y (N, D, H, W, Cout_p), sums (N, 1, Cout_p), sqs (N, 1, Cout_p)
    """
    N, D, H, W, Cin = x.shape
    Cin_p = w_packed.shape[1] // 9
    Cout_p = w_packed.shape[2]
    kernel = functools.partial(_conv_kernel, apply_prologue=apply_prologue)
    # NOTE: the z axis streams input slices and carries the rotating im2col cache and
    # the BN statistic accumulators, so it must stay the innermost "arbitrary" axis.
    # MXU M per matmul is H*W; keep H*W >= 256 for v6e/v7x.
    # TODO(synk): tile extra depth / H rows per step when H*W < 256, and add a second
    # parallel grid axis when N == 1 so v7x's 2nd TensorCore is used.
    return pl.pallas_call(
        kernel,
        out_shape=(jax.ShapeDtypeStruct((N, D, H, W, Cout_p), compute_dtype),
                   jax.ShapeDtypeStruct((N, 1, Cout_p), jnp.float32),
                   jax.ShapeDtypeStruct((N, 1, Cout_p), jnp.float32)),
        grid_spec=pltpu.PrefetchScalarGridSpec(
            num_scalar_prefetch=0,
            grid=(N, D + 1),
            in_specs=[
                pl.BlockSpec((1, 1, H, W, Cin),
                             lambda n, z: (n, jnp.minimum(z, D - 1), 0, 0, 0)),
                # constant block index -> fetched once, stays resident across the grid.
                # TODO(synk): at Cin_p=Cout_p=512 on v7x, avoid double-buffering this
                # slab (one-shot DMA) to reclaim VMEM headroom.
                pl.BlockSpec((3, 9 * Cin_p, Cout_p), lambda n, z: (0, 0, 0)),
                pl.BlockSpec((1, Cin), lambda n, z: (0, 0)),
                pl.BlockSpec((1, Cin), lambda n, z: (0, 0)),
            ],
            out_specs=(
                pl.BlockSpec((1, 1, H, W, Cout_p),
                             lambda n, z: (n, jnp.maximum(z - 1, 0), 0, 0, 0)),
                pl.BlockSpec((1, 1, Cout_p), lambda n, z: (n, 0, 0)),
                pl.BlockSpec((1, 1, Cout_p), lambda n, z: (n, 0, 0)),
            ),
            scratch_shapes=[
                pltpu.VMEM((H + 2, W + 2, Cin_p), compute_dtype),    # halo staging slab
                pltpu.VMEM((3, H * W, 9 * Cin_p), compute_dtype),    # rotating im2col cache
            ]),
        compiler_params=pltpu.CompilerParams(
            dimension_semantics=("parallel", "arbitrary"),
            vmem_limit_bytes=_VMEM_LIMIT_BYTES),
    )(x, w_packed, in_scale, in_shift)


# ---------------------------------------------------------------------------
# Kernel 2: fused BatchNorm(affine) + ReLU, depth-tiled, lane-dense
# ---------------------------------------------------------------------------
def _bn_relu_kernel(y_ref, scale_ref, shift_ref, o_ref):
    C = y_ref.shape[-1]
    y = y_ref[...].astype(jnp.float32)
    s = scale_ref[...].reshape(1, 1, 1, 1, C)
    t = shift_ref[...].reshape(1, 1, 1, 1, C)
    o_ref[...] = jnp.maximum(y * s + t, 0.0).astype(o_ref.dtype)


def bn_relu(y, scale, shift, out_dtype=jnp.float32):
    N, D, H, W, Cp = y.shape
    # Purely HBM-bound: pick the largest depth tile with (in + out) <= ~16 MiB so the
    # ~0.35us/step grid overhead is amortized.
    # TODO(synk): cap at ~4-8 MiB on v7x (64 MiB VMEM).
    per_d = H * W * Cp * (jnp.dtype(y.dtype).itemsize + jnp.dtype(out_dtype).itemsize)
    td = max(1, min(D, (16 * 1024 * 1024) // max(1, per_d)))
    while D % td:
        td -= 1
    return pl.pallas_call(
        _bn_relu_kernel,
        out_shape=jax.ShapeDtypeStruct((N, D, H, W, Cp), out_dtype),
        grid_spec=pltpu.PrefetchScalarGridSpec(
            num_scalar_prefetch=0,
            grid=(N, D // td),
            in_specs=[
                pl.BlockSpec((1, td, H, W, Cp), lambda n, i: (n, i, 0, 0, 0)),
                pl.BlockSpec((1, Cp), lambda n, i: (0, 0)),
                pl.BlockSpec((1, Cp), lambda n, i: (0, 0)),
            ],
            out_specs=pl.BlockSpec((1, td, H, W, Cp), lambda n, i: (n, i, 0, 0, 0)),
        ),
        compiler_params=pltpu.CompilerParams(
            dimension_semantics=("parallel", "parallel"),
            vmem_limit_bytes=_VMEM_LIMIT_BYTES),
    )(y, scale, shift)


# ---------------------------------------------------------------------------
# Wrapper glue
# ---------------------------------------------------------------------------
def _pack_weight(w_oikkk, cin_p, cout_p, dtype):
    """PyTorch (Cout, Cin, 3, 3, 3) -> (3, 9*Cin_p, Cout_p) im2col weight slabs."""
    cout, cin = w_oikkk.shape[0], w_oikkk.shape[1]
    w = jnp.transpose(w_oikkk, (2, 3, 4, 1, 0))                    # (kd, kh, kw, I, O)
    w = jnp.pad(w, ((0, 0), (0, 0), (0, 0), (0, cin_p - cin), (0, cout_p - cout)))
    return w.reshape(3, 9 * cin_p, cout_p).astype(dtype)


def _bn_affine(sums, sqs, gamma, beta, cout, cout_p, count, eps):
    """Fold batch statistics + (gamma, beta) into per-channel scale/shift (f32)."""
    s = jnp.sum(sums, axis=(0, 1))                                 # (Cout_p,)
    q = jnp.sum(sqs, axis=(0, 1))
    mean = s / count
    var = jnp.maximum(q / count - mean * mean, 0.0)                # biased variance
    g = jnp.pad(gamma.astype(jnp.float32), (0, cout_p - cout))
    b = jnp.pad(beta.astype(jnp.float32), (0, cout_p - cout))
    inv = g / jnp.sqrt(var + eps)                                  # 0 on padded channels
    return inv.reshape(1, cout_p), (b - mean * inv).reshape(1, cout_p)


def double_conv_ndhwc(x_ndhwc, params, eps=1e-5, compute_dtype=jnp.bfloat16):
    """DoubleConv on channels-last input: (N, D, H, W, Cin) -> (N, D, H, W, Cout) f32.

    Preferred entry point: no layout transposes and no channel padding of the input
    in HBM.
    """
    N, D, H, W, Cin = x_ndhwc.shape
    Cout = params["w1"].shape[0]
    cin_p, cout_p = _round_up(Cin, LANE), _round_up(Cout, LANE)
    count = N * D * H * W

    x = x_ndhwc.astype(compute_dtype)
    # TODO(synk): small-Cin fast path (pack conv1's K as 27*Cin rounded to 128 instead
    # of 9*cin_p) would cut conv1's MXU passes ~9x when Cin << 128.
    w1 = _pack_weight(params["w1"], cin_p, cout_p, compute_dtype)
    w2 = _pack_weight(params["w2"], cout_p, cout_p, compute_dtype)
    # Conv biases are dropped: training-mode BN mean subtraction absorbs them exactly.

    dummy_s = jnp.ones((1, Cin), jnp.float32)
    dummy_t = jnp.zeros((1, Cin), jnp.float32)

    # conv1 (+ fused BN1 statistics)
    y1, s1, q1 = conv3d_bn_stats(x, w1, dummy_s, dummy_t,
                                 apply_prologue=False, compute_dtype=compute_dtype)
    scale1, shift1 = _bn_affine(s1, q1, params["g1"], params["be1"],
                                Cout, cout_p, count, eps)

    # conv2 with BN1+ReLU fused into its load prologue (+ fused BN2 statistics)
    y2, s2, q2 = conv3d_bn_stats(y1, w2, scale1, shift1,
                                 apply_prologue=True, compute_dtype=compute_dtype)
    scale2, shift2 = _bn_affine(s2, q2, params["g2"], params["be2"],
                                Cout, cout_p, count, eps)

    # final BN2 + ReLU (lane-dense, depth-tiled elementwise kernel)
    out = bn_relu(y2, scale2, shift2, out_dtype=jnp.float32)       # (N, D, H, W, cout_p)

    # TODO(synk): BatchNorm running_mean/running_var buffer updates are a training-time
    # side effect and are not modeled (they do not affect this forward output).
    # The unpad slice is a no-op whenever Cout is a multiple of 128.
    return out if Cout == cout_p else out[..., :Cout]


def double_conv(x_ncdhw, params, eps=1e-5, compute_dtype=jnp.bfloat16):
    """PyTorch-layout wrapper: (N, Cin, D, H, W) -> (N, Cout, D, H, W) float32.

    The two transposes here are a layout-compat shim only; keep the surrounding model
    channels-last and call double_conv_ndhwc directly to avoid them.
    """
    x = jnp.transpose(x_ncdhw, (0, 2, 3, 4, 1))
    out = double_conv_ndhwc(x, params, eps=eps, compute_dtype=compute_dtype)
    return jnp.transpose(out, (0, 4, 1, 2, 3))


# ---------------------------------------------------------------------------
# Pure-JAX references
# ---------------------------------------------------------------------------
def ref_double_conv(x, params, eps=1e-5):
    """f32 reference matching PyTorch training-mode forward()."""
    def conv(xx, w, b):
        y = jax.lax.conv_general_dilated(
            xx, w, window_strides=(1, 1, 1), padding=[(1, 1)] * 3,
            dimension_numbers=("NCDHW", "OIDHW", "NCDHW"))
        return y + b[None, :, None, None, None]

    def bnr(y, g, bt):
        m = jnp.mean(y, axis=(0, 2, 3, 4), keepdims=True)
        v = jnp.var(y, axis=(0, 2, 3, 4), keepdims=True)
        yn = (y - m) / jnp.sqrt(v + eps)
        return jnp.maximum(yn * g[None, :, None, None, None]
                           + bt[None, :, None, None, None], 0.0)

    y = bnr(conv(x, params["w1"], params["b1"]), params["g1"], params["be1"])
    return bnr(conv(y, params["w2"], params["b2"]), params["g2"], params["be2"])


def ref_double_conv_mixed(x, params, eps=1e-5, store=jnp.bfloat16):
    """Mirrors the kernel's precision policy: bf16 conv operands / bf16 activation
    storage, f32 accumulation & statistics, bias absorbed by training-mode BN."""
    def conv(xx, w):
        return jax.lax.conv_general_dilated(
            xx.astype(store), w.astype(store), window_strides=(1, 1, 1),
            padding=[(1, 1)] * 3, dimension_numbers=("NCDHW", "OIDHW", "NCDHW"),
            preferred_element_type=jnp.float32)

    def bnr(y_f32, g, bt):
        m = jnp.mean(y_f32, axis=(0, 2, 3, 4), keepdims=True)
        v = jnp.mean(y_f32 * y_f32, axis=(0, 2, 3, 4), keepdims=True) - m * m
        inv = g[None, :, None, None, None] / jnp.sqrt(v + eps)
        ys = y_f32.astype(store).astype(jnp.float32)
        return jnp.maximum(ys * inv + (bt[None, :, None, None, None] - m * inv), 0.0)

    a1 = bnr(conv(x, params["w1"]), params["g1"], params["be1"])
    return bnr(conv(a1, params["w2"]), params["g2"], params["be2"])


if __name__ == "__main__":
    key = jax.random.PRNGKey(0)
    N, Cin, Cout, D, H, W = 2, 4, 8, 8, 16, 16
    ks = jax.random.split(key, 9)

    x = jax.random.normal(ks[0], (N, Cin, D, H, W), jnp.float32)
    params = {
        "w1": 0.1 * jax.random.normal(ks[1], (Cout, Cin, 3, 3, 3), jnp.float32),
        "b1": 0.1 * jax.random.normal(ks[2], (Cout,), jnp.float32),
        "g1": 1.0 + 0.1 * jax.random.normal(ks[3], (Cout,), jnp.float32),
        "be1": 0.1 * jax.random.normal(ks[4], (Cout,), jnp.float32),
        "w2": 0.1 * jax.random.normal(ks[5], (Cout, Cout, 3, 3, 3), jnp.float32),
        "b2": 0.1 * jax.random.normal(ks[6], (Cout,), jnp.float32),
        "g2": 1.0 + 0.1 * jax.random.normal(ks[7], (Cout,), jnp.float32),
        "be2": 0.1 * jax.random.normal(ks[8], (Cout,), jnp.float32),
    }

    ref = ref_double_conv(x, params)

    # 1) exactness: the f32 compute path must match the PyTorch-semantics reference.
    out_f32 = jax.block_until_ready(double_conv(x, params, compute_dtype=jnp.float32))
    assert out_f32.shape == (N, Cout, D, H, W)
    err_f32 = float(jnp.max(jnp.abs(out_f32 - ref)))
    if not err_f32 < 1e-3:
        raise AssertionError(f"f32 path mismatch vs reference: max abs err = {err_f32}")

    # 2) fast path: bf16 operands / activation storage with f32 accumulation.
    out_bf16 = jax.block_until_ready(double_conv(x, params))
    err_mixed = float(jnp.max(jnp.abs(out_bf16 - ref_double_conv_mixed(x, params))))
    if not err_mixed < 2e-2:
        raise AssertionError(
            f"bf16 path mismatch vs mixed-precision reference: max abs err = {err_mixed}")
    err_vs_ref = float(jnp.max(jnp.abs(out_bf16 - ref)))
    if not err_vs_ref < 2.5e-1:   # bf16 storage of intermediates bounds this loosely
        raise AssertionError(
            f"bf16 path drifted too far from f32 reference: max abs err = {err_vs_ref}")

    print("KERNEL_OK")
</pallas_src>

<mosaic_0001>
module attributes {stable_mosaic.version = 11 : i64} {
  func.func @_conv_kernel(%arg0: i32, %arg1: i32, %arg2: memref<1x1x16x16x4xf32, #tpu.memory_space<vmem>>, %arg3: memref<3x1152x128xf32, #tpu.memory_space<vmem>>, %arg4: memref<1x4xf32, #tpu.memory_space<vmem>>, %arg5: memref<1x4xf32, #tpu.memory_space<vmem>>, %arg6: memref<1x1x16x16x128xf32, #tpu.memory_space<vmem>>, %arg7: memref<1x1x128xf32, #tpu.memory_space<vmem>>, %arg8: memref<1x1x128xf32, #tpu.memory_space<vmem>>, %arg9: memref<18x18x128xf32, #tpu.memory_space<vmem>>, %arg10: memref<3x256x1152xf32, #tpu.memory_space<vmem>>) attributes {dimension_semantics = [#tpu.dimension_semantics<parallel>, #tpu.dimension_semantics<arbitrary>], iteration_bounds = array<i64: 2, 9>, scalar_prefetch = 0 : i64, scratch_operands = 2 : i64, tpu.core_type = #tpu.core_type<tc>, window_params = [{transform_indices = @transform_0, window_bounds = array<i64: 1, 1, 16, 16, 4>}, {pipeline_mode = #tpu.pipeline_mode<synchronous>, transform_indices = @transform_1, window_bounds = array<i64: 3, 1152, 128>}, {pipeline_mode = #tpu.pipeline_mode<synchronous>, transform_indices = @transform_2, window_bounds = array<i64: 1, 4>}, {pipeline_mode = #tpu.pipeline_mode<synchronous>, transform_indices = @transform_3, window_bounds = array<i64: 1, 4>}, {transform_indices = @transform_4, window_bounds = array<i64: 1, 1, 16, 16, 128>}, {transform_indices = @transform_5, window_bounds = array<i64: 1, 1, 128>}, {transform_indices = @transform_6, window_bounds = array<i64: 1, 1, 128>}]} {
    %c3_i32 = arith.constant 3 : i32
    %c0_i32 = arith.constant 0 : i32
    %0 = arith.cmpi eq, %c3_i32, %c0_i32 : i32
    %c1_i32 = arith.constant 1 : i32
    %1 = arith.select %0, %c1_i32, %c3_i32 : i32
    %2 = arith.remsi %arg1, %1 : i32
    %c0_i32_0 = arith.constant 0 : i32
    %3 = arith.cmpi ne, %2, %c0_i32_0 : i32
    %c0_i32_1 = arith.constant 0 : i32
    %4 = arith.cmpi slt, %2, %c0_i32_1 : i32
    %c0_i32_2 = arith.constant 0 : i32
    %5 = arith.cmpi slt, %1, %c0_i32_2 : i32
    %6 = arith.xori %4, %5 : i1
    %7 = arith.andi %6, %3 : i1
    %8 = arith.addi %2, %1 : i32
    %9 = arith.select %7, %8, %2 : i32
    %c0_i32_3 = arith.constant 0 : i32
    %10 = arith.cmpi eq, %arg1, %c0_i32_3 : i32
    %11 = arith.extui %10 : i1 to i32
    %c0_i32_4 = arith.constant 0 : i32
    %12 = arith.cmpi ne, %11, %c0_i32_4 : i32
    scf.if %12 {
      %cst = arith.constant 0.000000e+00 : f32
      %25 = vector.broadcast %cst : f32 to vector<18x18x128xf32>
      %c0 = arith.constant 0 : index
      %c0_12 = arith.constant 0 : index
      %c0_13 = arith.constant 0 : index
      %26 = vector.load %arg9[%c0, %c0_12, %c0_13] : memref<18x18x128xf32, #tpu.memory_space<vmem>>, vector<18x18x128xf32>
      tpu.vector_store %arg9[%c0, %c0_12, %c0_13], %25 {strides = array<i32>} : memref<18x18x128xf32, #tpu.memory_space<vmem>>, vector<18x18x128xf32>,
      %cst_14 = arith.constant 0.000000e+00 : f32
      %27 = vector.broadcast %cst_14 : f32 to vector<3x256x1152xf32>
      %c0_15 = arith.constant 0 : index
      %c0_16 = arith.constant 0 : index
      %c0_17 = arith.constant 0 : index
      %28 = vector.load %arg10[%c0_15, %c0_16, %c0_17] : memref<3x256x1152xf32, #tpu.memory_space<vmem>>, vector<3x256x1152xf32>
      tpu.vector_store %arg10[%c0_15, %c0_16, %c0_17], %27 {strides = array<i32>} : memref<3x256x1152xf32, #tpu.memory_space<vmem>>, vector<3x256x1152xf32>,
    } else {
    }
    %c8_i32 = arith.constant 8 : i32
    %13 = arith.cmpi slt, %arg1, %c8_i32 : i32
    %14 = arith.extui %13 : i1 to i32
    %c0_i32_5 = arith.constant 0 : i32
    %15 = arith.cmpi ne, %14, %c0_i32_5 : i32
    scf.if %15 {
      %c0 = arith.constant 0 : index
      %c0_12 = arith.constant 0 : index
      %c0_13 = arith.constant 0 : index
      %c0_14 = arith.constant 0 : index
      %c0_15 = arith.constant 0 : index
      %25 = vector.load %arg2[%c0, %c0_12, %c0_13, %c0_14, %c0_15] : memref<1x1x16x16x4xf32, #tpu.memory_space<vmem>>, vector<1x1x16x16x4xf32>
      %26 = vector.shape_cast %25 : vector<1x1x16x16x4xf32> to vector<16x16x4xf32>
      %c1 = arith.constant 1 : index
      %c1_16 = arith.constant 1 : index
      %c0_17 = arith.constant 0 : index
      %27 = vector.load %arg9[%c1, %c1_16, %c0_17] : memref<18x18x128xf32, #tpu.memory_space<vmem>>, vector<16x16x4xf32>
      tpu.vector_store %arg9[%c1, %c1_16, %c0_17], %26 {strides = array<i32>} : memref<18x18x128xf32, #tpu.memory_space<vmem>>, vector<16x16x4xf32>,
      %c0_18 = arith.constant 0 : index
      %c0_19 = arith.constant 0 : index
      %c0_20 = arith.constant 0 : index
      %28 = vector.load %arg9[%c0_18, %c0_19, %c0_20] : memref<18x18x128xf32, #tpu.memory_space<vmem>>, vector<16x16x128xf32>
      %29 = vector.shape_cast %28 : vector<16x16x128xf32> to vector<256x128xf32>
      %30 = arith.index_cast %9 : i32 to index
      %c0_21 = arith.constant 0 : index
      %c0_22 = arith.constant 0 : index
      %31 = vector.load %arg10[%30, %c0_21, %c0_22] : memref<3x256x1152xf32, #tpu.memory_space<vmem>>, vector<1x256x128xf32>
      %32 = vector.shape_cast %31 : vector<1x256x128xf32> to vector<256x128xf32>
      %33 = vector.shape_cast %29 : vector<256x128xf32> to vector<1x256x128xf32>
      tpu.vector_store %arg10[%30, %c0_21, %c0_22], %33 {strides = array<i32>} : memref<3x256x1152xf32, #tpu.memory_space<vmem>>, vector<1x256x128xf32>,
      %c0_23 = arith.constant 0 : index
      %c1_24 = arith.constant 1 : index
      %c0_25 = arith.constant 0 : index
      %34 = vector.load %arg9[%c0_23, %c1_24, %c0_25] : memref<18x18x128xf32, #tpu.memory_space<vmem>>, vector<16x16x128xf32>
      %35 = vector.shape_cast %34 : vector<16x16x128xf32> to vector<256x128xf32>
      %36 = arith.index_cast %9 : i32 to index
      %c0_26 = arith.constant 0 : index
      %c128 = arith.constant 128 : index
      %37 = vector.load %arg10[%36, %c0_26, %c128] : memref<3x256x1152xf32, #tpu.memory_space<vmem>>, vector<1x256x128xf32>
      %38 = vector.shape_cast %37 : vector<1x256x128xf32> to vector<256x128xf32>
      %39 = vector.shape_cast %35 : vector<256x128xf32> to vector<1x256x128xf32>
      tpu.vector_store %arg10[%36, %c0_26, %c128], %39 {strides = array<i32>} : memref<3x256x1152xf32, #tpu.memory_space<vmem>>, vector<1x256x128xf32>,
      %c0_27 = arith.constant 0 : index
      %c2 = arith.constant 2 : index
      %c0_28 = arith.constant 0 : index
      %40 = vector.load %arg9[%c0_27, %c2, %c0_28] : memref<18x18x128xf32, #tpu.memory_space<vmem>>, vector<16x16x128xf32>
      %41 = vector.shape_cast %40 : vector<16x16x128xf32> to vector<256x128xf32>
      %42 = arith.index_cast %9 : i32 to index
      %c0_29 = arith.constant 0 : index
      %c256 = arith.constant 256 : index
      %43 = vector.load %arg10[%42, %c0_29, %c256] : memref<3x256x1152xf32, #tpu.memory_space<vmem>>, vector<1x256x128xf32>
      %44 = vector.shape_cast %43 : vector<1x256x128xf32> to vector<256x128xf32>
      %45 = vector.shape_cast %41 : vector<256x128xf32> to vector<1x256x128xf32>
      tpu.vector_store %arg10[%42, %c0_29, %c256], %45 {strides = array<i32>} : memref<3x256x1152xf32, #tpu.memory_space<vmem>>, vector<1x256x128xf32>,
      %c1_30 = arith.constant 1 : index
      %c0_31 = arith.constant 0 : index
      %c0_32 = arith.constant 0 : index
      %46 = vector.load %arg9[%c1_30, %c0_31, %c0_32] : memref<18x18x128xf32, #tpu.memory_space<vmem>>, vector<16x16x128xf32>
      %47 = vector.shape_cast %46 : vector<16x16x128xf32> to vector<256x128xf32>
      %48 = arith.index_cast %9 : i32 to index
      %c0_33 = arith.constant 0 : index
      %c384 = arith.constant 384 : index
      %49 = vector.load %arg10[%48, %c0_33, %c384] : memref<3x256x1152xf32, #tpu.memory_space<vmem>>, vector<1x256x128xf32>
      %50 = vector.shape_cast %49 : vector<1x256x128xf32> to vector<256x128xf32>
      %51 = vector.shape_cast %47 : vector<256x128xf32> to vector<1x256x128xf32>
      tpu.vector_store %arg10[%48, %c0_33, %c384], %51 {strides = array<i32>} : memref<3x256x1152xf32, #tpu.memory_space<vmem>>, vector<1x256x128xf32>,
      %c1_34 = arith.constant 1 : index
      %c1_35 = arith.constant 1 : index
      %c0_36 = arith.constant 0 : index
      %52 = vector.load %arg9[%c1_34, %c1_35, %c0_36] : memref<18x18x128xf32, #tpu.memory_space<vmem>>, vector<16x16x128xf32>
      %53 = vector.shape_cast %52 : vector<16x16x128xf32> to vector<256x128xf32>
      %54 = arith.index_cast %9 : i32 to index
      %c0_37 = arith.constant 0 : index
      %c512 = arith.constant 512 : index
      %55 = vector.load %arg10[%54, %c0_37, %c512] : memref<3x256x1152xf32, #tpu.memory_space<vmem>>, vector<1x256x128xf32>
      %56 = vector.shape_cast %55 : vector<1x256x128xf32> to vector<256x128xf32>
      %57 = vector.shape_cast %53 : vector<256x128xf32> to vector<1x256x128xf32>
      tpu.vector_store %arg10[%54, %c0_37, %c512], %57 {strides = array<i32>} : memref<3x256x1152xf32, #tpu.memory_space<vmem>>, vector<1x256x128xf32>,
      %c1_38 = arith.constant 1 : index
      %c2_39 = arith.constant 2 : index
      %c0_40 = arith.constant 0 : index
      %58 = vector.load %arg9[%c1_38, %c2_39, %c0_40] : memref<18x18x128xf32, #tpu.memory_space<vmem>>, vector<16x16x128xf32>
      %59 = vector.shape_cast %58 : vector<16x16x128xf32> to vector<256x128xf32>
      %60 = arith.index_cast %9 : i32 to index
      %c0_41 = arith.constant 0 : index
      %c640 = arith.constant 640 : index
      %61 = vector.load %arg10[%60, %c0_41, %c640] : memref<3x256x1152xf32, #tpu.memory_space<vmem>>, vector<1x256x128xf32>
      %62 = vector.shape_cast %61 : vector<1x256x128xf32> to vector<256x128xf32>
      %63 = vector.shape_cast %59 : vector<256x128xf32> to vector<1x256x128xf32>
      tpu.vector_store %arg10[%60, %c0_41, %c640], %63 {strides = array<i32>} : memref<3x256x1152xf32, #tpu.memory_space<vmem>>, vector<1x256x128xf32>,
      %c2_42 = arith.constant 2 : index
      %c0_43 = arith.constant 0 : index
      %c0_44 = arith.constant 0 : index
      %64 = vector.load %arg9[%c2_42, %c0_43, %c0_44] : memref<18x18x128xf32, #tpu.memory_space<vmem>>, vector<16x16x128xf32>
      %65 = vector.shape_cast %64 : vector<16x16x128xf32> to vector<256x128xf32>
      %66 = arith.index_cast %9 : i32 to index
      %c0_45 = arith.constant 0 : index
      %c768 = arith.constant 768 : index
      %67 = vector.load %arg10[%66, %c0_45, %c768] : memref<3x256x1152xf32, #tpu.memory_space<vmem>>, vector<1x256x128xf32>
      %68 = vector.shape_cast %67 : vector<1x256x128xf32> to vector<256x128xf32>
      %69 = vector.shape_cast %65 : vector<256x128xf32> to vector<1x256x128xf32>
      tpu.vector_store %arg10[%66, %c0_45, %c768], %69 {strides = array<i32>} : memref<3x256x1152xf32, #tpu.memory_space<vmem>>, vector<1x256x128xf32>,
      %c2_46 = arith.constant 2 : index
      %c1_47 = arith.constant 1 : index
      %c0_48 = arith.constant 0 : index
      %70 = vector.load %arg9[%c2_46, %c1_47, %c0_48] : memref<18x18x128xf32, #tpu.memory_space<vmem>>, vector<16x16x128xf32>
      %71 = vector.shape_cast %70 : vector<16x16x128xf32> to vector<256x128xf32>
      %72 = arith.index_cast %9 : i32 to index
      %c0_49 = arith.constant 0 : index
      %c896 = arith.constant 896 : index
      %73 = vector.load %arg10[%72, %c0_49, %c896] : memref<3x256x1152xf32, #tpu.memory_space<vmem>>, vector<1x256x128xf32>
      %74 = vector.shape_cast %73 : vector<1x256x128xf32> to vector<256x128xf32>
      %75 = vector.shape_cast %71 : vector<256x128xf32> to vector<1x256x128xf32>
      tpu.vector_store %arg10[%72, %c0_49, %c896], %75 {strides = array<i32>} : memref<3x256x1152xf32, #tpu.memory_space<vmem>>, vector<1x256x128xf32>,
      %c2_50 = arith.constant 2 : index
      %c2_51 = arith.constant 2 : index
      %c0_52 = arith.constant 0 : index
      %76 = vector.load %arg9[%c2_50, %c2_51, %c0_52] : memref<18x18x128xf32, #tpu.memory_space<vmem>>, vector<16x16x128xf32>
      %77 = vector.shape_cast %76 : vector<16x16x128xf32> to vector<256x128xf32>
      %78 = arith.index_cast %9 : i32 to index
      %c0_53 = arith.constant 0 : index
      %c1024 = arith.constant 1024 : index
      %79 = vector.load %arg10[%78, %c0_53, %c1024] : memref<3x256x1152xf32, #tpu.memory_space<vmem>>, vector<1x256x128xf32>
      %80 = vector.shape_cast %79 : vector<1x256x128xf32> to vector<256x128xf32>
      %81 = vector.shape_cast %77 : vector<256x128xf32> to vector<1x256x128xf32>
      tpu.vector_store %arg10[%78, %c0_53, %c1024], %81 {strides = array<i32>} : memref<3x256x1152xf32, #tpu.memory_space<vmem>>, vector<1x256x128xf32>,
    } else {
    }
    %c8_i32_6 = arith.constant 8 : i32
    %16 = arith.cmpi eq, %arg1, %c8_i32_6 : i32
    %17 = arith.extui %16 : i1 to i32
    %c0_i32_7 = arith.constant 0 : i32
    %18 = arith.cmpi ne, %17, %c0_i32_7 : i32
    scf.if %18 {
      %cst = arith.constant 0.000000e+00 : f32
      %25 = vector.broadcast %cst : f32 to vector<256x1152xf32>
      %26 = arith.index_cast %9 : i32 to index
      %c0 = arith.constant 0 : index
      %c0_12 = arith.constant 0 : index
      %27 = vector.load %arg10[%26, %c0, %c0_12] : memref<3x256x1152xf32, #tpu.memory_space<vmem>>, vector<1x256x1152xf32>
      %28 = vector.shape_cast %27 : vector<1x256x1152xf32> to vector<256x1152xf32>
      %29 = vector.shape_cast %25 : vector<256x1152xf32> to vector<1x256x1152xf32>
      tpu.vector_store %arg10[%26, %c0, %c0_12], %29 {strides = array<i32>} : memref<3x256x1152xf32, #tpu.memory_space<vmem>>, vector<1x256x1152xf32>,
    } else {
    }
    %c1_i32_8 = arith.constant 1 : i32
    %19 = arith.cmpi eq, %arg1, %c1_i32_8 : i32
    %20 = arith.extui %19 : i1 to i32
    %c0_i32_9 = arith.constant 0 : i32
    %21 = arith.cmpi ne, %20, %c0_i32_9 : i32
    scf.if %21 {
      %cst = arith.constant 0.000000e+00 : f32
      %25 = vector.broadcast %cst : f32 to vector<1x1x128xf32>
      %c0 = arith.constant 0 : index
      %c0_12 = arith.constant 0 : index
      %c0_13 = arith.constant 0 : index
      %26 = vector.load %arg7[%c0, %c0_12, %c0_13] : memref<1x1x128xf32, #tpu.memory_space<vmem>>, vector<1x1x128xf32>
      tpu.vector_store %arg7[%c0, %c0_12, %c0_13], %25 {strides = array<i32>} : memref<1x1x128xf32, #tpu.memory_space<vmem>>, vector<1x1x128xf32>,
      %cst_14 = arith.constant 0.000000e+00 : f32
      %27 = vector.broadcast %cst_14 : f32 to vector<1x1x128xf32>
      %c0_15 = arith.constant 0 : index
      %c0_16 = arith.constant 0 : index
      %c0_17 = arith.constant 0 : index
      %28 = vector.load %arg8[%c0_15, %c0_16, %c0_17] : memref<1x1x128xf32, #tpu.memory_space<vmem>>, vector<1x1x128xf32>
      tpu.vector_store %arg8[%c0_15, %c0_16, %c0_17], %27 {strides = array<i32>} : memref<1x1x128xf32, #tpu.memory_space<vmem>>, vector<1x1x128xf32>,
    } else {
    }
    %c1_i32_10 = arith.constant 1 : i32
    %22 = arith.cmpi sge, %arg1, %c1_i32_10 : i32
    %23 = arith.extui %22 : i1 to i32
    %c0_i32_11 = arith.constant 0 : i32
    %24 = arith.cmpi ne, %23, %c0_i32_11 : i32
    scf.if %24 {
      %c2_i32 = arith.constant 2 : i32
      %25 = arith.addi %arg1, %c2_i32 : i32
      %c3_i32_12 = arith.constant 3 : i32
      %c0_i32_13 = arith.constant 0 : i32
      %26 = arith.cmpi eq, %c3_i32_12, %c0_i32_13 : i32
      %c1_i32_14 = arith.constant 1 : i32
      %27 = arith.select %26, %c1_i32_14, %c3_i32_12 : i32
      %28 = arith.remsi %25, %27 : i32
      %c0_i32_15 = arith.constant 0 : i32
      %29 = arith.cmpi ne, %28, %c0_i32_15 : i32
      %c0_i32_16 = arith.constant 0 : i32
      %30 = arith.cmpi slt, %28, %c0_i32_16 : i32
      %c0_i32_17 = arith.constant 0 : i32
      %31 = arith.cmpi slt, %27, %c0_i32_17 : i32
      %32 = arith.xori %30, %31 : i1
      %33 = arith.andi %32, %29 : i1
      %34 = arith.addi %28, %27 : i32
      %35 = arith.select %33, %34, %28 : i32
      %36 = arith.index_cast %35 : i32 to index
      %c0 = arith.constant 0 : index
      %c0_18 = arith.constant 0 : index
      %37 = vector.load %arg10[%36, %c0, %c0_18] : memref<3x256x1152xf32, #tpu.memory_space<vmem>>, vector<1x256x1152xf32>
      %38 = vector.shape_cast %37 : vector<1x256x1152xf32> to vector<256x1152xf32>
      %c1 = arith.constant 1 : index
      %c0_19 = arith.constant 0 : index
      %c0_20 = arith.constant 0 : index
      %39 = vector.load %arg3[%c1, %c0_19, %c0_20] : memref<3x1152x128xf32, #tpu.memory_space<vmem>>, vector<1x1152x128xf32>
      %40 = vector.shape_cast %39 : vector<1x1152x128xf32> to vector<1152x128xf32>
      %cst = arith.constant dense<0.000000e+00> : vector<256x128xf32>
      %41 = tpu.matmul %38, %40, %cst {dimension_numbers = #tpu.dot_dimension_numbers<[1], [0], [0], [1], [0, 0, 1, 1], [], []>} : vector<256x1152xf32>, vector<1152x128xf32>, vector<256x128xf32> -> vector<256x128xf32>
      %c1_i32_21 = arith.constant 1 : i32
      %42 = arith.addi %arg1, %c1_i32_21 : i32
      %c3_i32_22 = arith.constant 3 : i32
      %c0_i32_23 = arith.constant 0 : i32
      %43 = arith.cmpi eq, %c3_i32_22, %c0_i32_23 : i32
      %c1_i32_24 = arith.constant 1 : i32
      %44 = arith.select %43, %c1_i32_24, %c3_i32_22 : i32
      %45 = arith.remsi %42, %44 : i32
      %c0_i32_25 = arith.constant 0 : i32
      %46 = arith.cmpi ne, %45, %c0_i32_25 : i32
      %c0_i32_26 = arith.constant 0 : i32
      %47 = arith.cmpi slt, %45, %c0_i32_26 : i32
      %c0_i32_27 = arith.constant 0 : i32
      %48 = arith.cmpi slt, %44, %c0_i32_27 : i32
      %49 = arith.xori %47, %48 : i1
      %50 = arith.andi %49, %46 : i1
      %51 = arith.addi %45, %44 : i32
      %52 = arith.select %50, %51, %45 : i32
      %53 = arith.index_cast %52 : i32 to index
      %c0_28 = arith.constant 0 : index
      %c0_29 = arith.constant 0 : index
      %54 = vector.load %arg10[%53, %c0_28, %c0_29] : memref<3x256x1152xf32, #tpu.memory_space<vmem>>, vector<1x256x1152xf32>
      %55 = vector.shape_cast %54 : vector<1x256x1152xf32> to vector<256x1152xf32>
      %c0_30 = arith.constant 0 : index
      %c0_31 = arith.constant 0 : index
      %c0_32 = arith.constant 0 : index
      %56 = vector.load %arg3[%c0_30, %c0_31, %c0_32] : memref<3x1152x128xf32, #tpu.memory_space<vmem>>, vector<1x1152x128xf32>
      %57 = vector.shape_cast %56 : vector<1x1152x128xf32> to vector<1152x128xf32>
      %cst_33 = arith.constant dense<0.000000e+00> : vector<256x128xf32>
      %58 = tpu.matmul %55, %57, %cst_33 {dimension_numbers = #tpu.dot_dimension_numbers<[1], [0], [0], [1], [0, 0, 1, 1], [], []>} : vector<256x1152xf32>, vector<1152x128xf32>, vector<256x128xf32> -> vector<256x128xf32>
      %59 = arith.addf %41, %58 : vector<256x128xf32>
      %60 = arith.index_cast %9 : i32 to index
      %c0_34 = arith.constant 0 : index
      %c0_35 = arith.constant 0 : index
      %61 = vector.load %arg10[%60, %c0_34, %c0_35] : memref<3x256x1152xf32, #tpu.memory_space<vmem>>, vector<1x256x1152xf32>
      %62 = vector.shape_cast %61 : vector<1x256x1152xf32> to vector<256x1152xf32>
      %c2 = arith.constant 2 : index
      %c0_36 = arith.constant 0 : index
      %c0_37 = arith.constant 0 : index
      %63 = vector.load %arg3[%c2, %c0_36, %c0_37] : memref<3x1152x128xf32, #tpu.memory_space<vmem>>, vector<1x1152x128xf32>
      %64 = vector.shape_cast %63 : vector<1x1152x128xf32> to vector<1152x128xf32>
      %cst_38 = arith.constant dense<0.000000e+00> : vector<256x128xf32>
      %65 = tpu.matmul %62, %64, %cst_38 {dimension_numbers = #tpu.dot_dimension_numbers<[1], [0], [0], [1], [0, 0, 1, 1], [], []>} : vector<256x1152xf32>, vector<1152x128xf32>, vector<256x128xf32> -> vector<256x128xf32>
      %66 = arith.addf %59, %65 : vector<256x128xf32>
      %67 = vector.shape_cast %66 : vector<256x128xf32> to vector<16x16x128xf32>
      %c0_39 = arith.constant 0 : index
      %c0_40 = arith.constant 0 : index
      %c0_41 = arith.constant 0 : index
      %c0_42 = arith.constant 0 : index
      %c0_43 = arith.constant 0 : index
      %68 = vector.load %arg6[%c0_39, %c0_40, %c0_41, %c0_42, %c0_43] : memref<1x1x16x16x128xf32, #tpu.memory_space<vmem>>, vector<1x1x16x16x128xf32>
      %69 = vector.shape_cast %68 : vector<1x1x16x16x128xf32> to vector<16x16x128xf32>
      %70 = vector.shape_cast %67 : vector<16x16x128xf32> to vector<1x1x16x16x128xf32>
      tpu.vector_store %arg6[%c0_39, %c0_40, %c0_41, %c0_42, %c0_43], %70 {strides = array<i32>} : memref<1x1x16x16x128xf32, #tpu.memory_space<vmem>>, vector<1x1x16x16x128xf32>,
      %c0_44 = arith.constant 0 : index
      %c0_45 = arith.constant 0 : index
      %c0_46 = arith.constant 0 : index
      %71 = vector.load %arg7[%c0_44, %c0_45, %c0_46] : memref<1x1x128xf32, #tpu.memory_space<vmem>>, vector<1x1x128xf32>
      %cst_47 = arith.constant dense<0.000000e+00> : vector<128xf32>
      %72 = vector.multi_reduction <add>, %66, %cst_47 [0] : vector<256x128xf32> to vector<128xf32>
      %73 = vector.shape_cast %72 : vector<128xf32> to vector<1x128xf32>
      %74 = vector.shape_cast %73 : vector<1x128xf32> to vector<1x1x128xf32>
      %75 = arith.addf %71, %74 : vector<1x1x128xf32>
      %c0_48 = arith.constant 0 : index
      %c0_49 = arith.constant 0 : index
      %c0_50 = arith.constant 0 : index
      %76 = vector.load %arg7[%c0_48, %c0_49, %c0_50] : memref<1x1x128xf32, #tpu.memory_space<vmem>>, vector<1x1x128xf32>
      tpu.vector_store %arg7[%c0_48, %c0_49, %c0_50], %75 {strides = array<i32>} : memref<1x1x128xf32, #tpu.memory_space<vmem>>, vector<1x1x128xf32>,
      %c0_51 = arith.constant 0 : index
      %c0_52 = arith.constant 0 : index
      %c0_53 = arith.constant 0 : index
      %77 = vector.load %arg8[%c0_51, %c0_52, %c0_53] : memref<1x1x128xf32, #tpu.memory_space<vmem>>, vector<1x1x128xf32>
      %78 = arith.mulf %66, %66 : vector<256x128xf32>
      %cst_54 = arith.constant dense<0.000000e+00> : vector<128xf32>
      %79 = vector.multi_reduction <add>, %78, %cst_54 [0] : vector<256x128xf32> to vector<128xf32>
      %80 = vector.shape_cast %79 : vector<128xf32> to vector<1x128xf32>
      %81 = vector.shape_cast %80 : vector<1x128xf32> to vector<1x1x128xf32>
      %82 = arith.addf %77, %81 : vector<1x1x128xf32>
      %c0_55 = arith.constant 0 : index
      %c0_56 = arith.constant 0 : index
      %c0_57 = arith.constant 0 : index
      %83 = vector.load %arg8[%c0_55, %c0_56, %c0_57] : memref<1x1x128xf32, #tpu.memory_space<vmem>>, vector<1x1x128xf32>
      tpu.vector_store %arg8[%c0_55, %c0_56, %c0_57], %82 {strides = array<i32>} : memref<1x1x128xf32, #tpu.memory_space<vmem>>, vector<1x1x128xf32>,
    } else {
    }
    return
  }
  func.func @transform_0(%arg0: i32, %arg1: i32) -> (i32, i32, i32, i32, i32) {
    %c7_i32 = arith.constant 7 : i32
    %0 = arith.minsi %arg1, %c7_i32 : i32
    %c0_i32 = arith.constant 0 : i32
    %c0_i32_0 = arith.constant 0 : i32
    %c0_i32_1 = arith.constant 0 : i32
    %c0_i32_2 = arith.constant 0 : i32
    return %arg0, %0, %c0_i32, %c0_i32_0, %c0_i32_1 : i32, i32, i32, i32, i32
  }
  func.func @transform_1(%arg0: i32, %arg1: i32) -> (i32, i32, i32) {
    %c0_i32 = arith.constant 0 : i32
    %c0_i32_0 = arith.constant 0 : i32
    %c0_i32_1 = arith.constant 0 : i32
    %c0_i32_2 = arith.constant 0 : i32
    return %c0_i32, %c0_i32_0, %c0_i32_1 : i32, i32, i32
  }
  func.func @transform_2(%arg0: i32, %arg1: i32) -> (i32, i32) {
    %c0_i32 = arith.constant 0 : i32
    %c0_i32_0 = arith.constant 0 : i32
    %c0_i32_1 = arith.constant 0 : i32
    return %c0_i32, %c0_i32_0 : i32, i32
  }
  func.func @transform_3(%arg0: i32, %arg1: i32) -> (i32, i32) {
    %c0_i32 = arith.constant 0 : i32
    %c0_i32_0 = arith.constant 0 : i32
    %c0_i32_1 = arith.constant 0 : i32
    return %c0_i32, %c0_i32_0 : i32, i32
  }
  func.func @transform_4(%arg0: i32, %arg1: i32) -> (i32, i32, i32, i32, i32) {
    %c1_i32 = arith.constant 1 : i32
    %0 = arith.subi %arg1, %c1_i32 : i32
    %c0_i32 = arith.constant 0 : i32
    %1 = arith.maxsi %0, %c0_i32 : i32
    %c0_i32_0 = arith.constant 0 : i32
    %c0_i32_1 = arith.constant 0 : i32
    %c0_i32_2 = arith.constant 0 : i32
    %c0_i32_3 = arith.constant 0 : i32
    return %arg0, %1, %c0_i32_0, %c0_i32_1, %c0_i32_2 : i32, i32, i32, i32, i32
  }
  func.func @transform_5(%arg0: i32, %arg1: i32) -> (i32, i32, i32) {
    %c0_i32 = arith.constant 0 : i32
    %c0_i32_0 = arith.constant 0 : i32
    %c0_i32_1 = arith.constant 0 : i32
    return %arg0, %c0_i32, %c0_i32_0 : i32, i32, i32
  }
  func.func @transform_6(%arg0: i32, %arg1: i32) -> (i32, i32, i32) {
    %c0_i32 = arith.constant 0 : i32
    %c0_i32_0 = arith.constant 0 : i32
    %c0_i32_1 = arith.constant 0 : i32
    return %arg0, %c0_i32, %c0_i32_0 : i32, i32, i32
  }
}

</mosaic_0001>

<llo_original>
// kernel: tpu_custom_call.1
$region0: #{tpu_custom_call.1}
  #allocation0 [shape = 'u32[]', space=smem, size = 0x4, offset = 0x4, fixed_abs, tag = 'smem constant byte address 0x4 - core index']
  #allocation1 [shape = 'u32[72,128]{1,0:T(1,128)}', space=vmem, size = 0x9000, scoped, tag = 'internal scratch']
  #allocation2 [shape = 'f32[18,18,128]{2,1,0:T(8,128)}', space=vmem, size = 0x36000, scoped, tag = 'scratch operand']
  #allocation3 [shape = 'f32[3,256,1152]{2,1,0:T(8,128)}', space=vmem, size = 0x360000, scoped, tag = 'scratch operand']
  %s0 = inlined_call_operand.vmem [shape: f32[2,8,16,16,4], index: 0, kind: input, shape index: {}]
  %s1 = inlined_call_operand.vmem [shape: f32[3,1152,128], index: 1, kind: input, shape index: {}]
  %s2 = inlined_call_operand.vmem [shape: f32[1,4], index: 2, kind: input, shape index: {}]
  %s3 = inlined_call_operand.vmem [shape: f32[1,4], index: 3, kind: input, shape index: {}]
  %s4 = inlined_call_operand.hbm [shape: f32[2,8,16,16,128], index: 4, kind: output, shape index: {0}]
  %s5 = inlined_call_operand.hbm [shape: f32[2,1,128], index: 5, kind: output, shape index: {1}]
  %s6 = inlined_call_operand.hbm [shape: f32[2,1,128], index: 6, kind: output, shape index: {2}]
  %7 = xla_tuple %s4, %s5, %s6
  %s8 = sld [smem:[#allocation0]]
  $region85: #{tpu_custom_call.1} parent=0
    _
  %s10 = ssub.s32 1, %s8
  %s11 = scalar_select 0, %s10, %s8
  $region1: #{tpu_custom_call.1} parent=0
    #allocation4 [shape = 'u8[262144]{0}', space=vmem, size = 0x40000, scoped, tag = 'output window, operand 0']
    #allocation5 [shape = 's32[2]{0}', space=sflag, size = 0x8, scoped, tag = 'scoped memory for tpu_custom_call.1']
    #allocation6 [shape = 'u8[1024]{0}', space=vmem, size = 0x400, scoped, tag = 'output window, operand 1']
    #allocation7 [shape = 's32[2]{0}', space=sflag, size = 0x8, scoped, tag = 'scoped memory for tpu_custom_call.1']
    #allocation8 [shape = 'u8[1024]{0}', space=vmem, size = 0x400, scoped, tag = 'output window, operand 2']
    %12 = vsyncpa [#allocation5], 0
    %s13 = scalar_lea.sflag [#allocation5], 1
    %14 = vsyncpa %s13, 0
    %15 = vsyncpa [#allocation7], 0
    %s16 = scalar_lea.sflag [#allocation7], 1
    %17 = vsyncpa %s16, 0
    loop: start=0, step=1, limit=20
    $region2: #{tpu_custom_call.1} parent=1 // loop_pre_header
      _
    $region3: #{tpu_custom_call.1} parent=1 // loop_header
      %s19 = sphi 0, %s23
      %p20 = scmp.ge.s32.totalorder %s19, 20
      %s26 = sphi 0, %s38
      %s27 = sphi 0, %s34
      %s28 = sphi 0, %s26
      %s29 = sphi 0, %s27
      %s30 = sphi 0, %s28
      %s31 = sphi 0, %s29
      %s47 = sphi 0, %s49
      %s50 = sphi 0, %s47
      %s51 = sphi 0, %s50
      %s67 = sphi 0, %s51
      %s71 = sphi 0, %s71
      %s73 = sphi 0, %s71
      %s74 = sphi 0, %s73
      %s88 = sphi 0, %s74
      %s92 = sphi 0, %s92
      %s94 = sphi 0, %s92
      %s95 = sphi 0, %s94
      %s109 = sphi 0, %s95
      %s113 = sphi 0, %s113
      %s115 = sphi 0, %s113
      %s116 = sphi 0, %s115
      %s130 = sphi 0, %s116
      %s144 = sphi 0, %s146
      %s147 = sphi 0, %s144
      %s148 = sphi 0, %s147
      %s164 = sphi 0, %s148
      %s170 = sphi 0, %s172
      %s173 = sphi 0, %s170
      %s174 = sphi 0, %s173
      %s190 = sphi 0, %s174
      %s196 = sphi 0, %s198
      %s199 = sphi 0, %s196
      %s200 = sphi 0, %s199
      %s216 = sphi 0, %s200
    $region4: #{tpu_custom_call.1} parent=1 // loop_header_branch
      %22 = sbr.rel (%p20) target = $region8
    $region5: #{tpu_custom_call.1} parent=1 // loop_body
      %s24 = ssub.s32 %s19, 1
      %s25 = ssub.s32 %s19, 2
      %s32 = sadd.s32 1, %s27
      %p33 = scmp.ge.s32.totalorder %s32, 9
      %s34 = scalar_select %p33, 0, %s32
      %s35 = sadd.s32 1, %s26
      %s36 = scalar_select %p33, %s35, %s26
      %p37 = scmp.ge.s32.totalorder %s36, 2
      %s38 = scalar_select %p37, 0, %s36
      %p39 = scmp.lt.s32.totalorder %s27, 7
      %s40 = scalar_select %p39, %s27, 7
      %p41 = scmp.lt.s32.totalorder %s34, 7
      %s42 = scalar_select %p41, %s34, 7
      %s43 = ssub.s32 %s26, %s38
      %s44 = ssub.s32 %s40, %s42
      %s45 = sor.u32 %s43, %s44
      %p46 = scmp.eq.s32.totalorder %s45, 0
      %s48 = sadd.s32 %s47, 1
      %s49 = scalar_select %p46, %s47, %s48
      %p52 = pneg %p46
      %p53 = scmp.eq.s32.totalorder %s19, 17
      %p54 = por %p52, %p53
      %p55 = scmp.ne.s32.totalorder %s47, %s50
      %p56 = scmp.eq.s32.totalorder %s19, 0
      %p57 = por %p55, %p56
      %p58 = scmp.ne.s32.totalorder %s47, %s50
      %p59 = scmp.eq.s32.totalorder %s24, 17
      %p60 = por %p58, %p59
      %p61 = scmp.ne.s32.totalorder %s50, %s51
      %p62 = scmp.eq.s32.totalorder %s24, 0
      %p63 = por %p61, %p62
      %p64 = scmp.ne.s32.totalorder %s50, %s51
      %p65 = scmp.eq.s32.totalorder %s25, 17
      %p66 = por %p64, %p65
      %p68 = scmp.ne.s32.totalorder %s51, %s67
      %p69 = scmp.eq.s32.totalorder %s25, 0
      %p70 = por %p68, %p69
      %s72 = sadd.s32 %s71, 1
      %p75 = scmp.eq.s32.totalorder %s19, 17
      %p76 = scmp.ne.s32.totalorder %s71, %s73
      %p77 = scmp.eq.s32.totalorder %s19, 0
      %p78 = por %p76, %p77
      %p79 = scmp.ne.s32.totalorder %s71, %s73
      %p80 = scmp.eq.s32.totalorder %s24, 17
      %p81 = por %p79, %p80
      %p82 = scmp.ne.s32.totalorder %s73, %s74
      %p83 = scmp.eq.s32.totalorder %s24, 0
      %p84 = por %p82, %p83
      %p85 = scmp.ne.s32.totalorder %s73, %s74
      %p86 = scmp.eq.s32.totalorder %s25, 17
      %p87 = por %p85, %p86
      %p89 = scmp.ne.s32.totalorder %s74, %s88
      %p90 = scmp.eq.s32.totalorder %s25, 0
      %p91 = por %p89, %p90
      %s93 = sadd.s32 %s92, 1
      %p96 = scmp.eq.s32.totalorder %s19, 17
      %p97 = scmp.ne.s32.totalorder %s92, %s94
      %p98 = scmp.eq.s32.totalorder %s19, 0
      %p99 = por %p97, %p98
      %p100 = scmp.ne.s32.totalorder %s92, %s94
      %p101 = scmp.eq.s32.totalorder %s24, 17
      %p102 = por %p100, %p101
      %p103 = scmp.ne.s32.totalorder %s94, %s95
      %p104 = scmp.eq.s32.totalorder %s24, 0
      %p105 = por %p103, %p104
      %p106 = scmp.ne.s32.totalorder %s94, %s95
      %p107 = scmp.eq.s32.totalorder %s25, 17
      %p108 = por %p106, %p107
      %p110 = scmp.ne.s32.totalorder %s95, %s109
      %p111 = scmp.eq.s32.totalorder %s25, 0
      %p112 = por %p110, %p111
      %s114 = sadd.s32 %s113, 1
      %p117 = scmp.eq.s32.totalorder %s19, 17
      %p118 = scmp.ne.s32.totalorder %s113, %s115
      %p119 = scmp.eq.s32.totalorder %s19, 0
      %p120 = por %p118, %p119
      %p121 = scmp.ne.s32.totalorder %s113, %s115
      %p122 = scmp.eq.s32.totalorder %s24, 17
      %p123 = por %p121, %p122
      %p124 = scmp.ne.s32.totalorder %s115, %s116
      %p125 = scmp.eq.s32.totalorder %s24, 0
      %p126 = por %p124, %p125
      %p127 = scmp.ne.s32.totalorder %s115, %s116
      %p128 = scmp.eq.s32.totalorder %s25, 17
      %p129 = por %p127, %p128
      %p131 = scmp.ne.s32.totalorder %s116, %s130
      %p132 = scmp.eq.s32.totalorder %s25, 0
      %p133 = por %p131, %p132
      %s134 = ssub.s32 %s27, 1
      %p135 = scmp.gt.s32.totalorder %s134, 0
      %s136 = scalar_select %p135, %s134, 0
      %s137 = ssub.s32 %s34, 1
      %p138 = scmp.gt.s32.totalorder %s137, 0
      %s139 = scalar_select %p138, %s137, 0
      %s140 = ssub.s32 %s26, %s38
      %s141 = ssub.s32 %s136, %s139
      %s142 = sor.u32 %s140, %s141
      %p143 = scmp.eq.s32.totalorder %s142, 0
      %s145 = sadd.s32 %s144, 1
      %s146 = scalar_select %p143, %s144, %s145
      %p149 = pneg %p143
      %p150 = scmp.eq.s32.totalorder %s19, 17
      %p151 = por %p149, %p150
      %p152 = scmp.ne.s32.totalorder %s144, %s147
      %p153 = scmp.eq.s32.totalorder %s19, 0
      %p154 = por %p152, %p153
      %p155 = scmp.ne.s32.totalorder %s144, %s147
      %p156 = scmp.eq.s32.totalorder %s24, 17
      %p157 = por %p155, %p156
      %p158 = scmp.ne.s32.totalorder %s147, %s148
      %p159 = scmp.eq.s32.totalorder %s24, 0
      %p160 = por %p158, %p159
      %p161 = scmp.ne.s32.totalorder %s147, %s148
      %p162 = scmp.eq.s32.totalorder %s25, 17
      %p163 = por %p161, %p162
      %p165 = scmp.ne.s32.totalorder %s148, %s164
      %p166 = scmp.eq.s32.totalorder %s25, 0
      %p167 = por %p165, %p166
      %s168 = ssub.s32 %s26, %s38
      %p169 = scmp.eq.s32.totalorder %s168, 0
      %s171 = sadd.s32 %s170, 1
      %s172 = scalar_select %p169, %s170, %s171
      %p175 = pneg %p169
      %p176 = scmp.eq.s32.totalorder %s19, 17
      %p177 = por %p175, %p176
      %p178 = scmp.ne.s32.totalorder %s170, %s173
      %p179 = scmp.eq.s32.totalorder %s19, 0
      %p180 = por %p178, %p179
      %p181 = scmp.ne.s32.totalorder %s170, %s173
      %p182 = scmp.eq.s32.totalorder %s24, 17
      %p183 = por %p181, %p182
      %p184 = scmp.ne.s32.totalorder %s173, %s174
      %p185 = scmp.eq.s32.totalorder %s24, 0
      %p186 = por %p184, %p185
      %p187 = scmp.ne.s32.totalorder %s173, %s174
      %p188 = scmp.eq.s32.totalorder %s25, 17
      %p189 = por %p187, %p188
      %p191 = scmp.ne.s32.totalorder %s174, %s190
      %p192 = scmp.eq.s32.totalorder %s25, 0
      %p193 = por %p191, %p192
      %s194 = ssub.s32 %s26, %s38
      %p195 = scmp.eq.s32.totalorder %s194, 0
      %s197 = sadd.s32 %s196, 1
      %s198 = scalar_select %p195, %s196, %s197
      %p201 = pneg %p195
      %p202 = scmp.eq.s32.totalorder %s19, 17
      %p203 = por %p201, %p202
      %p204 = scmp.ne.s32.totalorder %s196, %s199
      %p205 = scmp.eq.s32.totalorder %s19, 0
      %p206 = por %p204, %p205
      %p207 = scmp.ne.s32.totalorder %s196, %s199
      %p208 = scmp.eq.s32.totalorder %s24, 17
      %p209 = por %p207, %p208
      %p210 = scmp.ne.s32.totalorder %s199, %s200
      %p211 = scmp.eq.s32.totalorder %s24, 0
      %p212 = por %p210, %p211
      %p213 = scmp.ne.s32.totalorder %s199, %s200
      %p214 = scmp.eq.s32.totalorder %s25, 17
      %p215 = por %p213, %p214
      %p217 = scmp.ne.s32.totalorder %s200, %s216
      %p218 = scmp.eq.s32.totalorder %s25, 0
      %p219 = por %p217, %p218
      %p220 = scmp.le.s32.totalorder 1, %s19
      %p221 = scmp.lt.s32.totalorder %s19, 19
      %p222 = pnand %p220, %p221
      %p223 = pneg %p222
      // Predicated region
      $region9: #{tpu_custom_call.1} parent=5 // pred_check
        _
      $region10: #{tpu_custom_call.1} parent=5 // pred_check_branch
        %225 = sbr.rel (%p222) target = $region12
      $region11: #{tpu_custom_call.1} parent=5 // pred_region
        %s226 = ssub.s32 %s19, 1
        // Predicated region
        $region13: #{tpu_custom_call.1} parent=11 // pred_check
          %p227 = pneg %p84
        $region14: #{tpu_custom_call.1} parent=11 // pred_check_branch
          %229 = sbr.rel (%p227) target = $region16
        $region15: #{tpu_custom_call.1} parent=11 // pred_region
          _
        $region16: #{tpu_custom_call.1} parent=11 // pred_fallthru
          _
        // Predicated region
        $region17: #{tpu_custom_call.1} parent=11 // pred_check
          %p230 = pneg %p105
        $region18: #{tpu_custom_call.1} parent=11 // pred_check_branch
          %232 = sbr.rel (%p230) target = $region20
        $region19: #{tpu_custom_call.1} parent=11 // pred_region
          _
        $region20: #{tpu_custom_call.1} parent=11 // pred_fallthru
          _
        // Predicated region
        $region21: #{tpu_custom_call.1} parent=11 // pred_check
          %p233 = pneg %p126
        $region22: #{tpu_custom_call.1} parent=11 // pred_check_branch
          %235 = sbr.rel (%p233) target = $region24
        $region23: #{tpu_custom_call.1} parent=11 // pred_region
          _
        $region24: #{tpu_custom_call.1} parent=11 // pred_fallthru
          _
      $region12: #{tpu_custom_call.1} parent=5 // pred_fallthru
        _
      %p236 = scmp.lt.s32.totalorder %s19, 18
      // Predicated region
      $region25: #{tpu_custom_call.1} parent=5 // pred_check
        %p237 = pneg %p236
      $region26: #{tpu_custom_call.1} parent=5 // pred_check_branch
        %239 = sbr.rel (%p237) target = $region28
      $region27: #{tpu_custom_call.1} parent=5 // pred_region
        // Predicated region
        $region29: #{tpu_custom_call.1} parent=27 // pred_check
          %p240 = pneg %p57
        $region30: #{tpu_custom_call.1} parent=27 // pred_check_branch
          %242 = sbr.rel (%p240) target = $region32
        $region31: #{tpu_custom_call.1} parent=27 // pred_region
          %p243 = scmp.lt.s32.totalorder %s27, 7
          %s244 = scalar_select %p243, %s27, 7
          %p245 = scmp.lt.s32.totalorder %s26, 1
          %s246 = scalar_select %p245, %s26, 1
          %p247 = scmp.lt.s32.totalorder %s244, 7
          %s248 = scalar_select %p247, %s244, 7
          %s249 = smul.addr %s248, 32
          %s250 = smul.addr %s246, 256
          %s251 = sadd.s32 %s249, %s250
          %s252 = smul.addr %s251, 8
          %s253 = scalar_lea.vmem %s0, %s252
          %p254 = scmp.lt.s32.totalorder %s27, 7
          %s255 = scalar_select %p254, %s27, 7
        $region32: #{tpu_custom_call.1} parent=27 // pred_fallthru
          _
      $region28: #{tpu_custom_call.1} parent=5 // pred_fallthru
        _
      %p256 = scmp.le.s32.totalorder 1, %s19
      %p257 = scmp.lt.s32.totalorder %s19, 19
      %p258 = pnand %p256, %p257
      %p259 = pneg %p258
      // Predicated region
      $region33: #{tpu_custom_call.1} parent=5 // pred_check
        _
      $region34: #{tpu_custom_call.1} parent=5 // pred_check_branch
        %261 = sbr.rel (%p258) target = $region36
      $region35: #{tpu_custom_call.1} parent=5 // pred_region
        %s262 = ssub.s32 %s19, 1
        %p263 = scmp.lt.s32.totalorder %s29, 7
        %s264 = scalar_select %p263, %s29, 7
        %p265 = scmp.lt.s32.totalorder %s28, 1
        %s266 = scalar_select %p265, %s28, 1
        %p267 = scmp.lt.s32.totalorder %s264, 7
        %s268 = scalar_select %p267, %s264, 7
        %s269 = smul.addr %s268, 32
        %s270 = smul.addr %s266, 256
        %s271 = sadd.s32 %s269, %s270
        %s272 = smul.addr %s271, 8
        %s273 = scalar_lea.vmem %s0, %s272
        %p274 = pneg %p63
        %p275 = pneg %p60
        %p276 = pneg %p84
        %p277 = pneg %p81
        %p278 = pneg %p105
        %p279 = pneg %p102
        %p280 = pneg %p126
        %p281 = pneg %p123
        %p282 = pneg %p160
        %p283 = pneg %p157
        %s284 = sand.u32 %s147, 1
        %s285 = scalar_lea.sflag [#allocation5], %s284
        %s286 = sand.u32 %s147, 1
        %s287 = smul.addr %s286, 256
        %s288 = scalar_lea.vmem [#allocation4], %s287
        %p289 = pneg %p186
        %p290 = pneg %p183
        %s291 = sand.u32 %s24, 1
        %s292 = scalar_lea.sflag [#allocation7], %s291
        %s293 = sand.u32 %s173, 1
        %s294 = scalar_lea.vmem [#allocation6], %s293
        %p295 = pneg %p212
        %p296 = pneg %p209
        %s297 = sand.u32 %s24, 1
        %s298 = scalar_lea.sflag [#allocation7], %s297
        %s299 = sand.u32 %s199, 1
        %s300 = scalar_lea.vmem [#allocation8], %s299
        %p301 = scmp.lt.s32.totalorder %s29, 7
        %s302 = scalar_select %p301, %s29, 7
        %p303 = scmp.lt.s32.totalorder %s28, 1
        %s304 = scalar_select %p303, %s28, 1
        %p305 = scmp.lt.s32.totalorder %s302, 7
        %s306 = scalar_select %p305, %s302, 7
        %s307 = smul.addr %s306, 32
        %s308 = smul.addr %s304, 256
        %s309 = sadd.s32 %s307, %s308
        %s310 = smul.addr %s309, 8
        %s311 = scalar_lea.vmem %s0, %s310
        %p312 = scmp.lt.s32.totalorder %s29, 7
        %s313 = scalar_select %p312, %s29, 7
        %s314 = ssub.s32 %s29, 1
        %p315 = scmp.gt.s32.totalorder %s314, 0
        %s316 = scalar_select %p315, %s314, 0
        %p317 = scmp.lt.s32.totalorder %s29, 0
        %s318 = ssub.s32 0, %s29
        %s319 = scalar_select %p317, %s318, %s29
        %s320 = sdiv.u32.pop %s319, 3
        %s321 = srem.u32.pop %s319, 3
        %s322 = ssub.s32 0, %s321
        %s323 = scalar_select %p317, %s322, %s321
        %p324 = scmp.ne.s32.totalorder %s323, 0
        %p325 = scmp.lt.s32.totalorder %s323, 0
        %p326 = pnand %p325, %p324
        %p327 = pneg %p326
        %s328 = sadd.s32 %s323, 3
        %s329 = scalar_select %p327, %s328, %s323
        %p330 = scmp.eq.s32.totalorder %s29, 0
        // Predicated region
        $region37: #{tpu_custom_call.1} parent=35 // pred_check
          %p331 = pneg %p330
        $region38: #{tpu_custom_call.1} parent=35 // pred_check_branch
          %333 = sbr.rel (%p331) target = $region40
        $region39: #{tpu_custom_call.1} parent=35 // pred_region
          %334 = vst [vmem:[#allocation2] sm:$0xff] 0.0
          %335 = vst [vmem:[#allocation2 + $0x8] sm:$0xff] 0.0
          %336 = vst [vmem:[#allocation2 + $0x10] sm:$0x3] 0.0
          %337 = vst [vmem:[#allocation2 + $0x18] sm:$0xff] 0.0
          %338 = vst [vmem:[#allocation2 + $0x20] sm:$0xff] 0.0
          %339 = vst [vmem:[#allocation2 + $0x28] sm:$0x3] 0.0
          %340 = vst [vmem:[#allocation2 + $0x30] sm:$0xff] 0.0
          %341 = vst [vmem:[#allocation2 + $0x38] sm:$0xff] 0.0
          %342 = vst [vmem:[#allocation2 + $0x40] sm:$0x3] 0.0
          %343 = vst [vmem:[#allocation2 + $0x48] sm:$0xff] 0.0
          %344 = vst [vmem:[#allocation2 + $0x50] sm:$0xff] 0.0
          %345 = vst [vmem:[#allocation2 + $0x58] sm:$0x3] 0.0
          %346 = vst [vmem:[#allocation2 + $0x60] sm:$0xff] 0.0
          %347 = vst [vmem:[#allocation2 + $0x68] sm:$0xff] 0.0
          %348 = vst [vmem:[#allocation2 + $0x70] sm:$0x3] 0.0
          %349 = vst [vmem:[#allocation2 + $0x78] sm:$0xff] 0.0
          %350 = vst [vmem:[#allocation2 + $0x80] sm:$0xff] 0.0
          %351 = vst [vmem:[#allocation2 + $0x88] sm:$0x3] 0.0
          %352 = vst [vmem:[#allocation2 + $0x90] sm:$0xff] 0.0
          %353 = vst [vmem:[#allocation2 + $0x98] sm:$0xff] 0.0
          %354 = vst [vmem:[#allocation2 + $0xa0] sm:$0x3] 0.0
          %355 = vst [vmem:[#allocation2 + $0xa8] sm:$0xff] 0.0
          %356 = vst [vmem:[#allocation2 + $0xb0] sm:$0xff] 0.0
          %357 = vst [vmem:[#allocation2 + $0xb8] sm:$0x3] 0.0
          %358 = vst [vmem:[#allocation2 + $0xc0] sm:$0xff] 0.0
          %359 = vst [vmem:[#allocation2 + $0xc8] sm:$0xff] 0.0
          %360 = vst [vmem:[#allocation2 + $0xd0] sm:$0x3] 0.0
          %361 = vst [vmem:[#allocation2 + $0xd8] sm:$0xff] 0.0
          %362 = vst [vmem:[#allocation2 + $0xe0] sm:$0xff] 0.0
          %363 = vst [vmem:[#allocation2 + $0xe8] sm:$0x3] 0.0
          %364 = vst [vmem:[#allocation2 + $0xf0] sm:$0xff] 0.0
          %365 = vst [vmem:[#allocation2 + $0xf8] sm:$0xff] 0.0
          %366 = vst [vmem:[#allocation2 + $0x100] sm:$0x3] 0.0
          %367 = vst [vmem:[#allocation2 + $0x108] sm:$0xff] 0.0
          %368 = vst [vmem:[#allocation2 + $0x110] sm:$0xff] 0.0
          %369 = vst [vmem:[#allocation2 + $0x118] sm:$0x3] 0.0
          %370 = vst [vmem:[#allocation2 + $0x120] sm:$0xff] 0.0
          %371 = vst [vmem:[#allocation2 + $0x128] sm:$0xff] 0.0
          %372 = vst [vmem:[#allocation2 + $0x130] sm:$0x3] 0.0
          %373 = vst [vmem:[#allocation2 + $0x138] sm:$0xff] 0.0
          %374 = vst [vmem:[#allocation2 + $0x140] sm:$0xff] 0.0
          %375 = vst [vmem:[#allocation2 + $0x148] sm:$0x3] 0.0
          %376 = vst [vmem:[#allocation2 + $0x150] sm:$0xff] 0.0
          %377 = vst [vmem:[#allocation2 + $0x158] sm:$0xff] 0.0
          %378 = vst [vmem:[#allocation2 + $0x160] sm:$0x3] 0.0
          %379 = vst [vmem:[#allocation2 + $0x168] sm:$0xff] 0.0
          %380 = vst [vmem:[#allocation2 + $0x170] sm:$0xff] 0.0
          %381 = vst [vmem:[#allocation2 + $0x178] sm:$0x3] 0.0
          %382 = vst [vmem:[#allocation2 + $0x180] sm:$0xff] 0.0
          %383 = vst [vmem:[#allocation2 + $0x188] sm:$0xff] 0.0
          %384 = vst [vmem:[#allocation2 + $0x190] sm:$0x3] 0.0
          %385 = vst [vmem:[#allocation2 + $0x198] sm:$0xff] 0.0
          %386 = vst [vmem:[#allocation2 + $0x1a0] sm:$0xff] 0.0
          %387 = vst [vmem:[#allocation2 + $0x1a8] sm:$0x3] 0.0
          %388 = vst [vmem:[#allocation3] sm:$0xff] 0.0
          %389 = vst [vmem:[#allocation3 + $0x8] sm:$0xff] 0.0
          %390 = vst [vmem:[#allocation3 + $0x10] sm:$0xff] 0.0
          %391 = vst [vmem:[#allocation3 + $0x18] sm:$0xff] 0.0
          %392 = vst [vmem:[#allocation3 + $0x20] sm:$0xff] 0.0
          %393 = vst [vmem:[#allocation3 + $0x28] sm:$0xff] 0.0
          %394 = vst [vmem:[#allocation3 + $0x30] sm:$0xff] 0.0
          %395 = vst [vmem:[#allocation3 + $0x38] sm:$0xff] 0.0
          %396 = vst [vmem:[#allocation3 + $0x40] sm:$0xff] 0.0
          %397 = vst [vmem:[#allocation3 + $0x48] sm:$0xff] 0.0
          %398 = vst [vmem:[#allocation3 + $0x50] sm:$0xff] 0.0
          %399 = vst [vmem:[#allocation3 + $0x58] sm:$0xff] 0.0
          %400 = vst [vmem:[#allocation3 + $0x60] sm:$0xff] 0.0
          %401 = vst [vmem:[#allocation3 + $0x68] sm:$0xff] 0.0
          %402 = vst [vmem:[#allocation3 + $0x70] sm:$0xff] 0.0
          %403 = vst [vmem:[#allocation3 + $0x78] sm:$0xff] 0.0
          %404 = vst [vmem:[#allocation3 + $0x80] sm:$0xff] 0.0
          %405 = vst [vmem:[#allocation3 + $0x88] sm:$0xff] 0.0
          %406 = vst [vmem:[#allocation3 + $0x90] sm:$0xff] 0.0
          %407 = vst [vmem:[#allocation3 + $0x98] sm:$0xff] 0.0
          %408 = vst [vmem:[#allocation3 + $0xa0] sm:$0xff] 0.0
          %409 = vst [vmem:[#allocation3 + $0xa8] sm:$0xff] 0.0
          %410 = vst [vmem:[#allocation3 + $0xb0] sm:$0xff] 0.0
          %411 = vst [vmem:[#allocation3 + $0xb8] sm:$0xff] 0.0
          %412 = vst [vmem:[#allocation3 + $0xc0] sm:$0xff] 0.0
          %413 = vst [vmem:[#allocation3 + $0xc8] sm:$0xff] 0.0
          %414 = vst [vmem:[#allocation3 + $0xd0] sm:$0xff] 0.0
          %415 = vst [vmem:[#allocation3 + $0xd8] sm:$0xff] 0.0
          %416 = vst [vmem:[#allocation3 + $0xe0] sm:$0xff] 0.0
          %417 = vst [vmem:[#allocation3 + $0xe8] sm:$0xff] 0.0
          %418 = vst [vmem:[#allocation3 + $0xf0] sm:$0xff] 0.0
          %419 = vst [vmem:[#allocation3 + $0xf8] sm:$0xff] 0.0
          %420 = vst [vmem:[#allocation3 + $0x100] sm:$0xff] 0.0
          %421 = vst [vmem:[#allocation3 + $0x108] sm:$0xff] 0.0
          %422 = vst [vmem:[#allocation3 + $0x110] sm:$0xff] 0.0
          %423 = vst [vmem:[#allocation3 + $0x118] sm:$0xff] 0.0
          %424 = vst [vmem:[#allocation3 + $0x120] sm:$0xff] 0.0
          %425 = vst [vmem:[#allocation3 + $0x128] sm:$0xff] 0.0
          %426 = vst [vmem:[#allocation3 + $0x130] sm:$0xff] 0.0
          %427 = vst [vmem:[#allocation3 + $0x138] sm:$0xff] 0.0
          %428 = vst [vmem:[#allocation3 + $0x140] sm:$0xff] 0.0
          %429 = vst [vmem:[#allocation3 + $0x148] sm:$0xff] 0.0
          %430 = vst [vmem:[#allocation3 + $0x150] sm:$0xff] 0.0
          %431 = vst [vmem:[#allocation3 + $0x158] sm:$0xff] 0.0
          %432 = vst [vmem:[#allocation3 + $0x160] sm:$0xff] 0.0
          %433 = vst [vmem:[#allocation3 + $0x168] sm:$0xff] 0.0
          %434 = vst [vmem:[#allocation3 + $0x170] sm:$0xff] 0.0
          %435 = vst [vmem:[#allocation3 + $0x178] sm:$0xff] 0.0
          %436 = vst [vmem:[#allocation3 + $0x180] sm:$0xff] 0.0
          %437 = vst [vmem:[#allocation3 + $0x188] sm:$0xff] 0.0
          %438 = vst [vmem:[#allocation3 + $0x190] sm:$0xff] 0.0
          %439 = vst [vmem:[#allocation3 + $0x198] sm:$0xff] 0.0
          %440 = vst [vmem:[#allocation3 + $0x1a0] sm:$0xff] 0.0
          %441 = vst [vmem:[#allocation3 + $0x1a8] sm:$0xff] 0.0
          %442 = vst [vmem:[#allocation3 + $0x1b0] sm:$0xff] 0.0
          %443 = vst [vmem:[#allocation3 + $0x1b8] sm:$0xff] 0.0
          %444 = vst [vmem:[#allocation3 + $0x1c0] sm:$0xff] 0.0
          %445 = vst [vmem:[#allocation3 + $0x1c8] sm:$0xff] 0.0
          %446 = vst [vmem:[#allocation3 + $0x1d0] sm:$0xff] 0.0
          %447 = vst [vmem:[#allocation3 + $0x1d8] sm:$0xff] 0.0
          %448 = vst [vmem:[#allocation3 + $0x1e0] sm:$0xff] 0.0
          %449 = vst [vmem:[#allocation3 + $0x1e8] sm:$0xff] 0.0
          %450 = vst [vmem:[#allocation3 + $0x1f0] sm:$0xff] 0.0
          %451 = vst [vmem:[#allocation3 + $0x1f8] sm:$0xff] 0.0
          %452 = vst [vmem:[#allocation3 + $0x200] sm:$0xff] 0.0
          %453 = vst [vmem:[#allocation3 + $0x208] sm:$0xff] 0.0
          %454 = vst [vmem:[#allocation3 + $0x210] sm:$0xff] 0.0
          %455 = vst [vmem:[#allocation3 + $0x218] sm:$0xff] 0.0
          %456 = vst [vmem:[#allocation3 + $0x220] sm:$0xff] 0.0
          %457 = vst [vmem:[#allocation3 + $0x228] sm:$0xff] 0.0
          %458 = vst [vmem:[#allocation3 + $0x230] sm:$0xff] 0.0
          %459 = vst [vmem:[#allocation3 + $0x238] sm:$0xff] 0.0
          %460 = vst [vmem:[#allocation3 + $0x240] sm:$0xff] 0.0
          %461 = vst [vmem:[#allocation3 + $0x248] sm:$0xff] 0.0
          %462 = vst [vmem:[#allocation3 + $0x250] sm:$0xff] 0.0
          %463 = vst [vmem:[#allocation3 + $0x258] sm:$0xff] 0.0
          %464 = vst [vmem:[#allocation3 + $0x260] sm:$0xff] 0.0
          %465 = vst [vmem:[#allocation3 + $0x268] sm:$0xff] 0.0
          %466 = vst [vmem:[#allocation3 + $0x270] sm:$0xff] 0.0
          %467 = vst [vmem:[#allocation3 + $0x278] sm:$0xff] 0.0
          %468 = vst [vmem:[#allocation3 + $0x280] sm:$0xff] 0.0
          %469 = vst [vmem:[#allocation3 + $0x288] sm:$0xff] 0.0
          %470 = vst [vmem:[#allocation3 + $0x290] sm:$0xff] 0.0
          %471 = vst [vmem:[#allocation3 + $0x298] sm:$0xff] 0.0
          %472 = vst [vmem:[#allocation3 + $0x2a0] sm:$0xff] 0.0
          %473 = vst [vmem:[#allocation3 + $0x2a8] sm:$0xff] 0.0
          %474 = vst [vmem:[#allocation3 + $0x2b0] sm:$0xff] 0.0
          %475 = vst [vmem:[#allocation3 + $0x2b8] sm:$0xff] 0.0
          %476 = vst [vmem:[#allocation3 + $0x2c0] sm:$0xff] 0.0
          %477 = vst [vmem:[#allocation3 + $0x2c8] sm:$0xff] 0.0
          %478 = vst [vmem:[#allocation3 + $0x2d0] sm:$0xff] 0.0
          %479 = vst [vmem:[#allocation3 + $0x2d8] sm:$0xff] 0.0
          %480 = vst [vmem:[#allocation3 + $0x2e0] sm:$0xff] 0.0
          %481 = vst [vmem:[#allocation3 + $0x2e8] sm:$0xff] 0.0
          %482 = vst [vmem:[#allocation3 + $0x2f0] sm:$0xff] 0.0
          %483 = vst [vmem:[#allocation3 + $0x2f8] sm:$0xff] 0.0
          %484 = vst [vmem:[#allocation3 + $0x300] sm:$0xff] 0.0
          %485 = vst [vmem:[#allocation3 + $0x308] sm:$0xff] 0.0
          %486 = vst [vmem:[#allocation3 + $0x310] sm:$0xff] 0.0
          %487 = vst [vmem:[#allocation3 + $0x318] sm:$0xff] 0.0
          %488 = vst [vmem:[#allocation3 + $0x320] sm:$0xff] 0.0
          %489 = vst [vmem:[#allocation3 + $0x328] sm:$0xff] 0.0
          %490 = vst [vmem:[#allocation3 + $0x330] sm:$0xff] 0.0
          %491 = vst [vmem:[#allocation3 + $0x338] sm:$0xff] 0.0
          %492 = vst [vmem:[#allocation3 + $0x340] sm:$0xff] 0.0
          %493 = vst [vmem:[#allocation3 + $0x348] sm:$0xff] 0.0
          %494 = vst [vmem:[#allocation3 + $0x350] sm:$0xff] 0.0
          %495 = vst [vmem:[#allocation3 + $0x358] sm:$0xff] 0.0
          %496 = vst [vmem:[#allocation3 + $0x360] sm:$0xff] 0.0
          %497 = vst [vmem:[#allocation3 + $0x368] sm:$0xff] 0.0
          %498 = vst [vmem:[#allocation3 + $0x370] sm:$0xff] 0.0
          %499 = vst [vmem:[#allocation3 + $0x378] sm:$0xff] 0.0
          %500 = vst [vmem:[#allocation3 + $0x380] sm:$0xff] 0.0
          %501 = vst [vmem:[#allocation3 + $0x388] sm:$0xff] 0.0
          %502 = vst [vmem:[#allocation3 + $0x390] sm:$0xff] 0.0
          %503 = vst [vmem:[#allocation3 + $0x398] sm:$0xff] 0.0
          %504 = vst [vmem:[#allocation3 + $0x3a0] sm:$0xff] 0.0
          %505 = vst [vmem:[#allocation3 + $0x3a8] sm:$0xff] 0.0
          %506 = vst [vmem:[#allocation3 + $0x3b0] sm:$0xff] 0.0
          %507 = vst [vmem:[#allocation3 + $0x3b8] sm:$0xff] 0.0
          %508 = vst [vmem:[#allocation3 + $0x3c0] sm:$0xff] 0.0
          %509 = vst [vmem:[#allocation3 + $0x3c8] sm:$0xff] 0.0
          %510 = vst [vmem:[#allocation3 + $0x3d0] sm:$0xff] 0.0
          %511 = vst [vmem:[#allocation3 + $0x3d8] sm:$0xff] 0.0
          %512 = vst [vmem:[#allocation3 + $0x3e0] sm:$0xff] 0.0
          %513 = vst [vmem:[#allocation3 + $0x3e8] sm:$0xff] 0.0
          %514 = vst [vmem:[#allocation3 + $0x3f0] sm:$0xff] 0.0
          %515 = vst [vmem:[#allocation3 + $0x3f8] sm:$0xff] 0.0
          %516 = vst [vmem:[#allocation3 + $0x400] sm:$0xff] 0.0
          %517 = vst [vmem:[#allocation3 + $0x408] sm:$0xff] 0.0
          %518 = vst [vmem:[#allocation3 + $0x410] sm:$0xff] 0.0
          %519 = vst [vmem:[#allocation3 + $0x418] sm:$0xff] 0.0
          %520 = vst [vmem:[#allocation3 + $0x420] sm:$0xff] 0.0
          %521 = vst [vmem:[#allocation3 + $0x428] sm:$0xff] 0.0
          %522 = vst [vmem:[#allocation3 + $0x430] sm:$0xff] 0.0
          %523 = vst [vmem:[#allocation3 + $0x438] sm:$0xff] 0.0
          %524 = vst [vmem:[#allocation3 + $0x440] sm:$0xff] 0.0
          %525 = vst [vmem:[#allocation3 + $0x448] sm:$0xff] 0.0
          %526 = vst [vmem:[#allocation3 + $0x450] sm:$0xff] 0.0
          %527 = vst [vmem:[#allocation3 + $0x458] sm:$0xff] 0.0
          %528 = vst [vmem:[#allocation3 + $0x460] sm:$0xff] 0.0
          %529 = vst [vmem:[#allocation3 + $0x468] sm:$0xff] 0.0
          %530 = vst [vmem:[#allocation3 + $0x470] sm:$0xff] 0.0
          %531 = vst [vmem:[#allocation3 + $0x478] sm:$0xff] 0.0
          %532 = vst [vmem:[#allocation3 + $0x480] sm:$0xff] 0.0
          %533 = vst [vmem:[#allocation3 + $0x488] sm:$0xff] 0.0
          %534 = vst [vmem:[#allocation3 + $0x490] sm:$0xff] 0.0
          %535 = vst [vmem:[#allocation3 + $0x498] sm:$0xff] 0.0
          %536 = vst [vmem:[#allocation3 + $0x4a0] sm:$0xff] 0.0
          %537 = vst [vmem:[#allocation3 + $0x4a8] sm:$0xff] 0.0
          %538 = vst [vmem:[#allocation3 + $0x4b0] sm:$0xff] 0.0
          %539 = vst [vmem:[#allocation3 + $0x4b8] sm:$0xff] 0.0
          %540 = vst [vmem:[#allocation3 + $0x4c0] sm:$0xff] 0.0
          %541 = vst [vmem:[#allocation3 + $0x4c8] sm:$0xff] 0.0
          %542 = vst [vmem:[#allocation3 + $0x4d0] sm:$0xff] 0.0
          %543 = vst [vmem:[#allocation3 + $0x4d8] sm:$0xff] 0.0
          %544 = vst [vmem:[#allocation3 + $0x4e0] sm:$0xff] 0.0
          %545 = vst [vmem:[#allocation3 + $0x4e8] sm:$0xff] 0.0
          %546 = vst [vmem:[#allocation3 + $0x4f0] sm:$0xff] 0.0
          %547 = vst [vmem:[#allocation3 + $0x4f8] sm:$0xff] 0.0
          %548 = vst [vmem:[#allocation3 + $0x500] sm:$0xff] 0.0
          %549 = vst [vmem:[#allocation3 + $0x508] sm:$0xff] 0.0
          %550 = vst [vmem:[#allocation3 + $0x510] sm:$0xff] 0.0
          %551 = vst [vmem:[#allocation3 + $0x518] sm:$0xff] 0.0
          %552 = vst [vmem:[#allocation3 + $0x520] sm:$0xff] 0.0
          %553 = vst [vmem:[#allocation3 + $0x528] sm:$0xff] 0.0
          %554 = vst [vmem:[#allocation3 + $0x530] sm:$0xff] 0.0
          %555 = vst [vmem:[#allocation3 + $0x538] sm:$0xff] 0.0
          %556 = vst [vmem:[#allocation3 + $0x540] sm:$0xff] 0.0
          %557 = vst [vmem:[#allocation3 + $0x548] sm:$0xff] 0.0
          %558 = vst [vmem:[#allocation3 + $0x550] sm:$0xff] 0.0
          %559 = vst [vmem:[#allocation3 + $0x558] sm:$0xff] 0.0
          %560 = vst [vmem:[#allocation3 + $0x560] sm:$0xff] 0.0
          %561 = vst [vmem:[#allocation3 + $0x568] sm:$0xff] 0.0
          %562 = vst [vmem:[#allocation3 + $0x570] sm:$0xff] 0.0
          %563 = vst [vmem:[#allocation3 + $0x578] sm:$0xff] 0.0
          %564 = vst [vmem:[#allocation3 + $0x580] sm:$0xff] 0.0
          %565 = vst [vmem:[#allocation3 + $0x588] sm:$0xff] 0.0
          %566 = vst [vmem:[#allocation3 + $0x590] sm:$0xff] 0.0
          %567 = vst [vmem:[#allocation3 + $0x598] sm:$0xff] 0.0
          %568 = vst [vmem:[#allocation3 + $0x5a0] sm:$0xff] 0.0
          %569 = vst [vmem:[#allocation3 + $0x5a8] sm:$0xff] 0.0
          %570 = vst [vmem:[#allocation3 + $0x5b0] sm:$0xff] 0.0
          %571 = vst [vmem:[#allocation3 + $0x5b8] sm:$0xff] 0.0
          %572 = vst [vmem:[#allocation3 + $0x5c0] sm:$0xff] 0.0
          %573 = vst [vmem:[#allocation3 + $0x5c8] sm:$0xff] 0.0
          %574 = vst [vmem:[#allocation3 + $0x5d0] sm:$0xff] 0.0
          %575 = vst [vmem:[#allocation3 + $0x5d8] sm:$0xff] 0.0
          %576 = vst [vmem:[#allocation3 + $0x5e0] sm:$0xff] 0.0
          %577 = vst [vmem:[#allocation3 + $0x5e8] sm:$0xff] 0.0
          %578 = vst [vmem:[#allocation3 + $0x5f0] sm:$0xff] 0.0
          %579 = vst [vmem:[#allocation3 + $0x5f8] sm:$0xff] 0.0
          %580 = vst [vmem:[#allocation3 + $0x600] sm:$0xff] 0.0
          %581 = vst [vmem:[#allocation3 + $0x608] sm:$0xff] 0.0
          %582 = vst [vmem:[#allocation3 + $0x610] sm:$0xff] 0.0
          %583 = vst [vmem:[#allocation3 + $0x618] sm:$0xff] 0.0
          %584 = vst [vmem:[#allocation3 + $0x620] sm:$0xff] 0.0
          %585 = vst [vmem:[#allocation3 + $0x628] sm:$0xff] 0.0
          %586 = vst [vmem:[#allocation3 + $0x630] sm:$0xff] 0.0
          %587 = vst [vmem:[#allocation3 + $0x638] sm:$0xff] 0.0
          %588 = vst [vmem:[#allocation3 + $0x640] sm:$0xff] 0.0
          %589 = vst [vmem:[#allocation3 + $0x648] sm:$0xff] 0.0
          %590 = vst [vmem:[#allocation3 + $0x650] sm:$0xff] 0.0
          %591 = vst [vmem:[#allocation3 + $0x658] sm:$0xff] 0.0
          %592 = vst [vmem:[#allocation3 + $0x660] sm:$0xff] 0.0
          %593 = vst [vmem:[#allocation3 + $0x668] sm:$0xff] 0.0
          %594 = vst [vmem:[#allocation3 + $0x670] sm:$0xff] 0.0
          %595 = vst [vmem:[#allocation3 + $0x678] sm:$0xff] 0.0
          %596 = vst [vmem:[#allocation3 + $0x680] sm:$0xff] 0.0
          %597 = vst [vmem:[#allocation3 + $0x688] sm:$0xff] 0.0
          %598 = vst [vmem:[#allocation3 + $0x690] sm:$0xff] 0.0
          %599 = vst [vmem:[#allocation3 + $0x698] sm:$0xff] 0.0
          %600 = vst [vmem:[#allocation3 + $0x6a0] sm:$0xff] 0.0
          %601 = vst [vmem:[#allocation3 + $0x6a8] sm:$0xff] 0.0
          %602 = vst [vmem:[#allocation3 + $0x6b0] sm:$0xff] 0.0
          %603 = vst [vmem:[#allocation3 + $0x6b8] sm:$0xff] 0.0
          %604 = vst [vmem:[#allocation3 + $0x6c0] sm:$0xff] 0.0
          %605 = vst [vmem:[#allocation3 + $0x6c8] sm:$0xff] 0.0
          %606 = vst [vmem:[#allocation3 + $0x6d0] sm:$0xff] 0.0
          %607 = vst [vmem:[#allocation3 + $0x6d8] sm:$0xff] 0.0
          %608 = vst [vmem:[#allocation3 + $0x6e0] sm:$0xff] 0.0
          %609 = vst [vmem:[#allocation3 + $0x6e8] sm:$0xff] 0.0
          %610 = vst [vmem:[#allocation3 + $0x6f0] sm:$0xff] 0.0
          %611 = vst [vmem:[#allocation3 + $0x6f8] sm:$0xff] 0.0
          %612 = vst [vmem:[#allocation3 + $0x700] sm:$0xff] 0.0
          %613 = vst [vmem:[#allocation3 + $0x708] sm:$0xff] 0.0
          %614 = vst [vmem:[#allocation3 + $0x710] sm:$0xff] 0.0
          %615 = vst [vmem:[#allocation3 + $0x718] sm:$0xff] 0.0
          %616 = vst [vmem:[#allocation3 + $0x720] sm:$0xff] 0.0
          %617 = vst [vmem:[#allocation3 + $0x728] sm:$0xff] 0.0
          %618 = vst [vmem:[#allocation3 + $0x730] sm:$0xff] 0.0
          %619 = vst [vmem:[#allocation3 + $0x738] sm:$0xff] 0.0
          %620 = vst [vmem:[#allocation3 + $0x740] sm:$0xff] 0.0
          %621 = vst [vmem:[#allocation3 + $0x748] sm:$0xff] 0.0
          %622 = vst [vmem:[#allocation3 + $0x750] sm:$0xff] 0.0
          %623 = vst [vmem:[#allocation3 + $0x758] sm:$0xff] 0.0
          %624 = vst [vmem:[#allocation3 + $0x760] sm:$0xff] 0.0
          %625 = vst [vmem:[#allocation3 + $0x768] sm:$0xff] 0.0
          %626 = vst [vmem:[#allocation3 + $0x770] sm:$0xff] 0.0
          %627 = vst [vmem:[#allocation3 + $0x778] sm:$0xff] 0.0
          %628 = vst [vmem:[#allocation3 + $0x780] sm:$0xff] 0.0
          %629 = vst [vmem:[#allocation3 + $0x788] sm:$0xff] 0.0
          %630 = vst [vmem:[#allocation3 + $0x790] sm:$0xff] 0.0
          %631 = vst [vmem:[#allocation3 + $0x798] sm:$0xff] 0.0
          %632 = vst [vmem:[#allocation3 + $0x7a0] sm:$0xff] 0.0
          %633 = vst [vmem:[#allocation3 + $0x7a8] sm:$0xff] 0.0
          %634 = vst [vmem:[#allocation3 + $0x7b0] sm:$0xff] 0.0
          %635 = vst [vmem:[#allocation3 + $0x7b8] sm:$0xff] 0.0
          %636 = vst [vmem:[#allocation3 + $0x7c0] sm:$0xff] 0.0
          %637 = vst [vmem:[#allocation3 + $0x7c8] sm:$0xff] 0.0
          %638 = vst [vmem:[#allocation3 + $0x7d0] sm:$0xff] 0.0
          %639 = vst [vmem:[#allocation3 + $0x7d8] sm:$0xff] 0.0
          %640 = vst [vmem:[#allocation3 + $0x7e0] sm:$0xff] 0.0
          %641 = vst [vmem:[#allocation3 + $0x7e8] sm:$0xff] 0.0
          %642 = vst [vmem:[#allocation3 + $0x7f0] sm:$0xff] 0.0
          %643 = vst [vmem:[#allocation3 + $0x7f8] sm:$0xff] 0.0
          %644 = vst [vmem:[#allocation3 + $0x800] sm:$0xff] 0.0
          %645 = vst [vmem:[#allocation3 + $0x808] sm:$0xff] 0.0
          %646 = vst [vmem:[#allocation3 + $0x810] sm:$0xff] 0.0
          %647 = vst [vmem:[#allocation3 + $0x818] sm:$0xff] 0.0
          %648 = vst [vmem:[#allocation3 + $0x820] sm:$0xff] 0.0
          %649 = vst [vmem:[#allocation3 + $0x828] sm:$0xff] 0.0
          %650 = vst [vmem:[#allocation3 + $0x830] sm:$0xff] 0.0
          %651 = vst [vmem:[#allocation3 + $0x838] sm:$0xff] 0.0
          %652 = vst [vmem:[#allocation3 + $0x840] sm:$0xff] 0.0
          %653 = vst [vmem:[#allocation3 + $0x848] sm:$0xff] 0.0
          %654 = vst [vmem:[#allocation3 + $0x850] sm:$0xff] 0.0
          %655 = vst [vmem:[#allocation3 + $0x858] sm:$0xff] 0.0
          %656 = vst [vmem:[#allocation3 + $0x860] sm:$0xff] 0.0
          %657 = vst [vmem:[#allocation3 + $0x868] sm:$0xff] 0.0
          %658 = vst [vmem:[#allocation3 + $0x870] sm:$0xff] 0.0
          %659 = vst [vmem:[#allocation3 + $0x878] sm:$0xff] 0.0
          %660 = vst [vmem:[#allocation3 + $0x880] sm:$0xff] 0.0
          %661 = vst [vmem:[#allocation3 + $0x888] sm:$0xff] 0.0
          %662 = vst [vmem:[#allocation3 + $0x890] sm:$0xff] 0.0
          %663 = vst [vmem:[#allocation3 + $0x898] sm:$0xff] 0.0
          %664 = vst [vmem:[#allocation3 + $0x8a0] sm:$0xff] 0.0
          %665 = vst [vmem:[#allocation3 + $0x8a8] sm:$0xff] 0.0
          %666 = vst [vmem:[#allocation3 + $0x8b0] sm:$0xff] 0.0
          %667 = vst [vmem:[#allocation3 + $0x8b8] sm:$0xff] 0.0
          %668 = vst [vmem:[#allocation3 + $0x8c0] sm:$0xff] 0.0
          %669 = vst [vmem:[#allocation3 + $0x8c8] sm:$0xff] 0.0
          %670 = vst [vmem:[#allocation3 + $0x8d0] sm:$0xff] 0.0
          %671 = vst [vmem:[#allocation3 + $0x8d8] sm:$0xff] 0.0
          %672 = vst [vmem:[#allocation3 + $0x8e0] sm:$0xff] 0.0
          %673 = vst [vmem:[#allocation3 + $0x8e8] sm:$0xff] 0.0
          %674 = vst [vmem:[#allocation3 + $0x8f0] sm:$0xff] 0.0
          %675 = vst [vmem:[#allocation3 + $0x8f8] sm:$0xff] 0.0
          %676 = vst [vmem:[#allocation3 + $0x900] sm:$0xff] 0.0
          %677 = vst [vmem:[#allocation3 + $0x908] sm:$0xff] 0.0
          %678 = vst [vmem:[#allocation3 + $0x910] sm:$0xff] 0.0
          %679 = vst [vmem:[#allocation3 + $0x918] sm:$0xff] 0.0
          %680 = vst [vmem:[#allocation3 + $0x920] sm:$0xff] 0.0
          %681 = vst [vmem:[#allocation3 + $0x928] sm:$0xff] 0.0
          %682 = vst [vmem:[#allocation3 + $0x930] sm:$0xff] 0.0
          %683 = vst [vmem:[#allocation3 + $0x938] sm:$0xff] 0.0
          %684 = vst [vmem:[#allocation3 + $0x940] sm:$0xff] 0.0
          %685 = vst [vmem:[#allocation3 + $0x948] sm:$0xff] 0.0
          %686 = vst [vmem:[#allocation3 + $0x950] sm:$0xff] 0.0
          %687 = vst [vmem:[#allocation3 + $0x958] sm:$0xff] 0.0
          %688 = vst [vmem:[#allocation3 + $0x960] sm:$0xff] 0.0
          %689 = vst [vmem:[#allocation3 + $0x968] sm:$0xff] 0.0
          %690 = vst [vmem:[#allocation3 + $0x970] sm:$0xff] 0.0
          %691 = vst [vmem:[#allocation3 + $0x978] sm:$0xff] 0.0
          %692 = vst [vmem:[#allocation3 + $0x980] sm:$0xff] 0.0
          %693 = vst [vmem:[#allocation3 + $0x988] sm:$0xff] 0.0
          %694 = vst [vmem:[#allocation3 + $0x990] sm:$0xff] 0.0
          %695 = vst [vmem:[#allocation3 + $0x998] sm:$0xff] 0.0
          %696 = vst [vmem:[#allocation3 + $0x9a0] sm:$0xff] 0.0
          %697 = vst [vmem:[#allocation3 + $0x9a8] sm:$0xff] 0.0
          %698 = vst [vmem:[#allocation3 + $0x9b0] sm:$0xff] 0.0
          %699 = vst [vmem:[#allocation3 + $0x9b8] sm:$0xff] 0.0
          %700 = vst [vmem:[#allocation3 + $0x9c0] sm:$0xff] 0.0
          %701 = vst [vmem:[#allocation3 + $0x9c8] sm:$0xff] 0.0
          %702 = vst [vmem:[#allocation3 + $0x9d0] sm:$0xff] 0.0
          %703 = vst [vmem:[#allocation3 + $0x9d8] sm:$0xff] 0.0
          %704 = vst [vmem:[#allocation3 + $0x9e0] sm:$0xff] 0.0
          %705 = vst [vmem:[#allocation3 + $0x9e8] sm:$0xff] 0.0
          %706 = vst [vmem:[#allocation3 + $0x9f0] sm:$0xff] 0.0
          %707 = vst [vmem:[#allocation3 + $0x9f8] sm:$0xff] 0.0
          %708 = vst [vmem:[#allocation3 + $0xa00] sm:$0xff] 0.0
          %709 = vst [vmem:[#allocation3 + $0xa08] sm:$0xff] 0.0
          %710 = vst [vmem:[#allocation3 + $0xa10] sm:$0xff] 0.0
          %711 = vst [vmem:[#allocation3 + $0xa18] sm:$0xff] 0.0
          %712 = vst [vmem:[#allocation3 + $0xa20] sm:$0xff] 0.0
          %713 = vst [vmem:[#allocation3 + $0xa28] sm:$0xff] 0.0
          %714 = vst [vmem:[#allocation3 + $0xa30] sm:$0xff] 0.0
          %715 = vst [vmem:[#allocation3 + $0xa38] sm:$0xff] 0.0
          %716 = vst [vmem:[#allocation3 + $0xa40] sm:$0xff] 0.0
          %717 = vst [vmem:[#allocation3 + $0xa48] sm:$0xff] 0.0
          %718 = vst [vmem:[#allocation3 + $0xa50] sm:$0xff] 0.0
          %719 = vst [vmem:[#allocation3 + $0xa58] sm:$0xff] 0.0
          %720 = vst [vmem:[#allocation3 + $0xa60] sm:$0xff] 0.0
          %721 = vst [vmem:[#allocation3 + $0xa68] sm:$0xff] 0.0
          %722 = vst [vmem:[#allocation3 + $0xa70] sm:$0xff] 0.0
          %723 = vst [vmem:[#allocation3 + $0xa78] sm:$0xff] 0.0
          %724 = vst [vmem:[#allocation3 + $0xa80] sm:$0xff] 0.0
          %725 = vst [vmem:[#allocation3 + $0xa88] sm:$0xff] 0.0
          %726 = vst [vmem:[#allocation3 + $0xa90] sm:$0xff] 0.0
          %727 = vst [vmem:[#allocation3 + $0xa98] sm:$0xff] 0.0
          %728 = vst [vmem:[#allocation3 + $0xaa0] sm:$0xff] 0.0
          %729 = vst [vmem:[#allocation3 + $0xaa8] sm:$0xff] 0.0
          %730 = vst [vmem:[#allocation3 + $0xab0] sm:$0xff] 0.0
          %731 = vst [vmem:[#allocation3 + $0xab8] sm:$0xff] 0.0
          %732 = vst [vmem:[#allocation3 + $0xac0] sm:$0xff] 0.0
          %733 = vst [vmem:[#allocation3 + $0xac8] sm:$0xff] 0.0
          %734 = vst [vmem:[#allocation3 + $0xad0] sm:$0xff] 0.0
          %735 = vst [vmem:[#allocation3 + $0xad8] sm:$0xff] 0.0
          %736 = vst [vmem:[#allocation3 + $0xae0] sm:$0xff] 0.0
          %737 = vst [vmem:[#allocation3 + $0xae8] sm:$0xff] 0.0
          %738 = vst [vmem:[#allocation3 + $0xaf0] sm:$0xff] 0.0
          %739 = vst [vmem:[#allocation3 + $0xaf8] sm:$0xff] 0.0
          %740 = vst [vmem:[#allocation3 + $0xb00] sm:$0xff] 0.0
          %741 = vst [vmem:[#allocation3 + $0xb08] sm:$0xff] 0.0
          %742 = vst [vmem:[#allocation3 + $0xb10] sm:$0xff] 0.0
          %743 = vst [vmem:[#allocation3 + $0xb18] sm:$0xff] 0.0
          %744 = vst [vmem:[#allocation3 + $0xb20] sm:$0xff] 0.0
          %745 = vst [vmem:[#allocation3 + $0xb28] sm:$0xff] 0.0
          %746 = vst [vmem:[#allocation3 + $0xb30] sm:$0xff] 0.0
          %747 = vst [vmem:[#allocation3 + $0xb38] sm:$0xff] 0.0
          %748 = vst [vmem:[#allocation3 + $0xb40] sm:$0xff] 0.0
          %749 = vst [vmem:[#allocation3 + $0xb48] sm:$0xff] 0.0
          %750 = vst [vmem:[#allocation3 + $0xb50] sm:$0xff] 0.0
          %751 = vst [vmem:[#allocation3 + $0xb58] sm:$0xff] 0.0
          %752 = vst [vmem:[#allocation3 + $0xb60] sm:$0xff] 0.0
          %753 = vst [vmem:[#allocation3 + $0xb68] sm:$0xff] 0.0
          %754 = vst [vmem:[#allocation3 + $0xb70] sm:$0xff] 0.0
          %755 = vst [vmem:[#allocation3 + $0xb78] sm:$0xff] 0.0
          %756 = vst [vmem:[#allocation3 + $0xb80] sm:$0xff] 0.0
          %757 = vst [vmem:[#allocation3 + $0xb88] sm:$0xff] 0.0
          %758 = vst [vmem:[#allocation3 + $0xb90] sm:$0xff] 0.0
          %759 = vst [vmem:[#allocation3 + $0xb98] sm:$0xff] 0.0
          %760 = vst [vmem:[#allocation3 + $0xba0] sm:$0xff] 0.0
          %761 = vst [vmem:[#allocation3 + $0xba8] sm:$0xff] 0.0
          %762 = vst [vmem:[#allocation3 + $0xbb0] sm:$0xff] 0.0
          %763 = vst [vmem:[#allocation3 + $0xbb8] sm:$0xff] 0.0
          %764 = vst [vmem:[#allocation3 + $0xbc0] sm:$0xff] 0.0
          %765 = vst [vmem:[#allocation3 + $0xbc8] sm:$0xff] 0.0
          %766 = vst [vmem:[#allocation3 + $0xbd0] sm:$0xff] 0.0
          %767 = vst [vmem:[#allocation3 + $0xbd8] sm:$0xff] 0.0
          %768 = vst [vmem:[#allocation3 + $0xbe0] sm:$0xff] 0.0
          %769 = vst [vmem:[#allocation3 + $0xbe8] sm:$0xff] 0.0
          %770 = vst [vmem:[#allocation3 + $0xbf0] sm:$0xff] 0.0
          %771 = vst [vmem:[#allocation3 + $0xbf8] sm:$0xff] 0.0
          %772 = vst [vmem:[#allocation3 + $0xc00] sm:$0xff] 0.0
          %773 = vst [vmem:[#allocation3 + $0xc08] sm:$0xff] 0.0
          %774 = vst [vmem:[#allocation3 + $0xc10] sm:$0xff] 0.0
          %775 = vst [vmem:[#allocation3 + $0xc18] sm:$0xff] 0.0
          %776 = vst [vmem:[#allocation3 + $0xc20] sm:$0xff] 0.0
          %777 = vst [vmem:[#allocation3 + $0xc28] sm:$0xff] 0.0
          %778 = vst [vmem:[#allocation3 + $0xc30] sm:$0xff] 0.0
          %779 = vst [vmem:[#allocation3 + $0xc38] sm:$0xff] 0.0
          %780 = vst [vmem:[#allocation3 + $0xc40] sm:$0xff] 0.0
          %781 = vst [vmem:[#allocation3 + $0xc48] sm:$0xff] 0.0
          %782 = vst [vmem:[#allocation3 + $0xc50] sm:$0xff] 0.0
          %783 = vst [vmem:[#allocation3 + $0xc58] sm:$0xff] 0.0
          %784 = vst [vmem:[#allocation3 + $0xc60] sm:$0xff] 0.0
          %785 = vst [vmem:[#allocation3 + $0xc68] sm:$0xff] 0.0
          %786 = vst [vmem:[#allocation3 + $0xc70] sm:$0xff] 0.0
          %787 = vst [vmem:[#allocation3 + $0xc78] sm:$0xff] 0.0
          %788 = vst [vmem:[#allocation3 + $0xc80] sm:$0xff] 0.0
          %789 = vst [vmem:[#allocation3 + $0xc88] sm:$0xff] 0.0
          %790 = vst [vmem:[#allocation3 + $0xc90] sm:$0xff] 0.0
          %791 = vst [vmem:[#allocation3 + $0xc98] sm:$0xff] 0.0
          %792 = vst [vmem:[#allocation3 + $0xca0] sm:$0xff] 0.0
          %793 = vst [vmem:[#allocation3 + $0xca8] sm:$0xff] 0.0
          %794 = vst [vmem:[#allocation3 + $0xcb0] sm:$0xff] 0.0
          %795 = vst [vmem:[#allocation3 + $0xcb8] sm:$0xff] 0.0
          %796 = vst [vmem:[#allocation3 + $0xcc0] sm:$0xff] 0.0
          %797 = vst [vmem:[#allocation3 + $0xcc8] sm:$0xff] 0.0
          %798 = vst [vmem:[#allocation3 + $0xcd0] sm:$0xff] 0.0
          %799 = vst [vmem:[#allocation3 + $0xcd8] sm:$0xff] 0.0
          %800 = vst [vmem:[#allocation3 + $0xce0] sm:$0xff] 0.0
          %801 = vst [vmem:[#allocation3 + $0xce8] sm:$0xff] 0.0
          %802 = vst [vmem:[#allocation3 + $0xcf0] sm:$0xff] 0.0
          %803 = vst [vmem:[#allocation3 + $0xcf8] sm:$0xff] 0.0
          %804 = vst [vmem:[#allocation3 + $0xd00] sm:$0xff] 0.0
          %805 = vst [vmem:[#allocation3 + $0xd08] sm:$0xff] 0.0
          %806 = vst [vmem:[#allocation3 + $0xd10] sm:$0xff] 0.0
          %807 = vst [vmem:[#allocation3 + $0xd18] sm:$0xff] 0.0
          %808 = vst [vmem:[#allocation3 + $0xd20] sm:$0xff] 0.0
          %809 = vst [vmem:[#allocation3 + $0xd28] sm:$0xff] 0.0
          %810 = vst [vmem:[#allocation3 + $0xd30] sm:$0xff] 0.0
          %811 = vst [vmem:[#allocation3 + $0xd38] sm:$0xff] 0.0
          %812 = vst [vmem:[#allocation3 + $0xd40] sm:$0xff] 0.0
          %813 = vst [vmem:[#allocation3 + $0xd48] sm:$0xff] 0.0
          %814 = vst [vmem:[#allocation3 + $0xd50] sm:$0xff] 0.0
          %815 = vst [vmem:[#allocation3 + $0xd58] sm:$0xff] 0.0
          %816 = vst [vmem:[#allocation3 + $0xd60] sm:$0xff] 0.0
          %817 = vst [vmem:[#allocation3 + $0xd68] sm:$0xff] 0.0
          %818 = vst [vmem:[#allocation3 + $0xd70] sm:$0xff] 0.0
          %819 = vst [vmem:[#allocation3 + $0xd78] sm:$0xff] 0.0
          %820 = vst [vmem:[#allocation3 + $0xd80] sm:$0xff] 0.0
          %821 = vst [vmem:[#allocation3 + $0xd88] sm:$0xff] 0.0
          %822 = vst [vmem:[#allocation3 + $0xd90] sm:$0xff] 0.0
          %823 = vst [vmem:[#allocation3 + $0xd98] sm:$0xff] 0.0
          %824 = vst [vmem:[#allocation3 + $0xda0] sm:$0xff] 0.0
          %825 = vst [vmem:[#allocation3 + $0xda8] sm:$0xff] 0.0
          %826 = vst [vmem:[#allocation3 + $0xdb0] sm:$0xff] 0.0
          %827 = vst [vmem:[#allocation3 + $0xdb8] sm:$0xff] 0.0
          %828 = vst [vmem:[#allocation3 + $0xdc0] sm:$0xff] 0.0
          %829 = vst [vmem:[#allocation3 + $0xdc8] sm:$0xff] 0.0
          %830 = vst [vmem:[#allocation3 + $0xdd0] sm:$0xff] 0.0
          %831 = vst [vmem:[#allocation3 + $0xdd8] sm:$0xff] 0.0
          %832 = vst [vmem:[#allocation3 + $0xde0] sm:$0xff] 0.0
          %833 = vst [vmem:[#allocation3 + $0xde8] sm:$0xff] 0.0
          %834 = vst [vmem:[#allocation3 + $0xdf0] sm:$0xff] 0.0
          %835 = vst [vmem:[#allocation3 + $0xdf8] sm:$0xff] 0.0
          %836 = vst [vmem:[#allocation3 + $0xe00] sm:$0xff] 0.0
          %837 = vst [vmem:[#allocation3 + $0xe08] sm:$0xff] 0.0
          %838 = vst [vmem:[#allocation3 + $0xe10] sm:$0xff] 0.0
          %839 = vst [vmem:[#allocation3 + $0xe18] sm:$0xff] 0.0
          %840 = vst [vmem:[#allocation3 + $0xe20] sm:$0xff] 0.0
          %841 = vst [vmem:[#allocation3 + $0xe28] sm:$0xff] 0.0
          %842 = vst [vmem:[#allocation3 + $0xe30] sm:$0xff] 0.0
          %843 = vst [vmem:[#allocation3 + $0xe38] sm:$0xff] 0.0
          %844 = vst [vmem:[#allocation3 + $0xe40] sm:$0xff] 0.0
          %845 = vst [vmem:[#allocation3 + $0xe48] sm:$0xff] 0.0
          %846 = vst [vmem:[#allocation3 + $0xe50] sm:$0xff] 0.0
          %847 = vst [vmem:[#allocation3 + $0xe58] sm:$0xff] 0.0
          %848 = vst [vmem:[#allocation3 + $0xe60] sm:$0xff] 0.0
          %849 = vst [vmem:[#allocation3 + $0xe68] sm:$0xff] 0.0
          %850 = vst [vmem:[#allocation3 + $0xe70] sm:$0xff] 0.0
          %851 = vst [vmem:[#allocation3 + $0xe78] sm:$0xff] 0.0
          %852 = vst [vmem:[#allocation3 + $0xe80] sm:$0xff] 0.0
          %853 = vst [vmem:[#allocation3 + $0xe88] sm:$0xff] 0.0
          %854 = vst [vmem:[#allocation3 + $0xe90] sm:$0xff] 0.0
          %855 = vst [vmem:[#allocation3 + $0xe98] sm:$0xff] 0.0
          %856 = vst [vmem:[#allocation3 + $0xea0] sm:$0xff] 0.0
          %857 = vst [vmem:[#allocation3 + $0xea8] sm:$0xff] 0.0
          %858 = vst [vmem:[#allocation3 + $0xeb0] sm:$0xff] 0.0
          %859 = vst [vmem:[#allocation3 + $0xeb8] sm:$0xff] 0.0
          %860 = vst [vmem:[#allocation3 + $0xec0] sm:$0xff] 0.0
          %861 = vst [vmem:[#allocation3 + $0xec8] sm:$0xff] 0.0
          %862 = vst [vmem:[#allocation3 + $0xed0] sm:$0xff] 0.0
          %863 = vst [vmem:[#allocation3 + $0xed8] sm:$0xff] 0.0
          %864 = vst [vmem:[#allocation3 + $0xee0] sm:$0xff] 0.0
          %865 = vst [vmem:[#allocation3 + $0xee8] sm:$0xff] 0.0
          %866 = vst [vmem:[#allocation3 + $0xef0] sm:$0xff] 0.0
          %867 = vst [vmem:[#allocation3 + $0xef8] sm:$0xff] 0.0
          %868 = vst [vmem:[#allocation3 + $0xf00] sm:$0xff] 0.0
          %869 = vst [vmem:[#allocation3 + $0xf08] sm:$0xff] 0.0
          %870 = vst [vmem:[#allocation3 + $0xf10] sm:$0xff] 0.0
          %871 = vst [vmem:[#allocation3 + $0xf18] sm:$0xff] 0.0
          %872 = vst [vmem:[#allocation3 + $0xf20] sm:$0xff] 0.0
          %873 = vst [vmem:[#allocation3 + $0xf28] sm:$0xff] 0.0
          %874 = vst [vmem:[#allocation3 + $0xf30] sm:$0xff] 0.0
          %875 = vst [vmem:[#allocation3 + $0xf38] sm:$0xff] 0.0
          %876 = vst [vmem:[#allocation3 + $0xf40] sm:$0xff] 0.0
          %877 = vst [vmem:[#allocation3 + $0xf48] sm:$0xff] 0.0
          %878 = vst [vmem:[#allocation3 + $0xf50] sm:$0xff] 0.0
          %879 = vst [vmem:[#allocation3 + $0xf58] sm:$0xff] 0.0
          %880 = vst [vmem:[#allocation3 + $0xf60] sm:$0xff] 0.0
          %881 = vst [vmem:[#allocation3 + $0xf68] sm:$0xff] 0.0
          %882 = vst [vmem:[#allocation3 + $0xf70] sm:$0xff] 0.0
          %883 = vst [vmem:[#allocation3 + $0xf78] sm:$0xff] 0.0
          %884 = vst [vmem:[#allocation3 + $0xf80] sm:$0xff] 0.0
          %885 = vst [vmem:[#allocation3 + $0xf88] sm:$0xff] 0.0
          %886 = vst [vmem:[#allocation3 + $0xf90] sm:$0xff] 0.0
          %887 = vst [vmem:[#allocation3 + $0xf98] sm:$0xff] 0.0
          %888 = vst [vmem:[#allocation3 + $0xfa0] sm:$0xff] 0.0
          %889 = vst [vmem:[#allocation3 + $0xfa8] sm:$0xff] 0.0
          %890 = vst [vmem:[#allocation3 + $0xfb0] sm:$0xff] 0.0
          %891 = vst [vmem:[#allocation3 + $0xfb8] sm:$0xff] 0.0
          %892 = vst [vmem:[#allocation3 + $0xfc0] sm:$0xff] 0.0
          %893 = vst [vmem:[#allocation3 + $0xfc8] sm:$0xff] 0.0
          %894 = vst [vmem:[#allocation3 + $0xfd0] sm:$0xff] 0.0
          %895 = vst [vmem:[#allocation3 + $0xfd8] sm:$0xff] 0.0
          %896 = vst [vmem:[#allocation3 + $0xfe0] sm:$0xff] 0.0
          %897 = vst [vmem:[#allocation3 + $0xfe8] sm:$0xff] 0.0
          %898 = vst [vmem:[#allocation3 + $0xff0] sm:$0xff] 0.0
          %899 = vst [vmem:[#allocation3 + $0xff8] sm:$0xff] 0.0
          %900 = vst [vmem:[#allocation3 + $0x1000] sm:$0xff] 0.0
          %901 = vst [vmem:[#allocation3 + $0x1008] sm:$0xff] 0.0
          %902 = vst [vmem:[#allocation3 + $0x1010] sm:$0xff] 0.0
          %903 = vst [vmem:[#allocation3 + $0x1018] sm:$0xff] 0.0
          %904 = vst [vmem:[#allocation3 + $0x1020] sm:$0xff] 0.0
          %905 = vst [vmem:[#allocation3 + $0x1028] sm:$0xff] 0.0
          %906 = vst [vmem:[#allocation3 + $0x1030] sm:$0xff] 0.0
          %907 = vst [vmem:[#allocation3 + $0x1038] sm:$0xff] 0.0
          %908 = vst [vmem:[#allocation3 + $0x1040] sm:$0xff] 0.0
          %909 = vst [vmem:[#allocation3 + $0x1048] sm:$0xff] 0.0
          %910 = vst [vmem:[#allocation3 + $0x1050] sm:$0xff] 0.0
          %911 = vst [vmem:[#allocation3 + $0x1058] sm:$0xff] 0.0
          %912 = vst [vmem:[#allocation3 + $0x1060] sm:$0xff] 0.0
          %913 = vst [vmem:[#allocation3 + $0x1068] sm:$0xff] 0.0
          %914 = vst [vmem:[#allocation3 + $0x1070] sm:$0xff] 0.0
          %915 = vst [vmem:[#allocation3 + $0x1078] sm:$0xff] 0.0
          %916 = vst [vmem:[#allocation3 + $0x1080] sm:$0xff] 0.0
          %917 = vst [vmem:[#allocation3 + $0x1088] sm:$0xff] 0.0
          %918 = vst [vmem:[#allocation3 + $0x1090] sm:$0xff] 0.0
          %919 = vst [vmem:[#allocation3 + $0x1098] sm:$0xff] 0.0
          %920 = vst [vmem:[#allocation3 + $0x10a0] sm:$0xff] 0.0
          %921 = vst [vmem:[#allocation3 + $0x10a8] sm:$0xff] 0.0
          %922 = vst [vmem:[#allocation3 + $0x10b0] sm:$0xff] 0.0
          %923 = vst [vmem:[#allocation3 + $0x10b8] sm:$0xff] 0.0
          %924 = vst [vmem:[#allocation3 + $0x10c0] sm:$0xff] 0.0
          %925 = vst [vmem:[#allocation3 + $0x10c8] sm:$0xff] 0.0
          %926 = vst [vmem:[#allocation3 + $0x10d0] sm:$0xff] 0.0
          %927 = vst [vmem:[#allocation3 + $0x10d8] sm:$0xff] 0.0
          %928 = vst [vmem:[#allocation3 + $0x10e0] sm:$0xff] 0.0
          %929 = vst [vmem:[#allocation3 + $0x10e8] sm:$0xff] 0.0
          %930 = vst [vmem:[#allocation3 + $0x10f0] sm:$0xff] 0.0
          %931 = vst [vmem:[#allocation3 + $0x10f8] sm:$0xff] 0.0
          %932 = vst [vmem:[#allocation3 + $0x1100] sm:$0xff] 0.0
          %933 = vst [vmem:[#allocation3 + $0x1108] sm:$0xff] 0.0
          %934 = vst [vmem:[#allocation3 + $0x1110] sm:$0xff] 0.0
          %935 = vst [vmem:[#allocation3 + $0x1118] sm:$0xff] 0.0
          %936 = vst [vmem:[#allocation3 + $0x1120] sm:$0xff] 0.0
          %937 = vst [vmem:[#allocation3 + $0x1128] sm:$0xff] 0.0
          %938 = vst [vmem:[#allocation3 + $0x1130] sm:$0xff] 0.0
          %939 = vst [vmem:[#allocation3 + $0x1138] sm:$0xff] 0.0
          %940 = vst [vmem:[#allocation3 + $0x1140] sm:$0xff] 0.0
          %941 = vst [vmem:[#allocation3 + $0x1148] sm:$0xff] 0.0
          %942 = vst [vmem:[#allocation3 + $0x1150] sm:$0xff] 0.0
          %943 = vst [vmem:[#allocation3 + $0x1158] sm:$0xff] 0.0
          %944 = vst [vmem:[#allocation3 + $0x1160] sm:$0xff] 0.0
          %945 = vst [vmem:[#allocation3 + $0x1168] sm:$0xff] 0.0
          %946 = vst [vmem:[#allocation3 + $0x1170] sm:$0xff] 0.0
          %947 = vst [vmem:[#allocation3 + $0x1178] sm:$0xff] 0.0
          %948 = vst [vmem:[#allocation3 + $0x1180] sm:$0xff] 0.0
          %949 = vst [vmem:[#allocation3 + $0x1188] sm:$0xff] 0.0
          %950 = vst [vmem:[#allocation3 + $0x1190] sm:$0xff] 0.0
          %951 = vst [vmem:[#allocation3 + $0x1198] sm:$0xff] 0.0
          %952 = vst [vmem:[#allocation3 + $0x11a0] sm:$0xff] 0.0
          %953 = vst [vmem:[#allocation3 + $0x11a8] sm:$0xff] 0.0
          %954 = vst [vmem:[#allocation3 + $0x11b0] sm:$0xff] 0.0
          %955 = vst [vmem:[#allocation3 + $0x11b8] sm:$0xff] 0.0
          %956 = vst [vmem:[#allocation3 + $0x11c0] sm:$0xff] 0.0
          %957 = vst [vmem:[#allocation3 + $0x11c8] sm:$0xff] 0.0
          %958 = vst [vmem:[#allocation3 + $0x11d0] sm:$0xff] 0.0
          %959 = vst [vmem:[#allocation3 + $0x11d8] sm:$0xff] 0.0
          %960 = vst [vmem:[#allocation3 + $0x11e0] sm:$0xff] 0.0
          %961 = vst [vmem:[#allocation3 + $0x11e8] sm:$0xff] 0.0
          %962 = vst [vmem:[#allocation3 + $0x11f0] sm:$0xff] 0.0
          %963 = vst [vmem:[#allocation3 + $0x11f8] sm:$0xff] 0.0
          %964 = vst [vmem:[#allocation3 + $0x1200] sm:$0xff] 0.0
          %965 = vst [vmem:[#allocation3 + $0x1208] sm:$0xff] 0.0
          %966 = vst [vmem:[#allocation3 + $0x1210] sm:$0xff] 0.0
          %967 = vst [vmem:[#allocation3 + $0x1218] sm:$0xff] 0.0
          %968 = vst [vmem:[#allocation3 + $0x1220] sm:$0xff] 0.0
          %969 = vst [vmem:[#allocation3 + $0x1228] sm:$0xff] 0.0
          %970 = vst [vmem:[#allocation3 + $0x1230] sm:$0xff] 0.0
          %971 = vst [vmem:[#allocation3 + $0x1238] sm:$0xff] 0.0
          %972 = vst [vmem:[#allocation3 + $0x1240] sm:$0xff] 0.0
          %973 = vst [vmem:[#allocation3 + $0x1248] sm:$0xff] 0.0
          %974 = vst [vmem:[#allocation3 + $0x1250] sm:$0xff] 0.0
          %975 = vst [vmem:[#allocation3 + $0x1258] sm:$0xff] 0.0
          %976 = vst [vmem:[#allocation3 + $0x1260] sm:$0xff] 0.0
          %977 = vst [vmem:[#allocation3 + $0x1268] sm:$0xff] 0.0
          %978 = vst [vmem:[#allocation3 + $0x1270] sm:$0xff] 0.0
          %979 = vst [vmem:[#allocation3 + $0x1278] sm:$0xff] 0.0
          %980 = vst [vmem:[#allocation3 + $0x1280] sm:$0xff] 0.0
          %981 = vst [vmem:[#allocation3 + $0x1288] sm:$0xff] 0.0
          %982 = vst [vmem:[#allocation3 + $0x1290] sm:$0xff] 0.0
          %983 = vst [vmem:[#allocation3 + $0x1298] sm:$0xff] 0.0
          %984 = vst [vmem:[#allocation3 + $0x12a0] sm:$0xff] 0.0
          %985 = vst [vmem:[#allocation3 + $0x12a8] sm:$0xff] 0.0
          %986 = vst [vmem:[#allocation3 + $0x12b0] sm:$0xff] 0.0
          %987 = vst [vmem:[#allocation3 + $0x12b8] sm:$0xff] 0.0
          %988 = vst [vmem:[#allocation3 + $0x12c0] sm:$0xff] 0.0
          %989 = vst [vmem:[#allocation3 + $0x12c8] sm:$0xff] 0.0
          %990 = vst [vmem:[#allocation3 + $0x12d0] sm:$0xff] 0.0
          %991 = vst [vmem:[#allocation3 + $0x12d8] sm:$0xff] 0.0
          %992 = vst [vmem:[#allocation3 + $0x12e0] sm:$0xff] 0.0
          %993 = vst [vmem:[#allocation3 + $0x12e8] sm:$0xff] 0.0
          %994 = vst [vmem:[#allocation3 + $0x12f0] sm:$0xff] 0.0
          %995 = vst [vmem:[#allocation3 + $0x12f8] sm:$0xff] 0.0
          %996 = vst [vmem:[#allocation3 + $0x1300] sm:$0xff] 0.0
          %997 = vst [vmem:[#allocation3 + $0x1308] sm:$0xff] 0.0
          %998 = vst [vmem:[#allocation3 + $0x1310] sm:$0xff] 0.0
          %999 = vst [vmem:[#allocation3 + $0x1318] sm:$0xff] 0.0
          %1000 = vst [vmem:[#allocation3 + $0x1320] sm:$0xff] 0.0
          %1001 = vst [vmem:[#allocation3 + $0x1328] sm:$0xff] 0.0
          %1002 = vst [vmem:[#allocation3 + $0x1330] sm:$0xff] 0.0
          %1003 = vst [vmem:[#allocation3 + $0x1338] sm:$0xff] 0.0
          %1004 = vst [vmem:[#allocation3 + $0x1340] sm:$0xff] 0.0
          %1005 = vst [vmem:[#allocation3 + $0x1348] sm:$0xff] 0.0
          %1006 = vst [vmem:[#allocation3 + $0x1350] sm:$0xff] 0.0
          %1007 = vst [vmem:[#allocation3 + $0x1358] sm:$0xff] 0.0
          %1008 = vst [vmem:[#allocation3 + $0x1360] sm:$0xff] 0.0
          %1009 = vst [vmem:[#allocation3 + $0x1368] sm:$0xff] 0.0
          %1010 = vst [vmem:[#allocation3 + $0x1370] sm:$0xff] 0.0
          %1011 = vst [vmem:[#allocation3 + $0x1378] sm:$0xff] 0.0
          %1012 = vst [vmem:[#allocation3 + $0x1380] sm:$0xff] 0.0
          %1013 = vst [vmem:[#allocation3 + $0x1388] sm:$0xff] 0.0
          %1014 = vst [vmem:[#allocation3 + $0x1390] sm:$0xff] 0.0
          %1015 = vst [vmem:[#allocation3 + $0x1398] sm:$0xff] 0.0
          %1016 = vst [vmem:[#allocation3 + $0x13a0] sm:$0xff] 0.0
          %1017 = vst [vmem:[#allocation3 + $0x13a8] sm:$0xff] 0.0
          %1018 = vst [vmem:[#allocation3 + $0x13b0] sm:$0xff] 0.0
          %1019 = vst [vmem:[#allocation3 + $0x13b8] sm:$0xff] 0.0
          %1020 = vst [vmem:[#allocation3 + $0x13c0] sm:$0xff] 0.0
          %1021 = vst [vmem:[#allocation3 + $0x13c8] sm:$0xff] 0.0
          %1022 = vst [vmem:[#allocation3 + $0x13d0] sm:$0xff] 0.0
          %1023 = vst [vmem:[#allocation3 + $0x13d8] sm:$0xff] 0.0
          %1024 = vst [vmem:[#allocation3 + $0x13e0] sm:$0xff] 0.0
          %1025 = vst [vmem:[#allocation3 + $0x13e8] sm:$0xff] 0.0
          %1026 = vst [vmem:[#allocation3 + $0x13f0] sm:$0xff] 0.0
          %1027 = vst [vmem:[#allocation3 + $0x13f8] sm:$0xff] 0.0
          %1028 = vst [vmem:[#allocation3 + $0x1400] sm:$0xff] 0.0
          %1029 = vst [vmem:[#allocation3 + $0x1408] sm:$0xff] 0.0
          %1030 = vst [vmem:[#allocation3 + $0x1410] sm:$0xff] 0.0
          %1031 = vst [vmem:[#allocation3 + $0x1418] sm:$0xff] 0.0
          %1032 = vst [vmem:[#allocation3 + $0x1420] sm:$0xff] 0.0
          %1033 = vst [vmem:[#allocation3 + $0x1428] sm:$0xff] 0.0
          %1034 = vst [vmem:[#allocation3 + $0x1430] sm:$0xff] 0.0
          %1035 = vst [vmem:[#allocation3 + $0x1438] sm:$0xff] 0.0
          %1036 = vst [vmem:[#allocation3 + $0x1440] sm:$0xff] 0.0
          %1037 = vst [vmem:[#allocation3 + $0x1448] sm:$0xff] 0.0
          %1038 = vst [vmem:[#allocation3 + $0x1450] sm:$0xff] 0.0
          %1039 = vst [vmem:[#allocation3 + $0x1458] sm:$0xff] 0.0
          %1040 = vst [vmem:[#allocation3 + $0x1460] sm:$0xff] 0.0
          %1041 = vst [vmem:[#allocation3 + $0x1468] sm:$0xff] 0.0
          %1042 = vst [vmem:[#allocation3 + $0x1470] sm:$0xff] 0.0
          %1043 = vst [vmem:[#allocation3 + $0x1478] sm:$0xff] 0.0
          %1044 = vst [vmem:[#allocation3 + $0x1480] sm:$0xff] 0.0
          %1045 = vst [vmem:[#allocation3 + $0x1488] sm:$0xff] 0.0
          %1046 = vst [vmem:[#allocation3 + $0x1490] sm:$0xff] 0.0
          %1047 = vst [vmem:[#allocation3 + $0x1498] sm:$0xff] 0.0
          %1048 = vst [vmem:[#allocation3 + $0x14a0] sm:$0xff] 0.0
          %1049 = vst [vmem:[#allocation3 + $0x14a8] sm:$0xff] 0.0
          %1050 = vst [vmem:[#allocation3 + $0x14b0] sm:$0xff] 0.0
          %1051 = vst [vmem:[#allocation3 + $0x14b8] sm:$0xff] 0.0
          %1052 = vst [vmem:[#allocation3 + $0x14c0] sm:$0xff] 0.0
          %1053 = vst [vmem:[#allocation3 + $0x14c8] sm:$0xff] 0.0
          %1054 = vst [vmem:[#allocation3 + $0x14d0] sm:$0xff] 0.0
          %1055 = vst [vmem:[#allocation3 + $0x14d8] sm:$0xff] 0.0
          %1056 = vst [vmem:[#allocation3 + $0x14e0] sm:$0xff] 0.0
          %1057 = vst [vmem:[#allocation3 + $0x14e8] sm:$0xff] 0.0
          %1058 = vst [vmem:[#allocation3 + $0x14f0] sm:$0xff] 0.0
          %1059 = vst [vmem:[#allocation3 + $0x14f8] sm:$0xff] 0.0
          %1060 = vst [vmem:[#allocation3 + $0x1500] sm:$0xff] 0.0
          %1061 = vst [vmem:[#allocation3 + $0x1508] sm:$0xff] 0.0
          %1062 = vst [vmem:[#allocation3 + $0x1510] sm:$0xff] 0.0
          %1063 = vst [vmem:[#allocation3 + $0x1518] sm:$0xff] 0.0
          %1064 = vst [vmem:[#allocation3 + $0x1520] sm:$0xff] 0.0
          %1065 = vst [vmem:[#allocation3 + $0x1528] sm:$0xff] 0.0
          %1066 = vst [vmem:[#allocation3 + $0x1530] sm:$0xff] 0.0
          %1067 = vst [vmem:[#allocation3 + $0x1538] sm:$0xff] 0.0
          %1068 = vst [vmem:[#allocation3 + $0x1540] sm:$0xff] 0.0
          %1069 = vst [vmem:[#allocation3 + $0x1548] sm:$0xff] 0.0
          %1070 = vst [vmem:[#allocation3 + $0x1550] sm:$0xff] 0.0
          %1071 = vst [vmem:[#allocation3 + $0x1558] sm:$0xff] 0.0
          %1072 = vst [vmem:[#allocation3 + $0x1560] sm:$0xff] 0.0
          %1073 = vst [vmem:[#allocation3 + $0x1568] sm:$0xff] 0.0
          %1074 = vst [vmem:[#allocation3 + $0x1570] sm:$0xff] 0.0
          %1075 = vst [vmem:[#allocation3 + $0x1578] sm:$0xff] 0.0
          %1076 = vst [vmem:[#allocation3 + $0x1580] sm:$0xff] 0.0
          %1077 = vst [vmem:[#allocation3 + $0x1588] sm:$0xff] 0.0
          %1078 = vst [vmem:[#allocation3 + $0x1590] sm:$0xff] 0.0
          %1079 = vst [vmem:[#allocation3 + $0x1598] sm:$0xff] 0.0
          %1080 = vst [vmem:[#allocation3 + $0x15a0] sm:$0xff] 0.0
          %1081 = vst [vmem:[#allocation3 + $0x15a8] sm:$0xff] 0.0
          %1082 = vst [vmem:[#allocation3 + $0x15b0] sm:$0xff] 0.0
          %1083 = vst [vmem:[#allocation3 + $0x15b8] sm:$0xff] 0.0
          %1084 = vst [vmem:[#allocation3 + $0x15c0] sm:$0xff] 0.0
          %1085 = vst [vmem:[#allocation3 + $0x15c8] sm:$0xff] 0.0
          %1086 = vst [vmem:[#allocation3 + $0x15d0] sm:$0xff] 0.0
          %1087 = vst [vmem:[#allocation3 + $0x15d8] sm:$0xff] 0.0
          %1088 = vst [vmem:[#allocation3 + $0x15e0] sm:$0xff] 0.0
          %1089 = vst [vmem:[#allocation3 + $0x15e8] sm:$0xff] 0.0
          %1090 = vst [vmem:[#allocation3 + $0x15f0] sm:$0xff] 0.0
          %1091 = vst [vmem:[#allocation3 + $0x15f8] sm:$0xff] 0.0
          %1092 = vst [vmem:[#allocation3 + $0x1600] sm:$0xff] 0.0
          %1093 = vst [vmem:[#allocation3 + $0x1608] sm:$0xff] 0.0
          %1094 = vst [vmem:[#allocation3 + $0x1610] sm:$0xff] 0.0
          %1095 = vst [vmem:[#allocation3 + $0x1618] sm:$0xff] 0.0
          %1096 = vst [vmem:[#allocation3 + $0x1620] sm:$0xff] 0.0
          %1097 = vst [vmem:[#allocation3 + $0x1628] sm:$0xff] 0.0
          %1098 = vst [vmem:[#allocation3 + $0x1630] sm:$0xff] 0.0
          %1099 = vst [vmem:[#allocation3 + $0x1638] sm:$0xff] 0.0
          %1100 = vst [vmem:[#allocation3 + $0x1640] sm:$0xff] 0.0
          %1101 = vst [vmem:[#allocation3 + $0x1648] sm:$0xff] 0.0
          %1102 = vst [vmem:[#allocation3 + $0x1650] sm:$0xff] 0.0
          %1103 = vst [vmem:[#allocation3 + $0x1658] sm:$0xff] 0.0
          %1104 = vst [vmem:[#allocation3 + $0x1660] sm:$0xff] 0.0
          %1105 = vst [vmem:[#allocation3 + $0x1668] sm:$0xff] 0.0
          %1106 = vst [vmem:[#allocation3 + $0x1670] sm:$0xff] 0.0
          %1107 = vst [vmem:[#allocation3 + $0x1678] sm:$0xff] 0.0
          %1108 = vst [vmem:[#allocation3 + $0x1680] sm:$0xff] 0.0
          %1109 = vst [vmem:[#allocation3 + $0x1688] sm:$0xff] 0.0
          %1110 = vst [vmem:[#allocation3 + $0x1690] sm:$0xff] 0.0
          %1111 = vst [vmem:[#allocation3 + $0x1698] sm:$0xff] 0.0
          %1112 = vst [vmem:[#allocation3 + $0x16a0] sm:$0xff] 0.0
          %1113 = vst [vmem:[#allocation3 + $0x16a8] sm:$0xff] 0.0
          %1114 = vst [vmem:[#allocation3 + $0x16b0] sm:$0xff] 0.0
          %1115 = vst [vmem:[#allocation3 + $0x16b8] sm:$0xff] 0.0
          %1116 = vst [vmem:[#allocation3 + $0x16c0] sm:$0xff] 0.0
          %1117 = vst [vmem:[#allocation3 + $0x16c8] sm:$0xff] 0.0
          %1118 = vst [vmem:[#allocation3 + $0x16d0] sm:$0xff] 0.0
          %1119 = vst [vmem:[#allocation3 + $0x16d8] sm:$0xff] 0.0
          %1120 = vst [vmem:[#allocation3 + $0x16e0] sm:$0xff] 0.0
          %1121 = vst [vmem:[#allocation3 + $0x16e8] sm:$0xff] 0.0
          %1122 = vst [vmem:[#allocation3 + $0x16f0] sm:$0xff] 0.0
          %1123 = vst [vmem:[#allocation3 + $0x16f8] sm:$0xff] 0.0
          %1124 = vst [vmem:[#allocation3 + $0x1700] sm:$0xff] 0.0
          %1125 = vst [vmem:[#allocation3 + $0x1708] sm:$0xff] 0.0
          %1126 = vst [vmem:[#allocation3 + $0x1710] sm:$0xff] 0.0
          %1127 = vst [vmem:[#allocation3 + $0x1718] sm:$0xff] 0.0
          %1128 = vst [vmem:[#allocation3 + $0x1720] sm:$0xff] 0.0
          %1129 = vst [vmem:[#allocation3 + $0x1728] sm:$0xff] 0.0
          %1130 = vst [vmem:[#allocation3 + $0x1730] sm:$0xff] 0.0
          %1131 = vst [vmem:[#allocation3 + $0x1738] sm:$0xff] 0.0
          %1132 = vst [vmem:[#allocation3 + $0x1740] sm:$0xff] 0.0
          %1133 = vst [vmem:[#allocation3 + $0x1748] sm:$0xff] 0.0
          %1134 = vst [vmem:[#allocation3 + $0x1750] sm:$0xff] 0.0
          %1135 = vst [vmem:[#allocation3 + $0x1758] sm:$0xff] 0.0
          %1136 = vst [vmem:[#allocation3 + $0x1760] sm:$0xff] 0.0
          %1137 = vst [vmem:[#allocation3 + $0x1768] sm:$0xff] 0.0
          %1138 = vst [vmem:[#allocation3 + $0x1770] sm:$0xff] 0.0
          %1139 = vst [vmem:[#allocation3 + $0x1778] sm:$0xff] 0.0
          %1140 = vst [vmem:[#allocation3 + $0x1780] sm:$0xff] 0.0
          %1141 = vst [vmem:[#allocation3 + $0x1788] sm:$0xff] 0.0
          %1142 = vst [vmem:[#allocation3 + $0x1790] sm:$0xff] 0.0
          %1143 = vst [vmem:[#allocation3 + $0x1798] sm:$0xff] 0.0
          %1144 = vst [vmem:[#allocation3 + $0x17a0] sm:$0xff] 0.0
          %1145 = vst [vmem:[#allocation3 + $0x17a8] sm:$0xff] 0.0
          %1146 = vst [vmem:[#allocation3 + $0x17b0] sm:$0xff] 0.0
          %1147 = vst [vmem:[#allocation3 + $0x17b8] sm:$0xff] 0.0
          %1148 = vst [vmem:[#allocation3 + $0x17c0] sm:$0xff] 0.0
          %1149 = vst [vmem:[#allocation3 + $0x17c8] sm:$0xff] 0.0
          %1150 = vst [vmem:[#allocation3 + $0x17d0] sm:$0xff] 0.0
          %1151 = vst [vmem:[#allocation3 + $0x17d8] sm:$0xff] 0.0
          %1152 = vst [vmem:[#allocation3 + $0x17e0] sm:$0xff] 0.0
          %1153 = vst [vmem:[#allocation3 + $0x17e8] sm:$0xff] 0.0
          %1154 = vst [vmem:[#allocation3 + $0x17f0] sm:$0xff] 0.0
          %1155 = vst [vmem:[#allocation3 + $0x17f8] sm:$0xff] 0.0
          %1156 = vst [vmem:[#allocation3 + $0x1800] sm:$0xff] 0.0
          %1157 = vst [vmem:[#allocation3 + $0x1808] sm:$0xff] 0.0
          %1158 = vst [vmem:[#allocation3 + $0x1810] sm:$0xff] 0.0
          %1159 = vst [vmem:[#allocation3 + $0x1818] sm:$0xff] 0.0
          %1160 = vst [vmem:[#allocation3 + $0x1820] sm:$0xff] 0.0
          %1161 = vst [vmem:[#allocation3 + $0x1828] sm:$0xff] 0.0
          %1162 = vst [vmem:[#allocation3 + $0x1830] sm:$0xff] 0.0
          %1163 = vst [vmem:[#allocation3 + $0x1838] sm:$0xff] 0.0
          %1164 = vst [vmem:[#allocation3 + $0x1840] sm:$0xff] 0.0
          %1165 = vst [vmem:[#allocation3 + $0x1848] sm:$0xff] 0.0
          %1166 = vst [vmem:[#allocation3 + $0x1850] sm:$0xff] 0.0
          %1167 = vst [vmem:[#allocation3 + $0x1858] sm:$0xff] 0.0
          %1168 = vst [vmem:[#allocation3 + $0x1860] sm:$0xff] 0.0
          %1169 = vst [vmem:[#allocation3 + $0x1868] sm:$0xff] 0.0
          %1170 = vst [vmem:[#allocation3 + $0x1870] sm:$0xff] 0.0
          %1171 = vst [vmem:[#allocation3 + $0x1878] sm:$0xff] 0.0
          %1172 = vst [vmem:[#allocation3 + $0x1880] sm:$0xff] 0.0
          %1173 = vst [vmem:[#allocation3 + $0x1888] sm:$0xff] 0.0
          %1174 = vst [vmem:[#allocation3 + $0x1890] sm:$0xff] 0.0
          %1175 = vst [vmem:[#allocation3 + $0x1898] sm:$0xff] 0.0
          %1176 = vst [vmem:[#allocation3 + $0x18a0] sm:$0xff] 0.0
          %1177 = vst [vmem:[#allocation3 + $0x18a8] sm:$0xff] 0.0
          %1178 = vst [vmem:[#allocation3 + $0x18b0] sm:$0xff] 0.0
          %1179 = vst [vmem:[#allocation3 + $0x18b8] sm:$0xff] 0.0
          %1180 = vst [vmem:[#allocation3 + $0x18c0] sm:$0xff] 0.0
          %1181 = vst [vmem:[#allocation3 + $0x18c8] sm:$0xff] 0.0
          %1182 = vst [vmem:[#allocation3 + $0x18d0] sm:$0xff] 0.0
          %1183 = vst [vmem:[#allocation3 + $0x18d8] sm:$0xff] 0.0
          %1184 = vst [vmem:[#allocation3 + $0x18e0] sm:$0xff] 0.0
          %1185 = vst [vmem:[#allocation3 + $0x18e8] sm:$0xff] 0.0
          %1186 = vst [vmem:[#allocation3 + $0x18f0] sm:$0xff] 0.0
          %1187 = vst [vmem:[#allocation3 + $0x18f8] sm:$0xff] 0.0
          %1188 = vst [vmem:[#allocation3 + $0x1900] sm:$0xff] 0.0
          %1189 = vst [vmem:[#allocation3 + $0x1908] sm:$0xff] 0.0
          %1190 = vst [vmem:[#allocation3 + $0x1910] sm:$0xff] 0.0
          %1191 = vst [vmem:[#allocation3 + $0x1918] sm:$0xff] 0.0
          %1192 = vst [vmem:[#allocation3 + $0x1920] sm:$0xff] 0.0
          %1193 = vst [vmem:[#allocation3 + $0x1928] sm:$0xff] 0.0
          %1194 = vst [vmem:[#allocation3 + $0x1930] sm:$0xff] 0.0
          %1195 = vst [vmem:[#allocation3 + $0x1938] sm:$0xff] 0.0
          %1196 = vst [vmem:[#allocation3 + $0x1940] sm:$0xff] 0.0
          %1197 = vst [vmem:[#allocation3 + $0x1948] sm:$0xff] 0.0
          %1198 = vst [vmem:[#allocation3 + $0x1950] sm:$0xff] 0.0
          %1199 = vst [vmem:[#allocation3 + $0x1958] sm:$0xff] 0.0
          %1200 = vst [vmem:[#allocation3 + $0x1960] sm:$0xff] 0.0
          %1201 = vst [vmem:[#allocation3 + $0x1968] sm:$0xff] 0.0
          %1202 = vst [vmem:[#allocation3 + $0x1970] sm:$0xff] 0.0
          %1203 = vst [vmem:[#allocation3 + $0x1978] sm:$0xff] 0.0
          %1204 = vst [vmem:[#allocation3 + $0x1980] sm:$0xff] 0.0
          %1205 = vst [vmem:[#allocation3 + $0x1988] sm:$0xff] 0.0
          %1206 = vst [vmem:[#allocation3 + $0x1990] sm:$0xff] 0.0
          %1207 = vst [vmem:[#allocation3 + $0x1998] sm:$0xff] 0.0
          %1208 = vst [vmem:[#allocation3 + $0x19a0] sm:$0xff] 0.0
          %1209 = vst [vmem:[#allocation3 + $0x19a8] sm:$0xff] 0.0
          %1210 = vst [vmem:[#allocation3 + $0x19b0] sm:$0xff] 0.0
          %1211 = vst [vmem:[#allocation3 + $0x19b8] sm:$0xff] 0.0
          %1212 = vst [vmem:[#allocation3 + $0x19c0] sm:$0xff] 0.0
          %1213 = vst [vmem:[#allocation3 + $0x19c8] sm:$0xff] 0.0
          %1214 = vst [vmem:[#allocation3 + $0x19d0] sm:$0xff] 0.0
          %1215 = vst [vmem:[#allocation3 + $0x19d8] sm:$0xff] 0.0
          %1216 = vst [vmem:[#allocation3 + $0x19e0] sm:$0xff] 0.0
          %1217 = vst [vmem:[#allocation3 + $0x19e8] sm:$0xff] 0.0
          %1218 = vst [vmem:[#allocation3 + $0x19f0] sm:$0xff] 0.0
          %1219 = vst [vmem:[#allocation3 + $0x19f8] sm:$0xff] 0.0
          %1220 = vst [vmem:[#allocation3 + $0x1a00] sm:$0xff] 0.0
          %1221 = vst [vmem:[#allocation3 + $0x1a08] sm:$0xff] 0.0
          %1222 = vst [vmem:[#allocation3 + $0x1a10] sm:$0xff] 0.0
          %1223 = vst [vmem:[#allocation3 + $0x1a18] sm:$0xff] 0.0
          %1224 = vst [vmem:[#allocation3 + $0x1a20] sm:$0xff] 0.0
          %1225 = vst [vmem:[#allocation3 + $0x1a28] sm:$0xff] 0.0
          %1226 = vst [vmem:[#allocation3 + $0x1a30] sm:$0xff] 0.0
          %1227 = vst [vmem:[#allocation3 + $0x1a38] sm:$0xff] 0.0
          %1228 = vst [vmem:[#allocation3 + $0x1a40] sm:$0xff] 0.0
          %1229 = vst [vmem:[#allocation3 + $0x1a48] sm:$0xff] 0.0
          %1230 = vst [vmem:[#allocation3 + $0x1a50] sm:$0xff] 0.0
          %1231 = vst [vmem:[#allocation3 + $0x1a58] sm:$0xff] 0.0
          %1232 = vst [vmem:[#allocation3 + $0x1a60] sm:$0xff] 0.0
          %1233 = vst [vmem:[#allocation3 + $0x1a68] sm:$0xff] 0.0
          %1234 = vst [vmem:[#allocation3 + $0x1a70] sm:$0xff] 0.0
          %1235 = vst [vmem:[#allocation3 + $0x1a78] sm:$0xff] 0.0
          %1236 = vst [vmem:[#allocation3 + $0x1a80] sm:$0xff] 0.0
          %1237 = vst [vmem:[#allocation3 + $0x1a88] sm:$0xff] 0.0
          %1238 = vst [vmem:[#allocation3 + $0x1a90] sm:$0xff] 0.0
          %1239 = vst [vmem:[#allocation3 + $0x1a98] sm:$0xff] 0.0
          %1240 = vst [vmem:[#allocation3 + $0x1aa0] sm:$0xff] 0.0
          %1241 = vst [vmem:[#allocation3 + $0x1aa8] sm:$0xff] 0.0
          %1242 = vst [vmem:[#allocation3 + $0x1ab0] sm:$0xff] 0.0
          %1243 = vst [vmem:[#allocation3 + $0x1ab8] sm:$0xff] 0.0
          %1244 = vst [vmem:[#allocation3 + $0x1ac0] sm:$0xff] 0.0
          %1245 = vst [vmem:[#allocation3 + $0x1ac8] sm:$0xff] 0.0
          %1246 = vst [vmem:[#allocation3 + $0x1ad0] sm:$0xff] 0.0
          %1247 = vst [vmem:[#allocation3 + $0x1ad8] sm:$0xff] 0.0
          %1248 = vst [vmem:[#allocation3 + $0x1ae0] sm:$0xff] 0.0
          %1249 = vst [vmem:[#allocation3 + $0x1ae8] sm:$0xff] 0.0
          %1250 = vst [vmem:[#allocation3 + $0x1af0] sm:$0xff] 0.0
          %1251 = vst [vmem:[#allocation3 + $0x1af8] sm:$0xff] 0.0
        $region40: #{tpu_custom_call.1} parent=35 // pred_fallthru
          _
        %p1252 = scmp.lt.s32.totalorder %s29, 8
        // Predicated region
        $region41: #{tpu_custom_call.1} parent=35 // pred_check
          %p1253 = pneg %p1252
        $region42: #{tpu_custom_call.1} parent=35 // pred_check_branch
          %1255 = sbr.rel (%p1253) target = $region44
        $region43: #{tpu_custom_call.1} parent=35 // pred_region
          %v1256 = vld [vmem:[%s311] sm:$0xff]
          %v1257 = vld [vmem:[%s311 + $0x8] sm:$0xff]
          %v1258 = vld [vmem:[%s311 + $0x10] sm:$0xff]
          %v1259 = vld [vmem:[%s311 + $0x18] sm:$0xff]
          %v1260 = vld [vmem:[%s311 + $0x20] sm:$0xff]
          %v1261 = vld [vmem:[%s311 + $0x28] sm:$0xff]
          %v1262 = vld [vmem:[%s311 + $0x30] sm:$0xff]
          %v1263 = vld [vmem:[%s311 + $0x38] sm:$0xff]
          %v1264 = vld [vmem:[%s311 + $0x40] sm:$0xff]
          %v1265 = vld [vmem:[%s311 + $0x48] sm:$0xff]
          %v1266 = vld [vmem:[%s311 + $0x50] sm:$0xff]
          %v1267 = vld [vmem:[%s311 + $0x58] sm:$0xff]
          %v1268 = vld [vmem:[%s311 + $0x60] sm:$0xff]
          %v1269 = vld [vmem:[%s311 + $0x68] sm:$0xff]
          %v1270 = vld [vmem:[%s311 + $0x70] sm:$0xff]
          %v1271 = vld [vmem:[%s311 + $0x78] sm:$0xff]
          %v1272 = vld [vmem:[%s311 + $0x80] sm:$0xff]
          %v1273 = vld [vmem:[%s311 + $0x88] sm:$0xff]
          %v1274 = vld [vmem:[%s311 + $0x90] sm:$0xff]
          %v1275 = vld [vmem:[%s311 + $0x98] sm:$0xff]
          %v1276 = vld [vmem:[%s311 + $0xa0] sm:$0xff]
          %v1277 = vld [vmem:[%s311 + $0xa8] sm:$0xff]
          %v1278 = vld [vmem:[%s311 + $0xb0] sm:$0xff]
          %v1279 = vld [vmem:[%s311 + $0xb8] sm:$0xff]
          %v1280 = vld [vmem:[%s311 + $0xc0] sm:$0xff]
          %v1281 = vld [vmem:[%s311 + $0xc8] sm:$0xff]
          %v1282 = vld [vmem:[%s311 + $0xd0] sm:$0xff]
          %v1283 = vld [vmem:[%s311 + $0xd8] sm:$0xff]
          %v1284 = vld [vmem:[%s311 + $0xe0] sm:$0xff]
          %v1285 = vld [vmem:[%s311 + $0xe8] sm:$0xff]
          %v1286 = vld [vmem:[%s311 + $0xf0] sm:$0xff]
          %v1287 = vld [vmem:[%s311 + $0xf8] sm:$0xff]
          %s1288 = scalar_lea.vmem [#allocation2], 24
          %vm1289 = vcmask 31744
          %1290 = vst.msk [vmem:[%s1288 + $0x1] sm:$0xff] %vm1289, %v1256
          %1291 = vst.msk [vmem:[%s1288 + $0x9] sm:$0xff] %vm1289, %v1257
          %1292 = vst.msk [vmem:[%s1288 + $0x19] sm:$0xff] %vm1289, %v1258
          %1293 = vst.msk [vmem:[%s1288 + $0x21] sm:$0xff] %vm1289, %v1259
          %1294 = vst.msk [vmem:[%s1288 + $0x31] sm:$0xff] %vm1289, %v1260
          %1295 = vst.msk [vmem:[%s1288 + $0x39] sm:$0xff] %vm1289, %v1261
          %1296 = vst.msk [vmem:[%s1288 + $0x49] sm:$0xff] %vm1289, %v1262
          %1297 = vst.msk [vmem:[%s1288 + $0x51] sm:$0xff] %vm1289, %v1263
          %1298 = vst.msk [vmem:[%s1288 + $0x61] sm:$0xff] %vm1289, %v1264
          %1299 = vst.msk [vmem:[%s1288 + $0x69] sm:$0xff] %vm1289, %v1265
          %1300 = vst.msk [vmem:[%s1288 + $0x79] sm:$0xff] %vm1289, %v1266
          %1301 = vst.msk [vmem:[%s1288 + $0x81] sm:$0xff] %vm1289, %v1267
          %1302 = vst.msk [vmem:[%s1288 + $0x91] sm:$0xff] %vm1289, %v1268
          %1303 = vst.msk [vmem:[%s1288 + $0x99] sm:$0xff] %vm1289, %v1269
          %1304 = vst.msk [vmem:[%s1288 + $0xa9] sm:$0xff] %vm1289, %v1270
          %1305 = vst.msk [vmem:[%s1288 + $0xb1] sm:$0xff] %vm1289, %v1271
          %1306 = vst.msk [vmem:[%s1288 + $0xc1] sm:$0xff] %vm1289, %v1272
          %1307 = vst.msk [vmem:[%s1288 + $0xc9] sm:$0xff] %vm1289, %v1273
          %1308 = vst.msk [vmem:[%s1288 + $0xd9] sm:$0xff] %vm1289, %v1274
          %1309 = vst.msk [vmem:[%s1288 + $0xe1] sm:$0xff] %vm1289, %v1275
          %1310 = vst.msk [vmem:[%s1288 + $0xf1] sm:$0xff] %vm1289, %v1276
          %1311 = vst.msk [vmem:[%s1288 + $0xf9] sm:$0xff] %vm1289, %v1277
          %1312 = vst.msk [vmem:[%s1288 + $0x109] sm:$0xff] %vm1289, %v1278
          %1313 = vst.msk [vmem:[%s1288 + $0x111] sm:$0xff] %vm1289, %v1279
          %1314 = vst.msk [vmem:[%s1288 + $0x121] sm:$0xff] %vm1289, %v1280
          %1315 = vst.msk [vmem:[%s1288 + $0x129] sm:$0xff] %vm1289, %v1281
          %1316 = vst.msk [vmem:[%s1288 + $0x139] sm:$0xff] %vm1289, %v1282
          %1317 = vst.msk [vmem:[%s1288 + $0x141] sm:$0xff] %vm1289, %v1283
          %1318 = vst.msk [vmem:[%s1288 + $0x151] sm:$0xff] %vm1289, %v1284
          %1319 = vst.msk [vmem:[%s1288 + $0x159] sm:$0xff] %vm1289, %v1285
          %1320 = vst.msk [vmem:[%s1288 + $0x169] sm:$0xff] %vm1289, %v1286
          %1321 = vst.msk [vmem:[%s1288 + $0x171] sm:$0xff] %vm1289, %v1287
          %v1322 = vld [vmem:[#allocation2] sm:$0xff]
          %v1323 = vld [vmem:[#allocation2 + $0x8] sm:$0xff]
          %v1324 = vld [vmem:[#allocation2 + $0x18] sm:$0xff]
          %v1325 = vld [vmem:[#allocation2 + $0x20] sm:$0xff]
          %v1326 = vld [vmem:[#allocation2 + $0x30] sm:$0xff]
          %v1327 = vld [vmem:[#allocation2 + $0x38] sm:$0xff]
          %v1328 = vld [vmem:[#allocation2 + $0x48] sm:$0xff]
          %v1329 = vld [vmem:[#allocation2 + $0x50] sm:$0xff]
          %v1330 = vld [vmem:[#allocation2 + $0x60] sm:$0xff]
          %v1331 = vld [vmem:[#allocation2 + $0x68] sm:$0xff]
          %v1332 = vld [vmem:[#allocation2 + $0x78] sm:$0xff]
          %v1333 = vld [vmem:[#allocation2 + $0x80] sm:$0xff]
          %v1334 = vld [vmem:[#allocation2 + $0x90] sm:$0xff]
          %v1335 = vld [vmem:[#allocation2 + $0x98] sm:$0xff]
          %v1336 = vld [vmem:[#allocation2 + $0xa8] sm:$0xff]
          %v1337 = vld [vmem:[#allocation2 + $0xb0] sm:$0xff]
          %v1338 = vld [vmem:[#allocation2 + $0xc0] sm:$0xff]
          %v1339 = vld [vmem:[#allocation2 + $0xc8] sm:$0xff]
          %v1340 = vld [vmem:[#allocation2 + $0xd8] sm:$0xff]
          %v1341 = vld [vmem:[#allocation2 + $0xe0] sm:$0xff]
          %v1342 = vld [vmem:[#allocation2 + $0xf0] sm:$0xff]
          %v1343 = vld [vmem:[#allocation2 + $0xf8] sm:$0xff]
          %v1344 = vld [vmem:[#allocation2 + $0x108] sm:$0xff]
          %v1345 = vld [vmem:[#allocation2 + $0x110] sm:$0xff]
          %v1346 = vld [vmem:[#allocation2 + $0x120] sm:$0xff]
          %v1347 = vld [vmem:[#allocation2 + $0x128] sm:$0xff]
          %v1348 = vld [vmem:[#allocation2 + $0x138] sm:$0xff]
          %v1349 = vld [vmem:[#allocation2 + $0x140] sm:$0xff]
          %v1350 = vld [vmem:[#allocation2 + $0x150] sm:$0xff]
          %v1351 = vld [vmem:[#allocation2 + $0x158] sm:$0xff]
          %v1352 = vld [vmem:[#allocation2 + $0x168] sm:$0xff]
          %v1353 = vld [vmem:[#allocation2 + $0x170] sm:$0xff]
          %s1354 = smul.u32 %s329, 288
          %s1355 = smul.addr %s1354, 8
          %s1356 = scalar_lea.vmem [#allocation3], %s1355
          %1357 = vst [vmem:[%s1356] sm:$0xff] %v1322
          %1358 = vst [vmem:[%s1356 + $0x48] sm:$0xff] %v1323
          %1359 = vst [vmem:[%s1356 + $0x90] sm:$0xff] %v1324
          %1360 = vst [vmem:[%s1356 + $0xd8] sm:$0xff] %v1325
          %1361 = vst [vmem:[%s1356 + $0x120] sm:$0xff] %v1326
          %1362 = vst [vmem:[%s1356 + $0x168] sm:$0xff] %v1327
          %1363 = vst [vmem:[%s1356 + $0x1b0] sm:$0xff] %v1328
          %1364 = vst [vmem:[%s1356 + $0x1f8] sm:$0xff] %v1329
          %1365 = vst [vmem:[%s1356 + $0x240] sm:$0xff] %v1330
          %1366 = vst [vmem:[%s1356 + $0x288] sm:$0xff] %v1331
          %1367 = vst [vmem:[%s1356 + $0x2d0] sm:$0xff] %v1332
          %1368 = vst [vmem:[%s1356 + $0x318] sm:$0xff] %v1333
          %1369 = vst [vmem:[%s1356 + $0x360] sm:$0xff] %v1334
          %1370 = vst [vmem:[%s1356 + $0x3a8] sm:$0xff] %v1335
          %1371 = vst [vmem:[%s1356 + $0x3f0] sm:$0xff] %v1336
          %1372 = vst [vmem:[%s1356 + $0x438] sm:$0xff] %v1337
          %1373 = vst [vmem:[%s1356 + $0x480] sm:$0xff] %v1338
          %1374 = vst [vmem:[%s1356 + $0x4c8] sm:$0xff] %v1339
          %1375 = vst [vmem:[%s1356 + $0x510] sm:$0xff] %v1340
          %1376 = vst [vmem:[%s1356 + $0x558] sm:$0xff] %v1341
          %1377 = vst [vmem:[%s1356 + $0x5a0] sm:$0xff] %v1342
          %1378 = vst [vmem:[%s1356 + $0x5e8] sm:$0xff] %v1343
          %1379 = vst [vmem:[%s1356 + $0x630] sm:$0xff] %v1344
          %1380 = vst [vmem:[%s1356 + $0x678] sm:$0xff] %v1345
          %1381 = vst [vmem:[%s1356 + $0x6c0] sm:$0xff] %v1346
          %1382 = vst [vmem:[%s1356 + $0x708] sm:$0xff] %v1347
          %1383 = vst [vmem:[%s1356 + $0x750] sm:$0xff] %v1348
          %1384 = vst [vmem:[%s1356 + $0x798] sm:$0xff] %v1349
          %1385 = vst [vmem:[%s1356 + $0x7e0] sm:$0xff] %v1350
          %1386 = vst [vmem:[%s1356 + $0x828] sm:$0xff] %v1351
          %1387 = vst [vmem:[%s1356 + $0x870] sm:$0xff] %v1352
          %1388 = vst [vmem:[%s1356 + $0x8b8] sm:$0xff] %v1353
          %v1389 = vld [vmem:[#allocation2 + $0x1] sm:$0xff]
          %v1390 = vld [vmem:[#allocation2 + $0x9] sm:$0xff]
          %v1391 = vld [vmem:[#allocation2 + $0x19] sm:$0xff]
          %v1392 = vld [vmem:[#allocation2 + $0x21] sm:$0xff]
          %v1393 = vld [vmem:[#allocation2 + $0x31] sm:$0xff]
          %v1394 = vld [vmem:[#allocation2 + $0x39] sm:$0xff]
          %v1395 = vld [vmem:[#allocation2 + $0x49] sm:$0xff]
          %v1396 = vld [vmem:[#allocation2 + $0x51] sm:$0xff]
          %v1397 = vld [vmem:[#allocation2 + $0x61] sm:$0xff]
          %v1398 = vld [vmem:[#allocation2 + $0x69] sm:$0xff]
          %v1399 = vld [vmem:[#allocation2 + $0x79] sm:$0xff]
          %v1400 = vld [vmem:[#allocation2 + $0x81] sm:$0xff]
          %v1401 = vld [vmem:[#allocation2 + $0x91] sm:$0xff]
          %v1402 = vld [vmem:[#allocation2 + $0x99] sm:$0xff]
          %v1403 = vld [vmem:[#allocation2 + $0xa9] sm:$0xff]
          %v1404 = vld [vmem:[#allocation2 + $0xb1] sm:$0xff]
          %v1405 = vld [vmem:[#allocation2 + $0xc1] sm:$0xff]
          %v1406 = vld [vmem:[#allocation2 + $0xc9] sm:$0xff]
          %v1407 = vld [vmem:[#allocation2 + $0xd9] sm:$0xff]
          %v1408 = vld [vmem:[#allocation2 + $0xe1] sm:$0xff]
          %v1409 = vld [vmem:[#allocation2 + $0xf1] sm:$0xff]
          %v1410 = vld [vmem:[#allocation2 + $0xf9] sm:$0xff]
          %v1411 = vld [vmem:[#allocation2 + $0x109] sm:$0xff]
          %v1412 = vld [vmem:[#allocation2 + $0x111] sm:$0xff]
          %v1413 = vld [vmem:[#allocation2 + $0x121] sm:$0xff]
          %v1414 = vld [vmem:[#allocation2 + $0x129] sm:$0xff]
          %v1415 = vld [vmem:[#allocation2 + $0x139] sm:$0xff]
          %v1416 = vld [vmem:[#allocation2 + $0x141] sm:$0xff]
          %v1417 = vld [vmem:[#allocation2 + $0x151] sm:$0xff]
          %v1418 = vld [vmem:[#allocation2 + $0x159] sm:$0xff]
          %v1419 = vld [vmem:[#allocation2 + $0x169] sm:$0xff]
          %v1420 = vld [vmem:[#allocation2 + $0x171] sm:$0xff]
          %1421 = vst [vmem:[%s1356 + $0x8] sm:$0xff] %v1389
          %1422 = vst [vmem:[%s1356 + $0x50] sm:$0xff] %v1390
          %1423 = vst [vmem:[%s1356 + $0x98] sm:$0xff] %v1391
          %1424 = vst [vmem:[%s1356 + $0xe0] sm:$0xff] %v1392
          %1425 = vst [vmem:[%s1356 + $0x128] sm:$0xff] %v1393
          %1426 = vst [vmem:[%s1356 + $0x170] sm:$0xff] %v1394
          %1427 = vst [vmem:[%s1356 + $0x1b8] sm:$0xff] %v1395
          %1428 = vst [vmem:[%s1356 + $0x200] sm:$0xff] %v1396
          %1429 = vst [vmem:[%s1356 + $0x248] sm:$0xff] %v1397
          %1430 = vst [vmem:[%s1356 + $0x290] sm:$0xff] %v1398
          %1431 = vst [vmem:[%s1356 + $0x2d8] sm:$0xff] %v1399
          %1432 = vst [vmem:[%s1356 + $0x320] sm:$0xff] %v1400
          %1433 = vst [vmem:[%s1356 + $0x368] sm:$0xff] %v1401
          %1434 = vst [vmem:[%s1356 + $0x3b0] sm:$0xff] %v1402
          %1435 = vst [vmem:[%s1356 + $0x3f8] sm:$0xff] %v1403
          %1436 = vst [vmem:[%s1356 + $0x440] sm:$0xff] %v1404
          %1437 = vst [vmem:[%s1356 + $0x488] sm:$0xff] %v1405
          %1438 = vst [vmem:[%s1356 + $0x4d0] sm:$0xff] %v1406
          %1439 = vst [vmem:[%s1356 + $0x518] sm:$0xff] %v1407
          %1440 = vst [vmem:[%s1356 + $0x560] sm:$0xff] %v1408
          %1441 = vst [vmem:[%s1356 + $0x5a8] sm:$0xff] %v1409
          %1442 = vst [vmem:[%s1356 + $0x5f0] sm:$0xff] %v1410
          %1443 = vst [vmem:[%s1356 + $0x638] sm:$0xff] %v1411
          %1444 = vst [vmem:[%s1356 + $0x680] sm:$0xff] %v1412
          %1445 = vst [vmem:[%s1356 + $0x6c8] sm:$0xff] %v1413
          %1446 = vst [vmem:[%s1356 + $0x710] sm:$0xff] %v1414
          %1447 = vst [vmem:[%s1356 + $0x758] sm:$0xff] %v1415
          %1448 = vst [vmem:[%s1356 + $0x7a0] sm:$0xff] %v1416
          %1449 = vst [vmem:[%s1356 + $0x7e8] sm:$0xff] %v1417
          %1450 = vst [vmem:[%s1356 + $0x830] sm:$0xff] %v1418
          %1451 = vst [vmem:[%s1356 + $0x878] sm:$0xff] %v1419
          %1452 = vst [vmem:[%s1356 + $0x8c0] sm:$0xff] %v1420
          %v1453 = vld [vmem:[#allocation2 + $0x2] sm:$0xff]
          %v1454 = vld [vmem:[#allocation2 + $0xa] sm:$0xff]
          %v1455 = vld [vmem:[#allocation2 + $0x1a] sm:$0xff]
          %v1456 = vld [vmem:[#allocation2 + $0x22] sm:$0xff]
          %v1457 = vld [vmem:[#allocation2 + $0x32] sm:$0xff]
          %v1458 = vld [vmem:[#allocation2 + $0x3a] sm:$0xff]
          %v1459 = vld [vmem:[#allocation2 + $0x4a] sm:$0xff]
          %v1460 = vld [vmem:[#allocation2 + $0x52] sm:$0xff]
          %v1461 = vld [vmem:[#allocation2 + $0x62] sm:$0xff]
          %v1462 = vld [vmem:[#allocation2 + $0x6a] sm:$0xff]
          %v1463 = vld [vmem:[#allocation2 + $0x7a] sm:$0xff]
          %v1464 = vld [vmem:[#allocation2 + $0x82] sm:$0xff]
          %v1465 = vld [vmem:[#allocation2 + $0x92] sm:$0xff]
          %v1466 = vld [vmem:[#allocation2 + $0x9a] sm:$0xff]
          %v1467 = vld [vmem:[#allocation2 + $0xaa] sm:$0xff]
          %v1468 = vld [vmem:[#allocation2 + $0xb2] sm:$0xff]
          %v1469 = vld [vmem:[#allocation2 + $0xc2] sm:$0xff]
          %v1470 = vld [vmem:[#allocation2 + $0xca] sm:$0xff]
          %v1471 = vld [vmem:[#allocation2 + $0xda] sm:$0xff]
          %v1472 = vld [vmem:[#allocation2 + $0xe2] sm:$0xff]
          %v1473 = vld [vmem:[#allocation2 + $0xf2] sm:$0xff]
          %v1474 = vld [vmem:[#allocation2 + $0xfa] sm:$0xff]
          %v1475 = vld [vmem:[#allocation2 + $0x10a] sm:$0xff]
          %v1476 = vld [vmem:[#allocation2 + $0x112] sm:$0xff]
          %v1477 = vld [vmem:[#allocation2 + $0x122] sm:$0xff]
          %v1478 = vld [vmem:[#allocation2 + $0x12a] sm:$0xff]
          %v1479 = vld [vmem:[#allocation2 + $0x13a] sm:$0xff]
          %v1480 = vld [vmem:[#allocation2 + $0x142] sm:$0xff]
          %v1481 = vld [vmem:[#allocation2 + $0x152] sm:$0xff]
          %v1482 = vld [vmem:[#allocation2 + $0x15a] sm:$0xff]
          %v1483 = vld [vmem:[#allocation2 + $0x16a] sm:$0xff]
          %v1484 = vld [vmem:[#allocation2 + $0x172] sm:$0xff]
          %1485 = vst [vmem:[%s1356 + $0x10] sm:$0xff] %v1453
          %1486 = vst [vmem:[%s1356 + $0x58] sm:$0xff] %v1454
          %1487 = vst [vmem:[%s1356 + $0xa0] sm:$0xff] %v1455
          %1488 = vst [vmem:[%s1356 + $0xe8] sm:$0xff] %v1456
          %1489 = vst [vmem:[%s1356 + $0x130] sm:$0xff] %v1457
          %1490 = vst [vmem:[%s1356 + $0x178] sm:$0xff] %v1458
          %1491 = vst [vmem:[%s1356 + $0x1c0] sm:$0xff] %v1459
          %1492 = vst [vmem:[%s1356 + $0x208] sm:$0xff] %v1460
          %1493 = vst [vmem:[%s1356 + $0x250] sm:$0xff] %v1461
          %1494 = vst [vmem:[%s1356 + $0x298] sm:$0xff] %v1462
          %1495 = vst [vmem:[%s1356 + $0x2e0] sm:$0xff] %v1463
          %1496 = vst [vmem:[%s1356 + $0x328] sm:$0xff] %v1464
          %1497 = vst [vmem:[%s1356 + $0x370] sm:$0xff] %v1465
          %1498 = vst [vmem:[%s1356 + $0x3b8] sm:$0xff] %v1466
          %1499 = vst [vmem:[%s1356 + $0x400] sm:$0xff] %v1467
          %1500 = vst [vmem:[%s1356 + $0x448] sm:$0xff] %v1468
          %1501 = vst [vmem:[%s1356 + $0x490] sm:$0xff] %v1469
          %1502 = vst [vmem:[%s1356 + $0x4d8] sm:$0xff] %v1470
          %1503 = vst [vmem:[%s1356 + $0x520] sm:$0xff] %v1471
          %1504 = vst [vmem:[%s1356 + $0x568] sm:$0xff] %v1472
          %1505 = vst [vmem:[%s1356 + $0x5b0] sm:$0xff] %v1473
          %1506 = vst [vmem:[%s1356 + $0x5f8] sm:$0xff] %v1474
          %1507 = vst [vmem:[%s1356 + $0x640] sm:$0xff] %v1475
          %1508 = vst [vmem:[%s1356 + $0x688] sm:$0xff] %v1476
          %1509 = vst [vmem:[%s1356 + $0x6d0] sm:$0xff] %v1477
          %1510 = vst [vmem:[%s1356 + $0x718] sm:$0xff] %v1478
          %1511 = vst [vmem:[%s1356 + $0x760] sm:$0xff] %v1479
          %1512 = vst [vmem:[%s1356 + $0x7a8] sm:$0xff] %v1480
          %1513 = vst [vmem:[%s1356 + $0x7f0] sm:$0xff] %v1481
          %1514 = vst [vmem:[%s1356 + $0x838] sm:$0xff] %v1482
          %1515 = vst [vmem:[%s1356 + $0x880] sm:$0xff] %v1483
          %1516 = vst [vmem:[%s1356 + $0x8c8] sm:$0xff] %v1484
          %v1517 = vld [vmem:[%s1288] sm:$0xff]
          %v1518 = vld [vmem:[%s1288 + $0x8] sm:$0xff]
          %v1519 = vld [vmem:[%s1288 + $0x18] sm:$0xff]
          %v1520 = vld [vmem:[%s1288 + $0x20] sm:$0xff]
          %v1521 = vld [vmem:[%s1288 + $0x30] sm:$0xff]
          %v1522 = vld [vmem:[%s1288 + $0x38] sm:$0xff]
          %v1523 = vld [vmem:[%s1288 + $0x48] sm:$0xff]
          %v1524 = vld [vmem:[%s1288 + $0x50] sm:$0xff]
          %v1525 = vld [vmem:[%s1288 + $0x60] sm:$0xff]
          %v1526 = vld [vmem:[%s1288 + $0x68] sm:$0xff]
          %v1527 = vld [vmem:[%s1288 + $0x78] sm:$0xff]
          %v1528 = vld [vmem:[%s1288 + $0x80] sm:$0xff]
          %v1529 = vld [vmem:[%s1288 + $0x90] sm:$0xff]
          %v1530 = vld [vmem:[%s1288 + $0x98] sm:$0xff]
          %v1531 = vld [vmem:[%s1288 + $0xa8] sm:$0xff]
          %v1532 = vld [vmem:[%s1288 + $0xb0] sm:$0xff]
          %v1533 = vld [vmem:[%s1288 + $0xc0] sm:$0xff]
          %v1534 = vld [vmem:[%s1288 + $0xc8] sm:$0xff]
          %v1535 = vld [vmem:[%s1288 + $0xd8] sm:$0xff]
          %v1536 = vld [vmem:[%s1288 + $0xe0] sm:$0xff]
          %v1537 = vld [vmem:[%s1288 + $0xf0] sm:$0xff]
          %v1538 = vld [vmem:[%s1288 + $0xf8] sm:$0xff]
          %v1539 = vld [vmem:[%s1288 + $0x108] sm:$0xff]
          %v1540 = vld [vmem:[%s1288 + $0x110] sm:$0xff]
          %v1541 = vld [vmem:[%s1288 + $0x120] sm:$0xff]
          %v1542 = vld [vmem:[%s1288 + $0x128] sm:$0xff]
          %v1543 = vld [vmem:[%s1288 + $0x138] sm:$0xff]
          %v1544 = vld [vmem:[%s1288 + $0x140] sm:$0xff]
          %v1545 = vld [vmem:[%s1288 + $0x150] sm:$0xff]
          %v1546 = vld [vmem:[%s1288 + $0x158] sm:$0xff]
          %v1547 = vld [vmem:[%s1288 + $0x168] sm:$0xff]
          %v1548 = vld [vmem:[%s1288 + $0x170] sm:$0xff]
          %1549 = vst [vmem:[%s1356 + $0x18] sm:$0xff] %v1517
          %1550 = vst [vmem:[%s1356 + $0x60] sm:$0xff] %v1518
          %1551 = vst [vmem:[%s1356 + $0xa8] sm:$0xff] %v1519
          %1552 = vst [vmem:[%s1356 + $0xf0] sm:$0xff] %v1520
          %1553 = vst [vmem:[%s1356 + $0x138] sm:$0xff] %v1521
          %1554 = vst [vmem:[%s1356 + $0x180] sm:$0xff] %v1522
          %1555 = vst [vmem:[%s1356 + $0x1c8] sm:$0xff] %v1523
          %1556 = vst [vmem:[%s1356 + $0x210] sm:$0xff] %v1524
          %1557 = vst [vmem:[%s1356 + $0x258] sm:$0xff] %v1525
          %1558 = vst [vmem:[%s1356 + $0x2a0] sm:$0xff] %v1526
          %1559 = vst [vmem:[%s1356 + $0x2e8] sm:$0xff] %v1527
          %1560 = vst [vmem:[%s1356 + $0x330] sm:$0xff] %v1528
          %1561 = vst [vmem:[%s1356 + $0x378] sm:$0xff] %v1529
          %1562 = vst [vmem:[%s1356 + $0x3c0] sm:$0xff] %v1530
          %1563 = vst [vmem:[%s1356 + $0x408] sm:$0xff] %v1531
          %1564 = vst [vmem:[%s1356 + $0x450] sm:$0xff] %v1532
          %1565 = vst [vmem:[%s1356 + $0x498] sm:$0xff] %v1533
          %1566 = vst [vmem:[%s1356 + $0x4e0] sm:$0xff] %v1534
          %1567 = vst [vmem:[%s1356 + $0x528] sm:$0xff] %v1535
          %1568 = vst [vmem:[%s1356 + $0x570] sm:$0xff] %v1536
          %1569 = vst [vmem:[%s1356 + $0x5b8] sm:$0xff] %v1537
          %1570 = vst [vmem:[%s1356 + $0x600] sm:$0xff] %v1538
          %1571 = vst [vmem:[%s1356 + $0x648] sm:$0xff] %v1539
          %1572 = vst [vmem:[%s1356 + $0x690] sm:$0xff] %v1540
          %1573 = vst [vmem:[%s1356 + $0x6d8] sm:$0xff] %v1541
          %1574 = vst [vmem:[%s1356 + $0x720] sm:$0xff] %v1542
          %1575 = vst [vmem:[%s1356 + $0x768] sm:$0xff] %v1543
          %1576 = vst [vmem:[%s1356 + $0x7b0] sm:$0xff] %v1544
          %1577 = vst [vmem:[%s1356 + $0x7f8] sm:$0xff] %v1545
          %1578 = vst [vmem:[%s1356 + $0x840] sm:$0xff] %v1546
          %1579 = vst [vmem:[%s1356 + $0x888] sm:$0xff] %v1547
          %1580 = vst [vmem:[%s1356 + $0x8d0] sm:$0xff] %v1548
          %v1581 = vld [vmem:[%s1288 + $0x1] sm:$0xff]
          %v1582 = vld [vmem:[%s1288 + $0x9] sm:$0xff]
          %v1583 = vld [vmem:[%s1288 + $0x19] sm:$0xff]
          %v1584 = vld [vmem:[%s1288 + $0x21] sm:$0xff]
          %v1585 = vld [vmem:[%s1288 + $0x31] sm:$0xff]
          %v1586 = vld [vmem:[%s1288 + $0x39] sm:$0xff]
          %v1587 = vld [vmem:[%s1288 + $0x49] sm:$0xff]
          %v1588 = vld [vmem:[%s1288 + $0x51] sm:$0xff]
          %v1589 = vld [vmem:[%s1288 + $0x61] sm:$0xff]
          %v1590 = vld [vmem:[%s1288 + $0x69] sm:$0xff]
          %v1591 = vld [vmem:[%s1288 + $0x79] sm:$0xff]
          %v1592 = vld [vmem:[%s1288 + $0x81] sm:$0xff]
          %v1593 = vld [vmem:[%s1288 + $0x91] sm:$0xff]
          %v1594 = vld [vmem:[%s1288 + $0x99] sm:$0xff]
          %v1595 = vld [vmem:[%s1288 + $0xa9] sm:$0xff]
          %v1596 = vld [vmem:[%s1288 + $0xb1] sm:$0xff]
          %v1597 = vld [vmem:[%s1288 + $0xc1] sm:$0xff]
          %v1598 = vld [vmem:[%s1288 + $0xc9] sm:$0xff]
          %v1599 = vld [vmem:[%s1288 + $0xd9] sm:$0xff]
          %v1600 = vld [vmem:[%s1288 + $0xe1] sm:$0xff]
          %v1601 = vld [vmem:[%s1288 + $0xf1] sm:$0xff]
          %v1602 = vld [vmem:[%s1288 + $0xf9] sm:$0xff]
          %v1603 = vld [vmem:[%s1288 + $0x109] sm:$0xff]
          %v1604 = vld [vmem:[%s1288 + $0x111] sm:$0xff]
          %v1605 = vld [vmem:[%s1288 + $0x121] sm:$0xff]
          %v1606 = vld [vmem:[%s1288 + $0x129] sm:$0xff]
          %v1607 = vld [vmem:[%s1288 + $0x139] sm:$0xff]
          %v1608 = vld [vmem:[%s1288 + $0x141] sm:$0xff]
          %v1609 = vld [vmem:[%s1288 + $0x151] sm:$0xff]
          %v1610 = vld [vmem:[%s1288 + $0x159] sm:$0xff]
          %v1611 = vld [vmem:[%s1288 + $0x169] sm:$0xff]
          %v1612 = vld [vmem:[%s1288 + $0x171] sm:$0xff]
          %1613 = vst [vmem:[%s1356 + $0x20] sm:$0xff] %v1581
          %1614 = vst [vmem:[%s1356 + $0x68] sm:$0xff] %v1582
          %1615 = vst [vmem:[%s1356 + $0xb0] sm:$0xff] %v1583
          %1616 = vst [vmem:[%s1356 + $0xf8] sm:$0xff] %v1584
          %1617 = vst [vmem:[%s1356 + $0x140] sm:$0xff] %v1585
          %1618 = vst [vmem:[%s1356 + $0x188] sm:$0xff] %v1586
          %1619 = vst [vmem:[%s1356 + $0x1d0] sm:$0xff] %v1587
          %1620 = vst [vmem:[%s1356 + $0x218] sm:$0xff] %v1588
          %1621 = vst [vmem:[%s1356 + $0x260] sm:$0xff] %v1589
          %1622 = vst [vmem:[%s1356 + $0x2a8] sm:$0xff] %v1590
          %1623 = vst [vmem:[%s1356 + $0x2f0] sm:$0xff] %v1591
          %1624 = vst [vmem:[%s1356 + $0x338] sm:$0xff] %v1592
          %1625 = vst [vmem:[%s1356 + $0x380] sm:$0xff] %v1593
          %1626 = vst [vmem:[%s1356 + $0x3c8] sm:$0xff] %v1594
          %1627 = vst [vmem:[%s1356 + $0x410] sm:$0xff] %v1595
          %1628 = vst [vmem:[%s1356 + $0x458] sm:$0xff] %v1596
          %1629 = vst [vmem:[%s1356 + $0x4a0] sm:$0xff] %v1597
          %1630 = vst [vmem:[%s1356 + $0x4e8] sm:$0xff] %v1598
          %1631 = vst [vmem:[%s1356 + $0x530] sm:$0xff] %v1599
          %1632 = vst [vmem:[%s1356 + $0x578] sm:$0xff] %v1600
          %1633 = vst [vmem:[%s1356 + $0x5c0] sm:$0xff] %v1601
          %1634 = vst [vmem:[%s1356 + $0x608] sm:$0xff] %v1602
          %1635 = vst [vmem:[%s1356 + $0x650] sm:$0xff] %v1603
          %1636 = vst [vmem:[%s1356 + $0x698] sm:$0xff] %v1604
          %1637 = vst [vmem:[%s1356 + $0x6e0] sm:$0xff] %v1605
          %1638 = vst [vmem:[%s1356 + $0x728] sm:$0xff] %v1606
          %1639 = vst [vmem:[%s1356 + $0x770] sm:$0xff] %v1607
          %1640 = vst [vmem:[%s1356 + $0x7b8] sm:$0xff] %v1608
          %1641 = vst [vmem:[%s1356 + $0x800] sm:$0xff] %v1609
          %1642 = vst [vmem:[%s1356 + $0x848] sm:$0xff] %v1610
          %1643 = vst [vmem:[%s1356 + $0x890] sm:$0xff] %v1611
          %1644 = vst [vmem:[%s1356 + $0x8d8] sm:$0xff] %v1612
          %v1645 = vld [vmem:[%s1288 + $0x2] sm:$0xff]
          %v1646 = vld [vmem:[%s1288 + $0xa] sm:$0xff]
          %v1647 = vld [vmem:[%s1288 + $0x1a] sm:$0xff]
          %v1648 = vld [vmem:[%s1288 + $0x22] sm:$0xff]
          %v1649 = vld [vmem:[%s1288 + $0x32] sm:$0xff]
          %v1650 = vld [vmem:[%s1288 + $0x3a] sm:$0xff]
          %v1651 = vld [vmem:[%s1288 + $0x4a] sm:$0xff]
          %v1652 = vld [vmem:[%s1288 + $0x52] sm:$0xff]
          %v1653 = vld [vmem:[%s1288 + $0x62] sm:$0xff]
          %v1654 = vld [vmem:[%s1288 + $0x6a] sm:$0xff]
          %v1655 = vld [vmem:[%s1288 + $0x7a] sm:$0xff]
          %v1656 = vld [vmem:[%s1288 + $0x82] sm:$0xff]
          %v1657 = vld [vmem:[%s1288 + $0x92] sm:$0xff]
          %v1658 = vld [vmem:[%s1288 + $0x9a] sm:$0xff]
          %v1659 = vld [vmem:[%s1288 + $0xaa] sm:$0xff]
          %v1660 = vld [vmem:[%s1288 + $0xb2] sm:$0xff]
          %v1661 = vld [vmem:[%s1288 + $0xc2] sm:$0xff]
          %v1662 = vld [vmem:[%s1288 + $0xca] sm:$0xff]
          %v1663 = vld [vmem:[%s1288 + $0xda] sm:$0xff]
          %v1664 = vld [vmem:[%s1288 + $0xe2] sm:$0xff]
          %v1665 = vld [vmem:[%s1288 + $0xf2] sm:$0xff]
          %v1666 = vld [vmem:[%s1288 + $0xfa] sm:$0xff]
          %v1667 = vld [vmem:[%s1288 + $0x10a] sm:$0xff]
          %v1668 = vld [vmem:[%s1288 + $0x112] sm:$0xff]
          %v1669 = vld [vmem:[%s1288 + $0x122] sm:$0xff]
          %v1670 = vld [vmem:[%s1288 + $0x12a] sm:$0xff]
          %v1671 = vld [vmem:[%s1288 + $0x13a] sm:$0xff]
          %v1672 = vld [vmem:[%s1288 + $0x142] sm:$0xff]
          %v1673 = vld [vmem:[%s1288 + $0x152] sm:$0xff]
          %v1674 = vld [vmem:[%s1288 + $0x15a] sm:$0xff]
          %v1675 = vld [vmem:[%s1288 + $0x16a] sm:$0xff]
          %v1676 = vld [vmem:[%s1288 + $0x172] sm:$0xff]
          %1677 = vst [vmem:[%s1356 + $0x28] sm:$0xff] %v1645
          %1678 = vst [vmem:[%s1356 + $0x70] sm:$0xff] %v1646
          %1679 = vst [vmem:[%s1356 + $0xb8] sm:$0xff] %v1647
          %1680 = vst [vmem:[%s1356 + $0x100] sm:$0xff] %v1648
          %1681 = vst [vmem:[%s1356 + $0x148] sm:$0xff] %v1649
          %1682 = vst [vmem:[%s1356 + $0x190] sm:$0xff] %v1650
          %1683 = vst [vmem:[%s1356 + $0x1d8] sm:$0xff] %v1651
          %1684 = vst [vmem:[%s1356 + $0x220] sm:$0xff] %v1652
          %1685 = vst [vmem:[%s1356 + $0x268] sm:$0xff] %v1653
          %1686 = vst [vmem:[%s1356 + $0x2b0] sm:$0xff] %v1654
          %1687 = vst [vmem:[%s1356 + $0x2f8] sm:$0xff] %v1655
          %1688 = vst [vmem:[%s1356 + $0x340] sm:$0xff] %v1656
          %1689 = vst [vmem:[%s1356 + $0x388] sm:$0xff] %v1657
          %1690 = vst [vmem:[%s1356 + $0x3d0] sm:$0xff] %v1658
          %1691 = vst [vmem:[%s1356 + $0x418] sm:$0xff] %v1659
          %1692 = vst [vmem:[%s1356 + $0x460] sm:$0xff] %v1660
          %1693 = vst [vmem:[%s1356 + $0x4a8] sm:$0xff] %v1661
          %1694 = vst [vmem:[%s1356 + $0x4f0] sm:$0xff] %v1662
          %1695 = vst [vmem:[%s1356 + $0x538] sm:$0xff] %v1663
          %1696 = vst [vmem:[%s1356 + $0x580] sm:$0xff] %v1664
          %1697 = vst [vmem:[%s1356 + $0x5c8] sm:$0xff] %v1665
          %1698 = vst [vmem:[%s1356 + $0x610] sm:$0xff] %v1666
          %1699 = vst [vmem:[%s1356 + $0x658] sm:$0xff] %v1667
          %1700 = vst [vmem:[%s1356 + $0x6a0] sm:$0xff] %v1668
          %1701 = vst [vmem:[%s1356 + $0x6e8] sm:$0xff] %v1669
          %1702 = vst [vmem:[%s1356 + $0x730] sm:$0xff] %v1670
          %1703 = vst [vmem:[%s1356 + $0x778] sm:$0xff] %v1671
          %1704 = vst [vmem:[%s1356 + $0x7c0] sm:$0xff] %v1672
          %1705 = vst [vmem:[%s1356 + $0x808] sm:$0xff] %v1673
          %1706 = vst [vmem:[%s1356 + $0x850] sm:$0xff] %v1674
          %1707 = vst [vmem:[%s1356 + $0x898] sm:$0xff] %v1675
          %1708 = vst [vmem:[%s1356 + $0x8e0] sm:$0xff] %v1676
          %s1709 = scalar_lea.vmem [#allocation2], 48
          %v1710 = vld [vmem:[%s1709] sm:$0xff]
          %v1711 = vld [vmem:[%s1709 + $0x8] sm:$0xff]
          %v1712 = vld [vmem:[%s1709 + $0x18] sm:$0xff]
          %v1713 = vld [vmem:[%s1709 + $0x20] sm:$0xff]
          %v1714 = vld [vmem:[%s1709 + $0x30] sm:$0xff]
          %v1715 = vld [vmem:[%s1709 + $0x38] sm:$0xff]
          %v1716 = vld [vmem:[%s1709 + $0x48] sm:$0xff]
          %v1717 = vld [vmem:[%s1709 + $0x50] sm:$0xff]
          %v1718 = vld [vmem:[%s1709 + $0x60] sm:$0xff]
          %v1719 = vld [vmem:[%s1709 + $0x68] sm:$0xff]
          %v1720 = vld [vmem:[%s1709 + $0x78] sm:$0xff]
          %v1721 = vld [vmem:[%s1709 + $0x80] sm:$0xff]
          %v1722 = vld [vmem:[%s1709 + $0x90] sm:$0xff]
          %v1723 = vld [vmem:[%s1709 + $0x98] sm:$0xff]
          %v1724 = vld [vmem:[%s1709 + $0xa8] sm:$0xff]
          %v1725 = vld [vmem:[%s1709 + $0xb0] sm:$0xff]
          %v1726 = vld [vmem:[%s1709 + $0xc0] sm:$0xff]
          %v1727 = vld [vmem:[%s1709 + $0xc8] sm:$0xff]
          %v1728 = vld [vmem:[%s1709 + $0xd8] sm:$0xff]
          %v1729 = vld [vmem:[%s1709 + $0xe0] sm:$0xff]
          %v1730 = vld [vmem:[%s1709 + $0xf0] sm:$0xff]
          %v1731 = vld [vmem:[%s1709 + $0xf8] sm:$0xff]
          %v1732 = vld [vmem:[%s1709 + $0x108] sm:$0xff]
          %v1733 = vld [vmem:[%s1709 + $0x110] sm:$0xff]
          %v1734 = vld [vmem:[%s1709 + $0x120] sm:$0xff]
          %v1735 = vld [vmem:[%s1709 + $0x128] sm:$0xff]
          %v1736 = vld [vmem:[%s1709 + $0x138] sm:$0xff]
          %v1737 = vld [vmem:[%s1709 + $0x140] sm:$0xff]
          %v1738 = vld [vmem:[%s1709 + $0x150] sm:$0xff]
          %v1739 = vld [vmem:[%s1709 + $0x158] sm:$0xff]
          %v1740 = vld [vmem:[%s1709 + $0x168] sm:$0xff]
          %v1741 = vld [vmem:[%s1709 + $0x170] sm:$0xff]
          %1742 = vst [vmem:[%s1356 + $0x30] sm:$0xff] %v1710
          %1743 = vst [vmem:[%s1356 + $0x78] sm:$0xff] %v1711
          %1744 = vst [vmem:[%s1356 + $0xc0] sm:$0xff] %v1712
          %1745 = vst [vmem:[%s1356 + $0x108] sm:$0xff] %v1713
          %1746 = vst [vmem:[%s1356 + $0x150] sm:$0xff] %v1714
          %1747 = vst [vmem:[%s1356 + $0x198] sm:$0xff] %v1715
          %1748 = vst [vmem:[%s1356 + $0x1e0] sm:$0xff] %v1716
          %1749 = vst [vmem:[%s1356 + $0x228] sm:$0xff] %v1717
          %1750 = vst [vmem:[%s1356 + $0x270] sm:$0xff] %v1718
          %1751 = vst [vmem:[%s1356 + $0x2b8] sm:$0xff] %v1719
          %1752 = vst [vmem:[%s1356 + $0x300] sm:$0xff] %v1720
          %1753 = vst [vmem:[%s1356 + $0x348] sm:$0xff] %v1721
          %1754 = vst [vmem:[%s1356 + $0x390] sm:$0xff] %v1722
          %1755 = vst [vmem:[%s1356 + $0x3d8] sm:$0xff] %v1723
          %1756 = vst [vmem:[%s1356 + $0x420] sm:$0xff] %v1724
          %1757 = vst [vmem:[%s1356 + $0x468] sm:$0xff] %v1725
          %1758 = vst [vmem:[%s1356 + $0x4b0] sm:$0xff] %v1726
          %1759 = vst [vmem:[%s1356 + $0x4f8] sm:$0xff] %v1727
          %1760 = vst [vmem:[%s1356 + $0x540] sm:$0xff] %v1728
          %1761 = vst [vmem:[%s1356 + $0x588] sm:$0xff] %v1729
          %1762 = vst [vmem:[%s1356 + $0x5d0] sm:$0xff] %v1730
          %1763 = vst [vmem:[%s1356 + $0x618] sm:$0xff] %v1731
          %1764 = vst [vmem:[%s1356 + $0x660] sm:$0xff] %v1732
          %1765 = vst [vmem:[%s1356 + $0x6a8] sm:$0xff] %v1733
          %1766 = vst [vmem:[%s1356 + $0x6f0] sm:$0xff] %v1734
          %1767 = vst [vmem:[%s1356 + $0x738] sm:$0xff] %v1735
          %1768 = vst [vmem:[%s1356 + $0x780] sm:$0xff] %v1736
          %1769 = vst [vmem:[%s1356 + $0x7c8] sm:$0xff] %v1737
          %1770 = vst [vmem:[%s1356 + $0x810] sm:$0xff] %v1738
          %1771 = vst [vmem:[%s1356 + $0x858] sm:$0xff] %v1739
          %1772 = vst [vmem:[%s1356 + $0x8a0] sm:$0xff] %v1740
          %1773 = vst [vmem:[%s1356 + $0x8e8] sm:$0xff] %v1741
          %v1774 = vld [vmem:[%s1709 + $0x1] sm:$0xff]
          %v1775 = vld [vmem:[%s1709 + $0x9] sm:$0xff]
          %v1776 = vld [vmem:[%s1709 + $0x19] sm:$0xff]
          %v1777 = vld [vmem:[%s1709 + $0x21] sm:$0xff]
          %v1778 = vld [vmem:[%s1709 + $0x31] sm:$0xff]
          %v1779 = vld [vmem:[%s1709 + $0x39] sm:$0xff]
          %v1780 = vld [vmem:[%s1709 + $0x49] sm:$0xff]
          %v1781 = vld [vmem:[%s1709 + $0x51] sm:$0xff]
          %v1782 = vld [vmem:[%s1709 + $0x61] sm:$0xff]
          %v1783 = vld [vmem:[%s1709 + $0x69] sm:$0xff]
          %v1784 = vld [vmem:[%s1709 + $0x79] sm:$0xff]
          %v1785 = vld [vmem:[%s1709 + $0x81] sm:$0xff]
          %v1786 = vld [vmem:[%s1709 + $0x91] sm:$0xff]
          %v1787 = vld [vmem:[%s1709 + $0x99] sm:$0xff]
          %v1788 = vld [vmem:[%s1709 + $0xa9] sm:$0xff]
          %v1789 = vld [vmem:[%s1709 + $0xb1] sm:$0xff]
          %v1790 = vld [vmem:[%s1709 + $0xc1] sm:$0xff]
          %v1791 = vld [vmem:[%s1709 + $0xc9] sm:$0xff]
          %v1792 = vld [vmem:[%s1709 + $0xd9] sm:$0xff]
          %v1793 = vld [vmem:[%s1709 + $0xe1] sm:$0xff]
          %v1794 = vld [vmem:[%s1709 + $0xf1] sm:$0xff]
          %v1795 = vld [vmem:[%s1709 + $0xf9] sm:$0xff]
          %v1796 = vld [vmem:[%s1709 + $0x109] sm:$0xff]
          %v1797 = vld [vmem:[%s1709 + $0x111] sm:$0xff]
          %v1798 = vld [vmem:[%s1709 + $0x121] sm:$0xff]
          %v1799 = vld [vmem:[%s1709 + $0x129] sm:$0xff]
          %v1800 = vld [vmem:[%s1709 + $0x139] sm:$0xff]
          %v1801 = vld [vmem:[%s1709 + $0x141] sm:$0xff]
          %v1802 = vld [vmem:[%s1709 + $0x151] sm:$0xff]
          %v1803 = vld [vmem:[%s1709 + $0x159] sm:$0xff]
          %v1804 = vld [vmem:[%s1709 + $0x169] sm:$0xff]
          %v1805 = vld [vmem:[%s1709 + $0x171] sm:$0xff]
          %1806 = vst [vmem:[%s1356 + $0x38] sm:$0xff] %v1774
          %1807 = vst [vmem:[%s1356 + $0x80] sm:$0xff] %v1775
          %1808 = vst [vmem:[%s1356 + $0xc8] sm:$0xff] %v1776
          %1809 = vst [vmem:[%s1356 + $0x110] sm:$0xff] %v1777
          %1810 = vst [vmem:[%s1356 + $0x158] sm:$0xff] %v1778
          %1811 = vst [vmem:[%s1356 + $0x1a0] sm:$0xff] %v1779
          %1812 = vst [vmem:[%s1356 + $0x1e8] sm:$0xff] %v1780
          %1813 = vst [vmem:[%s1356 + $0x230] sm:$0xff] %v1781
          %1814 = vst [vmem:[%s1356 + $0x278] sm:$0xff] %v1782
          %1815 = vst [vmem:[%s1356 + $0x2c0] sm:$0xff] %v1783
          %1816 = vst [vmem:[%s1356 + $0x308] sm:$0xff] %v1784
          %1817 = vst [vmem:[%s1356 + $0x350] sm:$0xff] %v1785
          %1818 = vst [vmem:[%s1356 + $0x398] sm:$0xff] %v1786
          %1819 = vst [vmem:[%s1356 + $0x3e0] sm:$0xff] %v1787
          %1820 = vst [vmem:[%s1356 + $0x428] sm:$0xff] %v1788
          %1821 = vst [vmem:[%s1356 + $0x470] sm:$0xff] %v1789
          %1822 = vst [vmem:[%s1356 + $0x4b8] sm:$0xff] %v1790
          %1823 = vst [vmem:[%s1356 + $0x500] sm:$0xff] %v1791
          %1824 = vst [vmem:[%s1356 + $0x548] sm:$0xff] %v1792
          %1825 = vst [vmem:[%s1356 + $0x590] sm:$0xff] %v1793
          %1826 = vst [vmem:[%s1356 + $0x5d8] sm:$0xff] %v1794
          %1827 = vst [vmem:[%s1356 + $0x620] sm:$0xff] %v1795
          %1828 = vst [vmem:[%s1356 + $0x668] sm:$0xff] %v1796
          %1829 = vst [vmem:[%s1356 + $0x6b0] sm:$0xff] %v1797
          %1830 = vst [vmem:[%s1356 + $0x6f8] sm:$0xff] %v1798
          %1831 = vst [vmem:[%s1356 + $0x740] sm:$0xff] %v1799
          %1832 = vst [vmem:[%s1356 + $0x788] sm:$0xff] %v1800
          %1833 = vst [vmem:[%s1356 + $0x7d0] sm:$0xff] %v1801
          %1834 = vst [vmem:[%s1356 + $0x818] sm:$0xff] %v1802
          %1835 = vst [vmem:[%s1356 + $0x860] sm:$0xff] %v1803
          %1836 = vst [vmem:[%s1356 + $0x8a8] sm:$0xff] %v1804
          %1837 = vst [vmem:[%s1356 + $0x8f0] sm:$0xff] %v1805
          %v1838 = vld [vmem:[%s1709 + $0x2] sm:$0xff]
          %v1839 = vld [vmem:[%s1709 + $0xa] sm:$0xff]
          %v1840 = vld [vmem:[%s1709 + $0x1a] sm:$0xff]
          %v1841 = vld [vmem:[%s1709 + $0x22] sm:$0xff]
          %v1842 = vld [vmem:[%s1709 + $0x32] sm:$0xff]
          %v1843 = vld [vmem:[%s1709 + $0x3a] sm:$0xff]
          %v1844 = vld [vmem:[%s1709 + $0x4a] sm:$0xff]
          %v1845 = vld [vmem:[%s1709 + $0x52] sm:$0xff]
          %v1846 = vld [vmem:[%s1709 + $0x62] sm:$0xff]
          %v1847 = vld [vmem:[%s1709 + $0x6a] sm:$0xff]
          %v1848 = vld [vmem:[%s1709 + $0x7a] sm:$0xff]
          %v1849 = vld [vmem:[%s1709 + $0x82] sm:$0xff]
          %v1850 = vld [vmem:[%s1709 + $0x92] sm:$0xff]
          %v1851 = vld [vmem:[%s1709 + $0x9a] sm:$0xff]
          %v1852 = vld [vmem:[%s1709 + $0xaa] sm:$0xff]
          %v1853 = vld [vmem:[%s1709 + $0xb2] sm:$0xff]
          %v1854 = vld [vmem:[%s1709 + $0xc2] sm:$0xff]
          %v1855 = vld [vmem:[%s1709 + $0xca] sm:$0xff]
          %v1856 = vld [vmem:[%s1709 + $0xda] sm:$0xff]
          %v1857 = vld [vmem:[%s1709 + $0xe2] sm:$0xff]
          %v1858 = vld [vmem:[%s1709 + $0xf2] sm:$0xff]
          %v1859 = vld [vmem:[%s1709 + $0xfa] sm:$0xff]
          %v1860 = vld [vmem:[%s1709 + $0x10a] sm:$0xff]
          %v1861 = vld [vmem:[%s1709 + $0x112] sm:$0xff]
          %v1862 = vld [vmem:[%s1709 + $0x122] sm:$0xff]
          %v1863 = vld [vmem:[%s1709 + $0x12a] sm:$0xff]
          %v1864 = vld [vmem:[%s1709 + $0x13a] sm:$0xff]
          %v1865 = vld [vmem:[%s1709 + $0x142] sm:$0xff]
          %v1866 = vld [vmem:[%s1709 + $0x152] sm:$0xff]
          %v1867 = vld [vmem:[%s1709 + $0x15a] sm:$0xff]
          %v1868 = vld [vmem:[%s1709 + $0x16a] sm:$0xff]
          %v1869 = vld [vmem:[%s1709 + $0x172] sm:$0xff]
          %1870 = vst [vmem:[%s1356 + $0x40] sm:$0xff] %v1838
          %1871 = vst [vmem:[%s1356 + $0x88] sm:$0xff] %v1839
          %1872 = vst [vmem:[%s1356 + $0xd0] sm:$0xff] %v1840
          %1873 = vst [vmem:[%s1356 + $0x118] sm:$0xff] %v1841
          %1874 = vst [vmem:[%s1356 + $0x160] sm:$0xff] %v1842
          %1875 = vst [vmem:[%s1356 + $0x1a8] sm:$0xff] %v1843
          %1876 = vst [vmem:[%s1356 + $0x1f0] sm:$0xff] %v1844
          %1877 = vst [vmem:[%s1356 + $0x238] sm:$0xff] %v1845
          %1878 = vst [vmem:[%s1356 + $0x280] sm:$0xff] %v1846
          %1879 = vst [vmem:[%s1356 + $0x2c8] sm:$0xff] %v1847
          %1880 = vst [vmem:[%s1356 + $0x310] sm:$0xff] %v1848
          %1881 = vst [vmem:[%s1356 + $0x358] sm:$0xff] %v1849
          %1882 = vst [vmem:[%s1356 + $0x3a0] sm:$0xff] %v1850
          %1883 = vst [vmem:[%s1356 + $0x3e8] sm:$0xff] %v1851
          %1884 = vst [vmem:[%s1356 + $0x430] sm:$0xff] %v1852
          %1885 = vst [vmem:[%s1356 + $0x478] sm:$0xff] %v1853
          %1886 = vst [vmem:[%s1356 + $0x4c0] sm:$0xff] %v1854
          %1887 = vst [vmem:[%s1356 + $0x508] sm:$0xff] %v1855
          %1888 = vst [vmem:[%s1356 + $0x550] sm:$0xff] %v1856
          %1889 = vst [vmem:[%s1356 + $0x598] sm:$0xff] %v1857
          %1890 = vst [vmem:[%s1356 + $0x5e0] sm:$0xff] %v1858
          %1891 = vst [vmem:[%s1356 + $0x628] sm:$0xff] %v1859
          %1892 = vst [vmem:[%s1356 + $0x670] sm:$0xff] %v1860
          %1893 = vst [vmem:[%s1356 + $0x6b8] sm:$0xff] %v1861
          %1894 = vst [vmem:[%s1356 + $0x700] sm:$0xff] %v1862
          %1895 = vst [vmem:[%s1356 + $0x748] sm:$0xff] %v1863
          %1896 = vst [vmem:[%s1356 + $0x790] sm:$0xff] %v1864
          %1897 = vst [vmem:[%s1356 + $0x7d8] sm:$0xff] %v1865
          %1898 = vst [vmem:[%s1356 + $0x820] sm:$0xff] %v1866
          %1899 = vst [vmem:[%s1356 + $0x868] sm:$0xff] %v1867
          %1900 = vst [vmem:[%s1356 + $0x8b0] sm:$0xff] %v1868
          %1901 = vst [vmem:[%s1356 + $0x8f8] sm:$0xff] %v1869
        $region44: #{tpu_custom_call.1} parent=35 // pred_fallthru
          _
        %p1902 = scmp.eq.s32.totalorder %s29, 8
        // Predicated region
        $region45: #{tpu_custom_call.1} parent=35 // pred_check
          %p1903 = pneg %p1902
        $region46: #{tpu_custom_call.1} parent=35 // pred_check_branch
          %1905 = sbr.rel (%p1903) target = $region48
        $region47: #{tpu_custom_call.1} parent=35 // pred_region
          %s1906 = smul.u32 %s329, 288
          %s1907 = smul.addr %s1906, 8
          %s1908 = scalar_lea.vmem [#allocation3], %s1907
          %1909 = vst [vmem:[%s1908] sm:$0xff] 0.0
          %1910 = vst [vmem:[%s1908 + $0x8] sm:$0xff] 0.0
          %1911 = vst [vmem:[%s1908 + $0x10] sm:$0xff] 0.0
          %1912 = vst [vmem:[%s1908 + $0x18] sm:$0xff] 0.0
          %1913 = vst [vmem:[%s1908 + $0x20] sm:$0xff] 0.0
          %1914 = vst [vmem:[%s1908 + $0x28] sm:$0xff] 0.0
          %1915 = vst [vmem:[%s1908 + $0x30] sm:$0xff] 0.0
          %1916 = vst [vmem:[%s1908 + $0x38] sm:$0xff] 0.0
          %1917 = vst [vmem:[%s1908 + $0x40] sm:$0xff] 0.0
          %1918 = vst [vmem:[%s1908 + $0x48] sm:$0xff] 0.0
          %1919 = vst [vmem:[%s1908 + $0x50] sm:$0xff] 0.0
          %1920 = vst [vmem:[%s1908 + $0x58] sm:$0xff] 0.0
          %1921 = vst [vmem:[%s1908 + $0x60] sm:$0xff] 0.0
          %1922 = vst [vmem:[%s1908 + $0x68] sm:$0xff] 0.0
          %1923 = vst [vmem:[%s1908 + $0x70] sm:$0xff] 0.0
          %1924 = vst [vmem:[%s1908 + $0x78] sm:$0xff] 0.0
          %1925 = vst [vmem:[%s1908 + $0x80] sm:$0xff] 0.0
          %1926 = vst [vmem:[%s1908 + $0x88] sm:$0xff] 0.0
          %1927 = vst [vmem:[%s1908 + $0x90] sm:$0xff] 0.0
          %1928 = vst [vmem:[%s1908 + $0x98] sm:$0xff] 0.0
          %1929 = vst [vmem:[%s1908 + $0xa0] sm:$0xff] 0.0
          %1930 = vst [vmem:[%s1908 + $0xa8] sm:$0xff] 0.0
          %1931 = vst [vmem:[%s1908 + $0xb0] sm:$0xff] 0.0
          %1932 = vst [vmem:[%s1908 + $0xb8] sm:$0xff] 0.0
          %1933 = vst [vmem:[%s1908 + $0xc0] sm:$0xff] 0.0
          %1934 = vst [vmem:[%s1908 + $0xc8] sm:$0xff] 0.0
          %1935 = vst [vmem:[%s1908 + $0xd0] sm:$0xff] 0.0
          %1936 = vst [vmem:[%s1908 + $0xd8] sm:$0xff] 0.0
          %1937 = vst [vmem:[%s1908 + $0xe0] sm:$0xff] 0.0
          %1938 = vst [vmem:[%s1908 + $0xe8] sm:$0xff] 0.0
          %1939 = vst [vmem:[%s1908 + $0xf0] sm:$0xff] 0.0
          %1940 = vst [vmem:[%s1908 + $0xf8] sm:$0xff] 0.0
          %1941 = vst [vmem:[%s1908 + $0x100] sm:$0xff] 0.0
          %1942 = vst [vmem:[%s1908 + $0x108] sm:$0xff] 0.0
          %1943 = vst [vmem:[%s1908 + $0x110] sm:$0xff] 0.0
          %1944 = vst [vmem:[%s1908 + $0x118] sm:$0xff] 0.0
          %1945 = vst [vmem:[%s1908 + $0x120] sm:$0xff] 0.0
          %1946 = vst [vmem:[%s1908 + $0x128] sm:$0xff] 0.0
          %1947 = vst [vmem:[%s1908 + $0x130] sm:$0xff] 0.0
          %1948 = vst [vmem:[%s1908 + $0x138] sm:$0xff] 0.0
          %1949 = vst [vmem:[%s1908 + $0x140] sm:$0xff] 0.0
          %1950 = vst [vmem:[%s1908 + $0x148] sm:$0xff] 0.0
          %1951 = vst [vmem:[%s1908 + $0x150] sm:$0xff] 0.0
          %1952 = vst [vmem:[%s1908 + $0x158] sm:$0xff] 0.0
          %1953 = vst [vmem:[%s1908 + $0x160] sm:$0xff] 0.0
          %1954 = vst [vmem:[%s1908 + $0x168] sm:$0xff] 0.0
          %1955 = vst [vmem:[%s1908 + $0x170] sm:$0xff] 0.0
          %1956 = vst [vmem:[%s1908 + $0x178] sm:$0xff] 0.0
          %1957 = vst [vmem:[%s1908 + $0x180] sm:$0xff] 0.0
          %1958 = vst [vmem:[%s1908 + $0x188] sm:$0xff] 0.0
          %1959 = vst [vmem:[%s1908 + $0x190] sm:$0xff] 0.0
          %1960 = vst [vmem:[%s1908 + $0x198] sm:$0xff] 0.0
          %1961 = vst [vmem:[%s1908 + $0x1a0] sm:$0xff] 0.0
          %1962 = vst [vmem:[%s1908 + $0x1a8] sm:$0xff] 0.0
          %1963 = vst [vmem:[%s1908 + $0x1b0] sm:$0xff] 0.0
          %1964 = vst [vmem:[%s1908 + $0x1b8] sm:$0xff] 0.0
          %1965 = vst [vmem:[%s1908 + $0x1c0] sm:$0xff] 0.0
          %1966 = vst [vmem:[%s1908 + $0x1c8] sm:$0xff] 0.0
          %1967 = vst [vmem:[%s1908 + $0x1d0] sm:$0xff] 0.0
          %1968 = vst [vmem:[%s1908 + $0x1d8] sm:$0xff] 0.0
          %1969 = vst [vmem:[%s1908 + $0x1e0] sm:$0xff] 0.0
          %1970 = vst [vmem:[%s1908 + $0x1e8] sm:$0xff] 0.0
          %1971 = vst [vmem:[%s1908 + $0x1f0] sm:$0xff] 0.0
          %1972 = vst [vmem:[%s1908 + $0x1f8] sm:$0xff] 0.0
          %1973 = vst [vmem:[%s1908 + $0x200] sm:$0xff] 0.0
          %1974 = vst [vmem:[%s1908 + $0x208] sm:$0xff] 0.0
          %1975 = vst [vmem:[%s1908 + $0x210] sm:$0xff] 0.0
          %1976 = vst [vmem:[%s1908 + $0x218] sm:$0xff] 0.0
          %1977 = vst [vmem:[%s1908 + $0x220] sm:$0xff] 0.0
          %1978 = vst [vmem:[%s1908 + $0x228] sm:$0xff] 0.0
          %1979 = vst [vmem:[%s1908 + $0x230] sm:$0xff] 0.0
          %1980 = vst [vmem:[%s1908 + $0x238] sm:$0xff] 0.0
          %1981 = vst [vmem:[%s1908 + $0x240] sm:$0xff] 0.0
          %1982 = vst [vmem:[%s1908 + $0x248] sm:$0xff] 0.0
          %1983 = vst [vmem:[%s1908 + $0x250] sm:$0xff] 0.0
          %1984 = vst [vmem:[%s1908 + $0x258] sm:$0xff] 0.0
          %1985 = vst [vmem:[%s1908 + $0x260] sm:$0xff] 0.0
          %1986 = vst [vmem:[%s1908 + $0x268] sm:$0xff] 0.0
          %1987 = vst [vmem:[%s1908 + $0x270] sm:$0xff] 0.0
          %1988 = vst [vmem:[%s1908 + $0x278] sm:$0xff] 0.0
          %1989 = vst [vmem:[%s1908 + $0x280] sm:$0xff] 0.0
          %1990 = vst [vmem:[%s1908 + $0x288] sm:$0xff] 0.0
          %1991 = vst [vmem:[%s1908 + $0x290] sm:$0xff] 0.0
          %1992 = vst [vmem:[%s1908 + $0x298] sm:$0xff] 0.0
          %1993 = vst [vmem:[%s1908 + $0x2a0] sm:$0xff] 0.0
          %1994 = vst [vmem:[%s1908 + $0x2a8] sm:$0xff] 0.0
          %1995 = vst [vmem:[%s1908 + $0x2b0] sm:$0xff] 0.0
          %1996 = vst [vmem:[%s1908 + $0x2b8] sm:$0xff] 0.0
          %1997 = vst [vmem:[%s1908 + $0x2c0] sm:$0xff] 0.0
          %1998 = vst [vmem:[%s1908 + $0x2c8] sm:$0xff] 0.0
          %1999 = vst [vmem:[%s1908 + $0x2d0] sm:$0xff] 0.0
          %2000 = vst [vmem:[%s1908 + $0x2d8] sm:$0xff] 0.0
          %2001 = vst [vmem:[%s1908 + $0x2e0] sm:$0xff] 0.0
          %2002 = vst [vmem:[%s1908 + $0x2e8] sm:$0xff] 0.0
          %2003 = vst [vmem:[%s1908 + $0x2f0] sm:$0xff] 0.0
          %2004 = vst [vmem:[%s1908 + $0x2f8] sm:$0xff] 0.0
          %2005 = vst [vmem:[%s1908 + $0x300] sm:$0xff] 0.0
          %2006 = vst [vmem:[%s1908 + $0x308] sm:$0xff] 0.0
          %2007 = vst [vmem:[%s1908 + $0x310] sm:$0xff] 0.0
          %2008 = vst [vmem:[%s1908 + $0x318] sm:$0xff] 0.0
          %2009 = vst [vmem:[%s1908 + $0x320] sm:$0xff] 0.0
          %2010 = vst [vmem:[%s1908 + $0x328] sm:$0xff] 0.0
          %2011 = vst [vmem:[%s1908 + $0x330] sm:$0xff] 0.0
          %2012 = vst [vmem:[%s1908 + $0x338] sm:$0xff] 0.0
          %2013 = vst [vmem:[%s1908 + $0x340] sm:$0xff] 0.0
          %2014 = vst [vmem:[%s1908 + $0x348] sm:$0xff] 0.0
          %2015 = vst [vmem:[%s1908 + $0x350] sm:$0xff] 0.0
          %2016 = vst [vmem:[%s1908 + $0x358] sm:$0xff] 0.0
          %2017 = vst [vmem:[%s1908 + $0x360] sm:$0xff] 0.0
          %2018 = vst [vmem:[%s1908 + $0x368] sm:$0xff] 0.0
          %2019 = vst [vmem:[%s1908 + $0x370] sm:$0xff] 0.0
          %2020 = vst [vmem:[%s1908 + $0x378] sm:$0xff] 0.0
          %2021 = vst [vmem:[%s1908 + $0x380] sm:$0xff] 0.0
          %2022 = vst [vmem:[%s1908 + $0x388] sm:$0xff] 0.0
          %2023 = vst [vmem:[%s1908 + $0x390] sm:$0xff] 0.0
          %2024 = vst [vmem:[%s1908 + $0x398] sm:$0xff] 0.0
          %2025 = vst [vmem:[%s1908 + $0x3a0] sm:$0xff] 0.0
          %2026 = vst [vmem:[%s1908 + $0x3a8] sm:$0xff] 0.0
          %2027 = vst [vmem:[%s1908 + $0x3b0] sm:$0xff] 0.0
          %2028 = vst [vmem:[%s1908 + $0x3b8] sm:$0xff] 0.0
          %2029 = vst [vmem:[%s1908 + $0x3c0] sm:$0xff] 0.0
          %2030 = vst [vmem:[%s1908 + $0x3c8] sm:$0xff] 0.0
          %2031 = vst [vmem:[%s1908 + $0x3d0] sm:$0xff] 0.0
          %2032 = vst [vmem:[%s1908 + $0x3d8] sm:$0xff] 0.0
          %2033 = vst [vmem:[%s1908 + $0x3e0] sm:$0xff] 0.0
          %2034 = vst [vmem:[%s1908 + $0x3e8] sm:$0xff] 0.0
          %2035 = vst [vmem:[%s1908 + $0x3f0] sm:$0xff] 0.0
          %2036 = vst [vmem:[%s1908 + $0x3f8] sm:$0xff] 0.0
          %2037 = vst [vmem:[%s1908 + $0x400] sm:$0xff] 0.0
          %2038 = vst [vmem:[%s1908 + $0x408] sm:$0xff] 0.0
          %2039 = vst [vmem:[%s1908 + $0x410] sm:$0xff] 0.0
          %2040 = vst [vmem:[%s1908 + $0x418] sm:$0xff] 0.0
          %2041 = vst [vmem:[%s1908 + $0x420] sm:$0xff] 0.0
          %2042 = vst [vmem:[%s1908 + $0x428] sm:$0xff] 0.0
          %2043 = vst [vmem:[%s1908 + $0x430] sm:$0xff] 0.0
          %2044 = vst [vmem:[%s1908 + $0x438] sm:$0xff] 0.0
          %2045 = vst [vmem:[%s1908 + $0x440] sm:$0xff] 0.0
          %2046 = vst [vmem:[%s1908 + $0x448] sm:$0xff] 0.0
          %2047 = vst [vmem:[%s1908 + $0x450] sm:$0xff] 0.0
          %2048 = vst [vmem:[%s1908 + $0x458] sm:$0xff] 0.0
          %2049 = vst [vmem:[%s1908 + $0x460] sm:$0xff] 0.0
          %2050 = vst [vmem:[%s1908 + $0x468] sm:$0xff] 0.0
          %2051 = vst [vmem:[%s1908 + $0x470] sm:$0xff] 0.0
          %2052 = vst [vmem:[%s1908 + $0x478] sm:$0xff] 0.0
          %2053 = vst [vmem:[%s1908 + $0x480] sm:$0xff] 0.0
          %2054 = vst [vmem:[%s1908 + $0x488] sm:$0xff] 0.0
          %2055 = vst [vmem:[%s1908 + $0x490] sm:$0xff] 0.0
          %2056 = vst [vmem:[%s1908 + $0x498] sm:$0xff] 0.0
          %2057 = vst [vmem:[%s1908 + $0x4a0] sm:$0xff] 0.0
          %2058 = vst [vmem:[%s1908 + $0x4a8] sm:$0xff] 0.0
          %2059 = vst [vmem:[%s1908 + $0x4b0] sm:$0xff] 0.0
          %2060 = vst [vmem:[%s1908 + $0x4b8] sm:$0xff] 0.0
          %2061 = vst [vmem:[%s1908 + $0x4c0] sm:$0xff] 0.0
          %2062 = vst [vmem:[%s1908 + $0x4c8] sm:$0xff] 0.0
          %2063 = vst [vmem:[%s1908 + $0x4d0] sm:$0xff] 0.0
          %2064 = vst [vmem:[%s1908 + $0x4d8] sm:$0xff] 0.0
          %2065 = vst [vmem:[%s1908 + $0x4e0] sm:$0xff] 0.0
          %2066 = vst [vmem:[%s1908 + $0x4e8] sm:$0xff] 0.0
          %2067 = vst [vmem:[%s1908 + $0x4f0] sm:$0xff] 0.0
          %2068 = vst [vmem:[%s1908 + $0x4f8] sm:$0xff] 0.0
          %2069 = vst [vmem:[%s1908 + $0x500] sm:$0xff] 0.0
          %2070 = vst [vmem:[%s1908 + $0x508] sm:$0xff] 0.0
          %2071 = vst [vmem:[%s1908 + $0x510] sm:$0xff] 0.0
          %2072 = vst [vmem:[%s1908 + $0x518] sm:$0xff] 0.0
          %2073 = vst [vmem:[%s1908 + $0x520] sm:$0xff] 0.0
          %2074 = vst [vmem:[%s1908 + $0x528] sm:$0xff] 0.0
          %2075 = vst [vmem:[%s1908 + $0x530] sm:$0xff] 0.0
          %2076 = vst [vmem:[%s1908 + $0x538] sm:$0xff] 0.0
          %2077 = vst [vmem:[%s1908 + $0x540] sm:$0xff] 0.0
          %2078 = vst [vmem:[%s1908 + $0x548] sm:$0xff] 0.0
          %2079 = vst [vmem:[%s1908 + $0x550] sm:$0xff] 0.0
          %2080 = vst [vmem:[%s1908 + $0x558] sm:$0xff] 0.0
          %2081 = vst [vmem:[%s1908 + $0x560] sm:$0xff] 0.0
          %2082 = vst [vmem:[%s1908 + $0x568] sm:$0xff] 0.0
          %2083 = vst [vmem:[%s1908 + $0x570] sm:$0xff] 0.0
          %2084 = vst [vmem:[%s1908 + $0x578] sm:$0xff] 0.0
          %2085 = vst [vmem:[%s1908 + $0x580] sm:$0xff] 0.0
          %2086 = vst [vmem:[%s1908 + $0x588] sm:$0xff] 0.0
          %2087 = vst [vmem:[%s1908 + $0x590] sm:$0xff] 0.0
          %2088 = vst [vmem:[%s1908 + $0x598] sm:$0xff] 0.0
          %2089 = vst [vmem:[%s1908 + $0x5a0] sm:$0xff] 0.0
          %2090 = vst [vmem:[%s1908 + $0x5a8] sm:$0xff] 0.0
          %2091 = vst [vmem:[%s1908 + $0x5b0] sm:$0xff] 0.0
          %2092 = vst [vmem:[%s1908 + $0x5b8] sm:$0xff] 0.0
          %2093 = vst [vmem:[%s1908 + $0x5c0] sm:$0xff] 0.0
          %2094 = vst [vmem:[%s1908 + $0x5c8] sm:$0xff] 0.0
          %2095 = vst [vmem:[%s1908 + $0x5d0] sm:$0xff] 0.0
          %2096 = vst [vmem:[%s1908 + $0x5d8] sm:$0xff] 0.0
          %2097 = vst [vmem:[%s1908 + $0x5e0] sm:$0xff] 0.0
          %2098 = vst [vmem:[%s1908 + $0x5e8] sm:$0xff] 0.0
          %2099 = vst [vmem:[%s1908 + $0x5f0] sm:$0xff] 0.0
          %2100 = vst [vmem:[%s1908 + $0x5f8] sm:$0xff] 0.0
          %2101 = vst [vmem:[%s1908 + $0x600] sm:$0xff] 0.0
          %2102 = vst [vmem:[%s1908 + $0x608] sm:$0xff] 0.0
          %2103 = vst [vmem:[%s1908 + $0x610] sm:$0xff] 0.0
          %2104 = vst [vmem:[%s1908 + $0x618] sm:$0xff] 0.0
          %2105 = vst [vmem:[%s1908 + $0x620] sm:$0xff] 0.0
          %2106 = vst [vmem:[%s1908 + $0x628] sm:$0xff] 0.0
          %2107 = vst [vmem:[%s1908 + $0x630] sm:$0xff] 0.0
          %2108 = vst [vmem:[%s1908 + $0x638] sm:$0xff] 0.0
          %2109 = vst [vmem:[%s1908 + $0x640] sm:$0xff] 0.0
          %2110 = vst [vmem:[%s1908 + $0x648] sm:$0xff] 0.0
          %2111 = vst [vmem:[%s1908 + $0x650] sm:$0xff] 0.0
          %2112 = vst [vmem:[%s1908 + $0x658] sm:$0xff] 0.0
          %2113 = vst [vmem:[%s1908 + $0x660] sm:$0xff] 0.0
          %2114 = vst [vmem:[%s1908 + $0x668] sm:$0xff] 0.0
          %2115 = vst [vmem:[%s1908 + $0x670] sm:$0xff] 0.0
          %2116 = vst [vmem:[%s1908 + $0x678] sm:$0xff] 0.0
          %2117 = vst [vmem:[%s1908 + $0x680] sm:$0xff] 0.0
          %2118 = vst [vmem:[%s1908 + $0x688] sm:$0xff] 0.0
          %2119 = vst [vmem:[%s1908 + $0x690] sm:$0xff] 0.0
          %2120 = vst [vmem:[%s1908 + $0x698] sm:$0xff] 0.0
          %2121 = vst [vmem:[%s1908 + $0x6a0] sm:$0xff] 0.0
          %2122 = vst [vmem:[%s1908 + $0x6a8] sm:$0xff] 0.0
          %2123 = vst [vmem:[%s1908 + $0x6b0] sm:$0xff] 0.0
          %2124 = vst [vmem:[%s1908 + $0x6b8] sm:$0xff] 0.0
          %2125 = vst [vmem:[%s1908 + $0x6c0] sm:$0xff] 0.0
          %2126 = vst [vmem:[%s1908 + $0x6c8] sm:$0xff] 0.0
          %2127 = vst [vmem:[%s1908 + $0x6d0] sm:$0xff] 0.0
          %2128 = vst [vmem:[%s1908 + $0x6d8] sm:$0xff] 0.0
          %2129 = vst [vmem:[%s1908 + $0x6e0] sm:$0xff] 0.0
          %2130 = vst [vmem:[%s1908 + $0x6e8] sm:$0xff] 0.0
          %2131 = vst [vmem:[%s1908 + $0x6f0] sm:$0xff] 0.0
          %2132 = vst [vmem:[%s1908 + $0x6f8] sm:$0xff] 0.0
          %2133 = vst [vmem:[%s1908 + $0x700] sm:$0xff] 0.0
          %2134 = vst [vmem:[%s1908 + $0x708] sm:$0xff] 0.0
          %2135 = vst [vmem:[%s1908 + $0x710] sm:$0xff] 0.0
          %2136 = vst [vmem:[%s1908 + $0x718] sm:$0xff] 0.0
          %2137 = vst [vmem:[%s1908 + $0x720] sm:$0xff] 0.0
          %2138 = vst [vmem:[%s1908 + $0x728] sm:$0xff] 0.0
          %2139 = vst [vmem:[%s1908 + $0x730] sm:$0xff] 0.0
          %2140 = vst [vmem:[%s1908 + $0x738] sm:$0xff] 0.0
          %2141 = vst [vmem:[%s1908 + $0x740] sm:$0xff] 0.0
          %2142 = vst [vmem:[%s1908 + $0x748] sm:$0xff] 0.0
          %2143 = vst [vmem:[%s1908 + $0x750] sm:$0xff] 0.0
          %2144 = vst [vmem:[%s1908 + $0x758] sm:$0xff] 0.0
          %2145 = vst [vmem:[%s1908 + $0x760] sm:$0xff] 0.0
          %2146 = vst [vmem:[%s1908 + $0x768] sm:$0xff] 0.0
          %2147 = vst [vmem:[%s1908 + $0x770] sm:$0xff] 0.0
          %2148 = vst [vmem:[%s1908 + $0x778] sm:$0xff] 0.0
          %2149 = vst [vmem:[%s1908 + $0x780] sm:$0xff] 0.0
          %2150 = vst [vmem:[%s1908 + $0x788] sm:$0xff] 0.0
          %2151 = vst [vmem:[%s1908 + $0x790] sm:$0xff] 0.0
          %2152 = vst [vmem:[%s1908 + $0x798] sm:$0xff] 0.0
          %2153 = vst [vmem:[%s1908 + $0x7a0] sm:$0xff] 0.0
          %2154 = vst [vmem:[%s1908 + $0x7a8] sm:$0xff] 0.0
          %2155 = vst [vmem:[%s1908 + $0x7b0] sm:$0xff] 0.0
          %2156 = vst [vmem:[%s1908 + $0x7b8] sm:$0xff] 0.0
          %2157 = vst [vmem:[%s1908 + $0x7c0] sm:$0xff] 0.0
          %2158 = vst [vmem:[%s1908 + $0x7c8] sm:$0xff] 0.0
          %2159 = vst [vmem:[%s1908 + $0x7d0] sm:$0xff] 0.0
          %2160 = vst [vmem:[%s1908 + $0x7d8] sm:$0xff] 0.0
          %2161 = vst [vmem:[%s1908 + $0x7e0] sm:$0xff] 0.0
          %2162 = vst [vmem:[%s1908 + $0x7e8] sm:$0xff] 0.0
          %2163 = vst [vmem:[%s1908 + $0x7f0] sm:$0xff] 0.0
          %2164 = vst [vmem:[%s1908 + $0x7f8] sm:$0xff] 0.0
          %2165 = vst [vmem:[%s1908 + $0x800] sm:$0xff] 0.0
          %2166 = vst [vmem:[%s1908 + $0x808] sm:$0xff] 0.0
          %2167 = vst [vmem:[%s1908 + $0x810] sm:$0xff] 0.0
          %2168 = vst [vmem:[%s1908 + $0x818] sm:$0xff] 0.0
          %2169 = vst [vmem:[%s1908 + $0x820] sm:$0xff] 0.0
          %2170 = vst [vmem:[%s1908 + $0x828] sm:$0xff] 0.0
          %2171 = vst [vmem:[%s1908 + $0x830] sm:$0xff] 0.0
          %2172 = vst [vmem:[%s1908 + $0x838] sm:$0xff] 0.0
          %2173 = vst [vmem:[%s1908 + $0x840] sm:$0xff] 0.0
          %2174 = vst [vmem:[%s1908 + $0x848] sm:$0xff] 0.0
          %2175 = vst [vmem:[%s1908 + $0x850] sm:$0xff] 0.0
          %2176 = vst [vmem:[%s1908 + $0x858] sm:$0xff] 0.0
          %2177 = vst [vmem:[%s1908 + $0x860] sm:$0xff] 0.0
          %2178 = vst [vmem:[%s1908 + $0x868] sm:$0xff] 0.0
          %2179 = vst [vmem:[%s1908 + $0x870] sm:$0xff] 0.0
          %2180 = vst [vmem:[%s1908 + $0x878] sm:$0xff] 0.0
          %2181 = vst [vmem:[%s1908 + $0x880] sm:$0xff] 0.0
          %2182 = vst [vmem:[%s1908 + $0x888] sm:$0xff] 0.0
          %2183 = vst [vmem:[%s1908 + $0x890] sm:$0xff] 0.0
          %2184 = vst [vmem:[%s1908 + $0x898] sm:$0xff] 0.0
          %2185 = vst [vmem:[%s1908 + $0x8a0] sm:$0xff] 0.0
          %2186 = vst [vmem:[%s1908 + $0x8a8] sm:$0xff] 0.0
          %2187 = vst [vmem:[%s1908 + $0x8b0] sm:$0xff] 0.0
          %2188 = vst [vmem:[%s1908 + $0x8b8] sm:$0xff] 0.0
          %2189 = vst [vmem:[%s1908 + $0x8c0] sm:$0xff] 0.0
          %2190 = vst [vmem:[%s1908 + $0x8c8] sm:$0xff] 0.0
          %2191 = vst [vmem:[%s1908 + $0x8d0] sm:$0xff] 0.0
          %2192 = vst [vmem:[%s1908 + $0x8d8] sm:$0xff] 0.0
          %2193 = vst [vmem:[%s1908 + $0x8e0] sm:$0xff] 0.0
          %2194 = vst [vmem:[%s1908 + $0x8e8] sm:$0xff] 0.0
          %2195 = vst [vmem:[%s1908 + $0x8f0] sm:$0xff] 0.0
          %2196 = vst [vmem:[%s1908 + $0x8f8] sm:$0xff] 0.0
        $region48: #{tpu_custom_call.1} parent=35 // pred_fallthru
          _
        %p2197 = scmp.eq.s32.totalorder %s29, 1
        // Predicated region
        $region49: #{tpu_custom_call.1} parent=35 // pred_check
          %p2198 = pneg %p2197
        $region50: #{tpu_custom_call.1} parent=35 // pred_check_branch
          %2200 = sbr.rel (%p2198) target = $region52
        $region51: #{tpu_custom_call.1} parent=35 // pred_region
          %2201 = vst [vmem:[%s294] sm:$0x1] 0.0
          %2202 = vst [vmem:[%s300] sm:$0x1] 0.0
        $region52: #{tpu_custom_call.1} parent=35 // pred_fallthru
          _
        %p2203 = scmp.ge.s32.totalorder %s29, 1
        // Predicated region
        $region53: #{tpu_custom_call.1} parent=35 // pred_check
          %p2204 = pneg %p2203
        $region54: #{tpu_custom_call.1} parent=35 // pred_check_branch
          %2206 = sbr.rel (%p2204) target = $region56
        $region55: #{tpu_custom_call.1} parent=35 // pred_region
          %s2207 = sadd.s32 %s29, 2
          %p2208 = scmp.lt.s32.totalorder %s2207, 0
          %s2209 = ssub.s32 0, %s2207
          %s2210 = scalar_select %p2208, %s2209, %s2207
          %s2211 = sdiv.u32.pop %s2210, 3
          %s2212 = srem.u32.pop %s2210, 3
          %s2213 = ssub.s32 0, %s2212
          %s2214 = scalar_select %p2208, %s2213, %s2212
          %p2215 = scmp.ne.s32.totalorder %s2214, 0
          %p2216 = scmp.lt.s32.totalorder %s2214, 0
          %p2217 = pnand %p2216, %p2215
          %p2218 = pneg %p2217
          %s2219 = sadd.s32 %s2214, 3
          %s2220 = scalar_select %p2218, %s2219, %s2214
          %s2221 = smul.u32 %s2220, 288
          %s2222 = smul.addr %s2221, 8
          %s2223 = scalar_lea.vmem [#allocation3], %s2222
          %v2224 = vld [vmem:[%s2223] sm:$0xff]
          %v2225 = vld [vmem:[%s2223 + $0x8] sm:$0xff]
          %v2226 = vld [vmem:[%s2223 + $0x10] sm:$0xff]
          %v2227 = vld [vmem:[%s2223 + $0x18] sm:$0xff]
          %v2228 = vld [vmem:[%s2223 + $0x20] sm:$0xff]
          %v2229 = vld [vmem:[%s2223 + $0x28] sm:$0xff]
          %v2230 = vld [vmem:[%s2223 + $0x30] sm:$0xff]
          %v2231 = vld [vmem:[%s2223 + $0x38] sm:$0xff]
          %v2232 = vld [vmem:[%s2223 + $0x40] sm:$0xff]
          %v2233 = vld [vmem:[%s2223 + $0x48] sm:$0xff]
          %v2234 = vld [vmem:[%s2223 + $0x50] sm:$0xff]
          %v2235 = vld [vmem:[%s2223 + $0x58] sm:$0xff]
          %v2236 = vld [vmem:[%s2223 + $0x60] sm:$0xff]
          %v2237 = vld [vmem:[%s2223 + $0x68] sm:$0xff]
          %v2238 = vld [vmem:[%s2223 + $0x70] sm:$0xff]
          %v2239 = vld [vmem:[%s2223 + $0x78] sm:$0xff]
          %v2240 = vld [vmem:[%s2223 + $0x80] sm:$0xff]
          %v2241 = vld [vmem:[%s2223 + $0x88] sm:$0xff]
          %v2242 = vld [vmem:[%s2223 + $0x90] sm:$0xff]
          %v2243 = vld [vmem:[%s2223 + $0x98] sm:$0xff]
          %v2244 = vld [vmem:[%s2223 + $0xa0] sm:$0xff]
          %v2245 = vld [vmem:[%s2223 + $0xa8] sm:$0xff]
          %v2246 = vld [vmem:[%s2223 + $0xb0] sm:$0xff]
          %v2247 = vld [vmem:[%s2223 + $0xb8] sm:$0xff]
          %v2248 = vld [vmem:[%s2223 + $0xc0] sm:$0xff]
          %v2249 = vld [vmem:[%s2223 + $0xc8] sm:$0xff]
          %v2250 = vld [vmem:[%s2223 + $0xd0] sm:$0xff]
          %v2251 = vld [vmem:[%s2223 + $0xd8] sm:$0xff]
          %v2252 = vld [vmem:[%s2223 + $0xe0] sm:$0xff]
          %v2253 = vld [vmem:[%s2223 + $0xe8] sm:$0xff]
          %v2254 = vld [vmem:[%s2223 + $0xf0] sm:$0xff]
          %v2255 = vld [vmem:[%s2223 + $0xf8] sm:$0xff]
          %v2256 = vld [vmem:[%s2223 + $0x100] sm:$0xff]
          %v2257 = vld [vmem:[%s2223 + $0x108] sm:$0xff]
          %v2258 = vld [vmem:[%s2223 + $0x110] sm:$0xff]
          %v2259 = vld [vmem:[%s2223 + $0x118] sm:$0xff]
          %v2260 = vld [vmem:[%s2223 + $0x120] sm:$0xff]
          %v2261 = vld [vmem:[%s2223 + $0x128] sm:$0xff]
          %v2262 = vld [vmem:[%s2223 + $0x130] sm:$0xff]
          %v2263 = vld [vmem:[%s2223 + $0x138] sm:$0xff]
          %v2264 = vld [vmem:[%s2223 + $0x140] sm:$0xff]
          %v2265 = vld [vmem:[%s2223 + $0x148] sm:$0xff]
          %v2266 = vld [vmem:[%s2223 + $0x150] sm:$0xff]
          %v2267 = vld [vmem:[%s2223 + $0x158] sm:$0xff]
          %v2268 = vld [vmem:[%s2223 + $0x160] sm:$0xff]
          %v2269 = vld [vmem:[%s2223 + $0x168] sm:$0xff]
          %v2270 = vld [vmem:[%s2223 + $0x170] sm:$0xff]
          %v2271 = vld [vmem:[%s2223 + $0x178] sm:$0xff]
          %v2272 = vld [vmem:[%s2223 + $0x180] sm:$0xff]
          %v2273 = vld [vmem:[%s2223 + $0x188] sm:$0xff]
          %v2274 = vld [vmem:[%s2223 + $0x190] sm:$0xff]
          %v2275 = vld [vmem:[%s2223 + $0x198] sm:$0xff]
          %v2276 = vld [vmem:[%s2223 + $0x1a0] sm:$0xff]
          %v2277 = vld [vmem:[%s2223 + $0x1a8] sm:$0xff]
          %v2278 = vld [vmem:[%s2223 + $0x1b0] sm:$0xff]
          %v2279 = vld [vmem:[%s2223 + $0x1b8] sm:$0xff]
          %v2280 = vld [vmem:[%s2223 + $0x1c0] sm:$0xff]
          %v2281 = vld [vmem:[%s2223 + $0x1c8] sm:$0xff]
          %v2282 = vld [vmem:[%s2223 + $0x1d0] sm:$0xff]
          %v2283 = vld [vmem:[%s2223 + $0x1d8] sm:$0xff]
          %v2284 = vld [vmem:[%s2223 + $0x1e0] sm:$0xff]
          %v2285 = vld [vmem:[%s2223 + $0x1e8] sm:$0xff]
          %v2286 = vld [vmem:[%s2223 + $0x1f0] sm:$0xff]
          %v2287 = vld [vmem:[%s2223 + $0x1f8] sm:$0xff]
          %v2288 = vld [vmem:[%s2223 + $0x200] sm:$0xff]
          %v2289 = vld [vmem:[%s2223 + $0x208] sm:$0xff]
          %v2290 = vld [vmem:[%s2223 + $0x210] sm:$0xff]
          %v2291 = vld [vmem:[%s2223 + $0x218] sm:$0xff]
          %v2292 = vld [vmem:[%s2223 + $0x220] sm:$0xff]
          %v2293 = vld [vmem:[%s2223 + $0x228] sm:$0xff]
          %v2294 = vld [vmem:[%s2223 + $0x230] sm:$0xff]
          %v2295 = vld [vmem:[%s2223 + $0x238] sm:$0xff]
          %v2296 = vld [vmem:[%s2223 + $0x240] sm:$0xff]
          %v2297 = vld [vmem:[%s2223 + $0x248] sm:$0xff]
          %v2298 = vld [vmem:[%s2223 + $0x250] sm:$0xff]
          %v2299 = vld [vmem:[%s2223 + $0x258] sm:$0xff]
          %v2300 = vld [vmem:[%s2223 + $0x260] sm:$0xff]
          %v2301 = vld [vmem:[%s2223 + $0x268] sm:$0xff]
          %v2302 = vld [vmem:[%s2223 + $0x270] sm:$0xff]
          %v2303 = vld [vmem:[%s2223 + $0x278] sm:$0xff]
          %v2304 = vld [vmem:[%s2223 + $0x280] sm:$0xff]
          %v2305 = vld [vmem:[%s2223 + $0x288] sm:$0xff]
          %v2306 = vld [vmem:[%s2223 + $0x290] sm:$0xff]
          %v2307 = vld [vmem:[%s2223 + $0x298] sm:$0xff]
          %v2308 = vld [vmem:[%s2223 + $0x2a0] sm:$0xff]
          %v2309 = vld [vmem:[%s2223 + $0x2a8] sm:$0xff]
          %v2310 = vld [vmem:[%s2223 + $0x2b0] sm:$0xff]
          %v2311 = vld [vmem:[%s2223 + $0x2b8] sm:$0xff]
          %v2312 = vld [vmem:[%s2223 + $0x2c0] sm:$0xff]
          %v2313 = vld [vmem:[%s2223 + $0x2c8] sm:$0xff]
          %v2314 = vld [vmem:[%s2223 + $0x2d0] sm:$0xff]
          %v2315 = vld [vmem:[%s2223 + $0x2d8] sm:$0xff]
          %v2316 = vld [vmem:[%s2223 + $0x2e0] sm:$0xff]
          %v2317 = vld [vmem:[%s2223 + $0x2e8] sm:$0xff]
          %v2318 = vld [vmem:[%s2223 + $0x2f0] sm:$0xff]
          %v2319 = vld [vmem:[%s2223 + $0x2f8] sm:$0xff]
          %v2320 = vld [vmem:[%s2223 + $0x300] sm:$0xff]
          %v2321 = vld [vmem:[%s2223 + $0x308] sm:$0xff]
          %v2322 = vld [vmem:[%s2223 + $0x310] sm:$0xff]
          %v2323 = vld [vmem:[%s2223 + $0x318] sm:$0xff]
          %v2324 = vld [vmem:[%s2223 + $0x320] sm:$0xff]
          %v2325 = vld [vmem:[%s2223 + $0x328] sm:$0xff]
          %v2326 = vld [vmem:[%s2223 + $0x330] sm:$0xff]
          %v2327 = vld [vmem:[%s2223 + $0x338] sm:$0xff]
          %v2328 = vld [vmem:[%s2223 + $0x340] sm:$0xff]
          %v2329 = vld [vmem:[%s2223 + $0x348] sm:$0xff]
          %v2330 = vld [vmem:[%s2223 + $0x350] sm:$0xff]
          %v2331 = vld [vmem:[%s2223 + $0x358] sm:$0xff]
          %v2332 = vld [vmem:[%s2223 + $0x360] sm:$0xff]
          %v2333 = vld [vmem:[%s2223 + $0x368] sm:$0xff]
          %v2334 = vld [vmem:[%s2223 + $0x370] sm:$0xff]
          %v2335 = vld [vmem:[%s2223 + $0x378] sm:$0xff]
          %v2336 = vld [vmem:[%s2223 + $0x380] sm:$0xff]
          %v2337 = vld [vmem:[%s2223 + $0x388] sm:$0xff]
          %v2338 = vld [vmem:[%s2223 + $0x390] sm:$0xff]
          %v2339 = vld [vmem:[%s2223 + $0x398] sm:$0xff]
          %v2340 = vld [vmem:[%s2223 + $0x3a0] sm:$0xff]
          %v2341 = vld [vmem:[%s2223 + $0x3a8] sm:$0xff]
          %v2342 = vld [vmem:[%s2223 + $0x3b0] sm:$0xff]
          %v2343 = vld [vmem:[%s2223 + $0x3b8] sm:$0xff]
          %v2344 = vld [vmem:[%s2223 + $0x3c0] sm:$0xff]
          %v2345 = vld [vmem:[%s2223 + $0x3c8] sm:$0xff]
          %v2346 = vld [vmem:[%s2223 + $0x3d0] sm:$0xff]
          %v2347 = vld [vmem:[%s2223 + $0x3d8] sm:$0xff]
          %v2348 = vld [vmem:[%s2223 + $0x3e0] sm:$0xff]
          %v2349 = vld [vmem:[%s2223 + $0x3e8] sm:$0xff]
          %v2350 = vld [vmem:[%s2223 + $0x3f0] sm:$0xff]
          %v2351 = vld [vmem:[%s2223 + $0x3f8] sm:$0xff]
          %v2352 = vld [vmem:[%s2223 + $0x400] sm:$0xff]
          %v2353 = vld [vmem:[%s2223 + $0x408] sm:$0xff]
          %v2354 = vld [vmem:[%s2223 + $0x410] sm:$0xff]
          %v2355 = vld [vmem:[%s2223 + $0x418] sm:$0xff]
          %v2356 = vld [vmem:[%s2223 + $0x420] sm:$0xff]
          %v2357 = vld [vmem:[%s2223 + $0x428] sm:$0xff]
          %v2358 = vld [vmem:[%s2223 + $0x430] sm:$0xff]
          %v2359 = vld [vmem:[%s2223 + $0x438] sm:$0xff]
          %v2360 = vld [vmem:[%s2223 + $0x440] sm:$0xff]
          %v2361 = vld [vmem:[%s2223 + $0x448] sm:$0xff]
          %v2362 = vld [vmem:[%s2223 + $0x450] sm:$0xff]
          %v2363 = vld [vmem:[%s2223 + $0x458] sm:$0xff]
          %v2364 = vld [vmem:[%s2223 + $0x460] sm:$0xff]
          %v2365 = vld [vmem:[%s2223 + $0x468] sm:$0xff]
          %v2366 = vld [vmem:[%s2223 + $0x470] sm:$0xff]
          %v2367 = vld [vmem:[%s2223 + $0x478] sm:$0xff]
          %v2368 = vld [vmem:[%s2223 + $0x480] sm:$0xff]
          %v2369 = vld [vmem:[%s2223 + $0x488] sm:$0xff]
          %v2370 = vld [vmem:[%s2223 + $0x490] sm:$0xff]
          %v2371 = vld [vmem:[%s2223 + $0x498] sm:$0xff]
          %v2372 = vld [vmem:[%s2223 + $0x4a0] sm:$0xff]
          %v2373 = vld [vmem:[%s2223 + $0x4a8] sm:$0xff]
          %v2374 = vld [vmem:[%s2223 + $0x4b0] sm:$0xff]
          %v2375 = vld [vmem:[%s2223 + $0x4b8] sm:$0xff]
          %v2376 = vld [vmem:[%s2223 + $0x4c0] sm:$0xff]
          %v2377 = vld [vmem:[%s2223 + $0x4c8] sm:$0xff]
          %v2378 = vld [vmem:[%s2223 + $0x4d0] sm:$0xff]
          %v2379 = vld [vmem:[%s2223 + $0x4d8] sm:$0xff]
          %v2380 = vld [vmem:[%s2223 + $0x4e0] sm:$0xff]
          %v2381 = vld [vmem:[%s2223 + $0x4e8] sm:$0xff]
          %v2382 = vld [vmem:[%s2223 + $0x4f0] sm:$0xff]
          %v2383 = vld [vmem:[%s2223 + $0x4f8] sm:$0xff]
          %v2384 = vld [vmem:[%s2223 + $0x500] sm:$0xff]
          %v2385 = vld [vmem:[%s2223 + $0x508] sm:$0xff]
          %v2386 = vld [vmem:[%s2223 + $0x510] sm:$0xff]
          %v2387 = vld [vmem:[%s2223 + $0x518] sm:$0xff]
          %v2388 = vld [vmem:[%s2223 + $0x520] sm:$0xff]
          %v2389 = vld [vmem:[%s2223 + $0x528] sm:$0xff]
          %v2390 = vld [vmem:[%s2223 + $0x530] sm:$0xff]
          %v2391 = vld [vmem:[%s2223 + $0x538] sm:$0xff]
          %v2392 = vld [vmem:[%s2223 + $0x540] sm:$0xff]
          %v2393 = vld [vmem:[%s2223 + $0x548] sm:$0xff]
          %v2394 = vld [vmem:[%s2223 + $0x550] sm:$0xff]
          %v2395 = vld [vmem:[%s2223 + $0x558] sm:$0xff]
          %v2396 = vld [vmem:[%s2223 + $0x560] sm:$0xff]
          %v2397 = vld [vmem:[%s2223 + $0x568] sm:$0xff]
          %v2398 = vld [vmem:[%s2223 + $0x570] sm:$0xff]
          %v2399 = vld [vmem:[%s2223 + $0x578] sm:$0xff]
          %v2400 = vld [vmem:[%s2223 + $0x580] sm:$0xff]
          %v2401 = vld [vmem:[%s2223 + $0x588] sm:$0xff]
          %v2402 = vld [vmem:[%s2223 + $0x590] sm:$0xff]
          %v2403 = vld [vmem:[%s2223 + $0x598] sm:$0xff]
          %v2404 = vld [vmem:[%s2223 + $0x5a0] sm:$0xff]
          %v2405 = vld [vmem:[%s2223 + $0x5a8] sm:$0xff]
          %v2406 = vld [vmem:[%s2223 + $0x5b0] sm:$0xff]
          %v2407 = vld [vmem:[%s2223 + $0x5b8] sm:$0xff]
          %v2408 = vld [vmem:[%s2223 + $0x5c0] sm:$0xff]
          %v2409 = vld [vmem:[%s2223 + $0x5c8] sm:$0xff]
          %v2410 = vld [vmem:[%s2223 + $0x5d0] sm:$0xff]
          %v2411 = vld [vmem:[%s2223 + $0x5d8] sm:$0xff]
          %v2412 = vld [vmem:[%s2223 + $0x5e0] sm:$0xff]
          %v2413 = vld [vmem:[%s2223 + $0x5e8] sm:$0xff]
          %v2414 = vld [vmem:[%s2223 + $0x5f0] sm:$0xff]
          %v2415 = vld [vmem:[%s2223 + $0x5f8] sm:$0xff]
          %v2416 = vld [vmem:[%s2223 + $0x600] sm:$0xff]
          %v2417 = vld [vmem:[%s2223 + $0x608] sm:$0xff]
          %v2418 = vld [vmem:[%s2223 + $0x610] sm:$0xff]
          %v2419 = vld [vmem:[%s2223 + $0x618] sm:$0xff]
          %v2420 = vld [vmem:[%s2223 + $0x620] sm:$0xff]
          %v2421 = vld [vmem:[%s2223 + $0x628] sm:$0xff]
          %v2422 = vld [vmem:[%s2223 + $0x630] sm:$0xff]
          %v2423 = vld [vmem:[%s2223 + $0x638] sm:$0xff]
          %v2424 = vld [vmem:[%s2223 + $0x640] sm:$0xff]
          %v2425 = vld [vmem:[%s2223 + $0x648] sm:$0xff]
          %v2426 = vld [vmem:[%s2223 + $0x650] sm:$0xff]
          %v2427 = vld [vmem:[%s2223 + $0x658] sm:$0xff]
          %v2428 = vld [vmem:[%s2223 + $0x660] sm:$0xff]
          %v2429 = vld [vmem:[%s2223 + $0x668] sm:$0xff]
          %v2430 = vld [vmem:[%s2223 + $0x670] sm:$0xff]
          %v2431 = vld [vmem:[%s2223 + $0x678] sm:$0xff]
          %v2432 = vld [vmem:[%s2223 + $0x680] sm:$0xff]
          %v2433 = vld [vmem:[%s2223 + $0x688] sm:$0xff]
          %v2434 = vld [vmem:[%s2223 + $0x690] sm:$0xff]
          %v2435 = vld [vmem:[%s2223 + $0x698] sm:$0xff]
          %v2436 = vld [vmem:[%s2223 + $0x6a0] sm:$0xff]
          %v2437 = vld [vmem:[%s2223 + $0x6a8] sm:$0xff]
          %v2438 = vld [vmem:[%s2223 + $0x6b0] sm:$0xff]
          %v2439 = vld [vmem:[%s2223 + $0x6b8] sm:$0xff]
          %v2440 = vld [vmem:[%s2223 + $0x6c0] sm:$0xff]
          %v2441 = vld [vmem:[%s2223 + $0x6c8] sm:$0xff]
          %v2442 = vld [vmem:[%s2223 + $0x6d0] sm:$0xff]
          %v2443 = vld [vmem:[%s2223 + $0x6d8] sm:$0xff]
          %v2444 = vld [vmem:[%s2223 + $0x6e0] sm:$0xff]
          %v2445 = vld [vmem:[%s2223 + $0x6e8] sm:$0xff]
          %v2446 = vld [vmem:[%s2223 + $0x6f0] sm:$0xff]
          %v2447 = vld [vmem:[%s2223 + $0x6f8] sm:$0xff]
          %v2448 = vld [vmem:[%s2223 + $0x700] sm:$0xff]
          %v2449 = vld [vmem:[%s2223 + $0x708] sm:$0xff]
          %v2450 = vld [vmem:[%s2223 + $0x710] sm:$0xff]
          %v2451 = vld [vmem:[%s2223 + $0x718] sm:$0xff]
          %v2452 = vld [vmem:[%s2223 + $0x720] sm:$0xff]
          %v2453 = vld [vmem:[%s2223 + $0x728] sm:$0xff]
          %v2454 = vld [vmem:[%s2223 + $0x730] sm:$0xff]
          %v2455 = vld [vmem:[%s2223 + $0x738] sm:$0xff]
          %v2456 = vld [vmem:[%s2223 + $0x740] sm:$0xff]
          %v2457 = vld [vmem:[%s2223 + $0x748] sm:$0xff]
          %v2458 = vld [vmem:[%s2223 + $0x750] sm:$0xff]
          %v2459 = vld [vmem:[%s2223 + $0x758] sm:$0xff]
          %v2460 = vld [vmem:[%s2223 + $0x760] sm:$0xff]
          %v2461 = vld [vmem:[%s2223 + $0x768] sm:$0xff]
          %v2462 = vld [vmem:[%s2223 + $0x770] sm:$0xff]
          %v2463 = vld [vmem:[%s2223 + $0x778] sm:$0xff]
          %v2464 = vld [vmem:[%s2223 + $0x780] sm:$0xff]
          %v2465 = vld [vmem:[%s2223 + $0x788] sm:$0xff]
          %v2466 = vld [vmem:[%s2223 + $0x790] sm:$0xff]
          %v2467 = vld [vmem:[%s2223 + $0x798] sm:$0xff]
          %v2468 = vld [vmem:[%s2223 + $0x7a0] sm:$0xff]
          %v2469 = vld [vmem:[%s2223 + $0x7a8] sm:$0xff]
          %v2470 = vld [vmem:[%s2223 + $0x7b0] sm:$0xff]
          %v2471 = vld [vmem:[%s2223 + $0x7b8] sm:$0xff]
          %v2472 = vld [vmem:[%s2223 + $0x7c0] sm:$0xff]
          %v2473 = vld [vmem:[%s2223 + $0x7c8] sm:$0xff]
          %v2474 = vld [vmem:[%s2223 + $0x7d0] sm:$0xff]
          %v2475 = vld [vmem:[%s2223 + $0x7d8] sm:$0xff]
          %v2476 = vld [vmem:[%s2223 + $0x7e0] sm:$0xff]
          %v2477 = vld [vmem:[%s2223 + $0x7e8] sm:$0xff]
          %v2478 = vld [vmem:[%s2223 + $0x7f0] sm:$0xff]
          %v2479 = vld [vmem:[%s2223 + $0x7f8] sm:$0xff]
          %v2480 = vld [vmem:[%s2223 + $0x800] sm:$0xff]
          %v2481 = vld [vmem:[%s2223 + $0x808] sm:$0xff]
          %v2482 = vld [vmem:[%s2223 + $0x810] sm:$0xff]
          %v2483 = vld [vmem:[%s2223 + $0x818] sm:$0xff]
          %v2484 = vld [vmem:[%s2223 + $0x820] sm:$0xff]
          %v2485 = vld [vmem:[%s2223 + $0x828] sm:$0xff]
          %v2486 = vld [vmem:[%s2223 + $0x830] sm:$0xff]
          %v2487 = vld [vmem:[%s2223 + $0x838] sm:$0xff]
          %v2488 = vld [vmem:[%s2223 + $0x840] sm:$0xff]
          %v2489 = vld [vmem:[%s2223 + $0x848] sm:$0xff]
          %v2490 = vld [vmem:[%s2223 + $0x850] sm:$0xff]
          %v2491 = vld [vmem:[%s2223 + $0x858] sm:$0xff]
          %v2492 = vld [vmem:[%s2223 + $0x860] sm:$0xff]
          %v2493 = vld [vmem:[%s2223 + $0x868] sm:$0xff]
          %v2494 = vld [vmem:[%s2223 + $0x870] sm:$0xff]
          %v2495 = vld [vmem:[%s2223 + $0x878] sm:$0xff]
          %v2496 = vld [vmem:[%s2223 + $0x880] sm:$0xff]
          %v2497 = vld [vmem:[%s2223 + $0x888] sm:$0xff]
          %v2498 = vld [vmem:[%s2223 + $0x890] sm:$0xff]
          %v2499 = vld [vmem:[%s2223 + $0x898] sm:$0xff]
          %v2500 = vld [vmem:[%s2223 + $0x8a0] sm:$0xff]
          %v2501 = vld [vmem:[%s2223 + $0x8a8] sm:$0xff]
          %v2502 = vld [vmem:[%s2223 + $0x8b0] sm:$0xff]
          %v2503 = vld [vmem:[%s2223 + $0x8b8] sm:$0xff]
          %v2504 = vld [vmem:[%s2223 + $0x8c0] sm:$0xff]
          %v2505 = vld [vmem:[%s2223 + $0x8c8] sm:$0xff]
          %v2506 = vld [vmem:[%s2223 + $0x8d0] sm:$0xff]
          %v2507 = vld [vmem:[%s2223 + $0x8d8] sm:$0xff]
          %v2508 = vld [vmem:[%s2223 + $0x8e0] sm:$0xff]
          %v2509 = vld [vmem:[%s2223 + $0x8e8] sm:$0xff]
          %v2510 = vld [vmem:[%s2223 + $0x8f0] sm:$0xff]
          %v2511 = vld [vmem:[%s2223 + $0x8f8] sm:$0xff]
          %s2512 = scalar_lea.vmem %s1, 1152
          %v2513 = vld [vmem:[%s2512] sm:$0xff]
          %v2514 = vld [vmem:[%s2512 + $0x8] sm:$0xff]
          %v2515 = vld [vmem:[%s2512 + $0x10] sm:$0xff]
          %v2516 = vld [vmem:[%s2512 + $0x18] sm:$0xff]
          %v2517 = vld [vmem:[%s2512 + $0x20] sm:$0xff]
          %v2518 = vld [vmem:[%s2512 + $0x28] sm:$0xff]
          %v2519 = vld [vmem:[%s2512 + $0x30] sm:$0xff]
          %v2520 = vld [vmem:[%s2512 + $0x38] sm:$0xff]
          %v2521 = vld [vmem:[%s2512 + $0x40] sm:$0xff]
          %v2522 = vld [vmem:[%s2512 + $0x48] sm:$0xff]
          %v2523 = vld [vmem:[%s2512 + $0x50] sm:$0xff]
          %v2524 = vld [vmem:[%s2512 + $0x58] sm:$0xff]
          %v2525 = vld [vmem:[%s2512 + $0x60] sm:$0xff]
          %v2526 = vld [vmem:[%s2512 + $0x68] sm:$0xff]
          %v2527 = vld [vmem:[%s2512 + $0x70] sm:$0xff]
          %v2528 = vld [vmem:[%s2512 + $0x78] sm:$0xff]
          %v2529 = vld [vmem:[%s2512 + $0x80] sm:$0xff]
          %v2530 = vld [vmem:[%s2512 + $0x88] sm:$0xff]
          %v2531 = vld [vmem:[%s2512 + $0x90] sm:$0xff]
          %v2532 = vld [vmem:[%s2512 + $0x98] sm:$0xff]
          %v2533 = vld [vmem:[%s2512 + $0xa0] sm:$0xff]
          %v2534 = vld [vmem:[%s2512 + $0xa8] sm:$0xff]
          %v2535 = vld [vmem:[%s2512 + $0xb0] sm:$0xff]
          %v2536 = vld [vmem:[%s2512 + $0xb8] sm:$0xff]
          %v2537 = vld [vmem:[%s2512 + $0xc0] sm:$0xff]
          %v2538 = vld [vmem:[%s2512 + $0xc8] sm:$0xff]
          %v2539 = vld [vmem:[%s2512 + $0xd0] sm:$0xff]
          %v2540 = vld [vmem:[%s2512 + $0xd8] sm:$0xff]
          %v2541 = vld [vmem:[%s2512 + $0xe0] sm:$0xff]
          %v2542 = vld [vmem:[%s2512 + $0xe8] sm:$0xff]
          %v2543 = vld [vmem:[%s2512 + $0xf0] sm:$0xff]
          %v2544 = vld [vmem:[%s2512 + $0xf8] sm:$0xff]
          %v2545 = vld [vmem:[%s2512 + $0x100] sm:$0xff]
          %v2546 = vld [vmem:[%s2512 + $0x108] sm:$0xff]
          %v2547 = vld [vmem:[%s2512 + $0x110] sm:$0xff]
          %v2548 = vld [vmem:[%s2512 + $0x118] sm:$0xff]
          %v2549 = vld [vmem:[%s2512 + $0x120] sm:$0xff]
          %v2550 = vld [vmem:[%s2512 + $0x128] sm:$0xff]
          %v2551 = vld [vmem:[%s2512 + $0x130] sm:$0xff]
          %v2552 = vld [vmem:[%s2512 + $0x138] sm:$0xff]
          %v2553 = vld [vmem:[%s2512 + $0x140] sm:$0xff]
          %v2554 = vld [vmem:[%s2512 + $0x148] sm:$0xff]
          %v2555 = vld [vmem:[%s2512 + $0x150] sm:$0xff]
          %v2556 = vld [vmem:[%s2512 + $0x158] sm:$0xff]
          %v2557 = vld [vmem:[%s2512 + $0x160] sm:$0xff]
          %v2558 = vld [vmem:[%s2512 + $0x168] sm:$0xff]
          %v2559 = vld [vmem:[%s2512 + $0x170] sm:$0xff]
          %v2560 = vld [vmem:[%s2512 + $0x178] sm:$0xff]
          %v2561 = vld [vmem:[%s2512 + $0x180] sm:$0xff]
          %v2562 = vld [vmem:[%s2512 + $0x188] sm:$0xff]
          %v2563 = vld [vmem:[%s2512 + $0x190] sm:$0xff]
          %v2564 = vld [vmem:[%s2512 + $0x198] sm:$0xff]
          %v2565 = vld [vmem:[%s2512 + $0x1a0] sm:$0xff]
          %v2566 = vld [vmem:[%s2512 + $0x1a8] sm:$0xff]
          %v2567 = vld [vmem:[%s2512 + $0x1b0] sm:$0xff]
          %v2568 = vld [vmem:[%s2512 + $0x1b8] sm:$0xff]
          %v2569 = vld [vmem:[%s2512 + $0x1c0] sm:$0xff]
          %v2570 = vld [vmem:[%s2512 + $0x1c8] sm:$0xff]
          %v2571 = vld [vmem:[%s2512 + $0x1d0] sm:$0xff]
          %v2572 = vld [vmem:[%s2512 + $0x1d8] sm:$0xff]
          %v2573 = vld [vmem:[%s2512 + $0x1e0] sm:$0xff]
          %v2574 = vld [vmem:[%s2512 + $0x1e8] sm:$0xff]
          %v2575 = vld [vmem:[%s2512 + $0x1f0] sm:$0xff]
          %v2576 = vld [vmem:[%s2512 + $0x1f8] sm:$0xff]
          %v2577 = vld [vmem:[%s2512 + $0x200] sm:$0xff]
          %v2578 = vld [vmem:[%s2512 + $0x208] sm:$0xff]
          %v2579 = vld [vmem:[%s2512 + $0x210] sm:$0xff]
          %v2580 = vld [vmem:[%s2512 + $0x218] sm:$0xff]
          %v2581 = vld [vmem:[%s2512 + $0x220] sm:$0xff]
          %v2582 = vld [vmem:[%s2512 + $0x228] sm:$0xff]
          %v2583 = vld [vmem:[%s2512 + $0x230] sm:$0xff]
          %v2584 = vld [vmem:[%s2512 + $0x238] sm:$0xff]
          %v2585 = vld [vmem:[%s2512 + $0x240] sm:$0xff]
          %v2586 = vld [vmem:[%s2512 + $0x248] sm:$0xff]
          %v2587 = vld [vmem:[%s2512 + $0x250] sm:$0xff]
          %v2588 = vld [vmem:[%s2512 + $0x258] sm:$0xff]
          %v2589 = vld [vmem:[%s2512 + $0x260] sm:$0xff]
          %v2590 = vld [vmem:[%s2512 + $0x268] sm:$0xff]
          %v2591 = vld [vmem:[%s2512 + $0x270] sm:$0xff]
          %v2592 = vld [vmem:[%s2512 + $0x278] sm:$0xff]
          %v2593 = vld [vmem:[%s2512 + $0x280] sm:$0xff]
          %v2594 = vld [vmem:[%s2512 + $0x288] sm:$0xff]
          %v2595 = vld [vmem:[%s2512 + $0x290] sm:$0xff]
          %v2596 = vld [vmem:[%s2512 + $0x298] sm:$0xff]
          %v2597 = vld [vmem:[%s2512 + $0x2a0] sm:$0xff]
          %v2598 = vld [vmem:[%s2512 + $0x2a8] sm:$0xff]
          %v2599 = vld [vmem:[%s2512 + $0x2b0] sm:$0xff]
          %v2600 = vld [vmem:[%s2512 + $0x2b8] sm:$0xff]
          %v2601 = vld [vmem:[%s2512 + $0x2c0] sm:$0xff]
          %v2602 = vld [vmem:[%s2512 + $0x2c8] sm:$0xff]
          %v2603 = vld [vmem:[%s2512 + $0x2d0] sm:$0xff]
          %v2604 = vld [vmem:[%s2512 + $0x2d8] sm:$0xff]
          %v2605 = vld [vmem:[%s2512 + $0x2e0] sm:$0xff]
          %v2606 = vld [vmem:[%s2512 + $0x2e8] sm:$0xff]
          %v2607 = vld [vmem:[%s2512 + $0x2f0] sm:$0xff]
          %v2608 = vld [vmem:[%s2512 + $0x2f8] sm:$0xff]
          %v2609 = vld [vmem:[%s2512 + $0x300] sm:$0xff]
          %v2610 = vld [vmem:[%s2512 + $0x308] sm:$0xff]
          %v2611 = vld [vmem:[%s2512 + $0x310] sm:$0xff]
          %v2612 = vld [vmem:[%s2512 + $0x318] sm:$0xff]
          %v2613 = vld [vmem:[%s2512 + $0x320] sm:$0xff]
          %v2614 = vld [vmem:[%s2512 + $0x328] sm:$0xff]
          %v2615 = vld [vmem:[%s2512 + $0x330] sm:$0xff]
          %v2616 = vld [vmem:[%s2512 + $0x338] sm:$0xff]
          %v2617 = vld [vmem:[%s2512 + $0x340] sm:$0xff]
          %v2618 = vld [vmem:[%s2512 + $0x348] sm:$0xff]
          %v2619 = vld [vmem:[%s2512 + $0x350] sm:$0xff]
          %v2620 = vld [vmem:[%s2512 + $0x358] sm:$0xff]
          %v2621 = vld [vmem:[%s2512 + $0x360] sm:$0xff]
          %v2622 = vld [vmem:[%s2512 + $0x368] sm:$0xff]
          %v2623 = vld [vmem:[%s2512 + $0x370] sm:$0xff]
          %v2624 = vld [vmem:[%s2512 + $0x378] sm:$0xff]
          %v2625 = vld [vmem:[%s2512 + $0x380] sm:$0xff]
          %v2626 = vld [vmem:[%s2512 + $0x388] sm:$0xff]
          %v2627 = vld [vmem:[%s2512 + $0x390] sm:$0xff]
          %v2628 = vld [vmem:[%s2512 + $0x398] sm:$0xff]
          %v2629 = vld [vmem:[%s2512 + $0x3a0] sm:$0xff]
          %v2630 = vld [vmem:[%s2512 + $0x3a8] sm:$0xff]
          %v2631 = vld [vmem:[%s2512 + $0x3b0] sm:$0xff]
          %v2632 = vld [vmem:[%s2512 + $0x3b8] sm:$0xff]
          %v2633 = vld [vmem:[%s2512 + $0x3c0] sm:$0xff]
          %v2634 = vld [vmem:[%s2512 + $0x3c8] sm:$0xff]
          %v2635 = vld [vmem:[%s2512 + $0x3d0] sm:$0xff]
          %v2636 = vld [vmem:[%s2512 + $0x3d8] sm:$0xff]
          %v2637 = vld [vmem:[%s2512 + $0x3e0] sm:$0xff]
          %v2638 = vld [vmem:[%s2512 + $0x3e8] sm:$0xff]
          %v2639 = vld [vmem:[%s2512 + $0x3f0] sm:$0xff]
          %v2640 = vld [vmem:[%s2512 + $0x3f8] sm:$0xff]
          %v2641 = vld [vmem:[%s2512 + $0x400] sm:$0xff]
          %v2642 = vld [vmem:[%s2512 + $0x408] sm:$0xff]
          %v2643 = vld [vmem:[%s2512 + $0x410] sm:$0xff]
          %v2644 = vld [vmem:[%s2512 + $0x418] sm:$0xff]
          %v2645 = vld [vmem:[%s2512 + $0x420] sm:$0xff]
          %v2646 = vld [vmem:[%s2512 + $0x428] sm:$0xff]
          %v2647 = vld [vmem:[%s2512 + $0x430] sm:$0xff]
          %v2648 = vld [vmem:[%s2512 + $0x438] sm:$0xff]
          %v2649 = vld [vmem:[%s2512 + $0x440] sm:$0xff]
          %v2650 = vld [vmem:[%s2512 + $0x448] sm:$0xff]
          %v2651 = vld [vmem:[%s2512 + $0x450] sm:$0xff]
          %v2652 = vld [vmem:[%s2512 + $0x458] sm:$0xff]
          %v2653 = vld [vmem:[%s2512 + $0x460] sm:$0xff]
          %v2654 = vld [vmem:[%s2512 + $0x468] sm:$0xff]
          %v2655 = vld [vmem:[%s2512 + $0x470] sm:$0xff]
          %v2656 = vld [vmem:[%s2512 + $0x478] sm:$0xff]
          %s2657 = sadd.s32 %s29, 1
          %p2658 = scmp.lt.s32.totalorder %s2657, 0
          %s2659 = ssub.s32 0, %s2657
          %s2660 = scalar_select %p2658, %s2659, %s2657
          %s2661 = sdiv.u32.pop %s2660, 3
          %s2662 = srem.u32.pop %s2660, 3
          %s2663 = ssub.s32 0, %s2662
          %s2664 = scalar_select %p2658, %s2663, %s2662
          %p2665 = scmp.ne.s32.totalorder %s2664, 0
          %p2666 = scmp.lt.s32.totalorder %s2664, 0
          %p2667 = pnand %p2666, %p2665
          %p2668 = pneg %p2667
          %s2669 = sadd.s32 %s2664, 3
          %s2670 = scalar_select %p2668, %s2669, %s2664
          %s2671 = smul.u32 %s2670, 288
          %s2672 = smul.addr %s2671, 8
          %s2673 = scalar_lea.vmem [#allocation3], %s2672
          %v2674 = vld [vmem:[%s2673] sm:$0xff]
          %v2675 = vld [vmem:[%s2673 + $0x8] sm:$0xff]
          %v2676 = vld [vmem:[%s2673 + $0x10] sm:$0xff]
          %v2677 = vld [vmem:[%s2673 + $0x18] sm:$0xff]
          %v2678 = vld [vmem:[%s2673 + $0x20] sm:$0xff]
          %v2679 = vld [vmem:[%s2673 + $0x28] sm:$0xff]
          %v2680 = vld [vmem:[%s2673 + $0x30] sm:$0xff]
          %v2681 = vld [vmem:[%s2673 + $0x38] sm:$0xff]
          %v2682 = vld [vmem:[%s2673 + $0x40] sm:$0xff]
          %v2683 = vld [vmem:[%s2673 + $0x48] sm:$0xff]
          %v2684 = vld [vmem:[%s2673 + $0x50] sm:$0xff]
          %v2685 = vld [vmem:[%s2673 + $0x58] sm:$0xff]
          %v2686 = vld [vmem:[%s2673 + $0x60] sm:$0xff]
          %v2687 = vld [vmem:[%s2673 + $0x68] sm:$0xff]
          %v2688 = vld [vmem:[%s2673 + $0x70] sm:$0xff]
          %v2689 = vld [vmem:[%s2673 + $0x78] sm:$0xff]
          %v2690 = vld [vmem:[%s2673 + $0x80] sm:$0xff]
          %v2691 = vld [vmem:[%s2673 + $0x88] sm:$0xff]
          %v2692 = vld [vmem:[%s2673 + $0x90] sm:$0xff]
          %v2693 = vld [vmem:[%s2673 + $0x98] sm:$0xff]
          %v2694 = vld [vmem:[%s2673 + $0xa0] sm:$0xff]
          %v2695 = vld [vmem:[%s2673 + $0xa8] sm:$0xff]
          %v2696 = vld [vmem:[%s2673 + $0xb0] sm:$0xff]
          %v2697 = vld [vmem:[%s2673 + $0xb8] sm:$0xff]
          %v2698 = vld [vmem:[%s2673 + $0xc0] sm:$0xff]
          %v2699 = vld [vmem:[%s2673 + $0xc8] sm:$0xff]
          %v2700 = vld [vmem:[%s2673 + $0xd0] sm:$0xff]
          %v2701 = vld [vmem:[%s2673 + $0xd8] sm:$0xff]
          %v2702 = vld [vmem:[%s2673 + $0xe0] sm:$0xff]
          %v2703 = vld [vmem:[%s2673 + $0xe8] sm:$0xff]
          %v2704 = vld [vmem:[%s2673 + $0xf0] sm:$0xff]
          %v2705 = vld [vmem:[%s2673 + $0xf8] sm:$0xff]
          %v2706 = vld [vmem:[%s2673 + $0x100] sm:$0xff]
          %v2707 = vld [vmem:[%s2673 + $0x108] sm:$0xff]
          %v2708 = vld [vmem:[%s2673 + $0x110] sm:$0xff]
          %v2709 = vld [vmem:[%s2673 + $0x118] sm:$0xff]
          %v2710 = vld [vmem:[%s2673 + $0x120] sm:$0xff]
          %v2711 = vld [vmem:[%s2673 + $0x128] sm:$0xff]
          %v2712 = vld [vmem:[%s2673 + $0x130] sm:$0xff]
          %v2713 = vld [vmem:[%s2673 + $0x138] sm:$0xff]
          %v2714 = vld [vmem:[%s2673 + $0x140] sm:$0xff]
          %v2715 = vld [vmem:[%s2673 + $0x148] sm:$0xff]
          %v2716 = vld [vmem:[%s2673 + $0x150] sm:$0xff]
          %v2717 = vld [vmem:[%s2673 + $0x158] sm:$0xff]
          %v2718 = vld [vmem:[%s2673 + $0x160] sm:$0xff]
          %v2719 = vld [vmem:[%s2673 + $0x168] sm:$0xff]
          %v2720 = vld [vmem:[%s2673 + $0x170] sm:$0xff]
          %v2721 = vld [vmem:[%s2673 + $0x178] sm:$0xff]
          %v2722 = vld [vmem:[%s2673 + $0x180] sm:$0xff]
          %v2723 = vld [vmem:[%s2673 + $0x188] sm:$0xff]
          %v2724 = vld [vmem:[%s2673 + $0x190] sm:$0xff]
          %v2725 = vld [vmem:[%s2673 + $0x198] sm:$0xff]
          %v2726 = vld [vmem:[%s2673 + $0x1a0] sm:$0xff]
          %v2727 = vld [vmem:[%s2673 + $0x1a8] sm:$0xff]
          %v2728 = vld [vmem:[%s2673 + $0x1b0] sm:$0xff]
          %v2729 = vld [vmem:[%s2673 + $0x1b8] sm:$0xff]
          %v2730 = vld [vmem:[%s2673 + $0x1c0] sm:$0xff]
          %v2731 = vld [vmem:[%s2673 + $0x1c8] sm:$0xff]
          %v2732 = vld [vmem:[%s2673 + $0x1d0] sm:$0xff]
          %v2733 = vld [vmem:[%s2673 + $0x1d8] sm:$0xff]
          %v2734 = vld [vmem:[%s2673 + $0x1e0] sm:$0xff]
          %v2735 = vld [vmem:[%s2673 + $0x1e8] sm:$0xff]
          %v2736 = vld [vmem:[%s2673 + $0x1f0] sm:$0xff]
          %v2737 = vld [vmem:[%s2673 + $0x1f8] sm:$0xff]
          %v2738 = vld [vmem:[%s2673 + $0x200] sm:$0xff]
          %v2739 = vld [vmem:[%s2673 + $0x208] sm:$0xff]
          %v2740 = vld [vmem:[%s2673 + $0x210] sm:$0xff]
          %v2741 = vld [vmem:[%s2673 + $0x218] sm:$0xff]
          %v2742 = vld [vmem:[%s2673 + $0x220] sm:$0xff]
          %v2743 = vld [vmem:[%s2673 + $0x228] sm:$0xff]
          %v2744 = vld [vmem:[%s2673 + $0x230] sm:$0xff]
          %v2745 = vld [vmem:[%s2673 + $0x238] sm:$0xff]
          %v2746 = vld [vmem:[%s2673 + $0x240] sm:$0xff]
          %v2747 = vld [vmem:[%s2673 + $0x248] sm:$0xff]
          %v2748 = vld [vmem:[%s2673 + $0x250] sm:$0xff]
          %v2749 = vld [vmem:[%s2673 + $0x258] sm:$0xff]
          %v2750 = vld [vmem:[%s2673 + $0x260] sm:$0xff]
          %v2751 = vld [vmem:[%s2673 + $0x268] sm:$0xff]
          %v2752 = vld [vmem:[%s2673 + $0x270] sm:$0xff]
          %v2753 = vld [vmem:[%s2673 + $0x278] sm:$0xff]
          %v2754 = vld [vmem:[%s2673 + $0x280] sm:$0xff]
          %v2755 = vld [vmem:[%s2673 + $0x288] sm:$0xff]
          %v2756 = vld [vmem:[%s2673 + $0x290] sm:$0xff]
          %v2757 = vld [vmem:[%s2673 + $0x298] sm:$0xff]
          %v2758 = vld [vmem:[%s2673 + $0x2a0] sm:$0xff]
          %v2759 = vld [vmem:[%s2673 + $0x2a8] sm:$0xff]
          %v2760 = vld [vmem:[%s2673 + $0x2b0] sm:$0xff]
          %v2761 = vld [vmem:[%s2673 + $0x2b8] sm:$0xff]
          %v2762 = vld [vmem:[%s2673 + $0x2c0] sm:$0xff]
          %v2763 = vld [vmem:[%s2673 + $0x2c8] sm:$0xff]
          %v2764 = vld [vmem:[%s2673 + $0x2d0] sm:$0xff]
          %v2765 = vld [vmem:[%s2673 + $0x2d8] sm:$0xff]
          %v2766 = vld [vmem:[%s2673 + $0x2e0] sm:$0xff]
          %v2767 = vld [vmem:[%s2673 + $0x2e8] sm:$0xff]
          %v2768 = vld [vmem:[%s2673 + $0x2f0] sm:$0xff]
          %v2769 = vld [vmem:[%s2673 + $0x2f8] sm:$0xff]
          %v2770 = vld [vmem:[%s2673 + $0x300] sm:$0xff]
          %v2771 = vld [vmem:[%s2673 + $0x308] sm:$0xff]
          %v2772 = vld [vmem:[%s2673 + $0x310] sm:$0xff]
          %v2773 = vld [vmem:[%s2673 + $0x318] sm:$0xff]
          %v2774 = vld [vmem:[%s2673 + $0x320] sm:$0xff]
          %v2775 = vld [vmem:[%s2673 + $0x328] sm:$0xff]
          %v2776 = vld [vmem:[%s2673 + $0x330] sm:$0xff]
          %v2777 = vld [vmem:[%s2673 + $0x338] sm:$0xff]
          %v2778 = vld [vmem:[%s2673 + $0x340] sm:$0xff]
          %v2779 = vld [vmem:[%s2673 + $0x348] sm:$0xff]
          %v2780 = vld [vmem:[%s2673 + $0x350] sm:$0xff]
          %v2781 = vld [vmem:[%s2673 + $0x358] sm:$0xff]
          %v2782 = vld [vmem:[%s2673 + $0x360] sm:$0xff]
          %v2783 = vld [vmem:[%s2673 + $0x368] sm:$0xff]
          %v2784 = vld [vmem:[%s2673 + $0x370] sm:$0xff]
          %v2785 = vld [vmem:[%s2673 + $0x378] sm:$0xff]
          %v2786 = vld [vmem:[%s2673 + $0x380] sm:$0xff]
          %v2787 = vld [vmem:[%s2673 + $0x388] sm:$0xff]
          %v2788 = vld [vmem:[%s2673 + $0x390] sm:$0xff]
          %v2789 = vld [vmem:[%s2673 + $0x398] sm:$0xff]
          %v2790 = vld [vmem:[%s2673 + $0x3a0] sm:$0xff]
          %v2791 = vld [vmem:[%s2673 + $0x3a8] sm:$0xff]
          %v2792 = vld [vmem:[%s2673 + $0x3b0] sm:$0xff]
          %v2793 = vld [vmem:[%s2673 + $0x3b8] sm:$0xff]
          %v2794 = vld [vmem:[%s2673 + $0x3c0] sm:$0xff]
          %v2795 = vld [vmem:[%s2673 + $0x3c8] sm:$0xff]
          %v2796 = vld [vmem:[%s2673 + $0x3d0] sm:$0xff]
          %v2797 = vld [vmem:[%s2673 + $0x3d8] sm:$0xff]
          %v2798 = vld [vmem:[%s2673 + $0x3e0] sm:$0xff]
          %v2799 = vld [vmem:[%s2673 + $0x3e8] sm:$0xff]
          %v2800 = vld [vmem:[%s2673 + $0x3f0] sm:$0xff]
          %v2801 = vld [vmem:[%s2673 + $0x3f8] sm:$0xff]
          %v2802 = vld [vmem:[%s2673 + $0x400] sm:$0xff]
          %v2803 = vld [vmem:[%s2673 + $0x408] sm:$0xff]
          %v2804 = vld [vmem:[%s2673 + $0x410] sm:$0xff]
          %v2805 = vld [vmem:[%s2673 + $0x418] sm:$0xff]
          %v2806 = vld [vmem:[%s2673 + $0x420] sm:$0xff]
          %v2807 = vld [vmem:[%s2673 + $0x428] sm:$0xff]
          %v2808 = vld [vmem:[%s2673 + $0x430] sm:$0xff]
          %v2809 = vld [vmem:[%s2673 + $0x438] sm:$0xff]
          %v2810 = vld [vmem:[%s2673 + $0x440] sm:$0xff]
          %v2811 = vld [vmem:[%s2673 + $0x448] sm:$0xff]
          %v2812 = vld [vmem:[%s2673 + $0x450] sm:$0xff]
          %v2813 = vld [vmem:[%s2673 + $0x458] sm:$0xff]
          %v2814 = vld [vmem:[%s2673 + $0x460] sm:$0xff]
          %v2815 = vld [vmem:[%s2673 + $0x468] sm:$0xff]
          %v2816 = vld [vmem:[%s2673 + $0x470] sm:$0xff]
          %v2817 = vld [vmem:[%s2673 + $0x478] sm:$0xff]
          %v2818 = vld [vmem:[%s2673 + $0x480] sm:$0xff]
          %v2819 = vld [vmem:[%s2673 + $0x488] sm:$0xff]
          %v2820 = vld [vmem:[%s2673 + $0x490] sm:$0xff]
          %v2821 = vld [vmem:[%s2673 + $0x498] sm:$0xff]
          %v2822 = vld [vmem:[%s2673 + $0x4a0] sm:$0xff]
          %v2823 = vld [vmem:[%s2673 + $0x4a8] sm:$0xff]
          %v2824 = vld [vmem:[%s2673 + $0x4b0] sm:$0xff]
          %v2825 = vld [vmem:[%s2673 + $0x4b8] sm:$0xff]
          %v2826 = vld [vmem:[%s2673 + $0x4c0] sm:$0xff]
          %v2827 = vld [vmem:[%s2673 + $0x4c8] sm:$0xff]
          %v2828 = vld [vmem:[%s2673 + $0x4d0] sm:$0xff]
          %v2829 = vld [vmem:[%s2673 + $0x4d8] sm:$0xff]
          %v2830 = vld [vmem:[%s2673 + $0x4e0] sm:$0xff]
          %v2831 = vld [vmem:[%s2673 + $0x4e8] sm:$0xff]
          %v2832 = vld [vmem:[%s2673 + $0x4f0] sm:$0xff]
          %v2833 = vld [vmem:[%s2673 + $0x4f8] sm:$0xff]
          %v2834 = vld [vmem:[%s2673 + $0x500] sm:$0xff]
          %v2835 = vld [vmem:[%s2673 + $0x508] sm:$0xff]
          %v2836 = vld [vmem:[%s2673 + $0x510] sm:$0xff]
          %v2837 = vld [vmem:[%s2673 + $0x518] sm:$0xff]
          %v2838 = vld [vmem:[%s2673 + $0x520] sm:$0xff]
          %v2839 = vld [vmem:[%s2673 + $0x528] sm:$0xff]
          %v2840 = vld [vmem:[%s2673 + $0x530] sm:$0xff]
          %v2841 = vld [vmem:[%s2673 + $0x538] sm:$0xff]
          %v2842 = vld [vmem:[%s2673 + $0x540] sm:$0xff]
          %v2843 = vld [vmem:[%s2673 + $0x548] sm:$0xff]
          %v2844 = vld [vmem:[%s2673 + $0x550] sm:$0xff]
          %v2845 = vld [vmem:[%s2673 + $0x558] sm:$0xff]
          %v2846 = vld [vmem:[%s2673 + $0x560] sm:$0xff]
          %v2847 = vld [vmem:[%s2673 + $0x568] sm:$0xff]
          %v2848 = vld [vmem:[%s2673 + $0x570] sm:$0xff]
          %v2849 = vld [vmem:[%s2673 + $0x578] sm:$0xff]
          %v2850 = vld [vmem:[%s2673 + $0x580] sm:$0xff]
          %v2851 = vld [vmem:[%s2673 + $0x588] sm:$0xff]
          %v2852 = vld [vmem:[%s2673 + $0x590] sm:$0xff]
          %v2853 = vld [vmem:[%s2673 + $0x598] sm:$0xff]
          %v2854 = vld [vmem:[%s2673 + $0x5a0] sm:$0xff]
          %v2855 = vld [vmem:[%s2673 + $0x5a8] sm:$0xff]
          %v2856 = vld [vmem:[%s2673 + $0x5b0] sm:$0xff]
          %v2857 = vld [vmem:[%s2673 + $0x5b8] sm:$0xff]
          %v2858 = vld [vmem:[%s2673 + $0x5c0] sm:$0xff]
          %v2859 = vld [vmem:[%s2673 + $0x5c8] sm:$0xff]
          %v2860 = vld [vmem:[%s2673 + $0x5d0] sm:$0xff]
          %v2861 = vld [vmem:[%s2673 + $0x5d8] sm:$0xff]
          %v2862 = vld [vmem:[%s2673 + $0x5e0] sm:$0xff]
          %v2863 = vld [vmem:[%s2673 + $0x5e8] sm:$0xff]
          %v2864 = vld [vmem:[%s2673 + $0x5f0] sm:$0xff]
          %v2865 = vld [vmem:[%s2673 + $0x5f8] sm:$0xff]
          %v2866 = vld [vmem:[%s2673 + $0x600] sm:$0xff]
          %v2867 = vld [vmem:[%s2673 + $0x608] sm:$0xff]
          %v2868 = vld [vmem:[%s2673 + $0x610] sm:$0xff]
          %v2869 = vld [vmem:[%s2673 + $0x618] sm:$0xff]
          %v2870 = vld [vmem:[%s2673 + $0x620] sm:$0xff]
          %v2871 = vld [vmem:[%s2673 + $0x628] sm:$0xff]
          %v2872 = vld [vmem:[%s2673 + $0x630] sm:$0xff]
          %v2873 = vld [vmem:[%s2673 + $0x638] sm:$0xff]
          %v2874 = vld [vmem:[%s2673 + $0x640] sm:$0xff]
          %v2875 = vld [vmem:[%s2673 + $0x648] sm:$0xff]
          %v2876 = vld [vmem:[%s2673 + $0x650] sm:$0xff]
          %v2877 = vld [vmem:[%s2673 + $0x658] sm:$0xff]
          %v2878 = vld [vmem:[%s2673 + $0x660] sm:$0xff]
          %v2879 = vld [vmem:[%s2673 + $0x668] sm:$0xff]
          %v2880 = vld [vmem:[%s2673 + $0x670] sm:$0xff]
          %v2881 = vld [vmem:[%s2673 + $0x678] sm:$0xff]
          %v2882 = vld [vmem:[%s2673 + $0x680] sm:$0xff]
          %v2883 = vld [vmem:[%s2673 + $0x688] sm:$0xff]
          %v2884 = vld [vmem:[%s2673 + $0x690] sm:$0xff]
          %v2885 = vld [vmem:[%s2673 + $0x698] sm:$0xff]
          %v2886 = vld [vmem:[%s2673 + $0x6a0] sm:$0xff]
          %v2887 = vld [vmem:[%s2673 + $0x6a8] sm:$0xff]
          %v2888 = vld [vmem:[%s2673 + $0x6b0] sm:$0xff]
          %v2889 = vld [vmem:[%s2673 + $0x6b8] sm:$0xff]
          %v2890 = vld [vmem:[%s2673 + $0x6c0] sm:$0xff]
          %v2891 = vld [vmem:[%s2673 + $0x6c8] sm:$0xff]
          %v2892 = vld [vmem:[%s2673 + $0x6d0] sm:$0xff]
          %v2893 = vld [vmem:[%s2673 + $0x6d8] sm:$0xff]
          %v2894 = vld [vmem:[%s2673 + $0x6e0] sm:$0xff]
          %v2895 = vld [vmem:[%s2673 + $0x6e8] sm:$0xff]
          %v2896 = vld [vmem:[%s2673 + $0x6f0] sm:$0xff]
          %v2897 = vld [vmem:[%s2673 + $0x6f8] sm:$0xff]
          %v2898 = vld [vmem:[%s2673 + $0x700] sm:$0xff]
          %v2899 = vld [vmem:[%s2673 + $0x708] sm:$0xff]
          %v2900 = vld [vmem:[%s2673 + $0x710] sm:$0xff]
          %v2901 = vld [vmem:[%s2673 + $0x718] sm:$0xff]
          %v2902 = vld [vmem:[%s2673 + $0x720] sm:$0xff]
          %v2903 = vld [vmem:[%s2673 + $0x728] sm:$0xff]
          %v2904 = vld [vmem:[%s2673 + $0x730] sm:$0xff]
          %v2905 = vld [vmem:[%s2673 + $0x738] sm:$0xff]
          %v2906 = vld [vmem:[%s2673 + $0x740] sm:$0xff]
          %v2907 = vld [vmem:[%s2673 + $0x748] sm:$0xff]
          %v2908 = vld [vmem:[%s2673 + $0x750] sm:$0xff]
          %v2909 = vld [vmem:[%s2673 + $0x758] sm:$0xff]
          %v2910 = vld [vmem:[%s2673 + $0x760] sm:$0xff]
          %v2911 = vld [vmem:[%s2673 + $0x768] sm:$0xff]
          %v2912 = vld [vmem:[%s2673 + $0x770] sm:$0xff]
          %v2913 = vld [vmem:[%s2673 + $0x778] sm:$0xff]
          %v2914 = vld [vmem:[%s2673 + $0x780] sm:$0xff]
          %v2915 = vld [vmem:[%s2673 + $0x788] sm:$0xff]
          %v2916 = vld [vmem:[%s2673 + $0x790] sm:$0xff]
          %v2917 = vld [vmem:[%s2673 + $0x798] sm:$0xff]
          %v2918 = vld [vmem:[%s2673 + $0x7a0] sm:$0xff]
          %v2919 = vld [vmem:[%s2673 + $0x7a8] sm:$0xff]
          %v2920 = vld [vmem:[%s2673 + $0x7b0] sm:$0xff]
          %v2921 = vld [vmem:[%s2673 + $0x7b8] sm:$0xff]
          %v2922 = vld [vmem:[%s2673 + $0x7c0] sm:$0xff]
          %v2923 = vld [vmem:[%s2673 + $0x7c8] sm:$0xff]
          %v2924 = vld [vmem:[%s2673 + $0x7d0] sm:$0xff]
          %v2925 = vld [vmem:[%s2673 + $0x7d8] sm:$0xff]
          %v2926 = vld [vmem:[%s2673 + $0x7e0] sm:$0xff]
          %v2927 = vld [vmem:[%s2673 + $0x7e8] sm:$0xff]
          %v2928 = vld [vmem:[%s2673 + $0x7f0] sm:$0xff]
          %v2929 = vld [vmem:[%s2673 + $0x7f8] sm:$0xff]
          %v2930 = vld [vmem:[%s2673 + $0x800] sm:$0xff]
          %v2931 = vld [vmem:[%s2673 + $0x808] sm:$0xff]
          %v2932 = vld [vmem:[%s2673 + $0x810] sm:$0xff]
          %v2933 = vld [vmem:[%s2673 + $0x818] sm:$0xff]
          %v2934 = vld [vmem:[%s2673 + $0x820] sm:$0xff]
          %v2935 = vld [vmem:[%s2673 + $0x828] sm:$0xff]
          %v2936 = vld [vmem:[%s2673 + $0x830] sm:$0xff]
          %v2937 = vld [vmem:[%s2673 + $0x838] sm:$0xff]
          %v2938 = vld [vmem:[%s2673 + $0x840] sm:$0xff]
          %v2939 = vld [vmem:[%s2673 + $0x848] sm:$0xff]
          %v2940 = vld [vmem:[%s2673 + $0x850] sm:$0xff]
          %v2941 = vld [vmem:[%s2673 + $0x858] sm:$0xff]
          %v2942 = vld [vmem:[%s2673 + $0x860] sm:$0xff]
          %v2943 = vld [vmem:[%s2673 + $0x868] sm:$0xff]
          %v2944 = vld [vmem:[%s2673 + $0x870] sm:$0xff]
          %v2945 = vld [vmem:[%s2673 + $0x878] sm:$0xff]
          %v2946 = vld [vmem:[%s2673 + $0x880] sm:$0xff]
          %v2947 = vld [vmem:[%s2673 + $0x888] sm:$0xff]
          %v2948 = vld [vmem:[%s2673 + $0x890] sm:$0xff]
          %v2949 = vld [vmem:[%s2673 + $0x898] sm:$0xff]
          %v2950 = vld [vmem:[%s2673 + $0x8a0] sm:$0xff]
          %v2951 = vld [vmem:[%s2673 + $0x8a8] sm:$0xff]
          %v2952 = vld [vmem:[%s2673 + $0x8b0] sm:$0xff]
          %v2953 = vld [vmem:[%s2673 + $0x8b8] sm:$0xff]
          %v2954 = vld [vmem:[%s2673 + $0x8c0] sm:$0xff]
          %v2955 = vld [vmem:[%s2673 + $0x8c8] sm:$0xff]
          %v2956 = vld [vmem:[%s2673 + $0x8d0] sm:$0xff]
          %v2957 = vld [vmem:[%s2673 + $0x8d8] sm:$0xff]
          %v2958 = vld [vmem:[%s2673 + $0x8e0] sm:$0xff]
          %v2959 = vld [vmem:[%s2673 + $0x8e8] sm:$0xff]
          %v2960 = vld [vmem:[%s2673 + $0x8f0] sm:$0xff]
          %v2961 = vld [vmem:[%s2673 + $0x8f8] sm:$0xff]
          %v2962 = vld [vmem:[%s1] sm:$0xff]
          %v2963 = vld [vmem:[%s1 + $0x8] sm:$0xff]
          %v2964 = vld [vmem:[%s1 + $0x10] sm:$0xff]
          %v2965 = vld [vmem:[%s1 + $0x18] sm:$0xff]
          %v2966 = vld [vmem:[%s1 + $0x20] sm:$0xff]
          %v2967 = vld [vmem:[%s1 + $0x28] sm:$0xff]
          %v2968 = vld [vmem:[%s1 + $0x30] sm:$0xff]
          %v2969 = vld [vmem:[%s1 + $0x38] sm:$0xff]
          %v2970 = vld [vmem:[%s1 + $0x40] sm:$0xff]
          %v2971 = vld [vmem:[%s1 + $0x48] sm:$0xff]
          %v2972 = vld [vmem:[%s1 + $0x50] sm:$0xff]
          %v2973 = vld [vmem:[%s1 + $0x58] sm:$0xff]
          %v2974 = vld [vmem:[%s1 + $0x60] sm:$0xff]
          %v2975 = vld [vmem:[%s1 + $0x68] sm:$0xff]
          %v2976 = vld [vmem:[%s1 + $0x70] sm:$0xff]
          %v2977 = vld [vmem:[%s1 + $0x78] sm:$0xff]
          %v2978 = vld [vmem:[%s1 + $0x80] sm:$0xff]
          %v2979 = vld [vmem:[%s1 + $0x88] sm:$0xff]
          %v2980 = vld [vmem:[%s1 + $0x90] sm:$0xff]
          %v2981 = vld [vmem:[%s1 + $0x98] sm:$0xff]
          %v2982 = vld [vmem:[%s1 + $0xa0] sm:$0xff]
          %v2983 = vld [vmem:[%s1 + $0xa8] sm:$0xff]
          %v2984 = vld [vmem:[%s1 + $0xb0] sm:$0xff]
          %v2985 = vld [vmem:[%s1 + $0xb8] sm:$0xff]
          %v2986 = vld [vmem:[%s1 + $0xc0] sm:$0xff]
          %v2987 = vld [vmem:[%s1 + $0xc8] sm:$0xff]
          %v2988 = vld [vmem:[%s1 + $0xd0] sm:$0xff]
          %v2989 = vld [vmem:[%s1 + $0xd8] sm:$0xff]
          %v2990 = vld [vmem:[%s1 + $0xe0] sm:$0xff]
          %v2991 = vld [vmem:[%s1 + $0xe8] sm:$0xff]
          %v2992 = vld [vmem:[%s1 + $0xf0] sm:$0xff]
          %v2993 = vld [vmem:[%s1 + $0xf8] sm:$0xff]
          %v2994 = vld [vmem:[%s1 + $0x100] sm:$0xff]
          %v2995 = vld [vmem:[%s1 + $0x108] sm:$0xff]
          %v2996 = vld [vmem:[%s1 + $0x110] sm:$0xff]
          %v2997 = vld [vmem:[%s1 + $0x118] sm:$0xff]
          %v2998 = vld [vmem:[%s1 + $0x120] sm:$0xff]
          %v2999 = vld [vmem:[%s1 + $0x128] sm:$0xff]
          %v3000 = vld [vmem:[%s1 + $0x130] sm:$0xff]
          %v3001 = vld [vmem:[%s1 + $0x138] sm:$0xff]
          %v3002 = vld [vmem:[%s1 + $0x140] sm:$0xff]
          %v3003 = vld [vmem:[%s1 + $0x148] sm:$0xff]
          %v3004 = vld [vmem:[%s1 + $0x150] sm:$0xff]
          %v3005 = vld [vmem:[%s1 + $0x158] sm:$0xff]
          %v3006 = vld [vmem:[%s1 + $0x160] sm:$0xff]
          %v3007 = vld [vmem:[%s1 + $0x168] sm:$0xff]
          %v3008 = vld [vmem:[%s1 + $0x170] sm:$0xff]
          %v3009 = vld [vmem:[%s1 + $0x178] sm:$0xff]
          %v3010 = vld [vmem:[%s1 + $0x180] sm:$0xff]
          %v3011 = vld [vmem:[%s1 + $0x188] sm:$0xff]
          %v3012 = vld [vmem:[%s1 + $0x190] sm:$0xff]
          %v3013 = vld [vmem:[%s1 + $0x198] sm:$0xff]
          %v3014 = vld [vmem:[%s1 + $0x1a0] sm:$0xff]
          %v3015 = vld [vmem:[%s1 + $0x1a8] sm:$0xff]
          %v3016 = vld [vmem:[%s1 + $0x1b0] sm:$0xff]
          %v3017 = vld [vmem:[%s1 + $0x1b8] sm:$0xff]
          %v3018 = vld [vmem:[%s1 + $0x1c0] sm:$0xff]
          %v3019 = vld [vmem:[%s1 + $0x1c8] sm:$0xff]
          %v3020 = vld [vmem:[%s1 + $0x1d0] sm:$0xff]
          %v3021 = vld [vmem:[%s1 + $0x1d8] sm:$0xff]
          %v3022 = vld [vmem:[%s1 + $0x1e0] sm:$0xff]
          %v3023 = vld [vmem:[%s1 + $0x1e8] sm:$0xff]
          %v3024 = vld [vmem:[%s1 + $0x1f0] sm:$0xff]
          %v3025 = vld [vmem:[%s1 + $0x1f8] sm:$0xff]
          %v3026 = vld [vmem:[%s1 + $0x200] sm:$0xff]
          %v3027 = vld [vmem:[%s1 + $0x208] sm:$0xff]
          %v3028 = vld [vmem:[%s1 + $0x210] sm:$0xff]
          %v3029 = vld [vmem:[%s1 + $0x218] sm:$0xff]
          %v3030 = vld [vmem:[%s1 + $0x220] sm:$0xff]
          %v3031 = vld [vmem:[%s1 + $0x228] sm:$0xff]
          %v3032 = vld [vmem:[%s1 + $0x230] sm:$0xff]
          %v3033 = vld [vmem:[%s1 + $0x238] sm:$0xff]
          %v3034 = vld [vmem:[%s1 + $0x240] sm:$0xff]
          %v3035 = vld [vmem:[%s1 + $0x248] sm:$0xff]
          %v3036 = vld [vmem:[%s1 + $0x250] sm:$0xff]
          %v3037 = vld [vmem:[%s1 + $0x258] sm:$0xff]
          %v3038 = vld [vmem:[%s1 + $0x260] sm:$0xff]
          %v3039 = vld [vmem:[%s1 + $0x268] sm:$0xff]
          %v3040 = vld [vmem:[%s1 + $0x270] sm:$0xff]
          %v3041 = vld [vmem:[%s1 + $0x278] sm:$0xff]
          %v3042 = vld [vmem:[%s1 + $0x280] sm:$0xff]
          %v3043 = vld [vmem:[%s1 + $0x288] sm:$0xff]
          %v3044 = vld [vmem:[%s1 + $0x290] sm:$0xff]
          %v3045 = vld [vmem:[%s1 + $0x298] sm:$0xff]
          %v3046 = vld [vmem:[%s1 + $0x2a0] sm:$0xff]
          %v3047 = vld [vmem:[%s1 + $0x2a8] sm:$0xff]
          %v3048 = vld [vmem:[%s1 + $0x2b0] sm:$0xff]
          %v3049 = vld [vmem:[%s1 + $0x2b8] sm:$0xff]
          %v3050 = vld [vmem:[%s1 + $0x2c0] sm:$0xff]
          %v3051 = vld [vmem:[%s1 + $0x2c8] sm:$0xff]
          %v3052 = vld [vmem:[%s1 + $0x2d0] sm:$0xff]
          %v3053 = vld [vmem:[%s1 + $0x2d8] sm:$0xff]
          %v3054 = vld [vmem:[%s1 + $0x2e0] sm:$0xff]
          %v3055 = vld [vmem:[%s1 + $0x2e8] sm:$0xff]
          %v3056 = vld [vmem:[%s1 + $0x2f0] sm:$0xff]
          %v3057 = vld [vmem:[%s1 + $0x2f8] sm:$0xff]
          %v3058 = vld [vmem:[%s1 + $0x300] sm:$0xff]
          %v3059 = vld [vmem:[%s1 + $0x308] sm:$0xff]
          %v3060 = vld [vmem:[%s1 + $0x310] sm:$0xff]
          %v3061 = vld [vmem:[%s1 + $0x318] sm:$0xff]
          %v3062 = vld [vmem:[%s1 + $0x320] sm:$0xff]
          %v3063 = vld [vmem:[%s1 + $0x328] sm:$0xff]
          %v3064 = vld [vmem:[%s1 + $0x330] sm:$0xff]
          %v3065 = vld [vmem:[%s1 + $0x338] sm:$0xff]
          %v3066 = vld [vmem:[%s1 + $0x340] sm:$0xff]
          %v3067 = vld [vmem:[%s1 + $0x348] sm:$0xff]
          %v3068 = vld [vmem:[%s1 + $0x350] sm:$0xff]
          %v3069 = vld [vmem:[%s1 + $0x358] sm:$0xff]
          %v3070 = vld [vmem:[%s1 + $0x360] sm:$0xff]
          %v3071 = vld [vmem:[%s1 + $0x368] sm:$0xff]
          %v3072 = vld [vmem:[%s1 + $0x370] sm:$0xff]
          %v3073 = vld [vmem:[%s1 + $0x378] sm:$0xff]
          %v3074 = vld [vmem:[%s1 + $0x380] sm:$0xff]
          %v3075 = vld [vmem:[%s1 + $0x388] sm:$0xff]
          %v3076 = vld [vmem:[%s1 + $0x390] sm:$0xff]
          %v3077 = vld [vmem:[%s1 + $0x398] sm:$0xff]
          %v3078 = vld [vmem:[%s1 + $0x3a0] sm:$0xff]
          %v3079 = vld [vmem:[%s1 + $0x3a8] sm:$0xff]
          %v3080 = vld [vmem:[%s1 + $0x3b0] sm:$0xff]
          %v3081 = vld [vmem:[%s1 + $0x3b8] sm:$0xff]
          %v3082 = vld [vmem:[%s1 + $0x3c0] sm:$0xff]
          %v3083 = vld [vmem:[%s1 + $0x3c8] sm:$0xff]
          %v3084 = vld [vmem:[%s1 + $0x3d0] sm:$0xff]
          %v3085 = vld [vmem:[%s1 + $0x3d8] sm:$0xff]
          %v3086 = vld [vmem:[%s1 + $0x3e0] sm:$0xff]
          %v3087 = vld [vmem:[%s1 + $0x3e8] sm:$0xff]
          %v3088 = vld [vmem:[%s1 + $0x3f0] sm:$0xff]
          %v3089 = vld [vmem:[%s1 + $0x3f8] sm:$0xff]
          %v3090 = vld [vmem:[%s1 + $0x400] sm:$0xff]
          %v3091 = vld [vmem:[%s1 + $0x408] sm:$0xff]
          %v3092 = vld [vmem:[%s1 + $0x410] sm:$0xff]
          %v3093 = vld [vmem:[%s1 + $0x418] sm:$0xff]
          %v3094 = vld [vmem:[%s1 + $0x420] sm:$0xff]
          %v3095 = vld [vmem:[%s1 + $0x428] sm:$0xff]
          %v3096 = vld [vmem:[%s1 + $0x430] sm:$0xff]
          %v3097 = vld [vmem:[%s1 + $0x438] sm:$0xff]
          %v3098 = vld [vmem:[%s1 + $0x440] sm:$0xff]
          %v3099 = vld [vmem:[%s1 + $0x448] sm:$0xff]
          %v3100 = vld [vmem:[%s1 + $0x450] sm:$0xff]
          %v3101 = vld [vmem:[%s1 + $0x458] sm:$0xff]
          %v3102 = vld [vmem:[%s1 + $0x460] sm:$0xff]
          %v3103 = vld [vmem:[%s1 + $0x468] sm:$0xff]
          %v3104 = vld [vmem:[%s1 + $0x470] sm:$0xff]
          %v3105 = vld [vmem:[%s1 + $0x478] sm:$0xff]
          %3106 = vmatpush.msra.mxu0 %v2977
          %3107 = vmatpush.msra.mxu0 %v2976
          %3108 = vmatpush.msra.mxu0 %v2975
          %3109 = vmatpush.msra.mxu0 %v2974
          %3110 = vmatpush.msra.mxu0 %v2973
          %3111 = vmatpush.msra.mxu0 %v2972
          %3112 = vmatpush.msra.mxu0 %v2971
          %3113 = vmatpush.msra.mxu0 %v2970
          %3114 = vmatpush.msra.mxu0 %v2969
          %3115 = vmatpush.msra.mxu0 %v2968
          %3116 = vmatpush.msra.mxu0 %v2967
          %3117 = vmatpush.msra.mxu0 %v2966
          %3118 = vmatpush.msra.mxu0 %v2965
          %3119 = vmatpush.msra.mxu0 %v2964
          %3120 = vmatpush.msra.mxu0 %v2963
          %3121 = vmatpush.msra.mxu0 %v2962
          %3122 = vmatmul.f32.gmra.mxu0 %v2674
          %v3123 = vpop.f32.mrf.mxu0
          %v3124 = vadd.f32 0.0, %v3123
          %3125 = vmatmul.f32.gmra.mxu0 %v2683
          %v3126 = vpop.f32.mrf.mxu0
          %v3127 = vadd.f32 0.0, %v3126
          %3128 = vmatmul.f32.gmra.mxu0 %v2692
          %v3129 = vpop.f32.mrf.mxu0
          %v3130 = vadd.f32 0.0, %v3129
          %3131 = vmatmul.f32.gmra.mxu0 %v2701
          %v3132 = vpop.f32.mrf.mxu0
          %v3133 = vadd.f32 0.0, %v3132
          %3134 = vmatmul.f32.gmra.mxu0 %v2710
          %v3135 = vpop.f32.mrf.mxu0
          %v3136 = vadd.f32 0.0, %v3135
          %3137 = vmatmul.f32.gmra.mxu0 %v2719
          %v3138 = vpop.f32.mrf.mxu0
          %v3139 = vadd.f32 0.0, %v3138
          %3140 = vmatmul.f32.gmra.mxu0 %v2728
          %v3141 = vpop.f32.mrf.mxu0
          %v3142 = vadd.f32 0.0, %v3141
          %3143 = vmatmul.f32.gmra.mxu0 %v2737
          %v3144 = vpop.f32.mrf.mxu0
          %v3145 = vadd.f32 0.0, %v3144
          %3146 = vmatmul.f32.gmra.mxu0 %v2746
          %v3147 = vpop.f32.mrf.mxu0
          %v3148 = vadd.f32 0.0, %v3147
          %3149 = vmatmul.f32.gmra.mxu0 %v2755
          %v3150 = vpop.f32.mrf.mxu0
          %v3151 = vadd.f32 0.0, %v3150
          %3152 = vmatmul.f32.gmra.mxu0 %v2764
          %v3153 = vpop.f32.mrf.mxu0
          %v3154 = vadd.f32 0.0, %v3153
          %3155 = vmatmul.f32.gmra.mxu0 %v2773
          %v3156 = vpop.f32.mrf.mxu0
          %v3157 = vadd.f32 0.0, %v3156
          %3158 = vmatmul.f32.gmra.mxu0 %v2782
          %v3159 = vpop.f32.mrf.mxu0
          %v3160 = vadd.f32 0.0, %v3159
          %3161 = vmatmul.f32.gmra.mxu0 %v2791
          %v3162 = vpop.f32.mrf.mxu0
          %v3163 = vadd.f32 0.0, %v3162
          %3164 = vmatmul.f32.gmra.mxu0 %v2800
          %v3165 = vpop.f32.mrf.mxu0
          %v3166 = vadd.f32 0.0, %v3165
          %3167 = vmatmul.f32.gmra.mxu0 %v2809
          %v3168 = vpop.f32.mrf.mxu0
          %v3169 = vadd.f32 0.0, %v3168
          %3170 = vmatmul.f32.gmra.mxu0 %v2818
          %v3171 = vpop.f32.mrf.mxu0
          %v3172 = vadd.f32 0.0, %v3171
          %3173 = vmatmul.f32.gmra.mxu0 %v2827
          %v3174 = vpop.f32.mrf.mxu0
          %v3175 = vadd.f32 0.0, %v3174
          %3176 = vmatmul.f32.gmra.mxu0 %v2836
          %v3177 = vpop.f32.mrf.mxu0
          %v3178 = vadd.f32 0.0, %v3177
          %3179 = vmatmul.f32.gmra.mxu0 %v2845
          %v3180 = vpop.f32.mrf.mxu0
          %v3181 = vadd.f32 0.0, %v3180
          %3182 = vmatmul.f32.gmra.mxu0 %v2854
          %v3183 = vpop.f32.mrf.mxu0
          %v3184 = vadd.f32 0.0, %v3183
          %3185 = vmatmul.f32.gmra.mxu0 %v2863
          %v3186 = vpop.f32.mrf.mxu0
          %v3187 = vadd.f32 0.0, %v3186
          %3188 = vmatmul.f32.gmra.mxu0 %v2872
          %v3189 = vpop.f32.mrf.mxu0
          %v3190 = vadd.f32 0.0, %v3189
          %3191 = vmatmul.f32.gmra.mxu0 %v2881
          %v3192 = vpop.f32.mrf.mxu0
          %v3193 = vadd.f32 0.0, %v3192
          %3194 = vmatmul.f32.gmra.mxu0 %v2890
          %v3195 = vpop.f32.mrf.mxu0
          %v3196 = vadd.f32 0.0, %v3195
          %3197 = vmatmul.f32.gmra.mxu0 %v2899
          %v3198 = vpop.f32.mrf.mxu0
          %v3199 = vadd.f32 0.0, %v3198
          %3200 = vmatmul.f32.gmra.mxu0 %v2908
          %v3201 = vpop.f32.mrf.mxu0
          %v3202 = vadd.f32 0.0, %v3201
          %3203 = vmatmul.f32.gmra.mxu0 %v2917
          %v3204 = vpop.f32.mrf.mxu0
          %v3205 = vadd.f32 0.0, %v3204
          %3206 = vmatmul.f32.gmra.mxu0 %v2926
          %v3207 = vpop.f32.mrf.mxu0
          %v3208 = vadd.f32 0.0, %v3207
          %3209 = vmatmul.f32.gmra.mxu0 %v2935
          %v3210 = vpop.f32.mrf.mxu0
          %v3211 = vadd.f32 0.0, %v3210
          %3212 = vmatmul.f32.gmra.mxu0 %v2944
          %v3213 = vpop.f32.mrf.mxu0
          %v3214 = vadd.f32 0.0, %v3213
          %3215 = vmatmul.f32.gmra.mxu0 %v2953
          %v3216 = vpop.f32.mrf.mxu0
          %v3217 = vadd.f32 0.0, %v3216
          %3218 = vdwg.mxu0
          %3219 = vmatpush.msra.mxu0 %v2993
          %3220 = vmatpush.msra.mxu0 %v2992
          %3221 = vmatpush.msra.mxu0 %v2991
          %3222 = vmatpush.msra.mxu0 %v2990
          %3223 = vmatpush.msra.mxu0 %v2989
          %3224 = vmatpush.msra.mxu0 %v2988
          %3225 = vmatpush.msra.mxu0 %v2987
          %3226 = vmatpush.msra.mxu0 %v2986
          %3227 = vmatpush.msra.mxu0 %v2985
          %3228 = vmatpush.msra.mxu0 %v2984
          %3229 = vmatpush.msra.mxu0 %v2983
          %3230 = vmatpush.msra.mxu0 %v2982
          %3231 = vmatpush.msra.mxu0 %v2981
          %3232 = vmatpush.msra.mxu0 %v2980
          %3233 = vmatpush.msra.mxu0 %v2979
          %3234 = vmatpush.msra.mxu0 %v2978
          %3235 = vmatmul.f32.gmra.mxu0 %v2675
          %v3236 = vpop.f32.mrf.mxu0
          %v3237 = vadd.f32 %v3124, %v3236
          %3238 = vmatmul.f32.gmra.mxu0 %v2684
          %v3239 = vpop.f32.mrf.mxu0
          %v3240 = vadd.f32 %v3127, %v3239
          %3241 = vmatmul.f32.gmra.mxu0 %v2693
          %v3242 = vpop.f32.mrf.mxu0
          %v3243 = vadd.f32 %v3130, %v3242
          %3244 = vmatmul.f32.gmra.mxu0 %v2702
          %v3245 = vpop.f32.mrf.mxu0
          %v3246 = vadd.f32 %v3133, %v3245
          %3247 = vmatmul.f32.gmra.mxu0 %v2711
          %v3248 = vpop.f32.mrf.mxu0
          %v3249 = vadd.f32 %v3136, %v3248
          %3250 = vmatmul.f32.gmra.mxu0 %v2720
          %v3251 = vpop.f32.mrf.mxu0
          %v3252 = vadd.f32 %v3139, %v3251
          %3253 = vmatmul.f32.gmra.mxu0 %v2729
          %v3254 = vpop.f32.mrf.mxu0
          %v3255 = vadd.f32 %v3142, %v3254
          %3256 = vmatmul.f32.gmra.mxu0 %v2738
          %v3257 = vpop.f32.mrf.mxu0
          %v3258 = vadd.f32 %v3145, %v3257
          %3259 = vmatmul.f32.gmra.mxu0 %v2747
          %v3260 = vpop.f32.mrf.mxu0
          %v3261 = vadd.f32 %v3148, %v3260
          %3262 = vmatmul.f32.gmra.mxu0 %v2756
          %v3263 = vpop.f32.mrf.mxu0
          %v3264 = vadd.f32 %v3151, %v3263
          %3265 = vmatmul.f32.gmra.mxu0 %v2765
          %v3266 = vpop.f32.mrf.mxu0
          %v3267 = vadd.f32 %v3154, %v3266
          %3268 = vmatmul.f32.gmra.mxu0 %v2774
          %v3269 = vpop.f32.mrf.mxu0
          %v3270 = vadd.f32 %v3157, %v3269
          %3271 = vmatmul.f32.gmra.mxu0 %v2783
          %v3272 = vpop.f32.mrf.mxu0
          %v3273 = vadd.f32 %v3160, %v3272
          %3274 = vmatmul.f32.gmra.mxu0 %v2792
          %v3275 = vpop.f32.mrf.mxu0
          %v3276 = vadd.f32 %v3163, %v3275
          %3277 = vmatmul.f32.gmra.mxu0 %v2801
          %v3278 = vpop.f32.mrf.mxu0
          %v3279 = vadd.f32 %v3166, %v3278
          %3280 = vmatmul.f32.gmra.mxu0 %v2810
          %v3281 = vpop.f32.mrf.mxu0
          %v3282 = vadd.f32 %v3169, %v3281
          %3283 = vmatmul.f32.gmra.mxu0 %v2819
          %v3284 = vpop.f32.mrf.mxu0
          %v3285 = vadd.f32 %v3172, %v3284
          %3286 = vmatmul.f32.gmra.mxu0 %v2828
          %v3287 = vpop.f32.mrf.mxu0
          %v3288 = vadd.f32 %v3175, %v3287
          %3289 = vmatmul.f32.gmra.mxu0 %v2837
          %v3290 = vpop.f32.mrf.mxu0
          %v3291 = vadd.f32 %v3178, %v3290
          %3292 = vmatmul.f32.gmra.mxu0 %v2846
          %v3293 = vpop.f32.mrf.mxu0
          %v3294 = vadd.f32 %v3181, %v3293
          %3295 = vmatmul.f32.gmra.mxu0 %v2855
          %v3296 = vpop.f32.mrf.mxu0
          %v3297 = vadd.f32 %v3184, %v3296
          %3298 = vmatmul.f32.gmra.mxu0 %v2864
          %v3299 = vpop.f32.mrf.mxu0
          %v3300 = vadd.f32 %v3187, %v3299
          %3301 = vmatmul.f32.gmra.mxu0 %v2873
          %v3302 = vpop.f32.mrf.mxu0
          %v3303 = vadd.f32 %v3190, %v3302
          %3304 = vmatmul.f32.gmra.mxu0 %v2882
          %v3305 = vpop.f32.mrf.mxu0
          %v3306 = vadd.f32 %v3193, %v3305
          %3307 = vmatmul.f32.gmra.mxu0 %v2891
          %v3308 = vpop.f32.mrf.mxu0
          %v3309 = vadd.f32 %v3196, %v3308
          %3310 = vmatmul.f32.gmra.mxu0 %v2900
          %v3311 = vpop.f32.mrf.mxu0
          %v3312 = vadd.f32 %v3199, %v3311
          %3313 = vmatmul.f32.gmra.mxu0 %v2909
          %v3314 = vpop.f32.mrf.mxu0
          %v3315 = vadd.f32 %v3202, %v3314
          %3316 = vmatmul.f32.gmra.mxu0 %v2918
          %v3317 = vpop.f32.mrf.mxu0
          %v3318 = vadd.f32 %v3205, %v3317
          %3319 = vmatmul.f32.gmra.mxu0 %v2927
          %v3320 = vpop.f32.mrf.mxu0
          %v3321 = vadd.f32 %v3208, %v3320
          %3322 = vmatmul.f32.gmra.mxu0 %v2936
          %v3323 = vpop.f32.mrf.mxu0
          %v3324 = vadd.f32 %v3211, %v3323
          %3325 = vmatmul.f32.gmra.mxu0 %v2945
          %v3326 = vpop.f32.mrf.mxu0
          %v3327 = vadd.f32 %v3214, %v3326
          %3328 = vmatmul.f32.gmra.mxu0 %v2954
          %v3329 = vpop.f32.mrf.mxu0
          %v3330 = vadd.f32 %v3217, %v3329
          %3331 = vdwg.mxu0
          %3332 = vmatpush.msra.mxu0 %v3009
          %3333 = vmatpush.msra.mxu0 %v3008
          %3334 = vmatpush.msra.mxu0 %v3007
          %3335 = vmatpush.msra.mxu0 %v3006
          %3336 = vmatpush.msra.mxu0 %v3005
          %3337 = vmatpush.msra.mxu0 %v3004
          %3338 = vmatpush.msra.mxu0 %v3003
          %3339 = vmatpush.msra.mxu0 %v3002
          %3340 = vmatpush.msra.mxu0 %v3001
          %3341 = vmatpush.msra.mxu0 %v3000
          %3342 = vmatpush.msra.mxu0 %v2999
          %3343 = vmatpush.msra.mxu0 %v2998
          %3344 = vmatpush.msra.mxu0 %v2997
          %3345 = vmatpush.msra.mxu0 %v2996
          %3346 = vmatpush.msra.mxu0 %v2995
          %3347 = vmatpush.msra.mxu0 %v2994
          %3348 = vmatmul.f32.gmra.mxu0 %v2676
          %v3349 = vpop.f32.mrf.mxu0
          %v3350 = vadd.f32 %v3237, %v3349
          %3351 = vmatmul.f32.gmra.mxu0 %v2685
          %v3352 = vpop.f32.mrf.mxu0
          %v3353 = vadd.f32 %v3240, %v3352
          %3354 = vmatmul.f32.gmra.mxu0 %v2694
          %v3355 = vpop.f32.mrf.mxu0
          %v3356 = vadd.f32 %v3243, %v3355
          %3357 = vmatmul.f32.gmra.mxu0 %v2703
          %v3358 = vpop.f32.mrf.mxu0
          %v3359 = vadd.f32 %v3246, %v3358
          %3360 = vmatmul.f32.gmra.mxu0 %v2712
          %v3361 = vpop.f32.mrf.mxu0
          %v3362 = vadd.f32 %v3249, %v3361
          %3363 = vmatmul.f32.gmra.mxu0 %v2721
          %v3364 = vpop.f32.mrf.mxu0
          %v3365 = vadd.f32 %v3252, %v3364
          %3366 = vmatmul.f32.gmra.mxu0 %v2730
          %v3367 = vpop.f32.mrf.mxu0
          %v3368 = vadd.f32 %v3255, %v3367
          %3369 = vmatmul.f32.gmra.mxu0 %v2739
          %v3370 = vpop.f32.mrf.mxu0
          %v3371 = vadd.f32 %v3258, %v3370
          %3372 = vmatmul.f32.gmra.mxu0 %v2748
          %v3373 = vpop.f32.mrf.mxu0
          %v3374 = vadd.f32 %v3261, %v3373
          %3375 = vmatmul.f32.gmra.mxu0 %v2757
          %v3376 = vpop.f32.mrf.mxu0
          %v3377 = vadd.f32 %v3264, %v3376
          %3378 = vmatmul.f32.gmra.mxu0 %v2766
          %v3379 = vpop.f32.mrf.mxu0
          %v3380 = vadd.f32 %v3267, %v3379
          %3381 = vmatmul.f32.gmra.mxu0 %v2775
          %v3382 = vpop.f32.mrf.mxu0
          %v3383 = vadd.f32 %v3270, %v3382
          %3384 = vmatmul.f32.gmra.mxu0 %v2784
          %v3385 = vpop.f32.mrf.mxu0
          %v3386 = vadd.f32 %v3273, %v3385
          %3387 = vmatmul.f32.gmra.mxu0 %v2793
          %v3388 = vpop.f32.mrf.mxu0
          %v3389 = vadd.f32 %v3276, %v3388
          %3390 = vmatmul.f32.gmra.mxu0 %v2802
          %v3391 = vpop.f32.mrf.mxu0
          %v3392 = vadd.f32 %v3279, %v3391
          %3393 = vmatmul.f32.gmra.mxu0 %v2811
          %v3394 = vpop.f32.mrf.mxu0
          %v3395 = vadd.f32 %v3282, %v3394
          %3396 = vmatmul.f32.gmra.mxu0 %v2820
          %v3397 = vpop.f32.mrf.mxu0
          %v3398 = vadd.f32 %v3285, %v3397
          %3399 = vmatmul.f32.gmra.mxu0 %v2829
          %v3400 = vpop.f32.mrf.mxu0
          %v3401 = vadd.f32 %v3288, %v3400
          %3402 = vmatmul.f32.gmra.mxu0 %v2838
          %v3403 = vpop.f32.mrf.mxu0
          %v3404 = vadd.f32 %v3291, %v3403
          %3405 = vmatmul.f32.gmra.mxu0 %v2847
          %v3406 = vpop.f32.mrf.mxu0
          %v3407 = vadd.f32 %v3294, %v3406
          %3408 = vmatmul.f32.gmra.mxu0 %v2856
          %v3409 = vpop.f32.mrf.mxu0
          %v3410 = vadd.f32 %v3297, %v3409
          %3411 = vmatmul.f32.gmra.mxu0 %v2865
          %v3412 = vpop.f32.mrf.mxu0
          %v3413 = vadd.f32 %v3300, %v3412
          %3414 = vmatmul.f32.gmra.mxu0 %v2874
          %v3415 = vpop.f32.mrf.mxu0
          %v3416 = vadd.f32 %v3303, %v3415
          %3417 = vmatmul.f32.gmra.mxu0 %v2883
          %v3418 = vpop.f32.mrf.mxu0
          %v3419 = vadd.f32 %v3306, %v3418
          %3420 = vmatmul.f32.gmra.mxu0 %v2892
          %v3421 = vpop.f32.mrf.mxu0
          %v3422 = vadd.f32 %v3309, %v3421
          %3423 = vmatmul.f32.gmra.mxu0 %v2901
          %v3424 = vpop.f32.mrf.mxu0
          %v3425 = vadd.f32 %v3312, %v3424
          %3426 = vmatmul.f32.gmra.mxu0 %v2910
          %v3427 = vpop.f32.mrf.mxu0
          %v3428 = vadd.f32 %v3315, %v3427
          %3429 = vmatmul.f32.gmra.mxu0 %v2919
          %v3430 = vpop.f32.mrf.mxu0
          %v3431 = vadd.f32 %v3318, %v3430
          %3432 = vmatmul.f32.gmra.mxu0 %v2928
          %v3433 = vpop.f32.mrf.mxu0
          %v3434 = vadd.f32 %v3321, %v3433
          %3435 = vmatmul.f32.gmra.mxu0 %v2937
          %v3436 = vpop.f32.mrf.mxu0
          %v3437 = vadd.f32 %v3324, %v3436
          %3438 = vmatmul.f32.gmra.mxu0 %v2946
          %v3439 = vpop.f32.mrf.mxu0
          %v3440 = vadd.f32 %v3327, %v3439
          %3441 = vmatmul.f32.gmra.mxu0 %v2955
          %v3442 = vpop.f32.mrf.mxu0
          %v3443 = vadd.f32 %v3330, %v3442
          %3444 = vdwg.mxu0
          %3445 = vmatpush.msra.mxu0 %v3025
          %3446 = vmatpush.msra.mxu0 %v3024
          %3447 = vmatpush.msra.mxu0 %v3023
          %3448 = vmatpush.msra.mxu0 %v3022
          %3449 = vmatpush.msra.mxu0 %v3021
          %3450 = vmatpush.msra.mxu0 %v3020
          %3451 = vmatpush.msra.mxu0 %v3019
          %3452 = vmatpush.msra.mxu0 %v3018
          %3453 = vmatpush.msra.mxu0 %v3017
          %3454 = vmatpush.msra.mxu0 %v3016
          %3455 = vmatpush.msra.mxu0 %v3015
          %3456 = vmatpush.msra.mxu0 %v3014
          %3457 = vmatpush.msra.mxu0 %v3013
          %3458 = vmatpush.msra.mxu0 %v3012
          %3459 = vmatpush.msra.mxu0 %v3011
          %3460 = vmatpush.msra.mxu0 %v3010
          %3461 = vmatmul.f32.gmra.mxu0 %v2677
          %v3462 = vpop.f32.mrf.mxu0
          %v3463 = vadd.f32 %v3350, %v3462
          %3464 = vmatmul.f32.gmra.mxu0 %v2686
          %v3465 = vpop.f32.mrf.mxu0
          %v3466 = vadd.f32 %v3353, %v3465
          %3467 = vmatmul.f32.gmra.mxu0 %v2695
          %v3468 = vpop.f32.mrf.mxu0
          %v3469 = vadd.f32 %v3356, %v3468
          %3470 = vmatmul.f32.gmra.mxu0 %v2704
          %v3471 = vpop.f32.mrf.mxu0
          %v3472 = vadd.f32 %v3359, %v3471
          %3473 = vmatmul.f32.gmra.mxu0 %v2713
          %v3474 = vpop.f32.mrf.mxu0
          %v3475 = vadd.f32 %v3362, %v3474
          %3476 = vmatmul.f32.gmra.mxu0 %v2722
          %v3477 = vpop.f32.mrf.mxu0
          %v3478 = vadd.f32 %v3365, %v3477
          %3479 = vmatmul.f32.gmra.mxu0 %v2731
          %v3480 = vpop.f32.mrf.mxu0
          %v3481 = vadd.f32 %v3368, %v3480
          %3482 = vmatmul.f32.gmra.mxu0 %v2740
          %v3483 = vpop.f32.mrf.mxu0
          %v3484 = vadd.f32 %v3371, %v3483
          %3485 = vmatmul.f32.gmra.mxu0 %v2749
          %v3486 = vpop.f32.mrf.mxu0
          %v3487 = vadd.f32 %v3374, %v3486
          %3488 = vmatmul.f32.gmra.mxu0 %v2758
          %v3489 = vpop.f32.mrf.mxu0
          %v3490 = vadd.f32 %v3377, %v3489
          %3491 = vmatmul.f32.gmra.mxu0 %v2767
          %v3492 = vpop.f32.mrf.mxu0
          %v3493 = vadd.f32 %v3380, %v3492
          %3494 = vmatmul.f32.gmra.mxu0 %v2776
          %v3495 = vpop.f32.mrf.mxu0
          %v3496 = vadd.f32 %v3383, %v3495
          %3497 = vmatmul.f32.gmra.mxu0 %v2785
          %v3498 = vpop.f32.mrf.mxu0
          %v3499 = vadd.f32 %v3386, %v3498
          %3500 = vmatmul.f32.gmra.mxu0 %v2794
          %v3501 = vpop.f32.mrf.mxu0
          %v3502 = vadd.f32 %v3389, %v3501
          %3503 = vmatmul.f32.gmra.mxu0 %v2803
          %v3504 = vpop.f32.mrf.mxu0
          %v3505 = vadd.f32 %v3392, %v3504
          %3506 = vmatmul.f32.gmra.mxu0 %v2812
          %v3507 = vpop.f32.mrf.mxu0
          %v3508 = vadd.f32 %v3395, %v3507
          %3509 = vmatmul.f32.gmra.mxu0 %v2821
          %v3510 = vpop.f32.mrf.mxu0
          %v3511 = vadd.f32 %v3398, %v3510
          %3512 = vmatmul.f32.gmra.mxu0 %v2830
          %v3513 = vpop.f32.mrf.mxu0
          %v3514 = vadd.f32 %v3401, %v3513
          %3515 = vmatmul.f32.gmra.mxu0 %v2839
          %v3516 = vpop.f32.mrf.mxu0
          %v3517 = vadd.f32 %v3404, %v3516
          %3518 = vmatmul.f32.gmra.mxu0 %v2848
          %v3519 = vpop.f32.mrf.mxu0
          %v3520 = vadd.f32 %v3407, %v3519
          %3521 = vmatmul.f32.gmra.mxu0 %v2857
          %v3522 = vpop.f32.mrf.mxu0
          %v3523 = vadd.f32 %v3410, %v3522
          %3524 = vmatmul.f32.gmra.mxu0 %v2866
          %v3525 = vpop.f32.mrf.mxu0
          %v3526 = vadd.f32 %v3413, %v3525
          %3527 = vmatmul.f32.gmra.mxu0 %v2875
          %v3528 = vpop.f32.mrf.mxu0
          %v3529 = vadd.f32 %v3416, %v3528
          %3530 = vmatmul.f32.gmra.mxu0 %v2884
          %v3531 = vpop.f32.mrf.mxu0
          %v3532 = vadd.f32 %v3419, %v3531
          %3533 = vmatmul.f32.gmra.mxu0 %v2893
          %v3534 = vpop.f32.mrf.mxu0
          %v3535 = vadd.f32 %v3422, %v3534
          %3536 = vmatmul.f32.gmra.mxu0 %v2902
          %v3537 = vpop.f32.mrf.mxu0
          %v3538 = vadd.f32 %v3425, %v3537
          %3539 = vmatmul.f32.gmra.mxu0 %v2911
          %v3540 = vpop.f32.mrf.mxu0
          %v3541 = vadd.f32 %v3428, %v3540
          %3542 = vmatmul.f32.gmra.mxu0 %v2920
          %v3543 = vpop.f32.mrf.mxu0
          %v3544 = vadd.f32 %v3431, %v3543
          %3545 = vmatmul.f32.gmra.mxu0 %v2929
          %v3546 = vpop.f32.mrf.mxu0
          %v3547 = vadd.f32 %v3434, %v3546
          %3548 = vmatmul.f32.gmra.mxu0 %v2938
          %v3549 = vpop.f32.mrf.mxu0
          %v3550 = vadd.f32 %v3437, %v3549
          %3551 = vmatmul.f32.gmra.mxu0 %v2947
          %v3552 = vpop.f32.mrf.mxu0
          %v3553 = vadd.f32 %v3440, %v3552
          %3554 = vmatmul.f32.gmra.mxu0 %v2956
          %v3555 = vpop.f32.mrf.mxu0
          %v3556 = vadd.f32 %v3443, %v3555
          %3557 = vdwg.mxu0
          %3558 = vmatpush.msra.mxu0 %v3041
          %3559 = vmatpush.msra.mxu0 %v3040
          %3560 = vmatpush.msra.mxu0 %v3039
          %3561 = vmatpush.msra.mxu0 %v3038
          %3562 = vmatpush.msra.mxu0 %v3037
          %3563 = vmatpush.msra.mxu0 %v3036
          %3564 = vmatpush.msra.mxu0 %v3035
          %3565 = vmatpush.msra.mxu0 %v3034
          %3566 = vmatpush.msra.mxu0 %v3033
          %3567 = vmatpush.msra.mxu0 %v3032
          %3568 = vmatpush.msra.mxu0 %v3031
          %3569 = vmatpush.msra.mxu0 %v3030
          %3570 = vmatpush.msra.mxu0 %v3029
          %3571 = vmatpush.msra.mxu0 %v3028
          %3572 = vmatpush.msra.mxu0 %v3027
          %3573 = vmatpush.msra.mxu0 %v3026
          %3574 = vmatmul.f32.gmra.mxu0 %v2678
          %v3575 = vpop.f32.mrf.mxu0
          %v3576 = vadd.f32 %v3463, %v3575
          %3577 = vmatmul.f32.gmra.mxu0 %v2687
          %v3578 = vpop.f32.mrf.mxu0
          %v3579 = vadd.f32 %v3466, %v3578
          %3580 = vmatmul.f32.gmra.mxu0 %v2696
          %v3581 = vpop.f32.mrf.mxu0
          %v3582 = vadd.f32 %v3469, %v3581
          %3583 = vmatmul.f32.gmra.mxu0 %v2705
          %v3584 = vpop.f32.mrf.mxu0
          %v3585 = vadd.f32 %v3472, %v3584
          %3586 = vmatmul.f32.gmra.mxu0 %v2714
          %v3587 = vpop.f32.mrf.mxu0
          %v3588 = vadd.f32 %v3475, %v3587
          %3589 = vmatmul.f32.gmra.mxu0 %v2723
          %v3590 = vpop.f32.mrf.mxu0
          %v3591 = vadd.f32 %v3478, %v3590
          %3592 = vmatmul.f32.gmra.mxu0 %v2732
          %v3593 = vpop.f32.mrf.mxu0
          %v3594 = vadd.f32 %v3481, %v3593
          %3595 = vmatmul.f32.gmra.mxu0 %v2741
          %v3596 = vpop.f32.mrf.mxu0
          %v3597 = vadd.f32 %v3484, %v3596
          %3598 = vmatmul.f32.gmra.mxu0 %v2750
          %v3599 = vpop.f32.mrf.mxu0
          %v3600 = vadd.f32 %v3487, %v3599
          %3601 = vmatmul.f32.gmra.mxu0 %v2759
          %v3602 = vpop.f32.mrf.mxu0
          %v3603 = vadd.f32 %v3490, %v3602
          %3604 = vmatmul.f32.gmra.mxu0 %v2768
          %v3605 = vpop.f32.mrf.mxu0
          %v3606 = vadd.f32 %v3493, %v3605
          %3607 = vmatmul.f32.gmra.mxu0 %v2777
          %v3608 = vpop.f32.mrf.mxu0
          %v3609 = vadd.f32 %v3496, %v3608
          %3610 = vmatmul.f32.gmra.mxu0 %v2786
          %v3611 = vpop.f32.mrf.mxu0
          %v3612 = vadd.f32 %v3499, %v3611
          %3613 = vmatmul.f32.gmra.mxu0 %v2795
          %v3614 = vpop.f32.mrf.mxu0
          %v3615 = vadd.f32 %v3502, %v3614
          %3616 = vmatmul.f32.gmra.mxu0 %v2804
          %v3617 = vpop.f32.mrf.mxu0
          %v3618 = vadd.f32 %v3505, %v3617
          %3619 = vmatmul.f32.gmra.mxu0 %v2813
          %v3620 = vpop.f32.mrf.mxu0
          %v3621 = vadd.f32 %v3508, %v3620
          %3622 = vmatmul.f32.gmra.mxu0 %v2822
          %v3623 = vpop.f32.mrf.mxu0
          %v3624 = vadd.f32 %v3511, %v3623
          %3625 = vmatmul.f32.gmra.mxu0 %v2831
          %v3626 = vpop.f32.mrf.mxu0
          %v3627 = vadd.f32 %v3514, %v3626
          %3628 = vmatmul.f32.gmra.mxu0 %v2840
          %v3629 = vpop.f32.mrf.mxu0
          %v3630 = vadd.f32 %v3517, %v3629
          %3631 = vmatmul.f32.gmra.mxu0 %v2849
          %v3632 = vpop.f32.mrf.mxu0
          %v3633 = vadd.f32 %v3520, %v3632
          %3634 = vmatmul.f32.gmra.mxu0 %v2858
          %v3635 = vpop.f32.mrf.mxu0
          %v3636 = vadd.f32 %v3523, %v3635
          %3637 = vmatmul.f32.gmra.mxu0 %v2867
          %v3638 = vpop.f32.mrf.mxu0
          %v3639 = vadd.f32 %v3526, %v3638
          %3640 = vmatmul.f32.gmra.mxu0 %v2876
          %v3641 = vpop.f32.mrf.mxu0
          %v3642 = vadd.f32 %v3529, %v3641
          %3643 = vmatmul.f32.gmra.mxu0 %v2885
          %v3644 = vpop.f32.mrf.mxu0
          %v3645 = vadd.f32 %v3532, %v3644
          %3646 = vmatmul.f32.gmra.mxu0 %v2894
          %v3647 = vpop.f32.mrf.mxu0
          %v3648 = vadd.f32 %v3535, %v3647
          %3649 = vmatmul.f32.gmra.mxu0 %v2903
          %v3650 = vpop.f32.mrf.mxu0
          %v3651 = vadd.f32 %v3538, %v3650
          %3652 = vmatmul.f32.gmra.mxu0 %v2912
          %v3653 = vpop.f32.mrf.mxu0
          %v3654 = vadd.f32 %v3541, %v3653
          %3655 = vmatmul.f32.gmra.mxu0 %v2921
          %v3656 = vpop.f32.mrf.mxu0
          %v3657 = vadd.f32 %v3544, %v3656
          %3658 = vmatmul.f32.gmra.mxu0 %v2930
          %v3659 = vpop.f32.mrf.mxu0
          %v3660 = vadd.f32 %v3547, %v3659
          %3661 = vmatmul.f32.gmra.mxu0 %v2939
          %v3662 = vpop.f32.mrf.mxu0
          %v3663 = vadd.f32 %v3550, %v3662
          %3664 = vmatmul.f32.gmra.mxu0 %v2948
          %v3665 = vpop.f32.mrf.mxu0
          %v3666 = vadd.f32 %v3553, %v3665
          %3667 = vmatmul.f32.gmra.mxu0 %v2957
          %v3668 = vpop.f32.mrf.mxu0
          %v3669 = vadd.f32 %v3556, %v3668
          %3670 = vdwg.mxu0
          %3671 = vmatpush.msra.mxu0 %v3057
          %3672 = vmatpush.msra.mxu0 %v3056
          %3673 = vmatpush.msra.mxu0 %v3055
          %3674 = vmatpush.msra.mxu0 %v3054
          %3675 = vmatpush.msra.mxu0 %v3053
          %3676 = vmatpush.msra.mxu0 %v3052
          %3677 = vmatpush.msra.mxu0 %v3051
          %3678 = vmatpush.msra.mxu0 %v3050
          %3679 = vmatpush.msra.mxu0 %v3049
          %3680 = vmatpush.msra.mxu0 %v3048
          %3681 = vmatpush.msra.mxu0 %v3047
          %3682 = vmatpush.msra.mxu0 %v3046
          %3683 = vmatpush.msra.mxu0 %v3045
          %3684 = vmatpush.msra.mxu0 %v3044
          %3685 = vmatpush.msra.mxu0 %v3043
          %3686 = vmatpush.msra.mxu0 %v3042
          %3687 = vmatmul.f32.gmra.mxu0 %v2679
          %v3688 = vpop.f32.mrf.mxu0
          %v3689 = vadd.f32 %v3576, %v3688
          %3690 = vmatmul.f32.gmra.mxu0 %v2688
          %v3691 = vpop.f32.mrf.mxu0
          %v3692 = vadd.f32 %v3579, %v3691
          %3693 = vmatmul.f32.gmra.mxu0 %v2697
          %v3694 = vpop.f32.mrf.mxu0
          %v3695 = vadd.f32 %v3582, %v3694
          %3696 = vmatmul.f32.gmra.mxu0 %v2706
          %v3697 = vpop.f32.mrf.mxu0
          %v3698 = vadd.f32 %v3585, %v3697
          %3699 = vmatmul.f32.gmra.mxu0 %v2715
          %v3700 = vpop.f32.mrf.mxu0
          %v3701 = vadd.f32 %v3588, %v3700
          %3702 = vmatmul.f32.gmra.mxu0 %v2724
          %v3703 = vpop.f32.mrf.mxu0
          %v3704 = vadd.f32 %v3591, %v3703
          %3705 = vmatmul.f32.gmra.mxu0 %v2733
          %v3706 = vpop.f32.mrf.mxu0
          %v3707 = vadd.f32 %v3594, %v3706
          %3708 = vmatmul.f32.gmra.mxu0 %v2742
          %v3709 = vpop.f32.mrf.mxu0
          %v3710 = vadd.f32 %v3597, %v3709
          %3711 = vmatmul.f32.gmra.mxu0 %v2751
          %v3712 = vpop.f32.mrf.mxu0
          %v3713 = vadd.f32 %v3600, %v3712
          %3714 = vmatmul.f32.gmra.mxu0 %v2760
          %v3715 = vpop.f32.mrf.mxu0
          %v3716 = vadd.f32 %v3603, %v3715
          %3717 = vmatmul.f32.gmra.mxu0 %v2769
          %v3718 = vpop.f32.mrf.mxu0
          %v3719 = vadd.f32 %v3606, %v3718
          %3720 = vmatmul.f32.gmra.mxu0 %v2778
          %v3721 = vpop.f32.mrf.mxu0
          %v3722 = vadd.f32 %v3609, %v3721
          %3723 = vmatmul.f32.gmra.mxu0 %v2787
          %v3724 = vpop.f32.mrf.mxu0
          %v3725 = vadd.f32 %v3612, %v3724
          %3726 = vmatmul.f32.gmra.mxu0 %v2796
          %v3727 = vpop.f32.mrf.mxu0
          %v3728 = vadd.f32 %v3615, %v3727
          %3729 = vmatmul.f32.gmra.mxu0 %v2805
          %v3730 = vpop.f32.mrf.mxu0
          %v3731 = vadd.f32 %v3618, %v3730
          %3732 = vmatmul.f32.gmra.mxu0 %v2814
          %v3733 = vpop.f32.mrf.mxu0
          %v3734 = vadd.f32 %v3621, %v3733
          %3735 = vmatmul.f32.gmra.mxu0 %v2823
          %v3736 = vpop.f32.mrf.mxu0
          %v3737 = vadd.f32 %v3624, %v3736
          %3738 = vmatmul.f32.gmra.mxu0 %v2832
          %v3739 = vpop.f32.mrf.mxu0
          %v3740 = vadd.f32 %v3627, %v3739
          %3741 = vmatmul.f32.gmra.mxu0 %v2841
          %v3742 = vpop.f32.mrf.mxu0
          %v3743 = vadd.f32 %v3630, %v3742
          %3744 = vmatmul.f32.gmra.mxu0 %v2850
          %v3745 = vpop.f32.mrf.mxu0
          %v3746 = vadd.f32 %v3633, %v3745
          %3747 = vmatmul.f32.gmra.mxu0 %v2859
          %v3748 = vpop.f32.mrf.mxu0
          %v3749 = vadd.f32 %v3636, %v3748
          %3750 = vmatmul.f32.gmra.mxu0 %v2868
          %v3751 = vpop.f32.mrf.mxu0
          %v3752 = vadd.f32 %v3639, %v3751
          %3753 = vmatmul.f32.gmra.mxu0 %v2877
          %v3754 = vpop.f32.mrf.mxu0
          %v3755 = vadd.f32 %v3642, %v3754
          %3756 = vmatmul.f32.gmra.mxu0 %v2886
          %v3757 = vpop.f32.mrf.mxu0
          %v3758 = vadd.f32 %v3645, %v3757
          %3759 = vmatmul.f32.gmra.mxu0 %v2895
          %v3760 = vpop.f32.mrf.mxu0
          %v3761 = vadd.f32 %v3648, %v3760
          %3762 = vmatmul.f32.gmra.mxu0 %v2904
          %v3763 = vpop.f32.mrf.mxu0
          %v3764 = vadd.f32 %v3651, %v3763
          %3765 = vmatmul.f32.gmra.mxu0 %v2913
          %v3766 = vpop.f32.mrf.mxu0
          %v3767 = vadd.f32 %v3654, %v3766
          %3768 = vmatmul.f32.gmra.mxu0 %v2922
          %v3769 = vpop.f32.mrf.mxu0
          %v3770 = vadd.f32 %v3657, %v3769
          %3771 = vmatmul.f32.gmra.mxu0 %v2931
          %v3772 = vpop.f32.mrf.mxu0
          %v3773 = vadd.f32 %v3660, %v3772
          %3774 = vmatmul.f32.gmra.mxu0 %v2940
          %v3775 = vpop.f32.mrf.mxu0
          %v3776 = vadd.f32 %v3663, %v3775
          %3777 = vmatmul.f32.gmra.mxu0 %v2949
          %v3778 = vpop.f32.mrf.mxu0
          %v3779 = vadd.f32 %v3666, %v3778
          %3780 = vmatmul.f32.gmra.mxu0 %v2958
          %v3781 = vpop.f32.mrf.mxu0
          %v3782 = vadd.f32 %v3669, %v3781
          %3783 = vdwg.mxu0
          %3784 = vmatpush.msra.mxu0 %v3073
          %3785 = vmatpush.msra.mxu0 %v3072
          %3786 = vmatpush.msra.mxu0 %v3071
          %3787 = vmatpush.msra.mxu0 %v3070
          %3788 = vmatpush.msra.mxu0 %v3069
          %3789 = vmatpush.msra.mxu0 %v3068
          %3790 = vmatpush.msra.mxu0 %v3067
          %3791 = vmatpush.msra.mxu0 %v3066
          %3792 = vmatpush.msra.mxu0 %v3065
          %3793 = vmatpush.msra.mxu0 %v3064
          %3794 = vmatpush.msra.mxu0 %v3063
          %3795 = vmatpush.msra.mxu0 %v3062
          %3796 = vmatpush.msra.mxu0 %v3061
          %3797 = vmatpush.msra.mxu0 %v3060
          %3798 = vmatpush.msra.mxu0 %v3059
          %3799 = vmatpush.msra.mxu0 %v3058
          %3800 = vmatmul.f32.gmra.mxu0 %v2680
          %v3801 = vpop.f32.mrf.mxu0
          %v3802 = vadd.f32 %v3689, %v3801
          %3803 = vmatmul.f32.gmra.mxu0 %v2689
          %v3804 = vpop.f32.mrf.mxu0
          %v3805 = vadd.f32 %v3692, %v3804
          %3806 = vmatmul.f32.gmra.mxu0 %v2698
          %v3807 = vpop.f32.mrf.mxu0
          %v3808 = vadd.f32 %v3695, %v3807
          %3809 = vmatmul.f32.gmra.mxu0 %v2707
          %v3810 = vpop.f32.mrf.mxu0
          %v3811 = vadd.f32 %v3698, %v3810
          %3812 = vmatmul.f32.gmra.mxu0 %v2716
          %v3813 = vpop.f32.mrf.mxu0
          %v3814 = vadd.f32 %v3701, %v3813
          %3815 = vmatmul.f32.gmra.mxu0 %v2725
          %v3816 = vpop.f32.mrf.mxu0
          %v3817 = vadd.f32 %v3704, %v3816
          %3818 = vmatmul.f32.gmra.mxu0 %v2734
          %v3819 = vpop.f32.mrf.mxu0
          %v3820 = vadd.f32 %v3707, %v3819
          %3821 = vmatmul.f32.gmra.mxu0 %v2743
          %v3822 = vpop.f32.mrf.mxu0
          %v3823 = vadd.f32 %v3710, %v3822
          %3824 = vmatmul.f32.gmra.mxu0 %v2752
          %v3825 = vpop.f32.mrf.mxu0
          %v3826 = vadd.f32 %v3713, %v3825
          %3827 = vmatmul.f32.gmra.mxu0 %v2761
          %v3828 = vpop.f32.mrf.mxu0
          %v3829 = vadd.f32 %v3716, %v3828
          %3830 = vmatmul.f32.gmra.mxu0 %v2770
          %v3831 = vpop.f32.mrf.mxu0
          %v3832 = vadd.f32 %v3719, %v3831
          %3833 = vmatmul.f32.gmra.mxu0 %v2779
          %v3834 = vpop.f32.mrf.mxu0
          %v3835 = vadd.f32 %v3722, %v3834
          %3836 = vmatmul.f32.gmra.mxu0 %v2788
          %v3837 = vpop.f32.mrf.mxu0
          %v3838 = vadd.f32 %v3725, %v3837
          %3839 = vmatmul.f32.gmra.mxu0 %v2797
          %v3840 = vpop.f32.mrf.mxu0
          %v3841 = vadd.f32 %v3728, %v3840
          %3842 = vmatmul.f32.gmra.mxu0 %v2806
          %v3843 = vpop.f32.mrf.mxu0
          %v3844 = vadd.f32 %v3731, %v3843
          %3845 = vmatmul.f32.gmra.mxu0 %v2815
          %v3846 = vpop.f32.mrf.mxu0
          %v3847 = vadd.f32 %v3734, %v3846
          %3848 = vmatmul.f32.gmra.mxu0 %v2824
          %v3849 = vpop.f32.mrf.mxu0
          %v3850 = vadd.f32 %v3737, %v3849
          %3851 = vmatmul.f32.gmra.mxu0 %v2833
          %v3852 = vpop.f32.mrf.mxu0
          %v3853 = vadd.f32 %v3740, %v3852
          %3854 = vmatmul.f32.gmra.mxu0 %v2842
          %v3855 = vpop.f32.mrf.mxu0
          %v3856 = vadd.f32 %v3743, %v3855
          %3857 = vmatmul.f32.gmra.mxu0 %v2851
          %v3858 = vpop.f32.mrf.mxu0
          %v3859 = vadd.f32 %v3746, %v3858
          %3860 = vmatmul.f32.gmra.mxu0 %v2860
          %v3861 = vpop.f32.mrf.mxu0
          %v3862 = vadd.f32 %v3749, %v3861
          %3863 = vmatmul.f32.gmra.mxu0 %v2869
          %v3864 = vpop.f32.mrf.mxu0
          %v3865 = vadd.f32 %v3752, %v3864
          %3866 = vmatmul.f32.gmra.mxu0 %v2878
          %v3867 = vpop.f32.mrf.mxu0
          %v3868 = vadd.f32 %v3755, %v3867
          %3869 = vmatmul.f32.gmra.mxu0 %v2887
          %v3870 = vpop.f32.mrf.mxu0
          %v3871 = vadd.f32 %v3758, %v3870
          %3872 = vmatmul.f32.gmra.mxu0 %v2896
          %v3873 = vpop.f32.mrf.mxu0
          %v3874 = vadd.f32 %v3761, %v3873
          %3875 = vmatmul.f32.gmra.mxu0 %v2905
          %v3876 = vpop.f32.mrf.mxu0
          %v3877 = vadd.f32 %v3764, %v3876
          %3878 = vmatmul.f32.gmra.mxu0 %v2914
          %v3879 = vpop.f32.mrf.mxu0
          %v3880 = vadd.f32 %v3767, %v3879
          %3881 = vmatmul.f32.gmra.mxu0 %v2923
          %v3882 = vpop.f32.mrf.mxu0
          %v3883 = vadd.f32 %v3770, %v3882
          %3884 = vmatmul.f32.gmra.mxu0 %v2932
          %v3885 = vpop.f32.mrf.mxu0
          %v3886 = vadd.f32 %v3773, %v3885
          %3887 = vmatmul.f32.gmra.mxu0 %v2941
          %v3888 = vpop.f32.mrf.mxu0
          %v3889 = vadd.f32 %v3776, %v3888
          %3890 = vmatmul.f32.gmra.mxu0 %v2950
          %v3891 = vpop.f32.mrf.mxu0
          %v3892 = vadd.f32 %v3779, %v3891
          %3893 = vmatmul.f32.gmra.mxu0 %v2959
          %v3894 = vpop.f32.mrf.mxu0
          %v3895 = vadd.f32 %v3782, %v3894
          %3896 = vdwg.mxu0
          %3897 = vmatpush.msra.mxu0 %v3089
          %3898 = vmatpush.msra.mxu0 %v3088
          %3899 = vmatpush.msra.mxu0 %v3087
          %3900 = vmatpush.msra.mxu0 %v3086
          %3901 = vmatpush.msra.mxu0 %v3085
          %3902 = vmatpush.msra.mxu0 %v3084
          %3903 = vmatpush.msra.mxu0 %v3083
          %3904 = vmatpush.msra.mxu0 %v3082
          %3905 = vmatpush.msra.mxu0 %v3081
          %3906 = vmatpush.msra.mxu0 %v3080
          %3907 = vmatpush.msra.mxu0 %v3079
          %3908 = vmatpush.msra.mxu0 %v3078
          %3909 = vmatpush.msra.mxu0 %v3077
          %3910 = vmatpush.msra.mxu0 %v3076
          %3911 = vmatpush.msra.mxu0 %v3075
          %3912 = vmatpush.msra.mxu0 %v3074
          %3913 = vmatmul.f32.gmra.mxu0 %v2681
          %v3914 = vpop.f32.mrf.mxu0
          %v3915 = vadd.f32 %v3802, %v3914
          %3916 = vmatmul.f32.gmra.mxu0 %v2690
          %v3917 = vpop.f32.mrf.mxu0
          %v3918 = vadd.f32 %v3805, %v3917
          %3919 = vmatmul.f32.gmra.mxu0 %v2699
          %v3920 = vpop.f32.mrf.mxu0
          %v3921 = vadd.f32 %v3808, %v3920
          %3922 = vmatmul.f32.gmra.mxu0 %v2708
          %v3923 = vpop.f32.mrf.mxu0
          %v3924 = vadd.f32 %v3811, %v3923
          %3925 = vmatmul.f32.gmra.mxu0 %v2717
          %v3926 = vpop.f32.mrf.mxu0
          %v3927 = vadd.f32 %v3814, %v3926
          %3928 = vmatmul.f32.gmra.mxu0 %v2726
          %v3929 = vpop.f32.mrf.mxu0
          %v3930 = vadd.f32 %v3817, %v3929
          %3931 = vmatmul.f32.gmra.mxu0 %v2735
          %v3932 = vpop.f32.mrf.mxu0
          %v3933 = vadd.f32 %v3820, %v3932
          %3934 = vmatmul.f32.gmra.mxu0 %v2744
          %v3935 = vpop.f32.mrf.mxu0
          %v3936 = vadd.f32 %v3823, %v3935
          %3937 = vmatmul.f32.gmra.mxu0 %v2753
          %v3938 = vpop.f32.mrf.mxu0
          %v3939 = vadd.f32 %v3826, %v3938
          %3940 = vmatmul.f32.gmra.mxu0 %v2762
          %v3941 = vpop.f32.mrf.mxu0
          %v3942 = vadd.f32 %v3829, %v3941
          %3943 = vmatmul.f32.gmra.mxu0 %v2771
          %v3944 = vpop.f32.mrf.mxu0
          %v3945 = vadd.f32 %v3832, %v3944
          %3946 = vmatmul.f32.gmra.mxu0 %v2780
          %v3947 = vpop.f32.mrf.mxu0
          %v3948 = vadd.f32 %v3835, %v3947
          %3949 = vmatmul.f32.gmra.mxu0 %v2789
          %v3950 = vpop.f32.mrf.mxu0
          %v3951 = vadd.f32 %v3838, %v3950
          %3952 = vmatmul.f32.gmra.mxu0 %v2798
          %v3953 = vpop.f32.mrf.mxu0
          %v3954 = vadd.f32 %v3841, %v3953
          %3955 = vmatmul.f32.gmra.mxu0 %v2807
          %v3956 = vpop.f32.mrf.mxu0
          %v3957 = vadd.f32 %v3844, %v3956
          %3958 = vmatmul.f32.gmra.mxu0 %v2816
          %v3959 = vpop.f32.mrf.mxu0
          %v3960 = vadd.f32 %v3847, %v3959
          %3961 = vmatmul.f32.gmra.mxu0 %v2825
          %v3962 = vpop.f32.mrf.mxu0
          %v3963 = vadd.f32 %v3850, %v3962
          %3964 = vmatmul.f32.gmra.mxu0 %v2834
          %v3965 = vpop.f32.mrf.mxu0
          %v3966 = vadd.f32 %v3853, %v3965
          %3967 = vmatmul.f32.gmra.mxu0 %v2843
          %v3968 = vpop.f32.mrf.mxu0
          %v3969 = vadd.f32 %v3856, %v3968
          %3970 = vmatmul.f32.gmra.mxu0 %v2852
          %v3971 = vpop.f32.mrf.mxu0
          %v3972 = vadd.f32 %v3859, %v3971
          %3973 = vmatmul.f32.gmra.mxu0 %v2861
          %v3974 = vpop.f32.mrf.mxu0
          %v3975 = vadd.f32 %v3862, %v3974
          %3976 = vmatmul.f32.gmra.mxu0 %v2870
          %v3977 = vpop.f32.mrf.mxu0
          %v3978 = vadd.f32 %v3865, %v3977
          %3979 = vmatmul.f32.gmra.mxu0 %v2879
          %v3980 = vpop.f32.mrf.mxu0
          %v3981 = vadd.f32 %v3868, %v3980
          %3982 = vmatmul.f32.gmra.mxu0 %v2888
          %v3983 = vpop.f32.mrf.mxu0
          %v3984 = vadd.f32 %v3871, %v3983
          %3985 = vmatmul.f32.gmra.mxu0 %v2897
          %v3986 = vpop.f32.mrf.mxu0
          %v3987 = vadd.f32 %v3874, %v3986
          %3988 = vmatmul.f32.gmra.mxu0 %v2906
          %v3989 = vpop.f32.mrf.mxu0
          %v3990 = vadd.f32 %v3877, %v3989
          %3991 = vmatmul.f32.gmra.mxu0 %v2915
          %v3992 = vpop.f32.mrf.mxu0
          %v3993 = vadd.f32 %v3880, %v3992
          %3994 = vmatmul.f32.gmra.mxu0 %v2924
          %v3995 = vpop.f32.mrf.mxu0
          %v3996 = vadd.f32 %v3883, %v3995
          %3997 = vmatmul.f32.gmra.mxu0 %v2933
          %v3998 = vpop.f32.mrf.mxu0
          %v3999 = vadd.f32 %v3886, %v3998
          %4000 = vmatmul.f32.gmra.mxu0 %v2942
          %v4001 = vpop.f32.mrf.mxu0
          %v4002 = vadd.f32 %v3889, %v4001
          %4003 = vmatmul.f32.gmra.mxu0 %v2951
          %v4004 = vpop.f32.mrf.mxu0
          %v4005 = vadd.f32 %v3892, %v4004
          %4006 = vmatmul.f32.gmra.mxu0 %v2960
          %v4007 = vpop.f32.mrf.mxu0
          %v4008 = vadd.f32 %v3895, %v4007
          %4009 = vdwg.mxu0
          %4010 = vmatpush.msra.mxu0 %v3105
          %4011 = vmatpush.msra.mxu0 %v3104
          %4012 = vmatpush.msra.mxu0 %v3103
          %4013 = vmatpush.msra.mxu0 %v3102
          %4014 = vmatpush.msra.mxu0 %v3101
          %4015 = vmatpush.msra.mxu0 %v3100
          %4016 = vmatpush.msra.mxu0 %v3099
          %4017 = vmatpush.msra.mxu0 %v3098
          %4018 = vmatpush.msra.mxu0 %v3097
          %4019 = vmatpush.msra.mxu0 %v3096
          %4020 = vmatpush.msra.mxu0 %v3095
          %4021 = vmatpush.msra.mxu0 %v3094
          %4022 = vmatpush.msra.mxu0 %v3093
          %4023 = vmatpush.msra.mxu0 %v3092
          %4024 = vmatpush.msra.mxu0 %v3091
          %4025 = vmatpush.msra.mxu0 %v3090
          %4026 = vmatmul.f32.gmra.mxu0 %v2682
          %v4027 = vpop.f32.mrf.mxu0
          %v4028 = vadd.f32 %v3915, %v4027
          %4029 = vmatmul.f32.gmra.mxu0 %v2691
          %v4030 = vpop.f32.mrf.mxu0
          %v4031 = vadd.f32 %v3918, %v4030
          %4032 = vmatmul.f32.gmra.mxu0 %v2700
          %v4033 = vpop.f32.mrf.mxu0
          %v4034 = vadd.f32 %v3921, %v4033
          %4035 = vmatmul.f32.gmra.mxu0 %v2709
          %v4036 = vpop.f32.mrf.mxu0
          %v4037 = vadd.f32 %v3924, %v4036
          %4038 = vmatmul.f32.gmra.mxu0 %v2718
          %v4039 = vpop.f32.mrf.mxu0
          %v4040 = vadd.f32 %v3927, %v4039
          %4041 = vmatmul.f32.gmra.mxu0 %v2727
          %v4042 = vpop.f32.mrf.mxu0
          %v4043 = vadd.f32 %v3930, %v4042
          %4044 = vmatmul.f32.gmra.mxu0 %v2736
          %v4045 = vpop.f32.mrf.mxu0
          %v4046 = vadd.f32 %v3933, %v4045
          %4047 = vmatmul.f32.gmra.mxu0 %v2745
          %v4048 = vpop.f32.mrf.mxu0
          %v4049 = vadd.f32 %v3936, %v4048
          %4050 = vmatmul.f32.gmra.mxu0 %v2754
          %v4051 = vpop.f32.mrf.mxu0
          %v4052 = vadd.f32 %v3939, %v4051
          %4053 = vmatmul.f32.gmra.mxu0 %v2763
          %v4054 = vpop.f32.mrf.mxu0
          %v4055 = vadd.f32 %v3942, %v4054
          %4056 = vmatmul.f32.gmra.mxu0 %v2772
          %v4057 = vpop.f32.mrf.mxu0
          %v4058 = vadd.f32 %v3945, %v4057
          %4059 = vmatmul.f32.gmra.mxu0 %v2781
          %v4060 = vpop.f32.mrf.mxu0
          %v4061 = vadd.f32 %v3948, %v4060
          %4062 = vmatmul.f32.gmra.mxu0 %v2790
          %v4063 = vpop.f32.mrf.mxu0
          %v4064 = vadd.f32 %v3951, %v4063
          %4065 = vmatmul.f32.gmra.mxu0 %v2799
          %v4066 = vpop.f32.mrf.mxu0
          %v4067 = vadd.f32 %v3954, %v4066
          %4068 = vmatmul.f32.gmra.mxu0 %v2808
          %v4069 = vpop.f32.mrf.mxu0
          %v4070 = vadd.f32 %v3957, %v4069
          %4071 = vmatmul.f32.gmra.mxu0 %v2817
          %v4072 = vpop.f32.mrf.mxu0
          %v4073 = vadd.f32 %v3960, %v4072
          %4074 = vmatmul.f32.gmra.mxu0 %v2826
          %v4075 = vpop.f32.mrf.mxu0
          %v4076 = vadd.f32 %v3963, %v4075
          %4077 = vmatmul.f32.gmra.mxu0 %v2835
          %v4078 = vpop.f32.mrf.mxu0
          %v4079 = vadd.f32 %v3966, %v4078
          %4080 = vmatmul.f32.gmra.mxu0 %v2844
          %v4081 = vpop.f32.mrf.mxu0
          %v4082 = vadd.f32 %v3969, %v4081
          %4083 = vmatmul.f32.gmra.mxu0 %v2853
          %v4084 = vpop.f32.mrf.mxu0
          %v4085 = vadd.f32 %v3972, %v4084
          %4086 = vmatmul.f32.gmra.mxu0 %v2862
          %v4087 = vpop.f32.mrf.mxu0
          %v4088 = vadd.f32 %v3975, %v4087
          %4089 = vmatmul.f32.gmra.mxu0 %v2871
          %v4090 = vpop.f32.mrf.mxu0
          %v4091 = vadd.f32 %v3978, %v4090
          %4092 = vmatmul.f32.gmra.mxu0 %v2880
          %v4093 = vpop.f32.mrf.mxu0
          %v4094 = vadd.f32 %v3981, %v4093
          %4095 = vmatmul.f32.gmra.mxu0 %v2889
          %v4096 = vpop.f32.mrf.mxu0
          %v4097 = vadd.f32 %v3984, %v4096
          %4098 = vmatmul.f32.gmra.mxu0 %v2898
          %v4099 = vpop.f32.mrf.mxu0
          %v4100 = vadd.f32 %v3987, %v4099
          %4101 = vmatmul.f32.gmra.mxu0 %v2907
          %v4102 = vpop.f32.mrf.mxu0
          %v4103 = vadd.f32 %v3990, %v4102
          %4104 = vmatmul.f32.gmra.mxu0 %v2916
          %v4105 = vpop.f32.mrf.mxu0
          %v4106 = vadd.f32 %v3993, %v4105
          %4107 = vmatmul.f32.gmra.mxu0 %v2925
          %v4108 = vpop.f32.mrf.mxu0
          %v4109 = vadd.f32 %v3996, %v4108
          %4110 = vmatmul.f32.gmra.mxu0 %v2934
          %v4111 = vpop.f32.mrf.mxu0
          %v4112 = vadd.f32 %v3999, %v4111
          %4113 = vmatmul.f32.gmra.mxu0 %v2943
          %v4114 = vpop.f32.mrf.mxu0
          %v4115 = vadd.f32 %v4002, %v4114
          %4116 = vmatmul.f32.gmra.mxu0 %v2952
          %v4117 = vpop.f32.mrf.mxu0
          %v4118 = vadd.f32 %v4005, %v4117
          %4119 = vmatmul.f32.gmra.mxu0 %v2961
          %v4120 = vpop.f32.mrf.mxu0
          %v4121 = vadd.f32 %v4008, %v4120
          %4122 = vdwg.mxu0
          %4123 = vmatpush.msra.mxu0 %v2528
          %4124 = vmatpush.msra.mxu0 %v2527
          %4125 = vmatpush.msra.mxu0 %v2526
          %4126 = vmatpush.msra.mxu0 %v2525
          %4127 = vmatpush.msra.mxu0 %v2524
          %4128 = vmatpush.msra.mxu0 %v2523
          %4129 = vmatpush.msra.mxu0 %v2522
          %4130 = vmatpush.msra.mxu0 %v2521
          %4131 = vmatpush.msra.mxu0 %v2520
          %4132 = vmatpush.msra.mxu0 %v2519
          %4133 = vmatpush.msra.mxu0 %v2518
          %4134 = vmatpush.msra.mxu0 %v2517
          %4135 = vmatpush.msra.mxu0 %v2516
          %4136 = vmatpush.msra.mxu0 %v2515
          %4137 = vmatpush.msra.mxu0 %v2514
          %4138 = vmatpush.msra.mxu0 %v2513
          %4139 = vmatmul.f32.gmra.mxu0 %v2224
          %v4140 = vpop.f32.mrf.mxu0
          %v4141 = vadd.f32 %v4028, %v4140
          %4142 = vmatmul.f32.gmra.mxu0 %v2233
          %v4143 = vpop.f32.mrf.mxu0
          %v4144 = vadd.f32 %v4031, %v4143
          %4145 = vmatmul.f32.gmra.mxu0 %v2242
          %v4146 = vpop.f32.mrf.mxu0
          %v4147 = vadd.f32 %v4034, %v4146
          %4148 = vmatmul.f32.gmra.mxu0 %v2251
          %v4149 = vpop.f32.mrf.mxu0
          %v4150 = vadd.f32 %v4037, %v4149
          %4151 = vmatmul.f32.gmra.mxu0 %v2260
          %v4152 = vpop.f32.mrf.mxu0
          %v4153 = vadd.f32 %v4040, %v4152
          %4154 = vmatmul.f32.gmra.mxu0 %v2269
          %v4155 = vpop.f32.mrf.mxu0
          %v4156 = vadd.f32 %v4043, %v4155
          %4157 = vmatmul.f32.gmra.mxu0 %v2278
          %v4158 = vpop.f32.mrf.mxu0
          %v4159 = vadd.f32 %v4046, %v4158
          %4160 = vmatmul.f32.gmra.mxu0 %v2287
          %v4161 = vpop.f32.mrf.mxu0
          %v4162 = vadd.f32 %v4049, %v4161
          %4163 = vmatmul.f32.gmra.mxu0 %v2296
          %v4164 = vpop.f32.mrf.mxu0
          %v4165 = vadd.f32 %v4052, %v4164
          %4166 = vmatmul.f32.gmra.mxu0 %v2305
          %v4167 = vpop.f32.mrf.mxu0
          %v4168 = vadd.f32 %v4055, %v4167
          %4169 = vmatmul.f32.gmra.mxu0 %v2314
          %v4170 = vpop.f32.mrf.mxu0
          %v4171 = vadd.f32 %v4058, %v4170
          %4172 = vmatmul.f32.gmra.mxu0 %v2323
          %v4173 = vpop.f32.mrf.mxu0
          %v4174 = vadd.f32 %v4061, %v4173
          %4175 = vmatmul.f32.gmra.mxu0 %v2332
          %v4176 = vpop.f32.mrf.mxu0
          %v4177 = vadd.f32 %v4064, %v4176
          %4178 = vmatmul.f32.gmra.mxu0 %v2341
          %v4179 = vpop.f32.mrf.mxu0
          %v4180 = vadd.f32 %v4067, %v4179
          %4181 = vmatmul.f32.gmra.mxu0 %v2350
          %v4182 = vpop.f32.mrf.mxu0
          %v4183 = vadd.f32 %v4070, %v4182
          %4184 = vmatmul.f32.gmra.mxu0 %v2359
          %v4185 = vpop.f32.mrf.mxu0
          %v4186 = vadd.f32 %v4073, %v4185
          %4187 = vmatmul.f32.gmra.mxu0 %v2368
          %v4188 = vpop.f32.mrf.mxu0
          %v4189 = vadd.f32 %v4076, %v4188
          %4190 = vmatmul.f32.gmra.mxu0 %v2377
          %v4191 = vpop.f32.mrf.mxu0
          %v4192 = vadd.f32 %v4079, %v4191
          %4193 = vmatmul.f32.gmra.mxu0 %v2386
          %v4194 = vpop.f32.mrf.mxu0
          %v4195 = vadd.f32 %v4082, %v4194
          %4196 = vmatmul.f32.gmra.mxu0 %v2395
          %v4197 = vpop.f32.mrf.mxu0
          %v4198 = vadd.f32 %v4085, %v4197
          %4199 = vmatmul.f32.gmra.mxu0 %v2404
          %v4200 = vpop.f32.mrf.mxu0
          %v4201 = vadd.f32 %v4088, %v4200
          %4202 = vmatmul.f32.gmra.mxu0 %v2413
          %v4203 = vpop.f32.mrf.mxu0
          %v4204 = vadd.f32 %v4091, %v4203
          %4205 = vmatmul.f32.gmra.mxu0 %v2422
          %v4206 = vpop.f32.mrf.mxu0
          %v4207 = vadd.f32 %v4094, %v4206
          %4208 = vmatmul.f32.gmra.mxu0 %v2431
          %v4209 = vpop.f32.mrf.mxu0
          %v4210 = vadd.f32 %v4097, %v4209
          %4211 = vmatmul.f32.gmra.mxu0 %v2440
          %v4212 = vpop.f32.mrf.mxu0
          %v4213 = vadd.f32 %v4100, %v4212
          %4214 = vmatmul.f32.gmra.mxu0 %v2449
          %v4215 = vpop.f32.mrf.mxu0
          %v4216 = vadd.f32 %v4103, %v4215
          %4217 = vmatmul.f32.gmra.mxu0 %v2458
          %v4218 = vpop.f32.mrf.mxu0
          %v4219 = vadd.f32 %v4106, %v4218
          %4220 = vmatmul.f32.gmra.mxu0 %v2467
          %v4221 = vpop.f32.mrf.mxu0
          %v4222 = vadd.f32 %v4109, %v4221
          %4223 = vmatmul.f32.gmra.mxu0 %v2476
          %v4224 = vpop.f32.mrf.mxu0
          %v4225 = vadd.f32 %v4112, %v4224
          %4226 = vmatmul.f32.gmra.mxu0 %v2485
          %v4227 = vpop.f32.mrf.mxu0
          %v4228 = vadd.f32 %v4115, %v4227
          %4229 = vmatmul.f32.gmra.mxu0 %v2494
          %v4230 = vpop.f32.mrf.mxu0
          %v4231 = vadd.f32 %v4118, %v4230
          %4232 = vmatmul.f32.gmra.mxu0 %v2503
          %v4233 = vpop.f32.mrf.mxu0
          %v4234 = vadd.f32 %v4121, %v4233
          %4235 = vdwg.mxu0
          %4236 = vmatpush.msra.mxu0 %v2544
          %4237 = vmatpush.msra.mxu0 %v2543
          %4238 = vmatpush.msra.mxu0 %v2542
          %4239 = vmatpush.msra.mxu0 %v2541
          %4240 = vmatpush.msra.mxu0 %v2540
          %4241 = vmatpush.msra.mxu0 %v2539
          %4242 = vmatpush.msra.mxu0 %v2538
          %4243 = vmatpush.msra.mxu0 %v2537
          %4244 = vmatpush.msra.mxu0 %v2536
          %4245 = vmatpush.msra.mxu0 %v2535
          %4246 = vmatpush.msra.mxu0 %v2534
          %4247 = vmatpush.msra.mxu0 %v2533
          %4248 = vmatpush.msra.mxu0 %v2532
          %4249 = vmatpush.msra.mxu0 %v2531
          %4250 = vmatpush.msra.mxu0 %v2530
          %4251 = vmatpush.msra.mxu0 %v2529
          %4252 = vmatmul.f32.gmra.mxu0 %v2225
          %v4253 = vpop.f32.mrf.mxu0
          %v4254 = vadd.f32 %v4141, %v4253
          %4255 = vmatmul.f32.gmra.mxu0 %v2234
          %v4256 = vpop.f32.mrf.mxu0
          %v4257 = vadd.f32 %v4144, %v4256
          %4258 = vmatmul.f32.gmra.mxu0 %v2243
          %v4259 = vpop.f32.mrf.mxu0
          %v4260 = vadd.f32 %v4147, %v4259
          %4261 = vmatmul.f32.gmra.mxu0 %v2252
          %v4262 = vpop.f32.mrf.mxu0
          %v4263 = vadd.f32 %v4150, %v4262
          %4264 = vmatmul.f32.gmra.mxu0 %v2261
          %v4265 = vpop.f32.mrf.mxu0
          %v4266 = vadd.f32 %v4153, %v4265
          %4267 = vmatmul.f32.gmra.mxu0 %v2270
          %v4268 = vpop.f32.mrf.mxu0
          %v4269 = vadd.f32 %v4156, %v4268
          %4270 = vmatmul.f32.gmra.mxu0 %v2279
          %v4271 = vpop.f32.mrf.mxu0
          %v4272 = vadd.f32 %v4159, %v4271
          %4273 = vmatmul.f32.gmra.mxu0 %v2288
          %v4274 = vpop.f32.mrf.mxu0
          %v4275 = vadd.f32 %v4162, %v4274
          %4276 = vmatmul.f32.gmra.mxu0 %v2297
          %v4277 = vpop.f32.mrf.mxu0
          %v4278 = vadd.f32 %v4165, %v4277
          %4279 = vmatmul.f32.gmra.mxu0 %v2306
          %v4280 = vpop.f32.mrf.mxu0
          %v4281 = vadd.f32 %v4168, %v4280
          %4282 = vmatmul.f32.gmra.mxu0 %v2315
          %v4283 = vpop.f32.mrf.mxu0
          %v4284 = vadd.f32 %v4171, %v4283
          %4285 = vmatmul.f32.gmra.mxu0 %v2324
          %v4286 = vpop.f32.mrf.mxu0
          %v4287 = vadd.f32 %v4174, %v4286
          %4288 = vmatmul.f32.gmra.mxu0 %v2333
          %v4289 = vpop.f32.mrf.mxu0
          %v4290 = vadd.f32 %v4177, %v4289
          %4291 = vmatmul.f32.gmra.mxu0 %v2342
          %v4292 = vpop.f32.mrf.mxu0
          %v4293 = vadd.f32 %v4180, %v4292
          %4294 = vmatmul.f32.gmra.mxu0 %v2351
          %v4295 = vpop.f32.mrf.mxu0
          %v4296 = vadd.f32 %v4183, %v4295
          %4297 = vmatmul.f32.gmra.mxu0 %v2360
          %v4298 = vpop.f32.mrf.mxu0
          %v4299 = vadd.f32 %v4186, %v4298
          %4300 = vmatmul.f32.gmra.mxu0 %v2369
          %v4301 = vpop.f32.mrf.mxu0
          %v4302 = vadd.f32 %v4189, %v4301
          %4303 = vmatmul.f32.gmra.mxu0 %v2378
          %v4304 = vpop.f32.mrf.mxu0
          %v4305 = vadd.f32 %v4192, %v4304
          %4306 = vmatmul.f32.gmra.mxu0 %v2387
          %v4307 = vpop.f32.mrf.mxu0
          %v4308 = vadd.f32 %v4195, %v4307
          %4309 = vmatmul.f32.gmra.mxu0 %v2396
          %v4310 = vpop.f32.mrf.mxu0
          %v4311 = vadd.f32 %v4198, %v4310
          %4312 = vmatmul.f32.gmra.mxu0 %v2405
          %v4313 = vpop.f32.mrf.mxu0
          %v4314 = vadd.f32 %v4201, %v4313
          %4315 = vmatmul.f32.gmra.mxu0 %v2414
          %v4316 = vpop.f32.mrf.mxu0
          %v4317 = vadd.f32 %v4204, %v4316
          %4318 = vmatmul.f32.gmra.mxu0 %v2423
          %v4319 = vpop.f32.mrf.mxu0
          %v4320 = vadd.f32 %v4207, %v4319
          %4321 = vmatmul.f32.gmra.mxu0 %v2432
          %v4322 = vpop.f32.mrf.mxu0
          %v4323 = vadd.f32 %v4210, %v4322
          %4324 = vmatmul.f32.gmra.mxu0 %v2441
          %v4325 = vpop.f32.mrf.mxu0
          %v4326 = vadd.f32 %v4213, %v4325
          %4327 = vmatmul.f32.gmra.mxu0 %v2450
          %v4328 = vpop.f32.mrf.mxu0
          %v4329 = vadd.f32 %v4216, %v4328
          %4330 = vmatmul.f32.gmra.mxu0 %v2459
          %v4331 = vpop.f32.mrf.mxu0
          %v4332 = vadd.f32 %v4219, %v4331
          %4333 = vmatmul.f32.gmra.mxu0 %v2468
          %v4334 = vpop.f32.mrf.mxu0
          %v4335 = vadd.f32 %v4222, %v4334
          %4336 = vmatmul.f32.gmra.mxu0 %v2477
          %v4337 = vpop.f32.mrf.mxu0
          %v4338 = vadd.f32 %v4225, %v4337
          %4339 = vmatmul.f32.gmra.mxu0 %v2486
          %v4340 = vpop.f32.mrf.mxu0
          %v4341 = vadd.f32 %v4228, %v4340
          %4342 = vmatmul.f32.gmra.mxu0 %v2495
          %v4343 = vpop.f32.mrf.mxu0
          %v4344 = vadd.f32 %v4231, %v4343
          %4345 = vmatmul.f32.gmra.mxu0 %v2504
          %v4346 = vpop.f32.mrf.mxu0
          %v4347 = vadd.f32 %v4234, %v4346
          %4348 = vdwg.mxu0
          %4349 = vmatpush.msra.mxu0 %v2560
          %4350 = vmatpush.msra.mxu0 %v2559
          %4351 = vmatpush.msra.mxu0 %v2558
          %4352 = vmatpush.msra.mxu0 %v2557
          %4353 = vmatpush.msra.mxu0 %v2556
          %4354 = vmatpush.msra.mxu0 %v2555
          %4355 = vmatpush.msra.mxu0 %v2554
          %4356 = vmatpush.msra.mxu0 %v2553
          %4357 = vmatpush.msra.mxu0 %v2552
          %4358 = vmatpush.msra.mxu0 %v2551
          %4359 = vmatpush.msra.mxu0 %v2550
          %4360 = vmatpush.msra.mxu0 %v2549
          %4361 = vmatpush.msra.mxu0 %v2548
          %4362 = vmatpush.msra.mxu0 %v2547
          %4363 = vmatpush.msra.mxu0 %v2546
          %4364 = vmatpush.msra.mxu0 %v2545
          %4365 = vmatmul.f32.gmra.mxu0 %v2226
          %v4366 = vpop.f32.mrf.mxu0
          %v4367 = vadd.f32 %v4254, %v4366
          %4368 = vmatmul.f32.gmra.mxu0 %v2235
          %v4369 = vpop.f32.mrf.mxu0
          %v4370 = vadd.f32 %v4257, %v4369
          %4371 = vmatmul.f32.gmra.mxu0 %v2244
          %v4372 = vpop.f32.mrf.mxu0
          %v4373 = vadd.f32 %v4260, %v4372
          %4374 = vmatmul.f32.gmra.mxu0 %v2253
          %v4375 = vpop.f32.mrf.mxu0
          %v4376 = vadd.f32 %v4263, %v4375
          %4377 = vmatmul.f32.gmra.mxu0 %v2262
          %v4378 = vpop.f32.mrf.mxu0
          %v4379 = vadd.f32 %v4266, %v4378
          %4380 = vmatmul.f32.gmra.mxu0 %v2271
          %v4381 = vpop.f32.mrf.mxu0
          %v4382 = vadd.f32 %v4269, %v4381
          %4383 = vmatmul.f32.gmra.mxu0 %v2280
          %v4384 = vpop.f32.mrf.mxu0
          %v4385 = vadd.f32 %v4272, %v4384
          %4386 = vmatmul.f32.gmra.mxu0 %v2289
          %v4387 = vpop.f32.mrf.mxu0
          %v4388 = vadd.f32 %v4275, %v4387
          %4389 = vmatmul.f32.gmra.mxu0 %v2298
          %v4390 = vpop.f32.mrf.mxu0
          %v4391 = vadd.f32 %v4278, %v4390
          %4392 = vmatmul.f32.gmra.mxu0 %v2307
          %v4393 = vpop.f32.mrf.mxu0
          %v4394 = vadd.f32 %v4281, %v4393
          %4395 = vmatmul.f32.gmra.mxu0 %v2316
          %v4396 = vpop.f32.mrf.mxu0
          %v4397 = vadd.f32 %v4284, %v4396
          %4398 = vmatmul.f32.gmra.mxu0 %v2325
          %v4399 = vpop.f32.mrf.mxu0
          %v4400 = vadd.f32 %v4287, %v4399
          %4401 = vmatmul.f32.gmra.mxu0 %v2334
          %v4402 = vpop.f32.mrf.mxu0
          %v4403 = vadd.f32 %v4290, %v4402
          %4404 = vmatmul.f32.gmra.mxu0 %v2343
          %v4405 = vpop.f32.mrf.mxu0
          %v4406 = vadd.f32 %v4293, %v4405
          %4407 = vmatmul.f32.gmra.mxu0 %v2352
          %v4408 = vpop.f32.mrf.mxu0
          %v4409 = vadd.f32 %v4296, %v4408
          %4410 = vmatmul.f32.gmra.mxu0 %v2361
          %v4411 = vpop.f32.mrf.mxu0
          %v4412 = vadd.f32 %v4299, %v4411
          %4413 = vmatmul.f32.gmra.mxu0 %v2370
          %v4414 = vpop.f32.mrf.mxu0
          %v4415 = vadd.f32 %v4302, %v4414
          %4416 = vmatmul.f32.gmra.mxu0 %v2379
          %v4417 = vpop.f32.mrf.mxu0
          %v4418 = vadd.f32 %v4305, %v4417
          %4419 = vmatmul.f32.gmra.mxu0 %v2388
          %v4420 = vpop.f32.mrf.mxu0
          %v4421 = vadd.f32 %v4308, %v4420
          %4422 = vmatmul.f32.gmra.mxu0 %v2397
          %v4423 = vpop.f32.mrf.mxu0
          %v4424 = vadd.f32 %v4311, %v4423
          %4425 = vmatmul.f32.gmra.mxu0 %v2406
          %v4426 = vpop.f32.mrf.mxu0
          %v4427 = vadd.f32 %v4314, %v4426
          %4428 = vmatmul.f32.gmra.mxu0 %v2415
          %v4429 = vpop.f32.mrf.mxu0
          %v4430 = vadd.f32 %v4317, %v4429
          %4431 = vmatmul.f32.gmra.mxu0 %v2424
          %v4432 = vpop.f32.mrf.mxu0
          %v4433 = vadd.f32 %v4320, %v4432
          %4434 = vmatmul.f32.gmra.mxu0 %v2433
          %v4435 = vpop.f32.mrf.mxu0
          %v4436 = vadd.f32 %v4323, %v4435
          %4437 = vmatmul.f32.gmra.mxu0 %v2442
          %v4438 = vpop.f32.mrf.mxu0
          %v4439 = vadd.f32 %v4326, %v4438
          %4440 = vmatmul.f32.gmra.mxu0 %v2451
          %v4441 = vpop.f32.mrf.mxu0
          %v4442 = vadd.f32 %v4329, %v4441
          %4443 = vmatmul.f32.gmra.mxu0 %v2460
          %v4444 = vpop.f32.mrf.mxu0
          %v4445 = vadd.f32 %v4332, %v4444
          %4446 = vmatmul.f32.gmra.mxu0 %v2469
          %v4447 = vpop.f32.mrf.mxu0
          %v4448 = vadd.f32 %v4335, %v4447
          %4449 = vmatmul.f32.gmra.mxu0 %v2478
          %v4450 = vpop.f32.mrf.mxu0
          %v4451 = vadd.f32 %v4338, %v4450
          %4452 = vmatmul.f32.gmra.mxu0 %v2487
          %v4453 = vpop.f32.mrf.mxu0
          %v4454 = vadd.f32 %v4341, %v4453
          %4455 = vmatmul.f32.gmra.mxu0 %v2496
          %v4456 = vpop.f32.mrf.mxu0
          %v4457 = vadd.f32 %v4344, %v4456
          %4458 = vmatmul.f32.gmra.mxu0 %v2505
          %v4459 = vpop.f32.mrf.mxu0
          %v4460 = vadd.f32 %v4347, %v4459
          %4461 = vdwg.mxu0
          %4462 = vmatpush.msra.mxu0 %v2576
          %4463 = vmatpush.msra.mxu0 %v2575
          %4464 = vmatpush.msra.mxu0 %v2574
          %4465 = vmatpush.msra.mxu0 %v2573
          %4466 = vmatpush.msra.mxu0 %v2572
          %4467 = vmatpush.msra.mxu0 %v2571
          %4468 = vmatpush.msra.mxu0 %v2570
          %4469 = vmatpush.msra.mxu0 %v2569
          %4470 = vmatpush.msra.mxu0 %v2568
          %4471 = vmatpush.msra.mxu0 %v2567
          %4472 = vmatpush.msra.mxu0 %v2566
          %4473 = vmatpush.msra.mxu0 %v2565
          %4474 = vmatpush.msra.mxu0 %v2564
          %4475 = vmatpush.msra.mxu0 %v2563
          %4476 = vmatpush.msra.mxu0 %v2562
          %4477 = vmatpush.msra.mxu0 %v2561
          %4478 = vmatmul.f32.gmra.mxu0 %v2227
          %v4479 = vpop.f32.mrf.mxu0
          %v4480 = vadd.f32 %v4367, %v4479
          %4481 = vmatmul.f32.gmra.mxu0 %v2236
          %v4482 = vpop.f32.mrf.mxu0
          %v4483 = vadd.f32 %v4370, %v4482
          %4484 = vmatmul.f32.gmra.mxu0 %v2245
          %v4485 = vpop.f32.mrf.mxu0
          %v4486 = vadd.f32 %v4373, %v4485
          %4487 = vmatmul.f32.gmra.mxu0 %v2254
          %v4488 = vpop.f32.mrf.mxu0
          %v4489 = vadd.f32 %v4376, %v4488
          %4490 = vmatmul.f32.gmra.mxu0 %v2263
          %v4491 = vpop.f32.mrf.mxu0
          %v4492 = vadd.f32 %v4379, %v4491
          %4493 = vmatmul.f32.gmra.mxu0 %v2272
          %v4494 = vpop.f32.mrf.mxu0
          %v4495 = vadd.f32 %v4382, %v4494
          %4496 = vmatmul.f32.gmra.mxu0 %v2281
          %v4497 = vpop.f32.mrf.mxu0
          %v4498 = vadd.f32 %v4385, %v4497
          %4499 = vmatmul.f32.gmra.mxu0 %v2290
          %v4500 = vpop.f32.mrf.mxu0
          %v4501 = vadd.f32 %v4388, %v4500
          %4502 = vmatmul.f32.gmra.mxu0 %v2299
          %v4503 = vpop.f32.mrf.mxu0
          %v4504 = vadd.f32 %v4391, %v4503
          %4505 = vmatmul.f32.gmra.mxu0 %v2308
          %v4506 = vpop.f32.mrf.mxu0
          %v4507 = vadd.f32 %v4394, %v4506
          %4508 = vmatmul.f32.gmra.mxu0 %v2317
          %v4509 = vpop.f32.mrf.mxu0
          %v4510 = vadd.f32 %v4397, %v4509
          %4511 = vmatmul.f32.gmra.mxu0 %v2326
          %v4512 = vpop.f32.mrf.mxu0
          %v4513 = vadd.f32 %v4400, %v4512
          %4514 = vmatmul.f32.gmra.mxu0 %v2335
          %v4515 = vpop.f32.mrf.mxu0
          %v4516 = vadd.f32 %v4403, %v4515
          %4517 = vmatmul.f32.gmra.mxu0 %v2344
          %v4518 = vpop.f32.mrf.mxu0
          %v4519 = vadd.f32 %v4406, %v4518
          %4520 = vmatmul.f32.gmra.mxu0 %v2353
          %v4521 = vpop.f32.mrf.mxu0
          %v4522 = vadd.f32 %v4409, %v4521
          %4523 = vmatmul.f32.gmra.mxu0 %v2362
          %v4524 = vpop.f32.mrf.mxu0
          %v4525 = vadd.f32 %v4412, %v4524
          %4526 = vmatmul.f32.gmra.mxu0 %v2371
          %v4527 = vpop.f32.mrf.mxu0
          %v4528 = vadd.f32 %v4415, %v4527
          %4529 = vmatmul.f32.gmra.mxu0 %v2380
          %v4530 = vpop.f32.mrf.mxu0
          %v4531 = vadd.f32 %v4418, %v4530
          %4532 = vmatmul.f32.gmra.mxu0 %v2389
          %v4533 = vpop.f32.mrf.mxu0
          %v4534 = vadd.f32 %v4421, %v4533
          %4535 = vmatmul.f32.gmra.mxu0 %v2398
          %v4536 = vpop.f32.mrf.mxu0
          %v4537 = vadd.f32 %v4424, %v4536
          %4538 = vmatmul.f32.gmra.mxu0 %v2407
          %v4539 = vpop.f32.mrf.mxu0
          %v4540 = vadd.f32 %v4427, %v4539
          %4541 = vmatmul.f32.gmra.mxu0 %v2416
          %v4542 = vpop.f32.mrf.mxu0
          %v4543 = vadd.f32 %v4430, %v4542
          %4544 = vmatmul.f32.gmra.mxu0 %v2425
          %v4545 = vpop.f32.mrf.mxu0
          %v4546 = vadd.f32 %v4433, %v4545
          %4547 = vmatmul.f32.gmra.mxu0 %v2434
          %v4548 = vpop.f32.mrf.mxu0
          %v4549 = vadd.f32 %v4436, %v4548
          %4550 = vmatmul.f32.gmra.mxu0 %v2443
          %v4551 = vpop.f32.mrf.mxu0
          %v4552 = vadd.f32 %v4439, %v4551
          %4553 = vmatmul.f32.gmra.mxu0 %v2452
          %v4554 = vpop.f32.mrf.mxu0
          %v4555 = vadd.f32 %v4442, %v4554
          %4556 = vmatmul.f32.gmra.mxu0 %v2461
          %v4557 = vpop.f32.mrf.mxu0
          %v4558 = vadd.f32 %v4445, %v4557
          %4559 = vmatmul.f32.gmra.mxu0 %v2470
          %v4560 = vpop.f32.mrf.mxu0
          %v4561 = vadd.f32 %v4448, %v4560
          %4562 = vmatmul.f32.gmra.mxu0 %v2479
          %v4563 = vpop.f32.mrf.mxu0
          %v4564 = vadd.f32 %v4451, %v4563
          %4565 = vmatmul.f32.gmra.mxu0 %v2488
          %v4566 = vpop.f32.mrf.mxu0
          %v4567 = vadd.f32 %v4454, %v4566
          %4568 = vmatmul.f32.gmra.mxu0 %v2497
          %v4569 = vpop.f32.mrf.mxu0
          %v4570 = vadd.f32 %v4457, %v4569
          %4571 = vmatmul.f32.gmra.mxu0 %v2506
          %v4572 = vpop.f32.mrf.mxu0
          %v4573 = vadd.f32 %v4460, %v4572
          %4574 = vdwg.mxu0
          %4575 = vmatpush.msra.mxu0 %v2592
          %4576 = vmatpush.msra.mxu0 %v2591
          %4577 = vmatpush.msra.mxu0 %v2590
          %4578 = vmatpush.msra.mxu0 %v2589
          %4579 = vmatpush.msra.mxu0 %v2588
          %4580 = vmatpush.msra.mxu0 %v2587
          %4581 = vmatpush.msra.mxu0 %v2586
          %4582 = vmatpush.msra.mxu0 %v2585
          %4583 = vmatpush.msra.mxu0 %v2584
          %4584 = vmatpush.msra.mxu0 %v2583
          %4585 = vmatpush.msra.mxu0 %v2582
          %4586 = vmatpush.msra.mxu0 %v2581
          %4587 = vmatpush.msra.mxu0 %v2580
          %4588 = vmatpush.msra.mxu0 %v2579
          %4589 = vmatpush.msra.mxu0 %v2578
          %4590 = vmatpush.msra.mxu0 %v2577
          %4591 = vmatmul.f32.gmra.mxu0 %v2228
          %v4592 = vpop.f32.mrf.mxu0
          %v4593 = vadd.f32 %v4480, %v4592
          %4594 = vmatmul.f32.gmra.mxu0 %v2237
          %v4595 = vpop.f32.mrf.mxu0
          %v4596 = vadd.f32 %v4483, %v4595
          %4597 = vmatmul.f32.gmra.mxu0 %v2246
          %v4598 = vpop.f32.mrf.mxu0
          %v4599 = vadd.f32 %v4486, %v4598
          %4600 = vmatmul.f32.gmra.mxu0 %v2255
          %v4601 = vpop.f32.mrf.mxu0
          %v4602 = vadd.f32 %v4489, %v4601
          %4603 = vmatmul.f32.gmra.mxu0 %v2264
          %v4604 = vpop.f32.mrf.mxu0
          %v4605 = vadd.f32 %v4492, %v4604
          %4606 = vmatmul.f32.gmra.mxu0 %v2273
          %v4607 = vpop.f32.mrf.mxu0
          %v4608 = vadd.f32 %v4495, %v4607
          %4609 = vmatmul.f32.gmra.mxu0 %v2282
          %v4610 = vpop.f32.mrf.mxu0
          %v4611 = vadd.f32 %v4498, %v4610
          %4612 = vmatmul.f32.gmra.mxu0 %v2291
          %v4613 = vpop.f32.mrf.mxu0
          %v4614 = vadd.f32 %v4501, %v4613
          %4615 = vmatmul.f32.gmra.mxu0 %v2300
          %v4616 = vpop.f32.mrf.mxu0
          %v4617 = vadd.f32 %v4504, %v4616
          %4618 = vmatmul.f32.gmra.mxu0 %v2309
          %v4619 = vpop.f32.mrf.mxu0
          %v4620 = vadd.f32 %v4507, %v4619
          %4621 = vmatmul.f32.gmra.mxu0 %v2318
          %v4622 = vpop.f32.mrf.mxu0
          %v4623 = vadd.f32 %v4510, %v4622
          %4624 = vmatmul.f32.gmra.mxu0 %v2327
          %v4625 = vpop.f32.mrf.mxu0
          %v4626 = vadd.f32 %v4513, %v4625
          %4627 = vmatmul.f32.gmra.mxu0 %v2336
          %v4628 = vpop.f32.mrf.mxu0
          %v4629 = vadd.f32 %v4516, %v4628
          %4630 = vmatmul.f32.gmra.mxu0 %v2345
          %v4631 = vpop.f32.mrf.mxu0
          %v4632 = vadd.f32 %v4519, %v4631
          %4633 = vmatmul.f32.gmra.mxu0 %v2354
          %v4634 = vpop.f32.mrf.mxu0
          %v4635 = vadd.f32 %v4522, %v4634
          %4636 = vmatmul.f32.gmra.mxu0 %v2363
          %v4637 = vpop.f32.mrf.mxu0
          %v4638 = vadd.f32 %v4525, %v4637
          %4639 = vmatmul.f32.gmra.mxu0 %v2372
          %v4640 = vpop.f32.mrf.mxu0
          %v4641 = vadd.f32 %v4528, %v4640
          %4642 = vmatmul.f32.gmra.mxu0 %v2381
          %v4643 = vpop.f32.mrf.mxu0
          %v4644 = vadd.f32 %v4531, %v4643
          %4645 = vmatmul.f32.gmra.mxu0 %v2390
          %v4646 = vpop.f32.mrf.mxu0
          %v4647 = vadd.f32 %v4534, %v4646
          %4648 = vmatmul.f32.gmra.mxu0 %v2399
          %v4649 = vpop.f32.mrf.mxu0
          %v4650 = vadd.f32 %v4537, %v4649
          %4651 = vmatmul.f32.gmra.mxu0 %v2408
          %v4652 = vpop.f32.mrf.mxu0
          %v4653 = vadd.f32 %v4540, %v4652
          %4654 = vmatmul.f32.gmra.mxu0 %v2417
          %v4655 = vpop.f32.mrf.mxu0
          %v4656 = vadd.f32 %v4543, %v4655
          %4657 = vmatmul.f32.gmra.mxu0 %v2426
          %v4658 = vpop.f32.mrf.mxu0
          %v4659 = vadd.f32 %v4546, %v4658
          %4660 = vmatmul.f32.gmra.mxu0 %v2435
          %v4661 = vpop.f32.mrf.mxu0
          %v4662 = vadd.f32 %v4549, %v4661
          %4663 = vmatmul.f32.gmra.mxu0 %v2444
          %v4664 = vpop.f32.mrf.mxu0
          %v4665 = vadd.f32 %v4552, %v4664
          %4666 = vmatmul.f32.gmra.mxu0 %v2453
          %v4667 = vpop.f32.mrf.mxu0
          %v4668 = vadd.f32 %v4555, %v4667
          %4669 = vmatmul.f32.gmra.mxu0 %v2462
          %v4670 = vpop.f32.mrf.mxu0
          %v4671 = vadd.f32 %v4558, %v4670
          %4672 = vmatmul.f32.gmra.mxu0 %v2471
          %v4673 = vpop.f32.mrf.mxu0
          %v4674 = vadd.f32 %v4561, %v4673
          %4675 = vmatmul.f32.gmra.mxu0 %v2480
          %v4676 = vpop.f32.mrf.mxu0
          %v4677 = vadd.f32 %v4564, %v4676
          %4678 = vmatmul.f32.gmra.mxu0 %v2489
          %v4679 = vpop.f32.mrf.mxu0
          %v4680 = vadd.f32 %v4567, %v4679
          %4681 = vmatmul.f32.gmra.mxu0 %v2498
          %v4682 = vpop.f32.mrf.mxu0
          %v4683 = vadd.f32 %v4570, %v4682
          %4684 = vmatmul.f32.gmra.mxu0 %v2507
          %v4685 = vpop.f32.mrf.mxu0
          %v4686 = vadd.f32 %v4573, %v4685
          %4687 = vdwg.mxu0
          %4688 = vmatpush.msra.mxu0 %v2608
          %4689 = vmatpush.msra.mxu0 %v2607
          %4690 = vmatpush.msra.mxu0 %v2606
          %4691 = vmatpush.msra.mxu0 %v2605
          %4692 = vmatpush.msra.mxu0 %v2604
          %4693 = vmatpush.msra.mxu0 %v2603
          %4694 = vmatpush.msra.mxu0 %v2602
          %4695 = vmatpush.msra.mxu0 %v2601
          %4696 = vmatpush.msra.mxu0 %v2600
          %4697 = vmatpush.msra.mxu0 %v2599
          %4698 = vmatpush.msra.mxu0 %v2598
          %4699 = vmatpush.msra.mxu0 %v2597
          %4700 = vmatpush.msra.mxu0 %v2596
          %4701 = vmatpush.msra.mxu0 %v2595
          %4702 = vmatpush.msra.mxu0 %v2594
          %4703 = vmatpush.msra.mxu0 %v2593
          %4704 = vmatmul.f32.gmra.mxu0 %v2229
          %v4705 = vpop.f32.mrf.mxu0
          %v4706 = vadd.f32 %v4593, %v4705
          %4707 = vmatmul.f32.gmra.mxu0 %v2238
          %v4708 = vpop.f32.mrf.mxu0
          %v4709 = vadd.f32 %v4596, %v4708
          %4710 = vmatmul.f32.gmra.mxu0 %v2247
          %v4711 = vpop.f32.mrf.mxu0
          %v4712 = vadd.f32 %v4599, %v4711
          %4713 = vmatmul.f32.gmra.mxu0 %v2256
          %v4714 = vpop.f32.mrf.mxu0
          %v4715 = vadd.f32 %v4602, %v4714
          %4716 = vmatmul.f32.gmra.mxu0 %v2265
          %v4717 = vpop.f32.mrf.mxu0
          %v4718 = vadd.f32 %v4605, %v4717
          %4719 = vmatmul.f32.gmra.mxu0 %v2274
          %v4720 = vpop.f32.mrf.mxu0
          %v4721 = vadd.f32 %v4608, %v4720
          %4722 = vmatmul.f32.gmra.mxu0 %v2283
          %v4723 = vpop.f32.mrf.mxu0
          %v4724 = vadd.f32 %v4611, %v4723
          %4725 = vmatmul.f32.gmra.mxu0 %v2292
          %v4726 = vpop.f32.mrf.mxu0
          %v4727 = vadd.f32 %v4614, %v4726
          %4728 = vmatmul.f32.gmra.mxu0 %v2301
          %v4729 = vpop.f32.mrf.mxu0
          %v4730 = vadd.f32 %v4617, %v4729
          %4731 = vmatmul.f32.gmra.mxu0 %v2310
          %v4732 = vpop.f32.mrf.mxu0
          %v4733 = vadd.f32 %v4620, %v4732
          %4734 = vmatmul.f32.gmra.mxu0 %v2319
          %v4735 = vpop.f32.mrf.mxu0
          %v4736 = vadd.f32 %v4623, %v4735
          %4737 = vmatmul.f32.gmra.mxu0 %v2328
          %v4738 = vpop.f32.mrf.mxu0
          %v4739 = vadd.f32 %v4626, %v4738
          %4740 = vmatmul.f32.gmra.mxu0 %v2337
          %v4741 = vpop.f32.mrf.mxu0
          %v4742 = vadd.f32 %v4629, %v4741
          %4743 = vmatmul.f32.gmra.mxu0 %v2346
          %v4744 = vpop.f32.mrf.mxu0
          %v4745 = vadd.f32 %v4632, %v4744
          %4746 = vmatmul.f32.gmra.mxu0 %v2355
          %v4747 = vpop.f32.mrf.mxu0
          %v4748 = vadd.f32 %v4635, %v4747
          %4749 = vmatmul.f32.gmra.mxu0 %v2364
          %v4750 = vpop.f32.mrf.mxu0
          %v4751 = vadd.f32 %v4638, %v4750
          %4752 = vmatmul.f32.gmra.mxu0 %v2373
          %v4753 = vpop.f32.mrf.mxu0
          %v4754 = vadd.f32 %v4641, %v4753
          %4755 = vmatmul.f32.gmra.mxu0 %v2382
          %v4756 = vpop.f32.mrf.mxu0
          %v4757 = vadd.f32 %v4644, %v4756
          %4758 = vmatmul.f32.gmra.mxu0 %v2391
          %v4759 = vpop.f32.mrf.mxu0
          %v4760 = vadd.f32 %v4647, %v4759
          %4761 = vmatmul.f32.gmra.mxu0 %v2400
          %v4762 = vpop.f32.mrf.mxu0
          %v4763 = vadd.f32 %v4650, %v4762
          %4764 = vmatmul.f32.gmra.mxu0 %v2409
          %v4765 = vpop.f32.mrf.mxu0
          %v4766 = vadd.f32 %v4653, %v4765
          %4767 = vmatmul.f32.gmra.mxu0 %v2418
          %v4768 = vpop.f32.mrf.mxu0
          %v4769 = vadd.f32 %v4656, %v4768
          %4770 = vmatmul.f32.gmra.mxu0 %v2427
          %v4771 = vpop.f32.mrf.mxu0
          %v4772 = vadd.f32 %v4659, %v4771
          %4773 = vmatmul.f32.gmra.mxu0 %v2436
          %v4774 = vpop.f32.mrf.mxu0
          %v4775 = vadd.f32 %v4662, %v4774
          %4776 = vmatmul.f32.gmra.mxu0 %v2445
          %v4777 = vpop.f32.mrf.mxu0
          %v4778 = vadd.f32 %v4665, %v4777
          %4779 = vmatmul.f32.gmra.mxu0 %v2454
          %v4780 = vpop.f32.mrf.mxu0
          %v4781 = vadd.f32 %v4668, %v4780
          %4782 = vmatmul.f32.gmra.mxu0 %v2463
          %v4783 = vpop.f32.mrf.mxu0
          %v4784 = vadd.f32 %v4671, %v4783
          %4785 = vmatmul.f32.gmra.mxu0 %v2472
          %v4786 = vpop.f32.mrf.mxu0
          %v4787 = vadd.f32 %v4674, %v4786
          %4788 = vmatmul.f32.gmra.mxu0 %v2481
          %v4789 = vpop.f32.mrf.mxu0
          %v4790 = vadd.f32 %v4677, %v4789
          %4791 = vmatmul.f32.gmra.mxu0 %v2490
          %v4792 = vpop.f32.mrf.mxu0
          %v4793 = vadd.f32 %v4680, %v4792
          %4794 = vmatmul.f32.gmra.mxu0 %v2499
          %v4795 = vpop.f32.mrf.mxu0
          %v4796 = vadd.f32 %v4683, %v4795
          %4797 = vmatmul.f32.gmra.mxu0 %v2508
          %v4798 = vpop.f32.mrf.mxu0
          %v4799 = vadd.f32 %v4686, %v4798
          %4800 = vdwg.mxu0
          %4801 = vmatpush.msra.mxu0 %v2624
          %4802 = vmatpush.msra.mxu0 %v2623
          %4803 = vmatpush.msra.mxu0 %v2622
          %4804 = vmatpush.msra.mxu0 %v2621
          %4805 = vmatpush.msra.mxu0 %v2620
          %4806 = vmatpush.msra.mxu0 %v2619
          %4807 = vmatpush.msra.mxu0 %v2618
          %4808 = vmatpush.msra.mxu0 %v2617
          %4809 = vmatpush.msra.mxu0 %v2616
          %4810 = vmatpush.msra.mxu0 %v2615
          %4811 = vmatpush.msra.mxu0 %v2614
          %4812 = vmatpush.msra.mxu0 %v2613
          %4813 = vmatpush.msra.mxu0 %v2612
          %4814 = vmatpush.msra.mxu0 %v2611
          %4815 = vmatpush.msra.mxu0 %v2610
          %4816 = vmatpush.msra.mxu0 %v2609
          %4817 = vmatmul.f32.gmra.mxu0 %v2230
          %v4818 = vpop.f32.mrf.mxu0
          %v4819 = vadd.f32 %v4706, %v4818
          %4820 = vmatmul.f32.gmra.mxu0 %v2239
          %v4821 = vpop.f32.mrf.mxu0
          %v4822 = vadd.f32 %v4709, %v4821
          %4823 = vmatmul.f32.gmra.mxu0 %v2248
          %v4824 = vpop.f32.mrf.mxu0
          %v4825 = vadd.f32 %v4712, %v4824
          %4826 = vmatmul.f32.gmra.mxu0 %v2257
          %v4827 = vpop.f32.mrf.mxu0
          %v4828 = vadd.f32 %v4715, %v4827
          %4829 = vmatmul.f32.gmra.mxu0 %v2266
          %v4830 = vpop.f32.mrf.mxu0
          %v4831 = vadd.f32 %v4718, %v4830
          %4832 = vmatmul.f32.gmra.mxu0 %v2275
          %v4833 = vpop.f32.mrf.mxu0
          %v4834 = vadd.f32 %v4721, %v4833
          %4835 = vmatmul.f32.gmra.mxu0 %v2284
          %v4836 = vpop.f32.mrf.mxu0
          %v4837 = vadd.f32 %v4724, %v4836
          %4838 = vmatmul.f32.gmra.mxu0 %v2293
          %v4839 = vpop.f32.mrf.mxu0
          %v4840 = vadd.f32 %v4727, %v4839
          %4841 = vmatmul.f32.gmra.mxu0 %v2302
          %v4842 = vpop.f32.mrf.mxu0
          %v4843 = vadd.f32 %v4730, %v4842
          %4844 = vmatmul.f32.gmra.mxu0 %v2311
          %v4845 = vpop.f32.mrf.mxu0
          %v4846 = vadd.f32 %v4733, %v4845
          %4847 = vmatmul.f32.gmra.mxu0 %v2320
          %v4848 = vpop.f32.mrf.mxu0
          %v4849 = vadd.f32 %v4736, %v4848
          %4850 = vmatmul.f32.gmra.mxu0 %v2329
          %v4851 = vpop.f32.mrf.mxu0
          %v4852 = vadd.f32 %v4739, %v4851
          %4853 = vmatmul.f32.gmra.mxu0 %v2338
          %v4854 = vpop.f32.mrf.mxu0
          %v4855 = vadd.f32 %v4742, %v4854
          %4856 = vmatmul.f32.gmra.mxu0 %v2347
          %v4857 = vpop.f32.mrf.mxu0
          %v4858 = vadd.f32 %v4745, %v4857
          %4859 = vmatmul.f32.gmra.mxu0 %v2356
          %v4860 = vpop.f32.mrf.mxu0
          %v4861 = vadd.f32 %v4748, %v4860
          %4862 = vmatmul.f32.gmra.mxu0 %v2365
          %v4863 = vpop.f32.mrf.mxu0
          %v4864 = vadd.f32 %v4751, %v4863
          %4865 = vmatmul.f32.gmra.mxu0 %v2374
          %v4866 = vpop.f32.mrf.mxu0
          %v4867 = vadd.f32 %v4754, %v4866
          %4868 = vmatmul.f32.gmra.mxu0 %v2383
          %v4869 = vpop.f32.mrf.mxu0
          %v4870 = vadd.f32 %v4757, %v4869
          %4871 = vmatmul.f32.gmra.mxu0 %v2392
          %v4872 = vpop.f32.mrf.mxu0
          %v4873 = vadd.f32 %v4760, %v4872
          %4874 = vmatmul.f32.gmra.mxu0 %v2401
          %v4875 = vpop.f32.mrf.mxu0
          %v4876 = vadd.f32 %v4763, %v4875
          %4877 = vmatmul.f32.gmra.mxu0 %v2410
          %v4878 = vpop.f32.mrf.mxu0
          %v4879 = vadd.f32 %v4766, %v4878
          %4880 = vmatmul.f32.gmra.mxu0 %v2419
          %v4881 = vpop.f32.mrf.mxu0
          %v4882 = vadd.f32 %v4769, %v4881
          %4883 = vmatmul.f32.gmra.mxu0 %v2428
          %v4884 = vpop.f32.mrf.mxu0
          %v4885 = vadd.f32 %v4772, %v4884
          %4886 = vmatmul.f32.gmra.mxu0 %v2437
          %v4887 = vpop.f32.mrf.mxu0
          %v4888 = vadd.f32 %v4775, %v4887
          %4889 = vmatmul.f32.gmra.mxu0 %v2446
          %v4890 = vpop.f32.mrf.mxu0
          %v4891 = vadd.f32 %v4778, %v4890
          %4892 = vmatmul.f32.gmra.mxu0 %v2455
          %v4893 = vpop.f32.mrf.mxu0
          %v4894 = vadd.f32 %v4781, %v4893
          %4895 = vmatmul.f32.gmra.mxu0 %v2464
          %v4896 = vpop.f32.mrf.mxu0
          %v4897 = vadd.f32 %v4784, %v4896
          %4898 = vmatmul.f32.gmra.mxu0 %v2473
          %v4899 = vpop.f32.mrf.mxu0
          %v4900 = vadd.f32 %v4787, %v4899
          %4901 = vmatmul.f32.gmra.mxu0 %v2482
          %v4902 = vpop.f32.mrf.mxu0
          %v4903 = vadd.f32 %v4790, %v4902
          %4904 = vmatmul.f32.gmra.mxu0 %v2491
          %v4905 = vpop.f32.mrf.mxu0
          %v4906 = vadd.f32 %v4793, %v4905
          %4907 = vmatmul.f32.gmra.mxu0 %v2500
          %v4908 = vpop.f32.mrf.mxu0
          %v4909 = vadd.f32 %v4796, %v4908
          %4910 = vmatmul.f32.gmra.mxu0 %v2509
          %v4911 = vpop.f32.mrf.mxu0
          %v4912 = vadd.f32 %v4799, %v4911
          %4913 = vdwg.mxu0
          %4914 = vmatpush.msra.mxu0 %v2640
          %4915 = vmatpush.msra.mxu0 %v2639
          %4916 = vmatpush.msra.mxu0 %v2638
          %4917 = vmatpush.msra.mxu0 %v2637
          %4918 = vmatpush.msra.mxu0 %v2636
          %4919 = vmatpush.msra.mxu0 %v2635
          %4920 = vmatpush.msra.mxu0 %v2634
          %4921 = vmatpush.msra.mxu0 %v2633
          %4922 = vmatpush.msra.mxu0 %v2632
          %4923 = vmatpush.msra.mxu0 %v2631
          %4924 = vmatpush.msra.mxu0 %v2630
          %4925 = vmatpush.msra.mxu0 %v2629
          %4926 = vmatpush.msra.mxu0 %v2628
          %4927 = vmatpush.msra.mxu0 %v2627
          %4928 = vmatpush.msra.mxu0 %v2626
          %4929 = vmatpush.msra.mxu0 %v2625
          %4930 = vmatmul.f32.gmra.mxu0 %v2231
          %v4931 = vpop.f32.mrf.mxu0
          %v4932 = vadd.f32 %v4819, %v4931
          %4933 = vmatmul.f32.gmra.mxu0 %v2240
          %v4934 = vpop.f32.mrf.mxu0
          %v4935 = vadd.f32 %v4822, %v4934
          %4936 = vmatmul.f32.gmra.mxu0 %v2249
          %v4937 = vpop.f32.mrf.mxu0
          %v4938 = vadd.f32 %v4825, %v4937
          %4939 = vmatmul.f32.gmra.mxu0 %v2258
          %v4940 = vpop.f32.mrf.mxu0
          %v4941 = vadd.f32 %v4828, %v4940
          %4942 = vmatmul.f32.gmra.mxu0 %v2267
          %v4943 = vpop.f32.mrf.mxu0
          %v4944 = vadd.f32 %v4831, %v4943
          %4945 = vmatmul.f32.gmra.mxu0 %v2276
          %v4946 = vpop.f32.mrf.mxu0
          %v4947 = vadd.f32 %v4834, %v4946
          %4948 = vmatmul.f32.gmra.mxu0 %v2285
          %v4949 = vpop.f32.mrf.mxu0
          %v4950 = vadd.f32 %v4837, %v4949
          %4951 = vmatmul.f32.gmra.mxu0 %v2294
          %v4952 = vpop.f32.mrf.mxu0
          %v4953 = vadd.f32 %v4840, %v4952
          %4954 = vmatmul.f32.gmra.mxu0 %v2303
          %v4955 = vpop.f32.mrf.mxu0
          %v4956 = vadd.f32 %v4843, %v4955
          %4957 = vmatmul.f32.gmra.mxu0 %v2312
          %v4958 = vpop.f32.mrf.mxu0
          %v4959 = vadd.f32 %v4846, %v4958
          %4960 = vmatmul.f32.gmra.mxu0 %v2321
          %v4961 = vpop.f32.mrf.mxu0
          %v4962 = vadd.f32 %v4849, %v4961
          %4963 = vmatmul.f32.gmra.mxu0 %v2330
          %v4964 = vpop.f32.mrf.mxu0
          %v4965 = vadd.f32 %v4852, %v4964
          %4966 = vmatmul.f32.gmra.mxu0 %v2339
          %v4967 = vpop.f32.mrf.mxu0
          %v4968 = vadd.f32 %v4855, %v4967
          %4969 = vmatmul.f32.gmra.mxu0 %v2348
          %v4970 = vpop.f32.mrf.mxu0
          %v4971 = vadd.f32 %v4858, %v4970
          %4972 = vmatmul.f32.gmra.mxu0 %v2357
          %v4973 = vpop.f32.mrf.mxu0
          %v4974 = vadd.f32 %v4861, %v4973
          %4975 = vmatmul.f32.gmra.mxu0 %v2366
          %v4976 = vpop.f32.mrf.mxu0
          %v4977 = vadd.f32 %v4864, %v4976
          %4978 = vmatmul.f32.gmra.mxu0 %v2375
          %v4979 = vpop.f32.mrf.mxu0
          %v4980 = vadd.f32 %v4867, %v4979
          %4981 = vmatmul.f32.gmra.mxu0 %v2384
          %v4982 = vpop.f32.mrf.mxu0
          %v4983 = vadd.f32 %v4870, %v4982
          %4984 = vmatmul.f32.gmra.mxu0 %v2393
          %v4985 = vpop.f32.mrf.mxu0
          %v4986 = vadd.f32 %v4873, %v4985
          %4987 = vmatmul.f32.gmra.mxu0 %v2402
          %v4988 = vpop.f32.mrf.mxu0
          %v4989 = vadd.f32 %v4876, %v4988
          %4990 = vmatmul.f32.gmra.mxu0 %v2411
          %v4991 = vpop.f32.mrf.mxu0
          %v4992 = vadd.f32 %v4879, %v4991
          %4993 = vmatmul.f32.gmra.mxu0 %v2420
          %v4994 = vpop.f32.mrf.mxu0
          %v4995 = vadd.f32 %v4882, %v4994
          %4996 = vmatmul.f32.gmra.mxu0 %v2429
          %v4997 = vpop.f32.mrf.mxu0
          %v4998 = vadd.f32 %v4885, %v4997
          %4999 = vmatmul.f32.gmra.mxu0 %v2438
          %v5000 = vpop.f32.mrf.mxu0
          %v5001 = vadd.f32 %v4888, %v5000
          %5002 = vmatmul.f32.gmra.mxu0 %v2447
          %v5003 = vpop.f32.mrf.mxu0
          %v5004 = vadd.f32 %v4891, %v5003
          %5005 = vmatmul.f32.gmra.mxu0 %v2456
          %v5006 = vpop.f32.mrf.mxu0
          %v5007 = vadd.f32 %v4894, %v5006
          %5008 = vmatmul.f32.gmra.mxu0 %v2465
          %v5009 = vpop.f32.mrf.mxu0
          %v5010 = vadd.f32 %v4897, %v5009
          %5011 = vmatmul.f32.gmra.mxu0 %v2474
          %v5012 = vpop.f32.mrf.mxu0
          %v5013 = vadd.f32 %v4900, %v5012
          %5014 = vmatmul.f32.gmra.mxu0 %v2483
          %v5015 = vpop.f32.mrf.mxu0
          %v5016 = vadd.f32 %v4903, %v5015
          %5017 = vmatmul.f32.gmra.mxu0 %v2492
          %v5018 = vpop.f32.mrf.mxu0
          %v5019 = vadd.f32 %v4906, %v5018
          %5020 = vmatmul.f32.gmra.mxu0 %v2501
          %v5021 = vpop.f32.mrf.mxu0
          %v5022 = vadd.f32 %v4909, %v5021
          %5023 = vmatmul.f32.gmra.mxu0 %v2510
          %v5024 = vpop.f32.mrf.mxu0
          %v5025 = vadd.f32 %v4912, %v5024
          %5026 = vdwg.mxu0
          %5027 = vmatpush.msra.mxu0 %v2656
          %5028 = vmatpush.msra.mxu0 %v2655
          %5029 = vmatpush.msra.mxu0 %v2654
          %5030 = vmatpush.msra.mxu0 %v2653
          %5031 = vmatpush.msra.mxu0 %v2652
          %5032 = vmatpush.msra.mxu0 %v2651
          %5033 = vmatpush.msra.mxu0 %v2650
          %5034 = vmatpush.msra.mxu0 %v2649
          %5035 = vmatpush.msra.mxu0 %v2648
          %5036 = vmatpush.msra.mxu0 %v2647
          %5037 = vmatpush.msra.mxu0 %v2646
          %5038 = vmatpush.msra.mxu0 %v2645
          %5039 = vmatpush.msra.mxu0 %v2644
          %5040 = vmatpush.msra.mxu0 %v2643
          %5041 = vmatpush.msra.mxu0 %v2642
          %5042 = vmatpush.msra.mxu0 %v2641
          %5043 = vmatmul.f32.gmra.mxu0 %v2232
          %v5044 = vpop.f32.mrf.mxu0
          %v5045 = vadd.f32 %v4932, %v5044
          %5046 = vmatmul.f32.gmra.mxu0 %v2241
          %v5047 = vpop.f32.mrf.mxu0
          %v5048 = vadd.f32 %v4935, %v5047
          %5049 = vmatmul.f32.gmra.mxu0 %v2250
          %v5050 = vpop.f32.mrf.mxu0
          %v5051 = vadd.f32 %v4938, %v5050
          %5052 = vmatmul.f32.gmra.mxu0 %v2259
          %v5053 = vpop.f32.mrf.mxu0
          %v5054 = vadd.f32 %v4941, %v5053
          %5055 = vmatmul.f32.gmra.mxu0 %v2268
          %v5056 = vpop.f32.mrf.mxu0
          %v5057 = vadd.f32 %v4944, %v5056
          %5058 = vmatmul.f32.gmra.mxu0 %v2277
          %v5059 = vpop.f32.mrf.mxu0
          %v5060 = vadd.f32 %v4947, %v5059
          %5061 = vmatmul.f32.gmra.mxu0 %v2286
          %v5062 = vpop.f32.mrf.mxu0
          %v5063 = vadd.f32 %v4950, %v5062
          %5064 = vmatmul.f32.gmra.mxu0 %v2295
          %v5065 = vpop.f32.mrf.mxu0
          %v5066 = vadd.f32 %v4953, %v5065
          %5067 = vmatmul.f32.gmra.mxu0 %v2304
          %v5068 = vpop.f32.mrf.mxu0
          %v5069 = vadd.f32 %v4956, %v5068
          %5070 = vmatmul.f32.gmra.mxu0 %v2313
          %v5071 = vpop.f32.mrf.mxu0
          %v5072 = vadd.f32 %v4959, %v5071
          %5073 = vmatmul.f32.gmra.mxu0 %v2322
          %v5074 = vpop.f32.mrf.mxu0
          %v5075 = vadd.f32 %v4962, %v5074
          %5076 = vmatmul.f32.gmra.mxu0 %v2331
          %v5077 = vpop.f32.mrf.mxu0
          %v5078 = vadd.f32 %v4965, %v5077
          %5079 = vmatmul.f32.gmra.mxu0 %v2340
          %v5080 = vpop.f32.mrf.mxu0
          %v5081 = vadd.f32 %v4968, %v5080
          %5082 = vmatmul.f32.gmra.mxu0 %v2349
          %v5083 = vpop.f32.mrf.mxu0
          %v5084 = vadd.f32 %v4971, %v5083
          %5085 = vmatmul.f32.gmra.mxu0 %v2358
          %v5086 = vpop.f32.mrf.mxu0
          %v5087 = vadd.f32 %v4974, %v5086
          %5088 = vmatmul.f32.gmra.mxu0 %v2367
          %v5089 = vpop.f32.mrf.mxu0
          %v5090 = vadd.f32 %v4977, %v5089
          %5091 = vmatmul.f32.gmra.mxu0 %v2376
          %v5092 = vpop.f32.mrf.mxu0
          %v5093 = vadd.f32 %v4980, %v5092
          %5094 = vmatmul.f32.gmra.mxu0 %v2385
          %v5095 = vpop.f32.mrf.mxu0
          %v5096 = vadd.f32 %v4983, %v5095
          %5097 = vmatmul.f32.gmra.mxu0 %v2394
          %v5098 = vpop.f32.mrf.mxu0
          %v5099 = vadd.f32 %v4986, %v5098
          %5100 = vmatmul.f32.gmra.mxu0 %v2403
          %v5101 = vpop.f32.mrf.mxu0
          %v5102 = vadd.f32 %v4989, %v5101
          %5103 = vmatmul.f32.gmra.mxu0 %v2412
          %v5104 = vpop.f32.mrf.mxu0
          %v5105 = vadd.f32 %v4992, %v5104
          %5106 = vmatmul.f32.gmra.mxu0 %v2421
          %v5107 = vpop.f32.mrf.mxu0
          %v5108 = vadd.f32 %v4995, %v5107
          %5109 = vmatmul.f32.gmra.mxu0 %v2430
          %v5110 = vpop.f32.mrf.mxu0
          %v5111 = vadd.f32 %v4998, %v5110
          %5112 = vmatmul.f32.gmra.mxu0 %v2439
          %v5113 = vpop.f32.mrf.mxu0
          %v5114 = vadd.f32 %v5001, %v5113
          %5115 = vmatmul.f32.gmra.mxu0 %v2448
          %v5116 = vpop.f32.mrf.mxu0
          %v5117 = vadd.f32 %v5004, %v5116
          %5118 = vmatmul.f32.gmra.mxu0 %v2457
          %v5119 = vpop.f32.mrf.mxu0
          %v5120 = vadd.f32 %v5007, %v5119
          %5121 = vmatmul.f32.gmra.mxu0 %v2466
          %v5122 = vpop.f32.mrf.mxu0
          %v5123 = vadd.f32 %v5010, %v5122
          %5124 = vmatmul.f32.gmra.mxu0 %v2475
          %v5125 = vpop.f32.mrf.mxu0
          %v5126 = vadd.f32 %v5013, %v5125
          %5127 = vmatmul.f32.gmra.mxu0 %v2484
          %v5128 = vpop.f32.mrf.mxu0
          %v5129 = vadd.f32 %v5016, %v5128
          %5130 = vmatmul.f32.gmra.mxu0 %v2493
          %v5131 = vpop.f32.mrf.mxu0
          %v5132 = vadd.f32 %v5019, %v5131
          %5133 = vmatmul.f32.gmra.mxu0 %v2502
          %v5134 = vpop.f32.mrf.mxu0
          %v5135 = vadd.f32 %v5022, %v5134
          %5136 = vmatmul.f32.gmra.mxu0 %v2511
          %v5137 = vpop.f32.mrf.mxu0
          %v5138 = vadd.f32 %v5025, %v5137
          %5139 = vdwg.mxu0
          %s5140 = smul.u32 %s329, 288
          %s5141 = smul.addr %s5140, 8
          %s5142 = scalar_lea.vmem [#allocation3], %s5141
          %v5143 = vld [vmem:[%s5142] sm:$0xff]
          %v5144 = vld [vmem:[%s5142 + $0x8] sm:$0xff]
          %v5145 = vld [vmem:[%s5142 + $0x10] sm:$0xff]
          %v5146 = vld [vmem:[%s5142 + $0x18] sm:$0xff]
          %v5147 = vld [vmem:[%s5142 + $0x20] sm:$0xff]
          %v5148 = vld [vmem:[%s5142 + $0x28] sm:$0xff]
          %v5149 = vld [vmem:[%s5142 + $0x30] sm:$0xff]
          %v5150 = vld [vmem:[%s5142 + $0x38] sm:$0xff]
          %v5151 = vld [vmem:[%s5142 + $0x40] sm:$0xff]
          %v5152 = vld [vmem:[%s5142 + $0x48] sm:$0xff]
          %v5153 = vld [vmem:[%s5142 + $0x50] sm:$0xff]
          %v5154 = vld [vmem:[%s5142 + $0x58] sm:$0xff]
          %v5155 = vld [vmem:[%s5142 + $0x60] sm:$0xff]
          %v5156 = vld [vmem:[%s5142 + $0x68] sm:$0xff]
          %v5157 = vld [vmem:[%s5142 + $0x70] sm:$0xff]
          %v5158 = vld [vmem:[%s5142 + $0x78] sm:$0xff]
          %v5159 = vld [vmem:[%s5142 + $0x80] sm:$0xff]
          %v5160 = vld [vmem:[%s5142 + $0x88] sm:$0xff]
          %v5161 = vld [vmem:[%s5142 + $0x90] sm:$0xff]
          %v5162 = vld [vmem:[%s5142 + $0x98] sm:$0xff]
          %v5163 = vld [vmem:[%s5142 + $0xa0] sm:$0xff]
          %v5164 = vld [vmem:[%s5142 + $0xa8] sm:$0xff]
          %v5165 = vld [vmem:[%s5142 + $0xb0] sm:$0xff]
          %v5166 = vld [vmem:[%s5142 + $0xb8] sm:$0xff]
          %v5167 = vld [vmem:[%s5142 + $0xc0] sm:$0xff]
          %v5168 = vld [vmem:[%s5142 + $0xc8] sm:$0xff]
          %v5169 = vld [vmem:[%s5142 + $0xd0] sm:$0xff]
          %v5170 = vld [vmem:[%s5142 + $0xd8] sm:$0xff]
          %v5171 = vld [vmem:[%s5142 + $0xe0] sm:$0xff]
          %v5172 = vld [vmem:[%s5142 + $0xe8] sm:$0xff]
          %v5173 = vld [vmem:[%s5142 + $0xf0] sm:$0xff]
          %v5174 = vld [vmem:[%s5142 + $0xf8] sm:$0xff]
          %v5175 = vld [vmem:[%s5142 + $0x100] sm:$0xff]
          %v5176 = vld [vmem:[%s5142 + $0x108] sm:$0xff]
          %v5177 = vld [vmem:[%s5142 + $0x110] sm:$0xff]
          %v5178 = vld [vmem:[%s5142 + $0x118] sm:$0xff]
          %v5179 = vld [vmem:[%s5142 + $0x120] sm:$0xff]
          %v5180 = vld [vmem:[%s5142 + $0x128] sm:$0xff]
          %v5181 = vld [vmem:[%s5142 + $0x130] sm:$0xff]
          %v5182 = vld [vmem:[%s5142 + $0x138] sm:$0xff]
          %v5183 = vld [vmem:[%s5142 + $0x140] sm:$0xff]
          %v5184 = vld [vmem:[%s5142 + $0x148] sm:$0xff]
          %v5185 = vld [vmem:[%s5142 + $0x150] sm:$0xff]
          %v5186 = vld [vmem:[%s5142 + $0x158] sm:$0xff]
          %v5187 = vld [vmem:[%s5142 + $0x160] sm:$0xff]
          %v5188 = vld [vmem:[%s5142 + $0x168] sm:$0xff]
          %v5189 = vld [vmem:[%s5142 + $0x170] sm:$0xff]
          %v5190 = vld [vmem:[%s5142 + $0x178] sm:$0xff]
          %v5191 = vld [vmem:[%s5142 + $0x180] sm:$0xff]
          %v5192 = vld [vmem:[%s5142 + $0x188] sm:$0xff]
          %v5193 = vld [vmem:[%s5142 + $0x190] sm:$0xff]
          %v5194 = vld [vmem:[%s5142 + $0x198] sm:$0xff]
          %v5195 = vld [vmem:[%s5142 + $0x1a0] sm:$0xff]
          %v5196 = vld [vmem:[%s5142 + $0x1a8] sm:$0xff]
          %v5197 = vld [vmem:[%s5142 + $0x1b0] sm:$0xff]
          %v5198 = vld [vmem:[%s5142 + $0x1b8] sm:$0xff]
          %v5199 = vld [vmem:[%s5142 + $0x1c0] sm:$0xff]
          %v5200 = vld [vmem:[%s5142 + $0x1c8] sm:$0xff]
          %v5201 = vld [vmem:[%s5142 + $0x1d0] sm:$0xff]
          %v5202 = vld [vmem:[%s5142 + $0x1d8] sm:$0xff]
          %v5203 = vld [vmem:[%s5142 + $0x1e0] sm:$0xff]
          %v5204 = vld [vmem:[%s5142 + $0x1e8] sm:$0xff]
          %v5205 = vld [vmem:[%s5142 + $0x1f0] sm:$0xff]
          %v5206 = vld [vmem:[%s5142 + $0x1f8] sm:$0xff]
          %v5207 = vld [vmem:[%s5142 + $0x200] sm:$0xff]
          %v5208 = vld [vmem:[%s5142 + $0x208] sm:$0xff]
          %v5209 = vld [vmem:[%s5142 + $0x210] sm:$0xff]
          %v5210 = vld [vmem:[%s5142 + $0x218] sm:$0xff]
          %v5211 = vld [vmem:[%s5142 + $0x220] sm:$0xff]
          %v5212 = vld [vmem:[%s5142 + $0x228] sm:$0xff]
          %v5213 = vld [vmem:[%s5142 + $0x230] sm:$0xff]
          %v5214 = vld [vmem:[%s5142 + $0x238] sm:$0xff]
          %v5215 = vld [vmem:[%s5142 + $0x240] sm:$0xff]
          %v5216 = vld [vmem:[%s5142 + $0x248] sm:$0xff]
          %v5217 = vld [vmem:[%s5142 + $0x250] sm:$0xff]
          %v5218 = vld [vmem:[%s5142 + $0x258] sm:$0xff]
          %v5219 = vld [vmem:[%s5142 + $0x260] sm:$0xff]
          %v5220 = vld [vmem:[%s5142 + $0x268] sm:$0xff]
          %v5221 = vld [vmem:[%s5142 + $0x270] sm:$0xff]
          %v5222 = vld [vmem:[%s5142 + $0x278] sm:$0xff]
          %v5223 = vld [vmem:[%s5142 + $0x280] sm:$0xff]
          %v5224 = vld [vmem:[%s5142 + $0x288] sm:$0xff]
          %v5225 = vld [vmem:[%s5142 + $0x290] sm:$0xff]
          %v5226 = vld [vmem:[%s5142 + $0x298] sm:$0xff]
          %v5227 = vld [vmem:[%s5142 + $0x2a0] sm:$0xff]
          %v5228 = vld [vmem:[%s5142 + $0x2a8] sm:$0xff]
          %v5229 = vld [vmem:[%s5142 + $0x2b0] sm:$0xff]
          %v5230 = vld [vmem:[%s5142 + $0x2b8] sm:$0xff]
          %v5231 = vld [vmem:[%s5142 + $0x2c0] sm:$0xff]
          %v5232 = vld [vmem:[%s5142 + $0x2c8] sm:$0xff]
          %v5233 = vld [vmem:[%s5142 + $0x2d0] sm:$0xff]
          %v5234 = vld [vmem:[%s5142 + $0x2d8] sm:$0xff]
          %v5235 = vld [vmem:[%s5142 + $0x2e0] sm:$0xff]
          %v5236 = vld [vmem:[%s5142 + $0x2e8] sm:$0xff]
          %v5237 = vld [vmem:[%s5142 + $0x2f0] sm:$0xff]
          %v5238 = vld [vmem:[%s5142 + $0x2f8] sm:$0xff]
          %v5239 = vld [vmem:[%s5142 + $0x300] sm:$0xff]
          %v5240 = vld [vmem:[%s5142 + $0x308] sm:$0xff]
          %v5241 = vld [vmem:[%s5142 + $0x310] sm:$0xff]
          %v5242 = vld [vmem:[%s5142 + $0x318] sm:$0xff]
          %v5243 = vld [vmem:[%s5142 + $0x320] sm:$0xff]
          %v5244 = vld [vmem:[%s5142 + $0x328] sm:$0xff]
          %v5245 = vld [vmem:[%s5142 + $0x330] sm:$0xff]
          %v5246 = vld [vmem:[%s5142 + $0x338] sm:$0xff]
          %v5247 = vld [vmem:[%s5142 + $0x340] sm:$0xff]
          %v5248 = vld [vmem:[%s5142 + $0x348] sm:$0xff]
          %v5249 = vld [vmem:[%s5142 + $0x350] sm:$0xff]
          %v5250 = vld [vmem:[%s5142 + $0x358] sm:$0xff]
          %v5251 = vld [vmem:[%s5142 + $0x360] sm:$0xff]
          %v5252 = vld [vmem:[%s5142 + $0x368] sm:$0xff]
          %v5253 = vld [vmem:[%s5142 + $0x370] sm:$0xff]
          %v5254 = vld [vmem:[%s5142 + $0x378] sm:$0xff]
          %v5255 = vld [vmem:[%s5142 + $0x380] sm:$0xff]
          %v5256 = vld [vmem:[%s5142 + $0x388] sm:$0xff]
          %v5257 = vld [vmem:[%s5142 + $0x390] sm:$0xff]
          %v5258 = vld [vmem:[%s5142 + $0x398] sm:$0xff]
          %v5259 = vld [vmem:[%s5142 + $0x3a0] sm:$0xff]
          %v5260 = vld [vmem:[%s5142 + $0x3a8] sm:$0xff]
          %v5261 = vld [vmem:[%s5142 + $0x3b0] sm:$0xff]
          %v5262 = vld [vmem:[%s5142 + $0x3b8] sm:$0xff]
          %v5263 = vld [vmem:[%s5142 + $0x3c0] sm:$0xff]
          %v5264 = vld [vmem:[%s5142 + $0x3c8] sm:$0xff]
          %v5265 = vld [vmem:[%s5142 + $0x3d0] sm:$0xff]
          %v5266 = vld [vmem:[%s5142 + $0x3d8] sm:$0xff]
          %v5267 = vld [vmem:[%s5142 + $0x3e0] sm:$0xff]
          %v5268 = vld [vmem:[%s5142 + $0x3e8] sm:$0xff]
          %v5269 = vld [vmem:[%s5142 + $0x3f0] sm:$0xff]
          %v5270 = vld [vmem:[%s5142 + $0x3f8] sm:$0xff]
          %v5271 = vld [vmem:[%s5142 + $0x400] sm:$0xff]
          %v5272 = vld [vmem:[%s5142 + $0x408] sm:$0xff]
          %v5273 = vld [vmem:[%s5142 + $0x410] sm:$0xff]
          %v5274 = vld [vmem:[%s5142 + $0x418] sm:$0xff]
          %v5275 = vld [vmem:[%s5142 + $0x420] sm:$0xff]
          %v5276 = vld [vmem:[%s5142 + $0x428] sm:$0xff]
          %v5277 = vld [vmem:[%s5142 + $0x430] sm:$0xff]
          %v5278 = vld [vmem:[%s5142 + $0x438] sm:$0xff]
          %v5279 = vld [vmem:[%s5142 + $0x440] sm:$0xff]
          %v5280 = vld [vmem:[%s5142 + $0x448] sm:$0xff]
          %v5281 = vld [vmem:[%s5142 + $0x450] sm:$0xff]
          %v5282 = vld [vmem:[%s5142 + $0x458] sm:$0xff]
          %v5283 = vld [vmem:[%s5142 + $0x460] sm:$0xff]
          %v5284 = vld [vmem:[%s5142 + $0x468] sm:$0xff]
          %v5285 = vld [vmem:[%s5142 + $0x470] sm:$0xff]
          %v5286 = vld [vmem:[%s5142 + $0x478] sm:$0xff]
          %v5287 = vld [vmem:[%s5142 + $0x480] sm:$0xff]
          %v5288 = vld [vmem:[%s5142 + $0x488] sm:$0xff]
          %v5289 = vld [vmem:[%s5142 + $0x490] sm:$0xff]
          %v5290 = vld [vmem:[%s5142 + $0x498] sm:$0xff]
          %v5291 = vld [vmem:[%s5142 + $0x4a0] sm:$0xff]
          %v5292 = vld [vmem:[%s5142 + $0x4a8] sm:$0xff]
          %v5293 = vld [vmem:[%s5142 + $0x4b0] sm:$0xff]
          %v5294 = vld [vmem:[%s5142 + $0x4b8] sm:$0xff]
          %v5295 = vld [vmem:[%s5142 + $0x4c0] sm:$0xff]
          %v5296 = vld [vmem:[%s5142 + $0x4c8] sm:$0xff]
          %v5297 = vld [vmem:[%s5142 + $0x4d0] sm:$0xff]
          %v5298 = vld [vmem:[%s5142 + $0x4d8] sm:$0xff]
          %v5299 = vld [vmem:[%s5142 + $0x4e0] sm:$0xff]
          %v5300 = vld [vmem:[%s5142 + $0x4e8] sm:$0xff]
          %v5301 = vld [vmem:[%s5142 + $0x4f0] sm:$0xff]
          %v5302 = vld [vmem:[%s5142 + $0x4f8] sm:$0xff]
          %v5303 = vld [vmem:[%s5142 + $0x500] sm:$0xff]
          %v5304 = vld [vmem:[%s5142 + $0x508] sm:$0xff]
          %v5305 = vld [vmem:[%s5142 + $0x510] sm:$0xff]
          %v5306 = vld [vmem:[%s5142 + $0x518] sm:$0xff]
          %v5307 = vld [vmem:[%s5142 + $0x520] sm:$0xff]
          %v5308 = vld [vmem:[%s5142 + $0x528] sm:$0xff]
          %v5309 = vld [vmem:[%s5142 + $0x530] sm:$0xff]
          %v5310 = vld [vmem:[%s5142 + $0x538] sm:$0xff]
          %v5311 = vld [vmem:[%s5142 + $0x540] sm:$0xff]
          %v5312 = vld [vmem:[%s5142 + $0x548] sm:$0xff]
          %v5313 = vld [vmem:[%s5142 + $0x550] sm:$0xff]
          %v5314 = vld [vmem:[%s5142 + $0x558] sm:$0xff]
          %v5315 = vld [vmem:[%s5142 + $0x560] sm:$0xff]
          %v5316 = vld [vmem:[%s5142 + $0x568] sm:$0xff]
          %v5317 = vld [vmem:[%s5142 + $0x570] sm:$0xff]
          %v5318 = vld [vmem:[%s5142 + $0x578] sm:$0xff]
          %v5319 = vld [vmem:[%s5142 + $0x580] sm:$0xff]
          %v5320 = vld [vmem:[%s5142 + $0x588] sm:$0xff]
          %v5321 = vld [vmem:[%s5142 + $0x590] sm:$0xff]
          %v5322 = vld [vmem:[%s5142 + $0x598] sm:$0xff]
          %v5323 = vld [vmem:[%s5142 + $0x5a0] sm:$0xff]
          %v5324 = vld [vmem:[%s5142 + $0x5a8] sm:$0xff]
          %v5325 = vld [vmem:[%s5142 + $0x5b0] sm:$0xff]
          %v5326 = vld [vmem:[%s5142 + $0x5b8] sm:$0xff]
          %v5327 = vld [vmem:[%s5142 + $0x5c0] sm:$0xff]
          %v5328 = vld [vmem:[%s5142 + $0x5c8] sm:$0xff]
          %v5329 = vld [vmem:[%s5142 + $0x5d0] sm:$0xff]
          %v5330 = vld [vmem:[%s5142 + $0x5d8] sm:$0xff]
          %v5331 = vld [vmem:[%s5142 + $0x5e0] sm:$0xff]
          %v5332 = vld [vmem:[%s5142 + $0x5e8] sm:$0xff]
          %v5333 = vld [vmem:[%s5142 + $0x5f0] sm:$0xff]
          %v5334 = vld [vmem:[%s5142 + $0x5f8] sm:$0xff]
          %v5335 = vld [vmem:[%s5142 + $0x600] sm:$0xff]
          %v5336 = vld [vmem:[%s5142 + $0x608] sm:$0xff]
          %v5337 = vld [vmem:[%s5142 + $0x610] sm:$0xff]
          %v5338 = vld [vmem:[%s5142 + $0x618] sm:$0xff]
          %v5339 = vld [vmem:[%s5142 + $0x620] sm:$0xff]
          %v5340 = vld [vmem:[%s5142 + $0x628] sm:$0xff]
          %v5341 = vld [vmem:[%s5142 + $0x630] sm:$0xff]
          %v5342 = vld [vmem:[%s5142 + $0x638] sm:$0xff]
          %v5343 = vld [vmem:[%s5142 + $0x640] sm:$0xff]
          %v5344 = vld [vmem:[%s5142 + $0x648] sm:$0xff]
          %v5345 = vld [vmem:[%s5142 + $0x650] sm:$0xff]
          %v5346 = vld [vmem:[%s5142 + $0x658] sm:$0xff]
          %v5347 = vld [vmem:[%s5142 + $0x660] sm:$0xff]
          %v5348 = vld [vmem:[%s5142 + $0x668] sm:$0xff]
          %v5349 = vld [vmem:[%s5142 + $0x670] sm:$0xff]
          %v5350 = vld [vmem:[%s5142 + $0x678] sm:$0xff]
          %v5351 = vld [vmem:[%s5142 + $0x680] sm:$0xff]
          %v5352 = vld [vmem:[%s5142 + $0x688] sm:$0xff]
          %v5353 = vld [vmem:[%s5142 + $0x690] sm:$0xff]
          %v5354 = vld [vmem:[%s5142 + $0x698] sm:$0xff]
          %v5355 = vld [vmem:[%s5142 + $0x6a0] sm:$0xff]
          %v5356 = vld [vmem:[%s5142 + $0x6a8] sm:$0xff]
          %v5357 = vld [vmem:[%s5142 + $0x6b0] sm:$0xff]
          %v5358 = vld [vmem:[%s5142 + $0x6b8] sm:$0xff]
          %v5359 = vld [vmem:[%s5142 + $0x6c0] sm:$0xff]
          %v5360 = vld [vmem:[%s5142 + $0x6c8] sm:$0xff]
          %v5361 = vld [vmem:[%s5142 + $0x6d0] sm:$0xff]
          %v5362 = vld [vmem:[%s5142 + $0x6d8] sm:$0xff]
          %v5363 = vld [vmem:[%s5142 + $0x6e0] sm:$0xff]
          %v5364 = vld [vmem:[%s5142 + $0x6e8] sm:$0xff]
          %v5365 = vld [vmem:[%s5142 + $0x6f0] sm:$0xff]
          %v5366 = vld [vmem:[%s5142 + $0x6f8] sm:$0xff]
          %v5367 = vld [vmem:[%s5142 + $0x700] sm:$0xff]
          %v5368 = vld [vmem:[%s5142 + $0x708] sm:$0xff]
          %v5369 = vld [vmem:[%s5142 + $0x710] sm:$0xff]
          %v5370 = vld [vmem:[%s5142 + $0x718] sm:$0xff]
          %v5371 = vld [vmem:[%s5142 + $0x720] sm:$0xff]
          %v5372 = vld [vmem:[%s5142 + $0x728] sm:$0xff]
          %v5373 = vld [vmem:[%s5142 + $0x730] sm:$0xff]
          %v5374 = vld [vmem:[%s5142 + $0x738] sm:$0xff]
          %v5375 = vld [vmem:[%s5142 + $0x740] sm:$0xff]
          %v5376 = vld [vmem:[%s5142 + $0x748] sm:$0xff]
          %v5377 = vld [vmem:[%s5142 + $0x750] sm:$0xff]
          %v5378 = vld [vmem:[%s5142 + $0x758] sm:$0xff]
          %v5379 = vld [vmem:[%s5142 + $0x760] sm:$0xff]
          %v5380 = vld [vmem:[%s5142 + $0x768] sm:$0xff]
          %v5381 = vld [vmem:[%s5142 + $0x770] sm:$0xff]
          %v5382 = vld [vmem:[%s5142 + $0x778] sm:$0xff]
          %v5383 = vld [vmem:[%s5142 + $0x780] sm:$0xff]
          %v5384 = vld [vmem:[%s5142 + $0x788] sm:$0xff]
          %v5385 = vld [vmem:[%s5142 + $0x790] sm:$0xff]
          %v5386 = vld [vmem:[%s5142 + $0x798] sm:$0xff]
          %v5387 = vld [vmem:[%s5142 + $0x7a0] sm:$0xff]
          %v5388 = vld [vmem:[%s5142 + $0x7a8] sm:$0xff]
          %v5389 = vld [vmem:[%s5142 + $0x7b0] sm:$0xff]
          %v5390 = vld [vmem:[%s5142 + $0x7b8] sm:$0xff]
          %v5391 = vld [vmem:[%s5142 + $0x7c0] sm:$0xff]
          %v5392 = vld [vmem:[%s5142 + $0x7c8] sm:$0xff]
          %v5393 = vld [vmem:[%s5142 + $0x7d0] sm:$0xff]
          %v5394 = vld [vmem:[%s5142 + $0x7d8] sm:$0xff]
          %v5395 = vld [vmem:[%s5142 + $0x7e0] sm:$0xff]
          %v5396 = vld [vmem:[%s5142 + $0x7e8] sm:$0xff]
          %v5397 = vld [vmem:[%s5142 + $0x7f0] sm:$0xff]
          %v5398 = vld [vmem:[%s5142 + $0x7f8] sm:$0xff]
          %v5399 = vld [vmem:[%s5142 + $0x800] sm:$0xff]
          %v5400 = vld [vmem:[%s5142 + $0x808] sm:$0xff]
          %v5401 = vld [vmem:[%s5142 + $0x810] sm:$0xff]
          %v5402 = vld [vmem:[%s5142 + $0x818] sm:$0xff]
          %v5403 = vld [vmem:[%s5142 + $0x820] sm:$0xff]
          %v5404 = vld [vmem:[%s5142 + $0x828] sm:$0xff]
          %v5405 = vld [vmem:[%s5142 + $0x830] sm:$0xff]
          %v5406 = vld [vmem:[%s5142 + $0x838] sm:$0xff]
          %v5407 = vld [vmem:[%s5142 + $0x840] sm:$0xff]
          %v5408 = vld [vmem:[%s5142 + $0x848] sm:$0xff]
          %v5409 = vld [vmem:[%s5142 + $0x850] sm:$0xff]
          %v5410 = vld [vmem:[%s5142 + $0x858] sm:$0xff]
          %v5411 = vld [vmem:[%s5142 + $0x860] sm:$0xff]
          %v5412 = vld [vmem:[%s5142 + $0x868] sm:$0xff]
          %v5413 = vld [vmem:[%s5142 + $0x870] sm:$0xff]
          %v5414 = vld [vmem:[%s5142 + $0x878] sm:$0xff]
          %v5415 = vld [vmem:[%s5142 + $0x880] sm:$0xff]
          %v5416 = vld [vmem:[%s5142 + $0x888] sm:$0xff]
          %v5417 = vld [vmem:[%s5142 + $0x890] sm:$0xff]
          %v5418 = vld [vmem:[%s5142 + $0x898] sm:$0xff]
          %v5419 = vld [vmem:[%s5142 + $0x8a0] sm:$0xff]
          %v5420 = vld [vmem:[%s5142 + $0x8a8] sm:$0xff]
          %v5421 = vld [vmem:[%s5142 + $0x8b0] sm:$0xff]
          %v5422 = vld [vmem:[%s5142 + $0x8b8] sm:$0xff]
          %v5423 = vld [vmem:[%s5142 + $0x8c0] sm:$0xff]
          %v5424 = vld [vmem:[%s5142 + $0x8c8] sm:$0xff]
          %v5425 = vld [vmem:[%s5142 + $0x8d0] sm:$0xff]
          %v5426 = vld [vmem:[%s5142 + $0x8d8] sm:$0xff]
          %v5427 = vld [vmem:[%s5142 + $0x8e0] sm:$0xff]
          %v5428 = vld [vmem:[%s5142 + $0x8e8] sm:$0xff]
          %v5429 = vld [vmem:[%s5142 + $0x8f0] sm:$0xff]
          %v5430 = vld [vmem:[%s5142 + $0x8f8] sm:$0xff]
          %s5431 = scalar_lea.vmem %s1, 2304
          %v5432 = vld [vmem:[%s5431] sm:$0xff]
          %v5433 = vld [vmem:[%s5431 + $0x8] sm:$0xff]
          %v5434 = vld [vmem:[%s5431 + $0x10] sm:$0xff]
          %v5435 = vld [vmem:[%s5431 + $0x18] sm:$0xff]
          %v5436 = vld [vmem:[%s5431 + $0x20] sm:$0xff]
          %v5437 = vld [vmem:[%s5431 + $0x28] sm:$0xff]
          %v5438 = vld [vmem:[%s5431 + $0x30] sm:$0xff]
          %v5439 = vld [vmem:[%s5431 + $0x38] sm:$0xff]
          %v5440 = vld [vmem:[%s5431 + $0x40] sm:$0xff]
          %v5441 = vld [vmem:[%s5431 + $0x48] sm:$0xff]
          %v5442 = vld [vmem:[%s5431 + $0x50] sm:$0xff]
          %v5443 = vld [vmem:[%s5431 + $0x58] sm:$0xff]
          %v5444 = vld [vmem:[%s5431 + $0x60] sm:$0xff]
          %v5445 = vld [vmem:[%s5431 + $0x68] sm:$0xff]
          %v5446 = vld [vmem:[%s5431 + $0x70] sm:$0xff]
          %v5447 = vld [vmem:[%s5431 + $0x78] sm:$0xff]
          %v5448 = vld [vmem:[%s5431 + $0x80] sm:$0xff]
          %v5449 = vld [vmem:[%s5431 + $0x88] sm:$0xff]
          %v5450 = vld [vmem:[%s5431 + $0x90] sm:$0xff]
          %v5451 = vld [vmem:[%s5431 + $0x98] sm:$0xff]
          %v5452 = vld [vmem:[%s5431 + $0xa0] sm:$0xff]
          %v5453 = vld [vmem:[%s5431 + $0xa8] sm:$0xff]
          %v5454 = vld [vmem:[%s5431 + $0xb0] sm:$0xff]
          %v5455 = vld [vmem:[%s5431 + $0xb8] sm:$0xff]
          %v5456 = vld [vmem:[%s5431 + $0xc0] sm:$0xff]
          %v5457 = vld [vmem:[%s5431 + $0xc8] sm:$0xff]
          %v5458 = vld [vmem:[%s5431 + $0xd0] sm:$0xff]
          %v5459 = vld [vmem:[%s5431 + $0xd8] sm:$0xff]
          %v5460 = vld [vmem:[%s5431 + $0xe0] sm:$0xff]
          %v5461 = vld [vmem:[%s5431 + $0xe8] sm:$0xff]
          %v5462 = vld [vmem:[%s5431 + $0xf0] sm:$0xff]
          %v5463 = vld [vmem:[%s5431 + $0xf8] sm:$0xff]
          %v5464 = vld [vmem:[%s5431 + $0x100] sm:$0xff]
          %v5465 = vld [vmem:[%s5431 + $0x108] sm:$0xff]
          %v5466 = vld [vmem:[%s5431 + $0x110] sm:$0xff]
          %v5467 = vld [vmem:[%s5431 + $0x118] sm:$0xff]
          %v5468 = vld [vmem:[%s5431 + $0x120] sm:$0xff]
          %v5469 = vld [vmem:[%s5431 + $0x128] sm:$0xff]
          %v5470 = vld [vmem:[%s5431 + $0x130] sm:$0xff]
          %v5471 = vld [vmem:[%s5431 + $0x138] sm:$0xff]
          %v5472 = vld [vmem:[%s5431 + $0x140] sm:$0xff]
          %v5473 = vld [vmem:[%s5431 + $0x148] sm:$0xff]
          %v5474 = vld [vmem:[%s5431 + $0x150] sm:$0xff]
          %v5475 = vld [vmem:[%s5431 + $0x158] sm:$0xff]
          %v5476 = vld [vmem:[%s5431 + $0x160] sm:$0xff]
          %v5477 = vld [vmem:[%s5431 + $0x168] sm:$0xff]
          %v5478 = vld [vmem:[%s5431 + $0x170] sm:$0xff]
          %v5479 = vld [vmem:[%s5431 + $0x178] sm:$0xff]
          %v5480 = vld [vmem:[%s5431 + $0x180] sm:$0xff]
          %v5481 = vld [vmem:[%s5431 + $0x188] sm:$0xff]
          %v5482 = vld [vmem:[%s5431 + $0x190] sm:$0xff]
          %v5483 = vld [vmem:[%s5431 + $0x198] sm:$0xff]
          %v5484 = vld [vmem:[%s5431 + $0x1a0] sm:$0xff]
          %v5485 = vld [vmem:[%s5431 + $0x1a8] sm:$0xff]
          %v5486 = vld [vmem:[%s5431 + $0x1b0] sm:$0xff]
          %v5487 = vld [vmem:[%s5431 + $0x1b8] sm:$0xff]
          %v5488 = vld [vmem:[%s5431 + $0x1c0] sm:$0xff]
          %v5489 = vld [vmem:[%s5431 + $0x1c8] sm:$0xff]
          %v5490 = vld [vmem:[%s5431 + $0x1d0] sm:$0xff]
          %v5491 = vld [vmem:[%s5431 + $0x1d8] sm:$0xff]
          %v5492 = vld [vmem:[%s5431 + $0x1e0] sm:$0xff]
          %v5493 = vld [vmem:[%s5431 + $0x1e8] sm:$0xff]
          %v5494 = vld [vmem:[%s5431 + $0x1f0] sm:$0xff]
          %v5495 = vld [vmem:[%s5431 + $0x1f8] sm:$0xff]
          %v5496 = vld [vmem:[%s5431 + $0x200] sm:$0xff]
          %v5497 = vld [vmem:[%s5431 + $0x208] sm:$0xff]
          %v5498 = vld [vmem:[%s5431 + $0x210] sm:$0xff]
          %v5499 = vld [vmem:[%s5431 + $0x218] sm:$0xff]
          %v5500 = vld [vmem:[%s5431 + $0x220] sm:$0xff]
          %v5501 = vld [vmem:[%s5431 + $0x228] sm:$0xff]
          %v5502 = vld [vmem:[%s5431 + $0x230] sm:$0xff]
          %v5503 = vld [vmem:[%s5431 + $0x238] sm:$0xff]
          %v5504 = vld [vmem:[%s5431 + $0x240] sm:$0xff]
          %v5505 = vld [vmem:[%s5431 + $0x248] sm:$0xff]
          %v5506 = vld [vmem:[%s5431 + $0x250] sm:$0xff]
          %v5507 = vld [vmem:[%s5431 + $0x258] sm:$0xff]
          %v5508 = vld [vmem:[%s5431 + $0x260] sm:$0xff]
          %v5509 = vld [vmem:[%s5431 + $0x268] sm:$0xff]
          %v5510 = vld [vmem:[%s5431 + $0x270] sm:$0xff]
          %v5511 = vld [vmem:[%s5431 + $0x278] sm:$0xff]
          %v5512 = vld [vmem:[%s5431 + $0x280] sm:$0xff]
          %v5513 = vld [vmem:[%s5431 + $0x288] sm:$0xff]
          %v5514 = vld [vmem:[%s5431 + $0x290] sm:$0xff]
          %v5515 = vld [vmem:[%s5431 + $0x298] sm:$0xff]
          %v5516 = vld [vmem:[%s5431 + $0x2a0] sm:$0xff]
          %v5517 = vld [vmem:[%s5431 + $0x2a8] sm:$0xff]
          %v5518 = vld [vmem:[%s5431 + $0x2b0] sm:$0xff]
          %v5519 = vld [vmem:[%s5431 + $0x2b8] sm:$0xff]
          %v5520 = vld [vmem:[%s5431 + $0x2c0] sm:$0xff]
          %v5521 = vld [vmem:[%s5431 + $0x2c8] sm:$0xff]
          %v5522 = vld [vmem:[%s5431 + $0x2d0] sm:$0xff]
          %v5523 = vld [vmem:[%s5431 + $0x2d8] sm:$0xff]
          %v5524 = vld [vmem:[%s5431 + $0x2e0] sm:$0xff]
          %v5525 = vld [vmem:[%s5431 + $0x2e8] sm:$0xff]
          %v5526 = vld [vmem:[%s5431 + $0x2f0] sm:$0xff]
          %v5527 = vld [vmem:[%s5431 + $0x2f8] sm:$0xff]
          %v5528 = vld [vmem:[%s5431 + $0x300] sm:$0xff]
          %v5529 = vld [vmem:[%s5431 + $0x308] sm:$0xff]
          %v5530 = vld [vmem:[%s5431 + $0x310] sm:$0xff]
          %v5531 = vld [vmem:[%s5431 + $0x318] sm:$0xff]
          %v5532 = vld [vmem:[%s5431 + $0x320] sm:$0xff]
          %v5533 = vld [vmem:[%s5431 + $0x328] sm:$0xff]
          %v5534 = vld [vmem:[%s5431 + $0x330] sm:$0xff]
          %v5535 = vld [vmem:[%s5431 + $0x338] sm:$0xff]
          %v5536 = vld [vmem:[%s5431 + $0x340] sm:$0xff]
          %v5537 = vld [vmem:[%s5431 + $0x348] sm:$0xff]
          %v5538 = vld [vmem:[%s5431 + $0x350] sm:$0xff]
          %v5539 = vld [vmem:[%s5431 + $0x358] sm:$0xff]
          %v5540 = vld [vmem:[%s5431 + $0x360] sm:$0xff]
          %v5541 = vld [vmem:[%s5431 + $0x368] sm:$0xff]
          %v5542 = vld [vmem:[%s5431 + $0x370] sm:$0xff]
          %v5543 = vld [vmem:[%s5431 + $0x378] sm:$0xff]
          %v5544 = vld [vmem:[%s5431 + $0x380] sm:$0xff]
          %v5545 = vld [vmem:[%s5431 + $0x388] sm:$0xff]
          %v5546 = vld [vmem:[%s5431 + $0x390] sm:$0xff]
          %v5547 = vld [vmem:[%s5431 + $0x398] sm:$0xff]
          %v5548 = vld [vmem:[%s5431 + $0x3a0] sm:$0xff]
          %v5549 = vld [vmem:[%s5431 + $0x3a8] sm:$0xff]
          %v5550 = vld [vmem:[%s5431 + $0x3b0] sm:$0xff]
          %v5551 = vld [vmem:[%s5431 + $0x3b8] sm:$0xff]
          %v5552 = vld [vmem:[%s5431 + $0x3c0] sm:$0xff]
          %v5553 = vld [vmem:[%s5431 + $0x3c8] sm:$0xff]
          %v5554 = vld [vmem:[%s5431 + $0x3d0] sm:$0xff]
          %v5555 = vld [vmem:[%s5431 + $0x3d8] sm:$0xff]
          %v5556 = vld [vmem:[%s5431 + $0x3e0] sm:$0xff]
          %v5557 = vld [vmem:[%s5431 + $0x3e8] sm:$0xff]
          %v5558 = vld [vmem:[%s5431 + $0x3f0] sm:$0xff]
          %v5559 = vld [vmem:[%s5431 + $0x3f8] sm:$0xff]
          %v5560 = vld [vmem:[%s5431 + $0x400] sm:$0xff]
          %v5561 = vld [vmem:[%s5431 + $0x408] sm:$0xff]
          %v5562 = vld [vmem:[%s5431 + $0x410] sm:$0xff]
          %v5563 = vld [vmem:[%s5431 + $0x418] sm:$0xff]
          %v5564 = vld [vmem:[%s5431 + $0x420] sm:$0xff]
          %v5565 = vld [vmem:[%s5431 + $0x428] sm:$0xff]
          %v5566 = vld [vmem:[%s5431 + $0x430] sm:$0xff]
          %v5567 = vld [vmem:[%s5431 + $0x438] sm:$0xff]
          %v5568 = vld [vmem:[%s5431 + $0x440] sm:$0xff]
          %v5569 = vld [vmem:[%s5431 + $0x448] sm:$0xff]
          %v5570 = vld [vmem:[%s5431 + $0x450] sm:$0xff]
          %v5571 = vld [vmem:[%s5431 + $0x458] sm:$0xff]
          %v5572 = vld [vmem:[%s5431 + $0x460] sm:$0xff]
          %v5573 = vld [vmem:[%s5431 + $0x468] sm:$0xff]
          %v5574 = vld [vmem:[%s5431 + $0x470] sm:$0xff]
          %v5575 = vld [vmem:[%s5431 + $0x478] sm:$0xff]
          %5576 = vmatpush.msra.mxu0 %v5447
          %5577 = vmatpush.msra.mxu0 %v5446
          %5578 = vmatpush.msra.mxu0 %v5445
          %5579 = vmatpush.msra.mxu0 %v5444
          %5580 = vmatpush.msra.mxu0 %v5443
          %5581 = vmatpush.msra.mxu0 %v5442
          %5582 = vmatpush.msra.mxu0 %v5441
          %5583 = vmatpush.msra.mxu0 %v5440
          %5584 = vmatpush.msra.mxu0 %v5439
          %5585 = vmatpush.msra.mxu0 %v5438
          %5586 = vmatpush.msra.mxu0 %v5437
          %5587 = vmatpush.msra.mxu0 %v5436
          %5588 = vmatpush.msra.mxu0 %v5435
          %5589 = vmatpush.msra.mxu0 %v5434
          %5590 = vmatpush.msra.mxu0 %v5433
          %5591 = vmatpush.msra.mxu0 %v5432
          %5592 = vmatmul.f32.gmra.mxu0 %v5143
          %v5593 = vpop.f32.mrf.mxu0
          %v5594 = vadd.f32 0.0, %v5593
          %5595 = vmatmul.f32.gmra.mxu0 %v5152
          %v5596 = vpop.f32.mrf.mxu0
          %v5597 = vadd.f32 0.0, %v5596
          %5598 = vmatmul.f32.gmra.mxu0 %v5161
          %v5599 = vpop.f32.mrf.mxu0
          %v5600 = vadd.f32 0.0, %v5599
          %5601 = vmatmul.f32.gmra.mxu0 %v5170
          %v5602 = vpop.f32.mrf.mxu0
          %v5603 = vadd.f32 0.0, %v5602
          %5604 = vmatmul.f32.gmra.mxu0 %v5179
          %v5605 = vpop.f32.mrf.mxu0
          %v5606 = vadd.f32 0.0, %v5605
          %5607 = vmatmul.f32.gmra.mxu0 %v5188
          %v5608 = vpop.f32.mrf.mxu0
          %v5609 = vadd.f32 0.0, %v5608
          %5610 = vmatmul.f32.gmra.mxu0 %v5197
          %v5611 = vpop.f32.mrf.mxu0
          %v5612 = vadd.f32 0.0, %v5611
          %5613 = vmatmul.f32.gmra.mxu0 %v5206
          %v5614 = vpop.f32.mrf.mxu0
          %v5615 = vadd.f32 0.0, %v5614
          %5616 = vmatmul.f32.gmra.mxu0 %v5215
          %v5617 = vpop.f32.mrf.mxu0
          %v5618 = vadd.f32 0.0, %v5617
          %5619 = vmatmul.f32.gmra.mxu0 %v5224
          %v5620 = vpop.f32.mrf.mxu0
          %v5621 = vadd.f32 0.0, %v5620
          %5622 = vmatmul.f32.gmra.mxu0 %v5233
          %v5623 = vpop.f32.mrf.mxu0
          %v5624 = vadd.f32 0.0, %v5623
          %5625 = vmatmul.f32.gmra.mxu0 %v5242
          %v5626 = vpop.f32.mrf.mxu0
          %v5627 = vadd.f32 0.0, %v5626
          %5628 = vmatmul.f32.gmra.mxu0 %v5251
          %v5629 = vpop.f32.mrf.mxu0
          %v5630 = vadd.f32 0.0, %v5629
          %5631 = vmatmul.f32.gmra.mxu0 %v5260
          %v5632 = vpop.f32.mrf.mxu0
          %v5633 = vadd.f32 0.0, %v5632
          %5634 = vmatmul.f32.gmra.mxu0 %v5269
          %v5635 = vpop.f32.mrf.mxu0
          %v5636 = vadd.f32 0.0, %v5635
          %5637 = vmatmul.f32.gmra.mxu0 %v5278
          %v5638 = vpop.f32.mrf.mxu0
          %v5639 = vadd.f32 0.0, %v5638
          %5640 = vmatmul.f32.gmra.mxu0 %v5287
          %v5641 = vpop.f32.mrf.mxu0
          %v5642 = vadd.f32 0.0, %v5641
          %5643 = vmatmul.f32.gmra.mxu0 %v5296
          %v5644 = vpop.f32.mrf.mxu0
          %v5645 = vadd.f32 0.0, %v5644
          %5646 = vmatmul.f32.gmra.mxu0 %v5305
          %v5647 = vpop.f32.mrf.mxu0
          %v5648 = vadd.f32 0.0, %v5647
          %5649 = vmatmul.f32.gmra.mxu0 %v5314
          %v5650 = vpop.f32.mrf.mxu0
          %v5651 = vadd.f32 0.0, %v5650
          %5652 = vmatmul.f32.gmra.mxu0 %v5323
          %v5653 = vpop.f32.mrf.mxu0
          %v5654 = vadd.f32 0.0, %v5653
          %5655 = vmatmul.f32.gmra.mxu0 %v5332
          %v5656 = vpop.f32.mrf.mxu0
          %v5657 = vadd.f32 0.0, %v5656
          %5658 = vmatmul.f32.gmra.mxu0 %v5341
          %v5659 = vpop.f32.mrf.mxu0
          %v5660 = vadd.f32 0.0, %v5659
          %5661 = vmatmul.f32.gmra.mxu0 %v5350
          %v5662 = vpop.f32.mrf.mxu0
          %v5663 = vadd.f32 0.0, %v5662
          %5664 = vmatmul.f32.gmra.mxu0 %v5359
          %v5665 = vpop.f32.mrf.mxu0
          %v5666 = vadd.f32 0.0, %v5665
          %5667 = vmatmul.f32.gmra.mxu0 %v5368
          %v5668 = vpop.f32.mrf.mxu0
          %v5669 = vadd.f32 0.0, %v5668
          %5670 = vmatmul.f32.gmra.mxu0 %v5377
          %v5671 = vpop.f32.mrf.mxu0
          %v5672 = vadd.f32 0.0, %v5671
          %5673 = vmatmul.f32.gmra.mxu0 %v5386
          %v5674 = vpop.f32.mrf.mxu0
          %v5675 = vadd.f32 0.0, %v5674
          %5676 = vmatmul.f32.gmra.mxu0 %v5395
          %v5677 = vpop.f32.mrf.mxu0
          %v5678 = vadd.f32 0.0, %v5677
          %5679 = vmatmul.f32.gmra.mxu0 %v5404
          %v5680 = vpop.f32.mrf.mxu0
          %v5681 = vadd.f32 0.0, %v5680
          %5682 = vmatmul.f32.gmra.mxu0 %v5413
          %v5683 = vpop.f32.mrf.mxu0
          %v5684 = vadd.f32 0.0, %v5683
          %5685 = vmatmul.f32.gmra.mxu0 %v5422
          %v5686 = vpop.f32.mrf.mxu0
          %v5687 = vadd.f32 0.0, %v5686
          %5688 = vdwg.mxu0
          %5689 = vmatpush.msra.mxu0 %v5463
          %5690 = vmatpush.msra.mxu0 %v5462
          %5691 = vmatpush.msra.mxu0 %v5461
          %5692 = vmatpush.msra.mxu0 %v5460
          %5693 = vmatpush.msra.mxu0 %v5459
          %5694 = vmatpush.msra.mxu0 %v5458
          %5695 = vmatpush.msra.mxu0 %v5457
          %5696 = vmatpush.msra.mxu0 %v5456
          %5697 = vmatpush.msra.mxu0 %v5455
          %5698 = vmatpush.msra.mxu0 %v5454
          %5699 = vmatpush.msra.mxu0 %v5453
          %5700 = vmatpush.msra.mxu0 %v5452
          %5701 = vmatpush.msra.mxu0 %v5451
          %5702 = vmatpush.msra.mxu0 %v5450
          %5703 = vmatpush.msra.mxu0 %v5449
          %5704 = vmatpush.msra.mxu0 %v5448
          %5705 = vmatmul.f32.gmra.mxu0 %v5144
          %v5706 = vpop.f32.mrf.mxu0
          %v5707 = vadd.f32 %v5594, %v5706
          %5708 = vmatmul.f32.gmra.mxu0 %v5153
          %v5709 = vpop.f32.mrf.mxu0
          %v5710 = vadd.f32 %v5597, %v5709
          %5711 = vmatmul.f32.gmra.mxu0 %v5162
          %v5712 = vpop.f32.mrf.mxu0
          %v5713 = vadd.f32 %v5600, %v5712
          %5714 = vmatmul.f32.gmra.mxu0 %v5171
          %v5715 = vpop.f32.mrf.mxu0
          %v5716 = vadd.f32 %v5603, %v5715
          %5717 = vmatmul.f32.gmra.mxu0 %v5180
          %v5718 = vpop.f32.mrf.mxu0
          %v5719 = vadd.f32 %v5606, %v5718
          %5720 = vmatmul.f32.gmra.mxu0 %v5189
          %v5721 = vpop.f32.mrf.mxu0
          %v5722 = vadd.f32 %v5609, %v5721
          %5723 = vmatmul.f32.gmra.mxu0 %v5198
          %v5724 = vpop.f32.mrf.mxu0
          %v5725 = vadd.f32 %v5612, %v5724
          %5726 = vmatmul.f32.gmra.mxu0 %v5207
          %v5727 = vpop.f32.mrf.mxu0
          %v5728 = vadd.f32 %v5615, %v5727
          %5729 = vmatmul.f32.gmra.mxu0 %v5216
          %v5730 = vpop.f32.mrf.mxu0
          %v5731 = vadd.f32 %v5618, %v5730
          %5732 = vmatmul.f32.gmra.mxu0 %v5225
          %v5733 = vpop.f32.mrf.mxu0
          %v5734 = vadd.f32 %v5621, %v5733
          %5735 = vmatmul.f32.gmra.mxu0 %v5234
          %v5736 = vpop.f32.mrf.mxu0
          %v5737 = vadd.f32 %v5624, %v5736
          %5738 = vmatmul.f32.gmra.mxu0 %v5243
          %v5739 = vpop.f32.mrf.mxu0
          %v5740 = vadd.f32 %v5627, %v5739
          %5741 = vmatmul.f32.gmra.mxu0 %v5252
          %v5742 = vpop.f32.mrf.mxu0
          %v5743 = vadd.f32 %v5630, %v5742
          %5744 = vmatmul.f32.gmra.mxu0 %v5261
          %v5745 = vpop.f32.mrf.mxu0
          %v5746 = vadd.f32 %v5633, %v5745
          %5747 = vmatmul.f32.gmra.mxu0 %v5270
          %v5748 = vpop.f32.mrf.mxu0
          %v5749 = vadd.f32 %v5636, %v5748
          %5750 = vmatmul.f32.gmra.mxu0 %v5279
          %v5751 = vpop.f32.mrf.mxu0
          %v5752 = vadd.f32 %v5639, %v5751
          %5753 = vmatmul.f32.gmra.mxu0 %v5288
          %v5754 = vpop.f32.mrf.mxu0
          %v5755 = vadd.f32 %v5642, %v5754
          %5756 = vmatmul.f32.gmra.mxu0 %v5297
          %v5757 = vpop.f32.mrf.mxu0
          %v5758 = vadd.f32 %v5645, %v5757
          %5759 = vmatmul.f32.gmra.mxu0 %v5306
          %v5760 = vpop.f32.mrf.mxu0
          %v5761 = vadd.f32 %v5648, %v5760
          %5762 = vmatmul.f32.gmra.mxu0 %v5315
          %v5763 = vpop.f32.mrf.mxu0
          %v5764 = vadd.f32 %v5651, %v5763
          %5765 = vmatmul.f32.gmra.mxu0 %v5324
          %v5766 = vpop.f32.mrf.mxu0
          %v5767 = vadd.f32 %v5654, %v5766
          %5768 = vmatmul.f32.gmra.mxu0 %v5333
          %v5769 = vpop.f32.mrf.mxu0
          %v5770 = vadd.f32 %v5657, %v5769
          %5771 = vmatmul.f32.gmra.mxu0 %v5342
          %v5772 = vpop.f32.mrf.mxu0
          %v5773 = vadd.f32 %v5660, %v5772
          %5774 = vmatmul.f32.gmra.mxu0 %v5351
          %v5775 = vpop.f32.mrf.mxu0
          %v5776 = vadd.f32 %v5663, %v5775
          %5777 = vmatmul.f32.gmra.mxu0 %v5360
          %v5778 = vpop.f32.mrf.mxu0
          %v5779 = vadd.f32 %v5666, %v5778
          %5780 = vmatmul.f32.gmra.mxu0 %v5369
          %v5781 = vpop.f32.mrf.mxu0
          %v5782 = vadd.f32 %v5669, %v5781
          %5783 = vmatmul.f32.gmra.mxu0 %v5378
          %v5784 = vpop.f32.mrf.mxu0
          %v5785 = vadd.f32 %v5672, %v5784
          %5786 = vmatmul.f32.gmra.mxu0 %v5387
          %v5787 = vpop.f32.mrf.mxu0
          %v5788 = vadd.f32 %v5675, %v5787
          %5789 = vmatmul.f32.gmra.mxu0 %v5396
          %v5790 = vpop.f32.mrf.mxu0
          %v5791 = vadd.f32 %v5678, %v5790
          %5792 = vmatmul.f32.gmra.mxu0 %v5405
          %v5793 = vpop.f32.mrf.mxu0
          %v5794 = vadd.f32 %v5681, %v5793
          %5795 = vmatmul.f32.gmra.mxu0 %v5414
          %v5796 = vpop.f32.mrf.mxu0
          %v5797 = vadd.f32 %v5684, %v5796
          %5798 = vmatmul.f32.gmra.mxu0 %v5423
          %v5799 = vpop.f32.mrf.mxu0
          %v5800 = vadd.f32 %v5687, %v5799
          %5801 = vdwg.mxu0
          %5802 = vmatpush.msra.mxu0 %v5479
          %5803 = vmatpush.msra.mxu0 %v5478
          %5804 = vmatpush.msra.mxu0 %v5477
          %5805 = vmatpush.msra.mxu0 %v5476
          %5806 = vmatpush.msra.mxu0 %v5475
          %5807 = vmatpush.msra.mxu0 %v5474
          %5808 = vmatpush.msra.mxu0 %v5473
          %5809 = vmatpush.msra.mxu0 %v5472
          %5810 = vmatpush.msra.mxu0 %v5471
          %5811 = vmatpush.msra.mxu0 %v5470
          %5812 = vmatpush.msra.mxu0 %v5469
          %5813 = vmatpush.msra.mxu0 %v5468
          %5814 = vmatpush.msra.mxu0 %v5467
          %5815 = vmatpush.msra.mxu0 %v5466
          %5816 = vmatpush.msra.mxu0 %v5465
          %5817 = vmatpush.msra.mxu0 %v5464
          %5818 = vmatmul.f32.gmra.mxu0 %v5145
          %v5819 = vpop.f32.mrf.mxu0
          %v5820 = vadd.f32 %v5707, %v5819
          %5821 = vmatmul.f32.gmra.mxu0 %v5154
          %v5822 = vpop.f32.mrf.mxu0
          %v5823 = vadd.f32 %v5710, %v5822
          %5824 = vmatmul.f32.gmra.mxu0 %v5163
          %v5825 = vpop.f32.mrf.mxu0
          %v5826 = vadd.f32 %v5713, %v5825
          %5827 = vmatmul.f32.gmra.mxu0 %v5172
          %v5828 = vpop.f32.mrf.mxu0
          %v5829 = vadd.f32 %v5716, %v5828
          %5830 = vmatmul.f32.gmra.mxu0 %v5181
          %v5831 = vpop.f32.mrf.mxu0
          %v5832 = vadd.f32 %v5719, %v5831
          %5833 = vmatmul.f32.gmra.mxu0 %v5190
          %v5834 = vpop.f32.mrf.mxu0
          %v5835 = vadd.f32 %v5722, %v5834
          %5836 = vmatmul.f32.gmra.mxu0 %v5199
          %v5837 = vpop.f32.mrf.mxu0
          %v5838 = vadd.f32 %v5725, %v5837
          %5839 = vmatmul.f32.gmra.mxu0 %v5208
          %v5840 = vpop.f32.mrf.mxu0
          %v5841 = vadd.f32 %v5728, %v5840
          %5842 = vmatmul.f32.gmra.mxu0 %v5217
          %v5843 = vpop.f32.mrf.mxu0
          %v5844 = vadd.f32 %v5731, %v5843
          %5845 = vmatmul.f32.gmra.mxu0 %v5226
          %v5846 = vpop.f32.mrf.mxu0
          %v5847 = vadd.f32 %v5734, %v5846
          %5848 = vmatmul.f32.gmra.mxu0 %v5235
          %v5849 = vpop.f32.mrf.mxu0
          %v5850 = vadd.f32 %v5737, %v5849
          %5851 = vmatmul.f32.gmra.mxu0 %v5244
          %v5852 = vpop.f32.mrf.mxu0
          %v5853 = vadd.f32 %v5740, %v5852
          %5854 = vmatmul.f32.gmra.mxu0 %v5253
          %v5855 = vpop.f32.mrf.mxu0
          %v5856 = vadd.f32 %v5743, %v5855
          %5857 = vmatmul.f32.gmra.mxu0 %v5262
          %v5858 = vpop.f32.mrf.mxu0
          %v5859 = vadd.f32 %v5746, %v5858
          %5860 = vmatmul.f32.gmra.mxu0 %v5271
          %v5861 = vpop.f32.mrf.mxu0
          %v5862 = vadd.f32 %v5749, %v5861
          %5863 = vmatmul.f32.gmra.mxu0 %v5280
          %v5864 = vpop.f32.mrf.mxu0
          %v5865 = vadd.f32 %v5752, %v5864
          %5866 = vmatmul.f32.gmra.mxu0 %v5289
          %v5867 = vpop.f32.mrf.mxu0
          %v5868 = vadd.f32 %v5755, %v5867
          %5869 = vmatmul.f32.gmra.mxu0 %v5298
          %v5870 = vpop.f32.mrf.mxu0
          %v5871 = vadd.f32 %v5758, %v5870
          %5872 = vmatmul.f32.gmra.mxu0 %v5307
          %v5873 = vpop.f32.mrf.mxu0
          %v5874 = vadd.f32 %v5761, %v5873
          %5875 = vmatmul.f32.gmra.mxu0 %v5316
          %v5876 = vpop.f32.mrf.mxu0
          %v5877 = vadd.f32 %v5764, %v5876
          %5878 = vmatmul.f32.gmra.mxu0 %v5325
          %v5879 = vpop.f32.mrf.mxu0
          %v5880 = vadd.f32 %v5767, %v5879
          %5881 = vmatmul.f32.gmra.mxu0 %v5334
          %v5882 = vpop.f32.mrf.mxu0
          %v5883 = vadd.f32 %v5770, %v5882
          %5884 = vmatmul.f32.gmra.mxu0 %v5343
          %v5885 = vpop.f32.mrf.mxu0
          %v5886 = vadd.f32 %v5773, %v5885
          %5887 = vmatmul.f32.gmra.mxu0 %v5352
          %v5888 = vpop.f32.mrf.mxu0
          %v5889 = vadd.f32 %v5776, %v5888
          %5890 = vmatmul.f32.gmra.mxu0 %v5361
          %v5891 = vpop.f32.mrf.mxu0
          %v5892 = vadd.f32 %v5779, %v5891
          %5893 = vmatmul.f32.gmra.mxu0 %v5370
          %v5894 = vpop.f32.mrf.mxu0
          %v5895 = vadd.f32 %v5782, %v5894
          %5896 = vmatmul.f32.gmra.mxu0 %v5379
          %v5897 = vpop.f32.mrf.mxu0
          %v5898 = vadd.f32 %v5785, %v5897
          %5899 = vmatmul.f32.gmra.mxu0 %v5388
          %v5900 = vpop.f32.mrf.mxu0
          %v5901 = vadd.f32 %v5788, %v5900
          %5902 = vmatmul.f32.gmra.mxu0 %v5397
          %v5903 = vpop.f32.mrf.mxu0
          %v5904 = vadd.f32 %v5791, %v5903
          %5905 = vmatmul.f32.gmra.mxu0 %v5406
          %v5906 = vpop.f32.mrf.mxu0
          %v5907 = vadd.f32 %v5794, %v5906
          %5908 = vmatmul.f32.gmra.mxu0 %v5415
          %v5909 = vpop.f32.mrf.mxu0
          %v5910 = vadd.f32 %v5797, %v5909
          %5911 = vmatmul.f32.gmra.mxu0 %v5424
          %v5912 = vpop.f32.mrf.mxu0
          %v5913 = vadd.f32 %v5800, %v5912
          %5914 = vdwg.mxu0
          %5915 = vmatpush.msra.mxu0 %v5495
          %5916 = vmatpush.msra.mxu0 %v5494
          %5917 = vmatpush.msra.mxu0 %v5493
          %5918 = vmatpush.msra.mxu0 %v5492
          %5919 = vmatpush.msra.mxu0 %v5491
          %5920 = vmatpush.msra.mxu0 %v5490
          %5921 = vmatpush.msra.mxu0 %v5489
          %5922 = vmatpush.msra.mxu0 %v5488
          %5923 = vmatpush.msra.mxu0 %v5487
          %5924 = vmatpush.msra.mxu0 %v5486
          %5925 = vmatpush.msra.mxu0 %v5485
          %5926 = vmatpush.msra.mxu0 %v5484
          %5927 = vmatpush.msra.mxu0 %v5483
          %5928 = vmatpush.msra.mxu0 %v5482
          %5929 = vmatpush.msra.mxu0 %v5481
          %5930 = vmatpush.msra.mxu0 %v5480
          %5931 = vmatmul.f32.gmra.mxu0 %v5146
          %v5932 = vpop.f32.mrf.mxu0
          %v5933 = vadd.f32 %v5820, %v5932
          %5934 = vmatmul.f32.gmra.mxu0 %v5155
          %v5935 = vpop.f32.mrf.mxu0
          %v5936 = vadd.f32 %v5823, %v5935
          %5937 = vmatmul.f32.gmra.mxu0 %v5164
          %v5938 = vpop.f32.mrf.mxu0
          %v5939 = vadd.f32 %v5826, %v5938
          %5940 = vmatmul.f32.gmra.mxu0 %v5173
          %v5941 = vpop.f32.mrf.mxu0
          %v5942 = vadd.f32 %v5829, %v5941
          %5943 = vmatmul.f32.gmra.mxu0 %v5182
          %v5944 = vpop.f32.mrf.mxu0
          %v5945 = vadd.f32 %v5832, %v5944
          %5946 = vmatmul.f32.gmra.mxu0 %v5191
          %v5947 = vpop.f32.mrf.mxu0
          %v5948 = vadd.f32 %v5835, %v5947
          %5949 = vmatmul.f32.gmra.mxu0 %v5200
          %v5950 = vpop.f32.mrf.mxu0
          %v5951 = vadd.f32 %v5838, %v5950
          %5952 = vmatmul.f32.gmra.mxu0 %v5209
          %v5953 = vpop.f32.mrf.mxu0
          %v5954 = vadd.f32 %v5841, %v5953
          %5955 = vmatmul.f32.gmra.mxu0 %v5218
          %v5956 = vpop.f32.mrf.mxu0
          %v5957 = vadd.f32 %v5844, %v5956
          %5958 = vmatmul.f32.gmra.mxu0 %v5227
          %v5959 = vpop.f32.mrf.mxu0
          %v5960 = vadd.f32 %v5847, %v5959
          %5961 = vmatmul.f32.gmra.mxu0 %v5236
          %v5962 = vpop.f32.mrf.mxu0
          %v5963 = vadd.f32 %v5850, %v5962
          %5964 = vmatmul.f32.gmra.mxu0 %v5245
          %v5965 = vpop.f32.mrf.mxu0
          %v5966 = vadd.f32 %v5853, %v5965
          %5967 = vmatmul.f32.gmra.mxu0 %v5254
          %v5968 = vpop.f32.mrf.mxu0
          %v5969 = vadd.f32 %v5856, %v5968
          %5970 = vmatmul.f32.gmra.mxu0 %v5263
          %v5971 = vpop.f32.mrf.mxu0
          %v5972 = vadd.f32 %v5859, %v5971
          %5973 = vmatmul.f32.gmra.mxu0 %v5272
          %v5974 = vpop.f32.mrf.mxu0
          %v5975 = vadd.f32 %v5862, %v5974
          %5976 = vmatmul.f32.gmra.mxu0 %v5281
          %v5977 = vpop.f32.mrf.mxu0
          %v5978 = vadd.f32 %v5865, %v5977
          %5979 = vmatmul.f32.gmra.mxu0 %v5290
          %v5980 = vpop.f32.mrf.mxu0
          %v5981 = vadd.f32 %v5868, %v5980
          %5982 = vmatmul.f32.gmra.mxu0 %v5299
          %v5983 = vpop.f32.mrf.mxu0
          %v5984 = vadd.f32 %v5871, %v5983
          %5985 = vmatmul.f32.gmra.mxu0 %v5308
          %v5986 = vpop.f32.mrf.mxu0
          %v5987 = vadd.f32 %v5874, %v5986
          %5988 = vmatmul.f32.gmra.mxu0 %v5317
          %v5989 = vpop.f32.mrf.mxu0
          %v5990 = vadd.f32 %v5877, %v5989
          %5991 = vmatmul.f32.gmra.mxu0 %v5326
          %v5992 = vpop.f32.mrf.mxu0
          %v5993 = vadd.f32 %v5880, %v5992
          %5994 = vmatmul.f32.gmra.mxu0 %v5335
          %v5995 = vpop.f32.mrf.mxu0
          %v5996 = vadd.f32 %v5883, %v5995
          %5997 = vmatmul.f32.gmra.mxu0 %v5344
          %v5998 = vpop.f32.mrf.mxu0
          %v5999 = vadd.f32 %v5886, %v5998
          %6000 = vmatmul.f32.gmra.mxu0 %v5353
          %v6001 = vpop.f32.mrf.mxu0
          %v6002 = vadd.f32 %v5889, %v6001
          %6003 = vmatmul.f32.gmra.mxu0 %v5362
          %v6004 = vpop.f32.mrf.mxu0
          %v6005 = vadd.f32 %v5892, %v6004
          %6006 = vmatmul.f32.gmra.mxu0 %v5371
          %v6007 = vpop.f32.mrf.mxu0
          %v6008 = vadd.f32 %v5895, %v6007
          %6009 = vmatmul.f32.gmra.mxu0 %v5380
          %v6010 = vpop.f32.mrf.mxu0
          %v6011 = vadd.f32 %v5898, %v6010
          %6012 = vmatmul.f32.gmra.mxu0 %v5389
          %v6013 = vpop.f32.mrf.mxu0
          %v6014 = vadd.f32 %v5901, %v6013
          %6015 = vmatmul.f32.gmra.mxu0 %v5398
          %v6016 = vpop.f32.mrf.mxu0
          %v6017 = vadd.f32 %v5904, %v6016
          %6018 = vmatmul.f32.gmra.mxu0 %v5407
          %v6019 = vpop.f32.mrf.mxu0
          %v6020 = vadd.f32 %v5907, %v6019
          %6021 = vmatmul.f32.gmra.mxu0 %v5416
          %v6022 = vpop.f32.mrf.mxu0
          %v6023 = vadd.f32 %v5910, %v6022
          %6024 = vmatmul.f32.gmra.mxu0 %v5425
          %v6025 = vpop.f32.mrf.mxu0
          %v6026 = vadd.f32 %v5913, %v6025
          %6027 = vdwg.mxu0
          %6028 = vmatpush.msra.mxu0 %v5511
          %6029 = vmatpush.msra.mxu0 %v5510
          %6030 = vmatpush.msra.mxu0 %v5509
          %6031 = vmatpush.msra.mxu0 %v5508
          %6032 = vmatpush.msra.mxu0 %v5507
          %6033 = vmatpush.msra.mxu0 %v5506
          %6034 = vmatpush.msra.mxu0 %v5505
          %6035 = vmatpush.msra.mxu0 %v5504
          %6036 = vmatpush.msra.mxu0 %v5503
          %6037 = vmatpush.msra.mxu0 %v5502
          %6038 = vmatpush.msra.mxu0 %v5501
          %6039 = vmatpush.msra.mxu0 %v5500
          %6040 = vmatpush.msra.mxu0 %v5499
          %6041 = vmatpush.msra.mxu0 %v5498
          %6042 = vmatpush.msra.mxu0 %v5497
          %6043 = vmatpush.msra.mxu0 %v5496
          %6044 = vmatmul.f32.gmra.mxu0 %v5147
          %v6045 = vpop.f32.mrf.mxu0
          %v6046 = vadd.f32 %v5933, %v6045
          %6047 = vmatmul.f32.gmra.mxu0 %v5156
          %v6048 = vpop.f32.mrf.mxu0
          %v6049 = vadd.f32 %v5936, %v6048
          %6050 = vmatmul.f32.gmra.mxu0 %v5165
          %v6051 = vpop.f32.mrf.mxu0
          %v6052 = vadd.f32 %v5939, %v6051
          %6053 = vmatmul.f32.gmra.mxu0 %v5174
          %v6054 = vpop.f32.mrf.mxu0
          %v6055 = vadd.f32 %v5942, %v6054
          %6056 = vmatmul.f32.gmra.mxu0 %v5183
          %v6057 = vpop.f32.mrf.mxu0
          %v6058 = vadd.f32 %v5945, %v6057
          %6059 = vmatmul.f32.gmra.mxu0 %v5192
          %v6060 = vpop.f32.mrf.mxu0
          %v6061 = vadd.f32 %v5948, %v6060
          %6062 = vmatmul.f32.gmra.mxu0 %v5201
          %v6063 = vpop.f32.mrf.mxu0
          %v6064 = vadd.f32 %v5951, %v6063
          %6065 = vmatmul.f32.gmra.mxu0 %v5210
          %v6066 = vpop.f32.mrf.mxu0
          %v6067 = vadd.f32 %v5954, %v6066
          %6068 = vmatmul.f32.gmra.mxu0 %v5219
          %v6069 = vpop.f32.mrf.mxu0
          %v6070 = vadd.f32 %v5957, %v6069
          %6071 = vmatmul.f32.gmra.mxu0 %v5228
          %v6072 = vpop.f32.mrf.mxu0
          %v6073 = vadd.f32 %v5960, %v6072
          %6074 = vmatmul.f32.gmra.mxu0 %v5237
          %v6075 = vpop.f32.mrf.mxu0
          %v6076 = vadd.f32 %v5963, %v6075
          %6077 = vmatmul.f32.gmra.mxu0 %v5246
          %v6078 = vpop.f32.mrf.mxu0
          %v6079 = vadd.f32 %v5966, %v6078
          %6080 = vmatmul.f32.gmra.mxu0 %v5255
          %v6081 = vpop.f32.mrf.mxu0
          %v6082 = vadd.f32 %v5969, %v6081
          %6083 = vmatmul.f32.gmra.mxu0 %v5264
          %v6084 = vpop.f32.mrf.mxu0
          %v6085 = vadd.f32 %v5972, %v6084
          %6086 = vmatmul.f32.gmra.mxu0 %v5273
          %v6087 = vpop.f32.mrf.mxu0
          %v6088 = vadd.f32 %v5975, %v6087
          %6089 = vmatmul.f32.gmra.mxu0 %v5282
          %v6090 = vpop.f32.mrf.mxu0
          %v6091 = vadd.f32 %v5978, %v6090
          %6092 = vmatmul.f32.gmra.mxu0 %v5291
          %v6093 = vpop.f32.mrf.mxu0
          %v6094 = vadd.f32 %v5981, %v6093
          %6095 = vmatmul.f32.gmra.mxu0 %v5300
          %v6096 = vpop.f32.mrf.mxu0
          %v6097 = vadd.f32 %v5984, %v6096
          %6098 = vmatmul.f32.gmra.mxu0 %v5309
          %v6099 = vpop.f32.mrf.mxu0
          %v6100 = vadd.f32 %v5987, %v6099
          %6101 = vmatmul.f32.gmra.mxu0 %v5318
          %v6102 = vpop.f32.mrf.mxu0
          %v6103 = vadd.f32 %v5990, %v6102
          %6104 = vmatmul.f32.gmra.mxu0 %v5327
          %v6105 = vpop.f32.mrf.mxu0
          %v6106 = vadd.f32 %v5993, %v6105
          %6107 = vmatmul.f32.gmra.mxu0 %v5336
          %v6108 = vpop.f32.mrf.mxu0
          %v6109 = vadd.f32 %v5996, %v6108
          %6110 = vmatmul.f32.gmra.mxu0 %v5345
          %v6111 = vpop.f32.mrf.mxu0
          %v6112 = vadd.f32 %v5999, %v6111
          %6113 = vmatmul.f32.gmra.mxu0 %v5354
          %v6114 = vpop.f32.mrf.mxu0
          %v6115 = vadd.f32 %v6002, %v6114
          %6116 = vmatmul.f32.gmra.mxu0 %v5363
          %v6117 = vpop.f32.mrf.mxu0
          %v6118 = vadd.f32 %v6005, %v6117
          %6119 = vmatmul.f32.gmra.mxu0 %v5372
          %v6120 = vpop.f32.mrf.mxu0
          %v6121 = vadd.f32 %v6008, %v6120
          %6122 = vmatmul.f32.gmra.mxu0 %v5381
          %v6123 = vpop.f32.mrf.mxu0
          %v6124 = vadd.f32 %v6011, %v6123
          %6125 = vmatmul.f32.gmra.mxu0 %v5390
          %v6126 = vpop.f32.mrf.mxu0
          %v6127 = vadd.f32 %v6014, %v6126
          %6128 = vmatmul.f32.gmra.mxu0 %v5399
          %v6129 = vpop.f32.mrf.mxu0
          %v6130 = vadd.f32 %v6017, %v6129
          %6131 = vmatmul.f32.gmra.mxu0 %v5408
          %v6132 = vpop.f32.mrf.mxu0
          %v6133 = vadd.f32 %v6020, %v6132
          %6134 = vmatmul.f32.gmra.mxu0 %v5417
          %v6135 = vpop.f32.mrf.mxu0
          %v6136 = vadd.f32 %v6023, %v6135
          %6137 = vmatmul.f32.gmra.mxu0 %v5426
          %v6138 = vpop.f32.mrf.mxu0
          %v6139 = vadd.f32 %v6026, %v6138
          %6140 = vdwg.mxu0
          %6141 = vmatpush.msra.mxu0 %v5527
          %6142 = vmatpush.msra.mxu0 %v5526
          %6143 = vmatpush.msra.mxu0 %v5525
          %6144 = vmatpush.msra.mxu0 %v5524
          %6145 = vmatpush.msra.mxu0 %v5523
          %6146 = vmatpush.msra.mxu0 %v5522
          %6147 = vmatpush.msra.mxu0 %v5521
          %6148 = vmatpush.msra.mxu0 %v5520
          %6149 = vmatpush.msra.mxu0 %v5519
          %6150 = vmatpush.msra.mxu0 %v5518
          %6151 = vmatpush.msra.mxu0 %v5517
          %6152 = vmatpush.msra.mxu0 %v5516
          %6153 = vmatpush.msra.mxu0 %v5515
          %6154 = vmatpush.msra.mxu0 %v5514
          %6155 = vmatpush.msra.mxu0 %v5513
          %6156 = vmatpush.msra.mxu0 %v5512
          %6157 = vmatmul.f32.gmra.mxu0 %v5148
          %v6158 = vpop.f32.mrf.mxu0
          %v6159 = vadd.f32 %v6046, %v6158
          %6160 = vmatmul.f32.gmra.mxu0 %v5157
          %v6161 = vpop.f32.mrf.mxu0
          %v6162 = vadd.f32 %v6049, %v6161
          %6163 = vmatmul.f32.gmra.mxu0 %v5166
          %v6164 = vpop.f32.mrf.mxu0
          %v6165 = vadd.f32 %v6052, %v6164
          %6166 = vmatmul.f32.gmra.mxu0 %v5175
          %v6167 = vpop.f32.mrf.mxu0
          %v6168 = vadd.f32 %v6055, %v6167
          %6169 = vmatmul.f32.gmra.mxu0 %v5184
          %v6170 = vpop.f32.mrf.mxu0
          %v6171 = vadd.f32 %v6058, %v6170
          %6172 = vmatmul.f32.gmra.mxu0 %v5193
          %v6173 = vpop.f32.mrf.mxu0
          %v6174 = vadd.f32 %v6061, %v6173
          %6175 = vmatmul.f32.gmra.mxu0 %v5202
          %v6176 = vpop.f32.mrf.mxu0
          %v6177 = vadd.f32 %v6064, %v6176
          %6178 = vmatmul.f32.gmra.mxu0 %v5211
          %v6179 = vpop.f32.mrf.mxu0
          %v6180 = vadd.f32 %v6067, %v6179
          %6181 = vmatmul.f32.gmra.mxu0 %v5220
          %v6182 = vpop.f32.mrf.mxu0
          %v6183 = vadd.f32 %v6070, %v6182
          %6184 = vmatmul.f32.gmra.mxu0 %v5229
          %v6185 = vpop.f32.mrf.mxu0
          %v6186 = vadd.f32 %v6073, %v6185
          %6187 = vmatmul.f32.gmra.mxu0 %v5238
          %v6188 = vpop.f32.mrf.mxu0
          %v6189 = vadd.f32 %v6076, %v6188
          %6190 = vmatmul.f32.gmra.mxu0 %v5247
          %v6191 = vpop.f32.mrf.mxu0
          %v6192 = vadd.f32 %v6079, %v6191
          %6193 = vmatmul.f32.gmra.mxu0 %v5256
          %v6194 = vpop.f32.mrf.mxu0
          %v6195 = vadd.f32 %v6082, %v6194
          %6196 = vmatmul.f32.gmra.mxu0 %v5265
          %v6197 = vpop.f32.mrf.mxu0
          %v6198 = vadd.f32 %v6085, %v6197
          %6199 = vmatmul.f32.gmra.mxu0 %v5274
          %v6200 = vpop.f32.mrf.mxu0
          %v6201 = vadd.f32 %v6088, %v6200
          %6202 = vmatmul.f32.gmra.mxu0 %v5283
          %v6203 = vpop.f32.mrf.mxu0
          %v6204 = vadd.f32 %v6091, %v6203
          %6205 = vmatmul.f32.gmra.mxu0 %v5292
          %v6206 = vpop.f32.mrf.mxu0
          %v6207 = vadd.f32 %v6094, %v6206
          %6208 = vmatmul.f32.gmra.mxu0 %v5301
          %v6209 = vpop.f32.mrf.mxu0
          %v6210 = vadd.f32 %v6097, %v6209
          %6211 = vmatmul.f32.gmra.mxu0 %v5310
          %v6212 = vpop.f32.mrf.mxu0
          %v6213 = vadd.f32 %v6100, %v6212
          %6214 = vmatmul.f32.gmra.mxu0 %v5319
          %v6215 = vpop.f32.mrf.mxu0
          %v6216 = vadd.f32 %v6103, %v6215
          %6217 = vmatmul.f32.gmra.mxu0 %v5328
          %v6218 = vpop.f32.mrf.mxu0
          %v6219 = vadd.f32 %v6106, %v6218
          %6220 = vmatmul.f32.gmra.mxu0 %v5337
          %v6221 = vpop.f32.mrf.mxu0
          %v6222 = vadd.f32 %v6109, %v6221
          %6223 = vmatmul.f32.gmra.mxu0 %v5346
          %v6224 = vpop.f32.mrf.mxu0
          %v6225 = vadd.f32 %v6112, %v6224
          %6226 = vmatmul.f32.gmra.mxu0 %v5355
          %v6227 = vpop.f32.mrf.mxu0
          %v6228 = vadd.f32 %v6115, %v6227
          %6229 = vmatmul.f32.gmra.mxu0 %v5364
          %v6230 = vpop.f32.mrf.mxu0
          %v6231 = vadd.f32 %v6118, %v6230
          %6232 = vmatmul.f32.gmra.mxu0 %v5373
          %v6233 = vpop.f32.mrf.mxu0
          %v6234 = vadd.f32 %v6121, %v6233
          %6235 = vmatmul.f32.gmra.mxu0 %v5382
          %v6236 = vpop.f32.mrf.mxu0
          %v6237 = vadd.f32 %v6124, %v6236
          %6238 = vmatmul.f32.gmra.mxu0 %v5391
          %v6239 = vpop.f32.mrf.mxu0
          %v6240 = vadd.f32 %v6127, %v6239
          %6241 = vmatmul.f32.gmra.mxu0 %v5400
          %v6242 = vpop.f32.mrf.mxu0
          %v6243 = vadd.f32 %v6130, %v6242
          %6244 = vmatmul.f32.gmra.mxu0 %v5409
          %v6245 = vpop.f32.mrf.mxu0
          %v6246 = vadd.f32 %v6133, %v6245
          %6247 = vmatmul.f32.gmra.mxu0 %v5418
          %v6248 = vpop.f32.mrf.mxu0
          %v6249 = vadd.f32 %v6136, %v6248
          %6250 = vmatmul.f32.gmra.mxu0 %v5427
          %v6251 = vpop.f32.mrf.mxu0
          %v6252 = vadd.f32 %v6139, %v6251
          %6253 = vdwg.mxu0
          %6254 = vmatpush.msra.mxu0 %v5543
          %6255 = vmatpush.msra.mxu0 %v5542
          %6256 = vmatpush.msra.mxu0 %v5541
          %6257 = vmatpush.msra.mxu0 %v5540
          %6258 = vmatpush.msra.mxu0 %v5539
          %6259 = vmatpush.msra.mxu0 %v5538
          %6260 = vmatpush.msra.mxu0 %v5537
          %6261 = vmatpush.msra.mxu0 %v5536
          %6262 = vmatpush.msra.mxu0 %v5535
          %6263 = vmatpush.msra.mxu0 %v5534
          %6264 = vmatpush.msra.mxu0 %v5533
          %6265 = vmatpush.msra.mxu0 %v5532
          %6266 = vmatpush.msra.mxu0 %v5531
          %6267 = vmatpush.msra.mxu0 %v5530
          %6268 = vmatpush.msra.mxu0 %v5529
          %6269 = vmatpush.msra.mxu0 %v5528
          %6270 = vmatmul.f32.gmra.mxu0 %v5149
          %v6271 = vpop.f32.mrf.mxu0
          %v6272 = vadd.f32 %v6159, %v6271
          %6273 = vmatmul.f32.gmra.mxu0 %v5158
          %v6274 = vpop.f32.mrf.mxu0
          %v6275 = vadd.f32 %v6162, %v6274
          %6276 = vmatmul.f32.gmra.mxu0 %v5167
          %v6277 = vpop.f32.mrf.mxu0
          %v6278 = vadd.f32 %v6165, %v6277
          %6279 = vmatmul.f32.gmra.mxu0 %v5176
          %v6280 = vpop.f32.mrf.mxu0
          %v6281 = vadd.f32 %v6168, %v6280
          %6282 = vmatmul.f32.gmra.mxu0 %v5185
          %v6283 = vpop.f32.mrf.mxu0
          %v6284 = vadd.f32 %v6171, %v6283
          %6285 = vmatmul.f32.gmra.mxu0 %v5194
          %v6286 = vpop.f32.mrf.mxu0
          %v6287 = vadd.f32 %v6174, %v6286
          %6288 = vmatmul.f32.gmra.mxu0 %v5203
          %v6289 = vpop.f32.mrf.mxu0
          %v6290 = vadd.f32 %v6177, %v6289
          %6291 = vmatmul.f32.gmra.mxu0 %v5212
          %v6292 = vpop.f32.mrf.mxu0
          %v6293 = vadd.f32 %v6180, %v6292
          %6294 = vmatmul.f32.gmra.mxu0 %v5221
          %v6295 = vpop.f32.mrf.mxu0
          %v6296 = vadd.f32 %v6183, %v6295
          %6297 = vmatmul.f32.gmra.mxu0 %v5230
          %v6298 = vpop.f32.mrf.mxu0
          %v6299 = vadd.f32 %v6186, %v6298
          %6300 = vmatmul.f32.gmra.mxu0 %v5239
          %v6301 = vpop.f32.mrf.mxu0
          %v6302 = vadd.f32 %v6189, %v6301
          %6303 = vmatmul.f32.gmra.mxu0 %v5248
          %v6304 = vpop.f32.mrf.mxu0
          %v6305 = vadd.f32 %v6192, %v6304
          %6306 = vmatmul.f32.gmra.mxu0 %v5257
          %v6307 = vpop.f32.mrf.mxu0
          %v6308 = vadd.f32 %v6195, %v6307
          %6309 = vmatmul.f32.gmra.mxu0 %v5266
          %v6310 = vpop.f32.mrf.mxu0
          %v6311 = vadd.f32 %v6198, %v6310
          %6312 = vmatmul.f32.gmra.mxu0 %v5275
          %v6313 = vpop.f32.mrf.mxu0
          %v6314 = vadd.f32 %v6201, %v6313
          %6315 = vmatmul.f32.gmra.mxu0 %v5284
          %v6316 = vpop.f32.mrf.mxu0
          %v6317 = vadd.f32 %v6204, %v6316
          %6318 = vmatmul.f32.gmra.mxu0 %v5293
          %v6319 = vpop.f32.mrf.mxu0
          %v6320 = vadd.f32 %v6207, %v6319
          %6321 = vmatmul.f32.gmra.mxu0 %v5302
          %v6322 = vpop.f32.mrf.mxu0
          %v6323 = vadd.f32 %v6210, %v6322
          %6324 = vmatmul.f32.gmra.mxu0 %v5311
          %v6325 = vpop.f32.mrf.mxu0
          %v6326 = vadd.f32 %v6213, %v6325
          %6327 = vmatmul.f32.gmra.mxu0 %v5320
          %v6328 = vpop.f32.mrf.mxu0
          %v6329 = vadd.f32 %v6216, %v6328
          %6330 = vmatmul.f32.gmra.mxu0 %v5329
          %v6331 = vpop.f32.mrf.mxu0
          %v6332 = vadd.f32 %v6219, %v6331
          %6333 = vmatmul.f32.gmra.mxu0 %v5338
          %v6334 = vpop.f32.mrf.mxu0
          %v6335 = vadd.f32 %v6222, %v6334
          %6336 = vmatmul.f32.gmra.mxu0 %v5347
          %v6337 = vpop.f32.mrf.mxu0
          %v6338 = vadd.f32 %v6225, %v6337
          %6339 = vmatmul.f32.gmra.mxu0 %v5356
          %v6340 = vpop.f32.mrf.mxu0
          %v6341 = vadd.f32 %v6228, %v6340
          %6342 = vmatmul.f32.gmra.mxu0 %v5365
          %v6343 = vpop.f32.mrf.mxu0
          %v6344 = vadd.f32 %v6231, %v6343
          %6345 = vmatmul.f32.gmra.mxu0 %v5374
          %v6346 = vpop.f32.mrf.mxu0
          %v6347 = vadd.f32 %v6234, %v6346
          %6348 = vmatmul.f32.gmra.mxu0 %v5383
          %v6349 = vpop.f32.mrf.mxu0
          %v6350 = vadd.f32 %v6237, %v6349
          %6351 = vmatmul.f32.gmra.mxu0 %v5392
          %v6352 = vpop.f32.mrf.mxu0
          %v6353 = vadd.f32 %v6240, %v6352
          %6354 = vmatmul.f32.gmra.mxu0 %v5401
          %v6355 = vpop.f32.mrf.mxu0
          %v6356 = vadd.f32 %v6243, %v6355
          %6357 = vmatmul.f32.gmra.mxu0 %v5410
          %v6358 = vpop.f32.mrf.mxu0
          %v6359 = vadd.f32 %v6246, %v6358
          %6360 = vmatmul.f32.gmra.mxu0 %v5419
          %v6361 = vpop.f32.mrf.mxu0
          %v6362 = vadd.f32 %v6249, %v6361
          %6363 = vmatmul.f32.gmra.mxu0 %v5428
          %v6364 = vpop.f32.mrf.mxu0
          %v6365 = vadd.f32 %v6252, %v6364
          %6366 = vdwg.mxu0
          %6367 = vmatpush.msra.mxu0 %v5559
          %6368 = vmatpush.msra.mxu0 %v5558
          %6369 = vmatpush.msra.mxu0 %v5557
          %6370 = vmatpush.msra.mxu0 %v5556
          %6371 = vmatpush.msra.mxu0 %v5555
          %6372 = vmatpush.msra.mxu0 %v5554
          %6373 = vmatpush.msra.mxu0 %v5553
          %6374 = vmatpush.msra.mxu0 %v5552
          %6375 = vmatpush.msra.mxu0 %v5551
          %6376 = vmatpush.msra.mxu0 %v5550
          %6377 = vmatpush.msra.mxu0 %v5549
          %6378 = vmatpush.msra.mxu0 %v5548
          %6379 = vmatpush.msra.mxu0 %v5547
          %6380 = vmatpush.msra.mxu0 %v5546
          %6381 = vmatpush.msra.mxu0 %v5545
          %6382 = vmatpush.msra.mxu0 %v5544
          %6383 = vmatmul.f32.gmra.mxu0 %v5150
          %v6384 = vpop.f32.mrf.mxu0
          %v6385 = vadd.f32 %v6272, %v6384
          %6386 = vmatmul.f32.gmra.mxu0 %v5159
          %v6387 = vpop.f32.mrf.mxu0
          %v6388 = vadd.f32 %v6275, %v6387
          %6389 = vmatmul.f32.gmra.mxu0 %v5168
          %v6390 = vpop.f32.mrf.mxu0
          %v6391 = vadd.f32 %v6278, %v6390
          %6392 = vmatmul.f32.gmra.mxu0 %v5177
          %v6393 = vpop.f32.mrf.mxu0
          %v6394 = vadd.f32 %v6281, %v6393
          %6395 = vmatmul.f32.gmra.mxu0 %v5186
          %v6396 = vpop.f32.mrf.mxu0
          %v6397 = vadd.f32 %v6284, %v6396
          %6398 = vmatmul.f32.gmra.mxu0 %v5195
          %v6399 = vpop.f32.mrf.mxu0
          %v6400 = vadd.f32 %v6287, %v6399
          %6401 = vmatmul.f32.gmra.mxu0 %v5204
          %v6402 = vpop.f32.mrf.mxu0
          %v6403 = vadd.f32 %v6290, %v6402
          %6404 = vmatmul.f32.gmra.mxu0 %v5213
          %v6405 = vpop.f32.mrf.mxu0
          %v6406 = vadd.f32 %v6293, %v6405
          %6407 = vmatmul.f32.gmra.mxu0 %v5222
          %v6408 = vpop.f32.mrf.mxu0
          %v6409 = vadd.f32 %v6296, %v6408
          %6410 = vmatmul.f32.gmra.mxu0 %v5231
          %v6411 = vpop.f32.mrf.mxu0
          %v6412 = vadd.f32 %v6299, %v6411
          %6413 = vmatmul.f32.gmra.mxu0 %v5240
          %v6414 = vpop.f32.mrf.mxu0
          %v6415 = vadd.f32 %v6302, %v6414
          %6416 = vmatmul.f32.gmra.mxu0 %v5249
          %v6417 = vpop.f32.mrf.mxu0
          %v6418 = vadd.f32 %v6305, %v6417
          %6419 = vmatmul.f32.gmra.mxu0 %v5258
          %v6420 = vpop.f32.mrf.mxu0
          %v6421 = vadd.f32 %v6308, %v6420
          %6422 = vmatmul.f32.gmra.mxu0 %v5267
          %v6423 = vpop.f32.mrf.mxu0
          %v6424 = vadd.f32 %v6311, %v6423
          %6425 = vmatmul.f32.gmra.mxu0 %v5276
          %v6426 = vpop.f32.mrf.mxu0
          %v6427 = vadd.f32 %v6314, %v6426
          %6428 = vmatmul.f32.gmra.mxu0 %v5285
          %v6429 = vpop.f32.mrf.mxu0
          %v6430 = vadd.f32 %v6317, %v6429
          %6431 = vmatmul.f32.gmra.mxu0 %v5294
          %v6432 = vpop.f32.mrf.mxu0
          %v6433 = vadd.f32 %v6320, %v6432
          %6434 = vmatmul.f32.gmra.mxu0 %v5303
          %v6435 = vpop.f32.mrf.mxu0
          %v6436 = vadd.f32 %v6323, %v6435
          %6437 = vmatmul.f32.gmra.mxu0 %v5312
          %v6438 = vpop.f32.mrf.mxu0
          %v6439 = vadd.f32 %v6326, %v6438
          %6440 = vmatmul.f32.gmra.mxu0 %v5321
          %v6441 = vpop.f32.mrf.mxu0
          %v6442 = vadd.f32 %v6329, %v6441
          %6443 = vmatmul.f32.gmra.mxu0 %v5330
          %v6444 = vpop.f32.mrf.mxu0
          %v6445 = vadd.f32 %v6332, %v6444
          %6446 = vmatmul.f32.gmra.mxu0 %v5339
          %v6447 = vpop.f32.mrf.mxu0
          %v6448 = vadd.f32 %v6335, %v6447
          %6449 = vmatmul.f32.gmra.mxu0 %v5348
          %v6450 = vpop.f32.mrf.mxu0
          %v6451 = vadd.f32 %v6338, %v6450
          %6452 = vmatmul.f32.gmra.mxu0 %v5357
          %v6453 = vpop.f32.mrf.mxu0
          %v6454 = vadd.f32 %v6341, %v6453
          %6455 = vmatmul.f32.gmra.mxu0 %v5366
          %v6456 = vpop.f32.mrf.mxu0
          %v6457 = vadd.f32 %v6344, %v6456
          %6458 = vmatmul.f32.gmra.mxu0 %v5375
          %v6459 = vpop.f32.mrf.mxu0
          %v6460 = vadd.f32 %v6347, %v6459
          %6461 = vmatmul.f32.gmra.mxu0 %v5384
          %v6462 = vpop.f32.mrf.mxu0
          %v6463 = vadd.f32 %v6350, %v6462
          %6464 = vmatmul.f32.gmra.mxu0 %v5393
          %v6465 = vpop.f32.mrf.mxu0
          %v6466 = vadd.f32 %v6353, %v6465
          %6467 = vmatmul.f32.gmra.mxu0 %v5402
          %v6468 = vpop.f32.mrf.mxu0
          %v6469 = vadd.f32 %v6356, %v6468
          %6470 = vmatmul.f32.gmra.mxu0 %v5411
          %v6471 = vpop.f32.mrf.mxu0
          %v6472 = vadd.f32 %v6359, %v6471
          %6473 = vmatmul.f32.gmra.mxu0 %v5420
          %v6474 = vpop.f32.mrf.mxu0
          %v6475 = vadd.f32 %v6362, %v6474
          %6476 = vmatmul.f32.gmra.mxu0 %v5429
          %v6477 = vpop.f32.mrf.mxu0
          %v6478 = vadd.f32 %v6365, %v6477
          %6479 = vdwg.mxu0
          %6480 = vmatpush.msra.mxu0 %v5575
          %6481 = vmatpush.msra.mxu0 %v5574
          %6482 = vmatpush.msra.mxu0 %v5573
          %6483 = vmatpush.msra.mxu0 %v5572
          %6484 = vmatpush.msra.mxu0 %v5571
          %6485 = vmatpush.msra.mxu0 %v5570
          %6486 = vmatpush.msra.mxu0 %v5569
          %6487 = vmatpush.msra.mxu0 %v5568
          %6488 = vmatpush.msra.mxu0 %v5567
          %6489 = vmatpush.msra.mxu0 %v5566
          %6490 = vmatpush.msra.mxu0 %v5565
          %6491 = vmatpush.msra.mxu0 %v5564
          %6492 = vmatpush.msra.mxu0 %v5563
          %6493 = vmatpush.msra.mxu0 %v5562
          %6494 = vmatpush.msra.mxu0 %v5561
          %6495 = vmatpush.msra.mxu0 %v5560
          %6496 = vmatmul.f32.gmra.mxu0 %v5151
          %v6497 = vpop.f32.mrf.mxu0
          %v6498 = vadd.f32 %v6385, %v6497
          %6499 = vmatmul.f32.gmra.mxu0 %v5160
          %v6500 = vpop.f32.mrf.mxu0
          %v6501 = vadd.f32 %v6388, %v6500
          %6502 = vmatmul.f32.gmra.mxu0 %v5169
          %v6503 = vpop.f32.mrf.mxu0
          %v6504 = vadd.f32 %v6391, %v6503
          %6505 = vmatmul.f32.gmra.mxu0 %v5178
          %v6506 = vpop.f32.mrf.mxu0
          %v6507 = vadd.f32 %v6394, %v6506
          %6508 = vmatmul.f32.gmra.mxu0 %v5187
          %v6509 = vpop.f32.mrf.mxu0
          %v6510 = vadd.f32 %v6397, %v6509
          %6511 = vmatmul.f32.gmra.mxu0 %v5196
          %v6512 = vpop.f32.mrf.mxu0
          %v6513 = vadd.f32 %v6400, %v6512
          %6514 = vmatmul.f32.gmra.mxu0 %v5205
          %v6515 = vpop.f32.mrf.mxu0
          %v6516 = vadd.f32 %v6403, %v6515
          %6517 = vmatmul.f32.gmra.mxu0 %v5214
          %v6518 = vpop.f32.mrf.mxu0
          %v6519 = vadd.f32 %v6406, %v6518
          %6520 = vmatmul.f32.gmra.mxu0 %v5223
          %v6521 = vpop.f32.mrf.mxu0
          %v6522 = vadd.f32 %v6409, %v6521
          %6523 = vmatmul.f32.gmra.mxu0 %v5232
          %v6524 = vpop.f32.mrf.mxu0
          %v6525 = vadd.f32 %v6412, %v6524
          %6526 = vmatmul.f32.gmra.mxu0 %v5241
          %v6527 = vpop.f32.mrf.mxu0
          %v6528 = vadd.f32 %v6415, %v6527
          %6529 = vmatmul.f32.gmra.mxu0 %v5250
          %v6530 = vpop.f32.mrf.mxu0
          %v6531 = vadd.f32 %v6418, %v6530
          %6532 = vmatmul.f32.gmra.mxu0 %v5259
          %v6533 = vpop.f32.mrf.mxu0
          %v6534 = vadd.f32 %v6421, %v6533
          %6535 = vmatmul.f32.gmra.mxu0 %v5268
          %v6536 = vpop.f32.mrf.mxu0
          %v6537 = vadd.f32 %v6424, %v6536
          %6538 = vmatmul.f32.gmra.mxu0 %v5277
          %v6539 = vpop.f32.mrf.mxu0
          %v6540 = vadd.f32 %v6427, %v6539
          %6541 = vmatmul.f32.gmra.mxu0 %v5286
          %v6542 = vpop.f32.mrf.mxu0
          %v6543 = vadd.f32 %v6430, %v6542
          %6544 = vmatmul.f32.gmra.mxu0 %v5295
          %v6545 = vpop.f32.mrf.mxu0
          %v6546 = vadd.f32 %v6433, %v6545
          %6547 = vmatmul.f32.gmra.mxu0 %v5304
          %v6548 = vpop.f32.mrf.mxu0
          %v6549 = vadd.f32 %v6436, %v6548
          %6550 = vmatmul.f32.gmra.mxu0 %v5313
          %v6551 = vpop.f32.mrf.mxu0
          %v6552 = vadd.f32 %v6439, %v6551
          %6553 = vmatmul.f32.gmra.mxu0 %v5322
          %v6554 = vpop.f32.mrf.mxu0
          %v6555 = vadd.f32 %v6442, %v6554
          %6556 = vmatmul.f32.gmra.mxu0 %v5331
          %v6557 = vpop.f32.mrf.mxu0
          %v6558 = vadd.f32 %v6445, %v6557
          %6559 = vmatmul.f32.gmra.mxu0 %v5340
          %v6560 = vpop.f32.mrf.mxu0
          %v6561 = vadd.f32 %v6448, %v6560
          %6562 = vmatmul.f32.gmra.mxu0 %v5349
          %v6563 = vpop.f32.mrf.mxu0
          %v6564 = vadd.f32 %v6451, %v6563
          %6565 = vmatmul.f32.gmra.mxu0 %v5358
          %v6566 = vpop.f32.mrf.mxu0
          %v6567 = vadd.f32 %v6454, %v6566
          %6568 = vmatmul.f32.gmra.mxu0 %v5367
          %v6569 = vpop.f32.mrf.mxu0
          %v6570 = vadd.f32 %v6457, %v6569
          %6571 = vmatmul.f32.gmra.mxu0 %v5376
          %v6572 = vpop.f32.mrf.mxu0
          %v6573 = vadd.f32 %v6460, %v6572
          %6574 = vmatmul.f32.gmra.mxu0 %v5385
          %v6575 = vpop.f32.mrf.mxu0
          %v6576 = vadd.f32 %v6463, %v6575
          %6577 = vmatmul.f32.gmra.mxu0 %v5394
          %v6578 = vpop.f32.mrf.mxu0
          %v6579 = vadd.f32 %v6466, %v6578
          %6580 = vmatmul.f32.gmra.mxu0 %v5403
          %v6581 = vpop.f32.mrf.mxu0
          %v6582 = vadd.f32 %v6469, %v6581
          %6583 = vmatmul.f32.gmra.mxu0 %v5412
          %v6584 = vpop.f32.mrf.mxu0
          %v6585 = vadd.f32 %v6472, %v6584
          %6586 = vmatmul.f32.gmra.mxu0 %v5421
          %v6587 = vpop.f32.mrf.mxu0
          %v6588 = vadd.f32 %v6475, %v6587
          %6589 = vmatmul.f32.gmra.mxu0 %v5430
          %v6590 = vpop.f32.mrf.mxu0
          %v6591 = vadd.f32 %v6478, %v6590
          %6592 = vdwg.mxu0
          %v6593 = vadd.f32 %v5045, %v6498
          %v6594 = vadd.f32 %v5048, %v6501
          %v6595 = vadd.f32 %v5051, %v6504
          %v6596 = vadd.f32 %v5054, %v6507
          %v6597 = vadd.f32 %v5057, %v6510
          %v6598 = vadd.f32 %v5060, %v6513
          %v6599 = vadd.f32 %v5063, %v6516
          %v6600 = vadd.f32 %v5066, %v6519
          %v6601 = vadd.f32 %v5069, %v6522
          %v6602 = vadd.f32 %v5072, %v6525
          %v6603 = vadd.f32 %v5075, %v6528
          %v6604 = vadd.f32 %v5078, %v6531
          %v6605 = vadd.f32 %v5081, %v6534
          %v6606 = vadd.f32 %v5084, %v6537
          %v6607 = vadd.f32 %v5087, %v6540
          %v6608 = vadd.f32 %v5090, %v6543
          %v6609 = vadd.f32 %v5093, %v6546
          %v6610 = vadd.f32 %v5096, %v6549
          %v6611 = vadd.f32 %v5099, %v6552
          %v6612 = vadd.f32 %v5102, %v6555
          %v6613 = vadd.f32 %v5105, %v6558
          %v6614 = vadd.f32 %v5108, %v6561
          %v6615 = vadd.f32 %v5111, %v6564
          %v6616 = vadd.f32 %v5114, %v6567
          %v6617 = vadd.f32 %v5117, %v6570
          %v6618 = vadd.f32 %v5120, %v6573
          %v6619 = vadd.f32 %v5123, %v6576
          %v6620 = vadd.f32 %v5126, %v6579
          %v6621 = vadd.f32 %v5129, %v6582
          %v6622 = vadd.f32 %v5132, %v6585
          %v6623 = vadd.f32 %v5135, %v6588
          %v6624 = vadd.f32 %v5138, %v6591
          %6625 = vst [vmem:[%s288] sm:$0xff] %v6593
          %6626 = vst [vmem:[%s288 + $0x8] sm:$0xff] %v6594
          %6627 = vst [vmem:[%s288 + $0x10] sm:$0xff] %v6595
          %6628 = vst [vmem:[%s288 + $0x18] sm:$0xff] %v6596
          %6629 = vst [vmem:[%s288 + $0x20] sm:$0xff] %v6597
          %6630 = vst [vmem:[%s288 + $0x28] sm:$0xff] %v6598
          %6631 = vst [vmem:[%s288 + $0x30] sm:$0xff] %v6599
          %6632 = vst [vmem:[%s288 + $0x38] sm:$0xff] %v6600
          %6633 = vst [vmem:[%s288 + $0x40] sm:$0xff] %v6601
          %6634 = vst [vmem:[%s288 + $0x48] sm:$0xff] %v6602
          %6635 = vst [vmem:[%s288 + $0x50] sm:$0xff] %v6603
          %6636 = vst [vmem:[%s288 + $0x58] sm:$0xff] %v6604
          %6637 = vst [vmem:[%s288 + $0x60] sm:$0xff] %v6605
          %6638 = vst [vmem:[%s288 + $0x68] sm:$0xff] %v6606
          %6639 = vst [vmem:[%s288 + $0x70] sm:$0xff] %v6607
          %6640 = vst [vmem:[%s288 + $0x78] sm:$0xff] %v6608
          %6641 = vst [vmem:[%s288 + $0x80] sm:$0xff] %v6609
          %6642 = vst [vmem:[%s288 + $0x88] sm:$0xff] %v6610
          %6643 = vst [vmem:[%s288 + $0x90] sm:$0xff] %v6611
          %6644 = vst [vmem:[%s288 + $0x98] sm:$0xff] %v6612
          %6645 = vst [vmem:[%s288 + $0xa0] sm:$0xff] %v6613
          %6646 = vst [vmem:[%s288 + $0xa8] sm:$0xff] %v6614
          %6647 = vst [vmem:[%s288 + $0xb0] sm:$0xff] %v6615
          %6648 = vst [vmem:[%s288 + $0xb8] sm:$0xff] %v6616
          %6649 = vst [vmem:[%s288 + $0xc0] sm:$0xff] %v6617
          %6650 = vst [vmem:[%s288 + $0xc8] sm:$0xff] %v6618
          %6651 = vst [vmem:[%s288 + $0xd0] sm:$0xff] %v6619
          %6652 = vst [vmem:[%s288 + $0xd8] sm:$0xff] %v6620
          %6653 = vst [vmem:[%s288 + $0xe0] sm:$0xff] %v6621
          %6654 = vst [vmem:[%s288 + $0xe8] sm:$0xff] %v6622
          %6655 = vst [vmem:[%s288 + $0xf0] sm:$0xff] %v6623
          %6656 = vst [vmem:[%s288 + $0xf8] sm:$0xff] %v6624
          %v6657 = vld [vmem:[%s294] sm:$0x1]
          %v6658 = vadd.f32 %v6593, %v6594
          %v6659 = vadd.f32 %v6658, %v6595
          %v6660 = vadd.f32 %v6659, %v6596
          %v6661 = vadd.f32 %v6660, %v6597
          %v6662 = vadd.f32 %v6661, %v6598
          %v6663 = vadd.f32 %v6662, %v6599
          %v6664 = vadd.f32 %v6663, %v6600
          %v6665 = vadd.f32 %v6664, %v6601
          %v6666 = vadd.f32 %v6665, %v6602
          %v6667 = vadd.f32 %v6666, %v6603
          %v6668 = vadd.f32 %v6667, %v6604
          %v6669 = vadd.f32 %v6668, %v6605
          %v6670 = vadd.f32 %v6669, %v6606
          %v6671 = vadd.f32 %v6670, %v6607
          %v6672 = vadd.f32 %v6671, %v6608
          %v6673 = vadd.f32 %v6672, %v6609
          %v6674 = vadd.f32 %v6673, %v6610
          %v6675 = vadd.f32 %v6674, %v6611
          %v6676 = vadd.f32 %v6675, %v6612
          %v6677 = vadd.f32 %v6676, %v6613
          %v6678 = vadd.f32 %v6677, %v6614
          %v6679 = vadd.f32 %v6678, %v6615
          %v6680 = vadd.f32 %v6679, %v6616
          %v6681 = vadd.f32 %v6680, %v6617
          %v6682 = vadd.f32 %v6681, %v6618
          %v6683 = vadd.f32 %v6682, %v6619
          %v6684 = vadd.f32 %v6683, %v6620
          %v6685 = vadd.f32 %v6684, %v6621
          %v6686 = vadd.f32 %v6685, %v6622
          %v6687 = vadd.f32 %v6686, %v6623
          %v6688 = vadd.f32 %v6687, %v6624
          %v6689 = vrot.slane %v6688, 4
          %v6690 = vadd.f32 %v6688, %v6689
          %v6691 = vrot.slane %v6690, 2
          %v6692 = vadd.f32 %v6690, %v6691
          %v6693 = vrot.slane %v6692, 1
          %v6694 = vadd.f32 %v6692, %v6693
          %v6695 = vadd.f32 %v6657, %v6694
          %6696 = vst [vmem:[%s294] sm:$0x1] %v6695
          %v6697 = vld [vmem:[%s300] sm:$0x1]
          %v6698 = vmul.f32 %v6593, %v6593
          %v6699 = vmul.f32 %v6594, %v6594
          %v6700 = vmul.f32 %v6595, %v6595
          %v6701 = vmul.f32 %v6596, %v6596
          %v6702 = vmul.f32 %v6597, %v6597
          %v6703 = vmul.f32 %v6598, %v6598
          %v6704 = vmul.f32 %v6599, %v6599
          %v6705 = vmul.f32 %v6600, %v6600
          %v6706 = vmul.f32 %v6601, %v6601
          %v6707 = vmul.f32 %v6602, %v6602
          %v6708 = vmul.f32 %v6603, %v6603
          %v6709 = vmul.f32 %v6604, %v6604
          %v6710 = vmul.f32 %v6605, %v6605
          %v6711 = vmul.f32 %v6606, %v6606
          %v6712 = vmul.f32 %v6607, %v6607
          %v6713 = vmul.f32 %v6608, %v6608
          %v6714 = vmul.f32 %v6609, %v6609
          %v6715 = vmul.f32 %v6610, %v6610
          %v6716 = vmul.f32 %v6611, %v6611
          %v6717 = vmul.f32 %v6612, %v6612
          %v6718 = vmul.f32 %v6613, %v6613
          %v6719 = vmul.f32 %v6614, %v6614
          %v6720 = vmul.f32 %v6615, %v6615
          %v6721 = vmul.f32 %v6616, %v6616
          %v6722 = vmul.f32 %v6617, %v6617
          %v6723 = vmul.f32 %v6618, %v6618
          %v6724 = vmul.f32 %v6619, %v6619
          %v6725 = vmul.f32 %v6620, %v6620
          %v6726 = vmul.f32 %v6621, %v6621
          %v6727 = vmul.f32 %v6622, %v6622
          %v6728 = vmul.f32 %v6623, %v6623
          %v6729 = vmul.f32 %v6624, %v6624
          %v6730 = vadd.f32 %v6698, %v6699
          %v6731 = vadd.f32 %v6730, %v6700
          %v6732 = vadd.f32 %v6731, %v6701
          %v6733 = vadd.f32 %v6732, %v6702
          %v6734 = vadd.f32 %v6733, %v6703
          %v6735 = vadd.f32 %v6734, %v6704
          %v6736 = vadd.f32 %v6735, %v6705
          %v6737 = vadd.f32 %v6736, %v6706
          %v6738 = vadd.f32 %v6737, %v6707
          %v6739 = vadd.f32 %v6738, %v6708
          %v6740 = vadd.f32 %v6739, %v6709
          %v6741 = vadd.f32 %v6740, %v6710
          %v6742 = vadd.f32 %v6741, %v6711
          %v6743 = vadd.f32 %v6742, %v6712
          %v6744 = vadd.f32 %v6743, %v6713
          %v6745 = vadd.f32 %v6744, %v6714
          %v6746 = vadd.f32 %v6745, %v6715
          %v6747 = vadd.f32 %v6746, %v6716
          %v6748 = vadd.f32 %v6747, %v6717
          %v6749 = vadd.f32 %v6748, %v6718
          %v6750 = vadd.f32 %v6749, %v6719
          %v6751 = vadd.f32 %v6750, %v6720
          %v6752 = vadd.f32 %v6751, %v6721
          %v6753 = vadd.f32 %v6752, %v6722
          %v6754 = vadd.f32 %v6753, %v6723
          %v6755 = vadd.f32 %v6754, %v6724
          %v6756 = vadd.f32 %v6755, %v6725
          %v6757 = vadd.f32 %v6756, %v6726
          %v6758 = vadd.f32 %v6757, %v6727
          %v6759 = vadd.f32 %v6758, %v6728
          %v6760 = vadd.f32 %v6759, %v6729
          %v6761 = vrot.slane %v6760, 4
          %v6762 = vadd.f32 %v6760, %v6761
          %v6763 = vrot.slane %v6762, 2
          %v6764 = vadd.f32 %v6762, %v6763
          %v6765 = vrot.slane %v6764, 1
          %v6766 = vadd.f32 %v6764, %v6765
          %v6767 = vadd.f32 %v6697, %v6766
          %6768 = vst [vmem:[%s300] sm:$0x1] %v6767
        $region56: #{tpu_custom_call.1} parent=35 // pred_fallthru
          _
        %s6769 = sand.u32 %s147, 1
        %s6770 = scalar_lea.sflag [#allocation5], %s6769
        %s6771 = sand.u32 %s147, 1
        %s6772 = smul.addr %s6771, 256
        %s6773 = scalar_lea.vmem [#allocation4], %s6772
        %s6774 = sand.u32 %s24, 1
        %s6775 = scalar_lea.sflag [#allocation7], %s6774
        %s6776 = sand.u32 %s173, 1
        %s6777 = scalar_lea.vmem [#allocation6], %s6776
        %s6778 = sand.u32 %s24, 1
        %s6779 = scalar_lea.sflag [#allocation7], %s6778
        %s6780 = sand.u32 %s199, 1
        %s6781 = scalar_lea.vmem [#allocation8], %s6780
        // Predicated region
        $region57: #{tpu_custom_call.1} parent=35 // pred_check
          %p6782 = pneg %p157
        $region58: #{tpu_custom_call.1} parent=35 // pred_check_branch
          %6784 = sbr.rel (%p6782) target = $region60
        $region59: #{tpu_custom_call.1} parent=35 // pred_region
          %s6785 = ssub.s32 %s29, 1
          %p6786 = scmp.gt.s32.totalorder %s6785, 0
          %s6787 = scalar_select %p6786, %s6785, 0
          %6789 = vsyncadd %s6770, 0
          %s6790 = smul.addr %s6787, 32
          %s6791 = smul.addr %s28, 256
          %s6792 = sadd.s32 %s6790, %s6791
          %s6793 = smul.addr %s6792, 8
          %s6794 = scalar_lea.hbm %s4, %s6793
          %s6795 = sshll.u32 %s6773, 4
          %s6796 = int_to_ptr.vmem [resolvable:$true] %s6795
          %s6797 = sshll.u32 %s6794, 4
          %s6798 = int_to_ptr.hbm [resolvable:$true] %s6797
          %6803 = dma.vmem_to_hbm [thread:$0]  %s6796, 4096, %s6798, %s6770, 128, 128, 8
        $region60: #{tpu_custom_call.1} parent=35 // pred_fallthru
          _
        // Predicated region
        $region61: #{tpu_custom_call.1} parent=35 // pred_check
          %p6804 = pneg %p183
        $region62: #{tpu_custom_call.1} parent=35 // pred_check_branch
          %6806 = sbr.rel (%p6804) target = $region64
        $region63: #{tpu_custom_call.1} parent=35 // pred_region
          %6808 = vsyncadd %s6775, 0
          %s6809 = scalar_lea.hbm %s5, %s28
          %s6811 = sshll.u32 %s6777, 4
          %s6812 = int_to_ptr.vmem [resolvable:$true] %s6811
          %s6813 = sshll.u32 %s6809, 4
          %s6814 = int_to_ptr.hbm [resolvable:$true] %s6813
          %6816 = dma.vmem_to_hbm [thread:$0]  %s6812, 16, %s6814, %s6775
        $region64: #{tpu_custom_call.1} parent=35 // pred_fallthru
          _
        // Predicated region
        $region65: #{tpu_custom_call.1} parent=35 // pred_check
          %p6817 = pneg %p209
        $region66: #{tpu_custom_call.1} parent=35 // pred_check_branch
          %6819 = sbr.rel (%p6817) target = $region68
        $region67: #{tpu_custom_call.1} parent=35 // pred_region
          %6821 = vsyncadd %s6779, 0
          %s6822 = scalar_lea.hbm %s6, %s28
          %s6824 = sshll.u32 %s6781, 4
          %s6825 = int_to_ptr.vmem [resolvable:$true] %s6824
          %s6826 = sshll.u32 %s6822, 4
          %s6827 = int_to_ptr.hbm [resolvable:$true] %s6826
          %6829 = dma.vmem_to_hbm [thread:$0]  %s6825, 16, %s6827, %s6779
        $region68: #{tpu_custom_call.1} parent=35 // pred_fallthru
          _
      $region36: #{tpu_custom_call.1} parent=5 // pred_fallthru
        _
      %p6830 = scmp.le.s32.totalorder 2, %s19
      // Predicated region
      $region69: #{tpu_custom_call.1} parent=5 // pred_check
        %p6831 = pneg %p6830
      $region70: #{tpu_custom_call.1} parent=5 // pred_check_branch
        %6833 = sbr.rel (%p6831) target = $region72
      $region71: #{tpu_custom_call.1} parent=5 // pred_region
        %s6834 = ssub.s32 %s19, 2
        // Predicated region
        $region73: #{tpu_custom_call.1} parent=71 // pred_check
          %p6835 = pneg %p163
        $region74: #{tpu_custom_call.1} parent=71 // pred_check_branch
          %6837 = sbr.rel (%p6835) target = $region76
        $region75: #{tpu_custom_call.1} parent=71 // pred_region
          %s6838 = sand.u32 %s148, 1
          %s6839 = scalar_lea.sflag [#allocation5], %s6838
          %s6840 = sand.u32 %s148, 1
          %s6841 = smul.addr %s6840, 256
          %s6842 = scalar_lea.vmem [#allocation4], %s6841
          %6844 = dma.done %s6839, 4096
        $region76: #{tpu_custom_call.1} parent=71 // pred_fallthru
          _
        // Predicated region
        $region77: #{tpu_custom_call.1} parent=71 // pred_check
          %p6845 = pneg %p189
        $region78: #{tpu_custom_call.1} parent=71 // pred_check_branch
          %6847 = sbr.rel (%p6845) target = $region80
        $region79: #{tpu_custom_call.1} parent=71 // pred_region
          %s6848 = sand.u32 %s25, 1
          %s6849 = scalar_lea.sflag [#allocation7], %s6848
          %s6850 = sand.u32 %s174, 1
          %s6851 = scalar_lea.vmem [#allocation6], %s6850
          %6853 = dma.done %s6849, 16
        $region80: #{tpu_custom_call.1} parent=71 // pred_fallthru
          _
        // Predicated region
        $region81: #{tpu_custom_call.1} parent=71 // pred_check
          %p6854 = pneg %p215
        $region82: #{tpu_custom_call.1} parent=71 // pred_check_branch
          %6856 = sbr.rel (%p6854) target = $region84
        $region83: #{tpu_custom_call.1} parent=71 // pred_region
          %s6857 = sand.u32 %s25, 1
          %s6858 = scalar_lea.sflag [#allocation7], %s6857
          %s6859 = sand.u32 %s200, 1
          %s6860 = scalar_lea.vmem [#allocation8], %s6859
          %6862 = dma.done %s6858, 16
        $region84: #{tpu_custom_call.1} parent=71 // pred_fallthru
          _
      $region72: #{tpu_custom_call.1} parent=5 // pred_fallthru
        _
    $region6: #{tpu_custom_call.1} parent=1 // loop_footer
      %s23 = sadd.s32 1, %s19
    $region7: #{tpu_custom_call.1} parent=1 // loop_footer_branch
      %18 = sbr.rel target = $region3
    $region8: #{tpu_custom_call.1} parent=1 // loop_exit
      _
    %6863 = vsyncpa [#allocation5], 1
    %s6864 = scalar_lea.sflag [#allocation5], 1
    %6865 = vsyncpa %s6864, 1
    %6866 = vsyncpa [#allocation7], 1
    %s6867 = scalar_lea.sflag [#allocation7], 1
    %6868 = vsyncpa %s6867, 1

</llo_original>
